<compile_context>
chip_gen: v7x
topology: tpu7x:2x2x1
jax: 0.10.0
libtpu: 0.0.40
codegen_flags: <defaults>
</compile_context>

<pallas_src>
import jax
import jax.numpy as jnp
from jax import lax
from jax.experimental import pallas as pl
from jax.experimental.pallas import tpu as pltpu


# ---------------------------------------------------------------------------
# Shared conv helper: 3x3 conv of a zero-padded bf16 activation scratch.
# ---------------------------------------------------------------------------
def _conv3x3_from_padded(act_ref, w_ref, m, h, w, c, g, col_refs, *, batched):
    """Returns the (m, g) f32 conv result.

    act_ref: zero-padded activation scratch, (NB, h+2, w+2, c) if batched
             else (h+2, w+2, c), bf16.
    w_ref:   (9*c, g) bf16 weights, rows ordered (kh, kw, c).
    """
    def tap(kh, kw):
        if batched:
            return act_ref[:, kh:kh + h, kw:kw + w, :].reshape(m, c)
        return act_ref[kh:kh + h, kw:kw + w, :].reshape(m, c)

    if c >= 128:
        # Large C: 9 accumulated MXU matmuls straight from the activation
        # scratch -- no im2col materialization, no 9x VMEM store traffic.
        acc = jnp.zeros((m, g), jnp.float32)
        for kh in range(3):
            for kw in range(3):
                k = kh * 3 + kw
                acc = acc + jnp.dot(tap(kh, kw), w_ref[k * c:(k + 1) * c, :],
                                    preferred_element_type=jnp.float32)
        return acc

    # Small C: one big-K (K = 9C) matmul via a small im2col scratch so the
    # MXU gets a single deep pass instead of 9 shallow (K = C) ones.
    col_ref = col_refs[0]
    for kh in range(3):
        for kw in range(3):
            k = kh * 3 + kw
            col_ref[:, k * c:(k + 1) * c] = tap(kh, kw)
    return jnp.dot(col_ref[...], w_ref[...], preferred_element_type=jnp.float32)


# ---------------------------------------------------------------------------
# Kernel A (preferred): whole image(s) per grid step, no halos.
# ---------------------------------------------------------------------------
def _single_layer_conv_image_kernel(x_ref, scale_ref, bias_ref, w_ref,
                                    out_ref, act_ref, *col_refs):
    # x_ref:     (NB, H, W, C)      NB whole images (input dtype)
    # scale_ref: (1, C) f32         folded BN scale = gamma / sqrt(var + eps)
    # bias_ref:  (1, C) f32         folded BN bias  = beta - mean * scale
    # w_ref:     (9*C, G) bf16      conv weights, rows ordered (kh, kw, c)
    # out_ref:   (NB, H, W, G)      conv result only (lane-dense at offset 0)
    # act_ref:   (NB, H+2, W+2, C)  bf16 scratch: zero-padded activation
    # col_refs:  optional (NB*H*W, 9C) bf16 im2col scratch (only when C<128)
    nb, h, w, c = x_ref.shape
    g = out_ref.shape[-1]
    mxu = act_ref.dtype
    scale = scale_ref[0]
    bias = bias_ref[0]

    # Zero only the 1-pixel border.  Done every step (cheap) instead of being
    # hoisted to "first iteration": scratch persistence across grid steps is
    # not safe when the (parallel) batch axis is sharded across cores.
    act_ref[:, 0:1, :, :] = jnp.zeros((nb, 1, w + 2, c), mxu)
    act_ref[:, h + 1:h + 2, :, :] = jnp.zeros((nb, 1, w + 2, c), mxu)
    act_ref[:, :, 0:1, :] = jnp.zeros((nb, h + 2, 1, c), mxu)
    act_ref[:, :, w + 1:w + 2, :] = jnp.zeros((nb, h + 2, 1, c), mxu)

    # Inference BN + ReLU in f32 on the VPU; single interior store as bf16.
    act = jnp.maximum(x_ref[...].astype(jnp.float32) * scale + bias, 0.0)
    act_ref[:, 1:h + 1, 1:w + 1, :] = act.astype(mxu)

    m = nb * h * w
    conv = _conv3x3_from_padded(act_ref, w_ref, m, h, w, c, g, col_refs,
                                batched=True)
    out_ref[...] = conv.reshape(nb, h, w, g).astype(out_ref.dtype)


# ---------------------------------------------------------------------------
# Kernel B (fallback): row tiles + halo rows for images too big for VMEM.
# ---------------------------------------------------------------------------
def _single_layer_conv_rows_kernel(x_ref, xtop_ref, xbot_ref, scale_ref,
                                   bias_ref, w_ref, out_ref, act_ref,
                                   *col_refs):
    # x_ref:    (1, TH, W, C)   current row tile
    # xtop_ref: (1, 1, W, C)    row just above the tile (clamped at edge)
    # xbot_ref: (1, 1, W, C)    row just below the tile (clamped at edge)
    # out_ref:  (1, TH, W, G)   conv result only
    # act_ref:  (TH+2, W+2, C)  bf16 scratch: zero-padded activation
    hi = pl.program_id(1)
    n_h = pl.num_programs(1)
    _, th, w, c = x_ref.shape
    g = out_ref.shape[-1]
    mxu = act_ref.dtype
    scale = scale_ref[0]
    bias = bias_ref[0]

    # Left/right zero columns: unconditional (megacore-safe; see kernel A).
    act_ref[:, 0:1, :] = jnp.zeros((th + 2, 1, c), mxu)
    act_ref[:, w + 1:w + 2, :] = jnp.zeros((th + 2, 1, c), mxu)

    # Interior: BN + ReLU in f32, stored once as bf16.
    act = jnp.maximum(x_ref[0].astype(jnp.float32) * scale + bias, 0.0)
    act_ref[1:th + 1, 1:w + 1, :] = act.astype(mxu)

    # Top halo row: neighbouring row's activation; zeros only at the image
    # edge (zero-row store is gated, not executed every step).
    @pl.when(hi > 0)
    def _():
        top = jnp.maximum(xtop_ref[0, 0].astype(jnp.float32) * scale + bias,
                          0.0)
        act_ref[0:1, 1:w + 1, :] = top.astype(mxu)[None]

    @pl.when(hi == 0)
    def _():
        act_ref[0:1, :, :] = jnp.zeros((1, w + 2, c), mxu)

    # Bottom halo row.
    @pl.when(hi < n_h - 1)
    def _():
        bot = jnp.maximum(xbot_ref[0, 0].astype(jnp.float32) * scale + bias,
                          0.0)
        act_ref[th + 1:th + 2, 1:w + 1, :] = bot.astype(mxu)[None]

    @pl.when(hi == n_h - 1)
    def _():
        act_ref[th + 1:th + 2, :, :] = jnp.zeros((1, w + 2, c), mxu)

    m = th * w
    conv = _conv3x3_from_padded(act_ref, w_ref, m, th, w, c, g, col_refs,
                                batched=False)
    out_ref[0, :, :, :] = conv.reshape(th, w, g).astype(out_ref.dtype)


# ---------------------------------------------------------------------------
# VMEM budgeting.
# ---------------------------------------------------------------------------
def _vmem_limits():
    """(compiler vmem limit, per-step working-set budget) in bytes.

    v5e/v6e (128 MiB physical): limit 96 MiB, working set <= ~56 MiB.
    v7x      (64 MiB physical): limit 48 MiB, working set <= ~24 MiB.
    """
    phys = 64 << 20
    try:
        phys = int(getattr(pltpu.get_tpu_info(), "vmem_capacity_bytes", phys))
    except Exception:
        pass
    limit = min(phys * 3 // 4, 100 << 20)
    budget = max(min(phys // 2 - (8 << 20), 88 << 20), 4 << 20)
    return limit, budget


def _image_step_bytes(nb, h, w, c, g, xbytes, obytes, use_col):
    b = 2 * nb * h * w * c * xbytes           # x block, double-buffered
    b += 2 * nb * h * w * g * obytes          # conv out block, double-buffered
    b += nb * (h + 2) * (w + 2) * c * 2       # padded-activation scratch bf16
    if use_col:
        b += nb * h * w * 9 * c * 2           # im2col scratch bf16 (C < 128)
    b += 2 * (2 * c * 4 + 9 * c * g * 2)      # scale/bias/weight blocks
    return b


def _row_step_bytes(th, w, c, g, xbytes, obytes, use_col):
    b = 2 * (th + 2) * w * c * xbytes         # x tile + 2 halo rows
    b += 2 * th * w * g * obytes
    b += (th + 2) * (w + 2) * c * 2
    if use_col:
        b += th * w * 9 * c * 2
    b += 2 * (2 * c * 4 + 9 * c * g * 2)
    return b


# ---------------------------------------------------------------------------
# Entry points.
# ---------------------------------------------------------------------------
def single_layer_conv_nhwc(x_nhwc, gamma, beta, running_mean, running_var,
                           conv_w_oihw, *, eps=1e-5, force_row_tile_h=None):
    """Conv3x3(ReLU(BN(x))) for NHWC x -> (N, H, W, G), lane-dense.

    Model-level building block: the kernel only READS the C input channels
    and only WRITES the G new channels (no passthrough re-write).
    """
    N, H, W, C = x_nhwc.shape
    G = conv_w_oihw.shape[0]
    out_dtype = x_nhwc.dtype
    xbytes = jnp.dtype(x_nhwc.dtype).itemsize
    obytes = jnp.dtype(out_dtype).itemsize
    use_col = C < 128  # big-K im2col only pays off for small C

    inv_std = lax.rsqrt(running_var.astype(jnp.float32) + eps)
    scale = (gamma.astype(jnp.float32) * inv_std).reshape(1, C)
    bias = (beta.astype(jnp.float32)
            - running_mean.astype(jnp.float32) * gamma.astype(jnp.float32)
            * inv_std).reshape(1, C)
    # OIHW -> HWIO -> (9*C, G); row order (kh, kw, c) matches the im2col /
    # per-tap slicing. bf16 operands for the MXU, accumulation stays f32.
    # (For best MXU fill pick C so that 9*C is a multiple of 256 on v6e/v7x,
    #  128 on v5e.)
    w2 = (jnp.transpose(conv_w_oihw, (2, 3, 1, 0))
          .reshape(9 * C, G).astype(jnp.bfloat16))

    vmem_limit, budget = _vmem_limits()

    # ---- preferred path: whole image(s) per grid step, no halos ----------
    nb = 0
    if force_row_tile_h is None:
        for cand in range(min(N, 8), 0, -1):
            if N % cand == 0 and _image_step_bytes(
                    cand, H, W, C, G, xbytes, obytes, use_col) <= budget:
                nb = cand
                break

    if nb > 0:
        scratch = [pltpu.VMEM((nb, H + 2, W + 2, C), jnp.bfloat16)]
        if use_col:
            scratch.append(pltpu.VMEM((nb * H * W, 9 * C), jnp.bfloat16))
        return pl.pallas_call(
            _single_layer_conv_image_kernel,
            out_shape=jax.ShapeDtypeStruct((N, H, W, G), out_dtype),
            grid_spec=pltpu.PrefetchScalarGridSpec(
                num_scalar_prefetch=0,
                grid=(N // nb,),
                in_specs=[
                    pl.BlockSpec((nb, H, W, C), lambda n: (n, 0, 0, 0)),
                    pl.BlockSpec((1, C), lambda n: (0, 0)),
                    pl.BlockSpec((1, C), lambda n: (0, 0)),
                    pl.BlockSpec((9 * C, G), lambda n: (0, 0)),
                ],
                out_specs=pl.BlockSpec((nb, H, W, G),
                                       lambda n: (n, 0, 0, 0)),
                scratch_shapes=scratch,
            ),
            compiler_params=pltpu.CompilerParams(
                dimension_semantics=("parallel",),
                vmem_limit_bytes=vmem_limit),
        )(x_nhwc, scale, bias, w2)

    # ---- fallback: row tiles + halo rows (large images / large C) --------
    if force_row_tile_h is not None:
        TH = int(force_row_tile_h)
        assert H % TH == 0, "force_row_tile_h must divide H"
    else:
        divs = [d for d in range(1, H + 1) if H % d == 0]
        fitting = [d for d in divs
                   if _row_step_bytes(d, W, C, G, xbytes, obytes, use_col)
                   <= budget]
        TH = max(fitting) if fitting else min(divs)
    n_h = H // TH

    scratch = [pltpu.VMEM((TH + 2, W + 2, C), jnp.bfloat16)]
    if use_col:
        scratch.append(pltpu.VMEM((TH * W, 9 * C), jnp.bfloat16))
    return pl.pallas_call(
        _single_layer_conv_rows_kernel,
        out_shape=jax.ShapeDtypeStruct((N, H, W, G), out_dtype),
        grid_spec=pltpu.PrefetchScalarGridSpec(
            num_scalar_prefetch=0,
            grid=(N, n_h),
            in_specs=[
                pl.BlockSpec((1, TH, W, C), lambda n, h: (n, h, 0, 0)),
                pl.BlockSpec(
                    (1, 1, W, C),
                    lambda n, h: (n, jnp.maximum(h * TH - 1, 0), 0, 0)),
                pl.BlockSpec(
                    (1, 1, W, C),
                    lambda n, h: (n, jnp.minimum(h * TH + TH, H - 1), 0, 0)),
                pl.BlockSpec((1, C), lambda n, h: (0, 0)),
                pl.BlockSpec((1, C), lambda n, h: (0, 0)),
                pl.BlockSpec((9 * C, G), lambda n, h: (0, 0)),
            ],
            out_specs=pl.BlockSpec((1, TH, W, G), lambda n, h: (n, h, 0, 0)),
            scratch_shapes=scratch,
        ),
        compiler_params=pltpu.CompilerParams(
            dimension_semantics=("parallel", "parallel"),
            vmem_limit_bytes=vmem_limit),
    )(x_nhwc, x_nhwc, x_nhwc, scale, bias, w2)


def single_layer_nhwc(x_nhwc, gamma, beta, running_mean, running_var,
                      conv_w_oihw, *, eps=1e-5, force_row_tile_h=None):
    """NHWC module forward: concat([x, Conv3x3(ReLU(BN(x)))], channel)."""
    conv = single_layer_conv_nhwc(x_nhwc, gamma, beta, running_mean,
                                  running_var, conv_w_oihw, eps=eps,
                                  force_row_tile_h=force_row_tile_h)
    # TODO(synk): at the model level, pre-allocate the full dense-block
    # (N, H, W, C_total) buffer once, alias it via input_output_aliases and
    # write each layer's G channels at its channel offset, instead of
    # re-materializing concat([x, conv]) per layer (the passthrough channels
    # are ~C/(2C+G) of all HBM traffic of this memory-bound layer).
    return jnp.concatenate([x_nhwc, conv], axis=-1)


def single_layer(x_nchw, gamma, beta, running_mean, running_var, conv_w_oihw,
                 eps=1e-5, force_row_tile_h=None):
    """PyTorch-interface wrapper: NCHW in / NCHW out.

    NOTE: the NCHW<->NHWC transposes are full HBM round-trips. Real models
    should stay NHWC and call single_layer_conv_nhwc / single_layer_nhwc.
    """
    x = jnp.transpose(x_nchw, (0, 2, 3, 1))
    out = single_layer_nhwc(x, gamma, beta, running_mean, running_var,
                            conv_w_oihw, eps=eps,
                            force_row_tile_h=force_row_tile_h)
    return jnp.transpose(out, (0, 3, 1, 2))


def reference(x, gamma, beta, mean, var, w, eps=1e-5):
    xn = (x - mean[None, :, None, None]) / jnp.sqrt(
        var[None, :, None, None] + eps)
    xn = xn * gamma[None, :, None, None] + beta[None, :, None, None]
    act = jnp.maximum(xn, 0.0)
    conv = lax.conv_general_dilated(
        act, w, window_strides=(1, 1), padding=((1, 1), (1, 1)),
        dimension_numbers=("NCHW", "OIHW", "NCHW"))
    return jnp.concatenate([x, conv], axis=1)


if __name__ == "__main__":
    N, C, H, W = 2, 4, 16, 16       # nChannels = 4
    G = 8                           # growthRate = 8

    key = jax.random.PRNGKey(0)
    kx, kg, kb, km, kv, kw = jax.random.split(key, 6)

    x = jax.random.normal(kx, (N, C, H, W), jnp.float32)
    gamma = jax.random.normal(kg, (C,), jnp.float32) * 0.1 + 1.0
    beta = jax.random.normal(kb, (C,), jnp.float32) * 0.1
    running_mean = jax.random.normal(km, (C,), jnp.float32) * 0.1
    running_var = jax.random.uniform(kv, (C,), jnp.float32, 0.5, 1.5)
    conv_w = jax.random.normal(kw, (G, C, 3, 3), jnp.float32) * 0.1

    ref = reference(x, gamma, beta, running_mean, running_var, conv_w)

    # Path A: whole-image (batched) kernel — the default for this size.
    out = single_layer(x, gamma, beta, running_mean, running_var, conv_w)
    out = jax.block_until_ready(out)
    assert out.shape == (N, C + G, H, W), out.shape
    # Passthrough channels must be bit-exact.
    assert bool(jnp.array_equal(out[:, :C], x))
    # Conv channels: bf16 MXU operands with f32 accumulation -> bf16 tol.
    max_err = float(jnp.max(jnp.abs(out[:, C:] - ref[:, C:])))
    assert jnp.allclose(out[:, C:], ref[:, C:], atol=2e-2, rtol=2e-2), max_err

    # Path B: row-tiled halo fallback, exercised explicitly.
    x_nhwc = jnp.transpose(x, (0, 2, 3, 1))
    ref_nhwc = jnp.transpose(ref, (0, 2, 3, 1))
    out2 = single_layer_nhwc(x_nhwc, gamma, beta, running_mean, running_var,
                             conv_w, force_row_tile_h=8)
    out2 = jax.block_until_ready(out2)
    assert out2.shape == (N, H, W, C + G), out2.shape
    assert bool(jnp.array_equal(out2[..., :C], x_nhwc))
    max_err2 = float(jnp.max(jnp.abs(out2[..., C:] - ref_nhwc[..., C:])))
    assert jnp.allclose(out2[..., C:], ref_nhwc[..., C:],
                        atol=2e-2, rtol=2e-2), max_err2

    print("KERNEL_OK")
</pallas_src>

<mosaic_0001>
module attributes {stable_mosaic.version = 11 : i64} {
  func.func @_single_layer_conv_image_kernel(%arg0: i32, %arg1: memref<2x16x16x4xf32, #tpu.memory_space<vmem>>, %arg2: memref<1x4xf32, #tpu.memory_space<vmem>>, %arg3: memref<1x4xf32, #tpu.memory_space<vmem>>, %arg4: memref<36x8xbf16, #tpu.memory_space<vmem>>, %arg5: memref<2x16x16x8xf32, #tpu.memory_space<vmem>>, %arg6: memref<2x18x18x4xbf16, #tpu.memory_space<vmem>>, %arg7: memref<512x36xbf16, #tpu.memory_space<vmem>>) attributes {dimension_semantics = [#tpu.dimension_semantics<parallel>], iteration_bounds = array<i64: 1>, scalar_prefetch = 0 : i64, scratch_operands = 2 : i64, tpu.core_type = #tpu.core_type<tc>, window_params = [{transform_indices = @transform_0, window_bounds = array<i64: 2, 16, 16, 4>}, {pipeline_mode = #tpu.pipeline_mode<synchronous>, transform_indices = @transform_1, window_bounds = array<i64: 1, 4>}, {pipeline_mode = #tpu.pipeline_mode<synchronous>, transform_indices = @transform_2, window_bounds = array<i64: 1, 4>}, {pipeline_mode = #tpu.pipeline_mode<synchronous>, transform_indices = @transform_3, window_bounds = array<i64: 36, 8>}, {transform_indices = @transform_4, window_bounds = array<i64: 2, 16, 16, 8>}]} {
    %c0 = arith.constant 0 : index
    %c0_0 = arith.constant 0 : index
    %0 = vector.load %arg2[%c0, %c0_0] : memref<1x4xf32, #tpu.memory_space<vmem>>, vector<1x4xf32>
    %1 = vector.shape_cast %0 : vector<1x4xf32> to vector<4xf32>
    %c0_1 = arith.constant 0 : index
    %c0_2 = arith.constant 0 : index
    %2 = vector.load %arg3[%c0_1, %c0_2] : memref<1x4xf32, #tpu.memory_space<vmem>>, vector<1x4xf32>
    %3 = vector.shape_cast %2 : vector<1x4xf32> to vector<4xf32>
    %cst = arith.constant 0.000000e+00 : bf16
    %4 = vector.broadcast %cst : bf16 to vector<2x1x18x4xbf16>
    %c0_3 = arith.constant 0 : index
    %c0_4 = arith.constant 0 : index
    %c0_5 = arith.constant 0 : index
    %c0_6 = arith.constant 0 : index
    %5 = vector.load %arg6[%c0_3, %c0_4, %c0_5, %c0_6] : memref<2x18x18x4xbf16, #tpu.memory_space<vmem>>, vector<2x1x18x4xbf16>
    tpu.vector_store %arg6[%c0_3, %c0_4, %c0_5, %c0_6], %4 {strides = array<i32>} : memref<2x18x18x4xbf16, #tpu.memory_space<vmem>>, vector<2x1x18x4xbf16>,
    %cst_7 = arith.constant 0.000000e+00 : bf16
    %6 = vector.broadcast %cst_7 : bf16 to vector<2x1x18x4xbf16>
    %c0_8 = arith.constant 0 : index
    %c17 = arith.constant 17 : index
    %c0_9 = arith.constant 0 : index
    %c0_10 = arith.constant 0 : index
    %7 = vector.load %arg6[%c0_8, %c17, %c0_9, %c0_10] : memref<2x18x18x4xbf16, #tpu.memory_space<vmem>>, vector<2x1x18x4xbf16>
    tpu.vector_store %arg6[%c0_8, %c17, %c0_9, %c0_10], %6 {strides = array<i32>} : memref<2x18x18x4xbf16, #tpu.memory_space<vmem>>, vector<2x1x18x4xbf16>,
    %cst_11 = arith.constant 0.000000e+00 : bf16
    %8 = vector.broadcast %cst_11 : bf16 to vector<2x18x1x4xbf16>
    %c0_12 = arith.constant 0 : index
    %c0_13 = arith.constant 0 : index
    %c0_14 = arith.constant 0 : index
    %c0_15 = arith.constant 0 : index
    %9 = vector.load %arg6[%c0_12, %c0_13, %c0_14, %c0_15] : memref<2x18x18x4xbf16, #tpu.memory_space<vmem>>, vector<2x18x1x4xbf16>
    tpu.vector_store %arg6[%c0_12, %c0_13, %c0_14, %c0_15], %8 {strides = array<i32>} : memref<2x18x18x4xbf16, #tpu.memory_space<vmem>>, vector<2x18x1x4xbf16>,
    %cst_16 = arith.constant 0.000000e+00 : bf16
    %10 = vector.broadcast %cst_16 : bf16 to vector<2x18x1x4xbf16>
    %c0_17 = arith.constant 0 : index
    %c0_18 = arith.constant 0 : index
    %c17_19 = arith.constant 17 : index
    %c0_20 = arith.constant 0 : index
    %11 = vector.load %arg6[%c0_17, %c0_18, %c17_19, %c0_20] : memref<2x18x18x4xbf16, #tpu.memory_space<vmem>>, vector<2x18x1x4xbf16>
    tpu.vector_store %arg6[%c0_17, %c0_18, %c17_19, %c0_20], %10 {strides = array<i32>} : memref<2x18x18x4xbf16, #tpu.memory_space<vmem>>, vector<2x18x1x4xbf16>,
    %c0_21 = arith.constant 0 : index
    %c0_22 = arith.constant 0 : index
    %c0_23 = arith.constant 0 : index
    %c0_24 = arith.constant 0 : index
    %12 = vector.load %arg1[%c0_21, %c0_22, %c0_23, %c0_24] : memref<2x16x16x4xf32, #tpu.memory_space<vmem>>, vector<2x16x16x4xf32>
    %13 = vector.shape_cast %1 : vector<4xf32> to vector<1x1x1x4xf32>
    %14 = vector.broadcast %13 : vector<1x1x1x4xf32> to vector<2x16x16x4xf32>
    %15 = arith.mulf %12, %14 : vector<2x16x16x4xf32>
    %16 = vector.shape_cast %3 : vector<4xf32> to vector<1x1x1x4xf32>
    %17 = vector.broadcast %16 : vector<1x1x1x4xf32> to vector<2x16x16x4xf32>
    %18 = arith.addf %15, %17 : vector<2x16x16x4xf32>
    %cst_25 = arith.constant 0.000000e+00 : f32
    %19 = vector.broadcast %cst_25 : f32 to vector<2x16x16x4xf32>
    %20 = arith.maximumf %18, %19 : vector<2x16x16x4xf32>
    %21 = arith.truncf %20 : vector<2x16x16x4xf32> to vector<2x16x16x4xbf16>
    %c0_26 = arith.constant 0 : index
    %c1 = arith.constant 1 : index
    %c1_27 = arith.constant 1 : index
    %c0_28 = arith.constant 0 : index
    %22 = vector.load %arg6[%c0_26, %c1, %c1_27, %c0_28] : memref<2x18x18x4xbf16, #tpu.memory_space<vmem>>, vector<2x16x16x4xbf16>
    tpu.vector_store %arg6[%c0_26, %c1, %c1_27, %c0_28], %21 {strides = array<i32>} : memref<2x18x18x4xbf16, #tpu.memory_space<vmem>>, vector<2x16x16x4xbf16>,
    %c0_29 = arith.constant 0 : index
    %c0_30 = arith.constant 0 : index
    %c0_31 = arith.constant 0 : index
    %c0_32 = arith.constant 0 : index
    %23 = vector.load %arg6[%c0_29, %c0_30, %c0_31, %c0_32] : memref<2x18x18x4xbf16, #tpu.memory_space<vmem>>, vector<2x16x16x4xbf16>
    %24 = vector.shape_cast %23 : vector<2x16x16x4xbf16> to vector<512x4xbf16>
    %c0_33 = arith.constant 0 : index
    %c0_34 = arith.constant 0 : index
    %25 = vector.load %arg7[%c0_33, %c0_34] : memref<512x36xbf16, #tpu.memory_space<vmem>>, vector<512x4xbf16>
    tpu.vector_store %arg7[%c0_33, %c0_34], %24 {strides = array<i32>} : memref<512x36xbf16, #tpu.memory_space<vmem>>, vector<512x4xbf16>,
    %c0_35 = arith.constant 0 : index
    %c0_36 = arith.constant 0 : index
    %c1_37 = arith.constant 1 : index
    %c0_38 = arith.constant 0 : index
    %26 = vector.load %arg6[%c0_35, %c0_36, %c1_37, %c0_38] : memref<2x18x18x4xbf16, #tpu.memory_space<vmem>>, vector<2x16x16x4xbf16>
    %27 = vector.shape_cast %26 : vector<2x16x16x4xbf16> to vector<512x4xbf16>
    %c0_39 = arith.constant 0 : index
    %c4 = arith.constant 4 : index
    %28 = vector.load %arg7[%c0_39, %c4] : memref<512x36xbf16, #tpu.memory_space<vmem>>, vector<512x4xbf16>
    tpu.vector_store %arg7[%c0_39, %c4], %27 {strides = array<i32>} : memref<512x36xbf16, #tpu.memory_space<vmem>>, vector<512x4xbf16>,
    %c0_40 = arith.constant 0 : index
    %c0_41 = arith.constant 0 : index
    %c2 = arith.constant 2 : index
    %c0_42 = arith.constant 0 : index
    %29 = vector.load %arg6[%c0_40, %c0_41, %c2, %c0_42] : memref<2x18x18x4xbf16, #tpu.memory_space<vmem>>, vector<2x16x16x4xbf16>
    %30 = vector.shape_cast %29 : vector<2x16x16x4xbf16> to vector<512x4xbf16>
    %c0_43 = arith.constant 0 : index
    %c8 = arith.constant 8 : index
    %31 = vector.load %arg7[%c0_43, %c8] : memref<512x36xbf16, #tpu.memory_space<vmem>>, vector<512x4xbf16>
    tpu.vector_store %arg7[%c0_43, %c8], %30 {strides = array<i32>} : memref<512x36xbf16, #tpu.memory_space<vmem>>, vector<512x4xbf16>,
    %c0_44 = arith.constant 0 : index
    %c1_45 = arith.constant 1 : index
    %c0_46 = arith.constant 0 : index
    %c0_47 = arith.constant 0 : index
    %32 = vector.load %arg6[%c0_44, %c1_45, %c0_46, %c0_47] : memref<2x18x18x4xbf16, #tpu.memory_space<vmem>>, vector<2x16x16x4xbf16>
    %33 = vector.shape_cast %32 : vector<2x16x16x4xbf16> to vector<512x4xbf16>
    %c0_48 = arith.constant 0 : index
    %c12 = arith.constant 12 : index
    %34 = vector.load %arg7[%c0_48, %c12] : memref<512x36xbf16, #tpu.memory_space<vmem>>, vector<512x4xbf16>
    tpu.vector_store %arg7[%c0_48, %c12], %33 {strides = array<i32>} : memref<512x36xbf16, #tpu.memory_space<vmem>>, vector<512x4xbf16>,
    %c0_49 = arith.constant 0 : index
    %c1_50 = arith.constant 1 : index
    %c1_51 = arith.constant 1 : index
    %c0_52 = arith.constant 0 : index
    %35 = vector.load %arg6[%c0_49, %c1_50, %c1_51, %c0_52] : memref<2x18x18x4xbf16, #tpu.memory_space<vmem>>, vector<2x16x16x4xbf16>
    %36 = vector.shape_cast %35 : vector<2x16x16x4xbf16> to vector<512x4xbf16>
    %c0_53 = arith.constant 0 : index
    %c16 = arith.constant 16 : index
    %37 = vector.load %arg7[%c0_53, %c16] : memref<512x36xbf16, #tpu.memory_space<vmem>>, vector<512x4xbf16>
    tpu.vector_store %arg7[%c0_53, %c16], %36 {strides = array<i32>} : memref<512x36xbf16, #tpu.memory_space<vmem>>, vector<512x4xbf16>,
    %c0_54 = arith.constant 0 : index
    %c1_55 = arith.constant 1 : index
    %c2_56 = arith.constant 2 : index
    %c0_57 = arith.constant 0 : index
    %38 = vector.load %arg6[%c0_54, %c1_55, %c2_56, %c0_57] : memref<2x18x18x4xbf16, #tpu.memory_space<vmem>>, vector<2x16x16x4xbf16>
    %39 = vector.shape_cast %38 : vector<2x16x16x4xbf16> to vector<512x4xbf16>
    %c0_58 = arith.constant 0 : index
    %c20 = arith.constant 20 : index
    %40 = vector.load %arg7[%c0_58, %c20] : memref<512x36xbf16, #tpu.memory_space<vmem>>, vector<512x4xbf16>
    tpu.vector_store %arg7[%c0_58, %c20], %39 {strides = array<i32>} : memref<512x36xbf16, #tpu.memory_space<vmem>>, vector<512x4xbf16>,
    %c0_59 = arith.constant 0 : index
    %c2_60 = arith.constant 2 : index
    %c0_61 = arith.constant 0 : index
    %c0_62 = arith.constant 0 : index
    %41 = vector.load %arg6[%c0_59, %c2_60, %c0_61, %c0_62] : memref<2x18x18x4xbf16, #tpu.memory_space<vmem>>, vector<2x16x16x4xbf16>
    %42 = vector.shape_cast %41 : vector<2x16x16x4xbf16> to vector<512x4xbf16>
    %c0_63 = arith.constant 0 : index
    %c24 = arith.constant 24 : index
    %43 = vector.load %arg7[%c0_63, %c24] : memref<512x36xbf16, #tpu.memory_space<vmem>>, vector<512x4xbf16>
    tpu.vector_store %arg7[%c0_63, %c24], %42 {strides = array<i32>} : memref<512x36xbf16, #tpu.memory_space<vmem>>, vector<512x4xbf16>,
    %c0_64 = arith.constant 0 : index
    %c2_65 = arith.constant 2 : index
    %c1_66 = arith.constant 1 : index
    %c0_67 = arith.constant 0 : index
    %44 = vector.load %arg6[%c0_64, %c2_65, %c1_66, %c0_67] : memref<2x18x18x4xbf16, #tpu.memory_space<vmem>>, vector<2x16x16x4xbf16>
    %45 = vector.shape_cast %44 : vector<2x16x16x4xbf16> to vector<512x4xbf16>
    %c0_68 = arith.constant 0 : index
    %c28 = arith.constant 28 : index
    %46 = vector.load %arg7[%c0_68, %c28] : memref<512x36xbf16, #tpu.memory_space<vmem>>, vector<512x4xbf16>
    tpu.vector_store %arg7[%c0_68, %c28], %45 {strides = array<i32>} : memref<512x36xbf16, #tpu.memory_space<vmem>>, vector<512x4xbf16>,
    %c0_69 = arith.constant 0 : index
    %c2_70 = arith.constant 2 : index
    %c2_71 = arith.constant 2 : index
    %c0_72 = arith.constant 0 : index
    %47 = vector.load %arg6[%c0_69, %c2_70, %c2_71, %c0_72] : memref<2x18x18x4xbf16, #tpu.memory_space<vmem>>, vector<2x16x16x4xbf16>
    %48 = vector.shape_cast %47 : vector<2x16x16x4xbf16> to vector<512x4xbf16>
    %c0_73 = arith.constant 0 : index
    %c32 = arith.constant 32 : index
    %49 = vector.load %arg7[%c0_73, %c32] : memref<512x36xbf16, #tpu.memory_space<vmem>>, vector<512x4xbf16>
    tpu.vector_store %arg7[%c0_73, %c32], %48 {strides = array<i32>} : memref<512x36xbf16, #tpu.memory_space<vmem>>, vector<512x4xbf16>,
    %c0_74 = arith.constant 0 : index
    %c0_75 = arith.constant 0 : index
    %50 = vector.load %arg7[%c0_74, %c0_75] : memref<512x36xbf16, #tpu.memory_space<vmem>>, vector<512x36xbf16>
    %c0_76 = arith.constant 0 : index
    %c0_77 = arith.constant 0 : index
    %51 = vector.load %arg4[%c0_76, %c0_77] : memref<36x8xbf16, #tpu.memory_space<vmem>>, vector<36x8xbf16>
    %cst_78 = arith.constant dense<0.000000e+00> : vector<512x8xf32>
    %52 = tpu.matmul %50, %51, %cst_78 {dimension_numbers = #tpu.dot_dimension_numbers<[1], [0], [0], [1], [0, 0, 1, 1], [], []>} : vector<512x36xbf16>, vector<36x8xbf16>, vector<512x8xf32> -> vector<512x8xf32>
    %53 = vector.shape_cast %52 : vector<512x8xf32> to vector<2x16x16x8xf32>
    %c0_79 = arith.constant 0 : index
    %c0_80 = arith.constant 0 : index
    %c0_81 = arith.constant 0 : index
    %c0_82 = arith.constant 0 : index
    %54 = vector.load %arg5[%c0_79, %c0_80, %c0_81, %c0_82] : memref<2x16x16x8xf32, #tpu.memory_space<vmem>>, vector<2x16x16x8xf32>
    tpu.vector_store %arg5[%c0_79, %c0_80, %c0_81, %c0_82], %53 {strides = array<i32>} : memref<2x16x16x8xf32, #tpu.memory_space<vmem>>, vector<2x16x16x8xf32>,
    return
  }
  func.func @transform_0(%arg0: i32) -> (i32, i32, i32, i32) {
    %c0_i32 = arith.constant 0 : i32
    %c0_i32_0 = arith.constant 0 : i32
    %c0_i32_1 = arith.constant 0 : i32
    %c0_i32_2 = arith.constant 0 : i32
    return %arg0, %c0_i32, %c0_i32_0, %c0_i32_1 : i32, i32, i32, i32
  }
  func.func @transform_1(%arg0: i32) -> (i32, i32) {
    %c0_i32 = arith.constant 0 : i32
    %c0_i32_0 = arith.constant 0 : i32
    %c0_i32_1 = arith.constant 0 : i32
    return %c0_i32, %c0_i32_0 : i32, i32
  }
  func.func @transform_2(%arg0: i32) -> (i32, i32) {
    %c0_i32 = arith.constant 0 : i32
    %c0_i32_0 = arith.constant 0 : i32
    %c0_i32_1 = arith.constant 0 : i32
    return %c0_i32, %c0_i32_0 : i32, i32
  }
  func.func @transform_3(%arg0: i32) -> (i32, i32) {
    %c0_i32 = arith.constant 0 : i32
    %c0_i32_0 = arith.constant 0 : i32
    %c0_i32_1 = arith.constant 0 : i32
    return %c0_i32, %c0_i32_0 : i32, i32
  }
  func.func @transform_4(%arg0: i32) -> (i32, i32, i32, i32) {
    %c0_i32 = arith.constant 0 : i32
    %c0_i32_0 = arith.constant 0 : i32
    %c0_i32_1 = arith.constant 0 : i32
    %c0_i32_2 = arith.constant 0 : i32
    return %arg0, %c0_i32, %c0_i32_0, %c0_i32_1 : i32, i32, i32, i32
  }
}

</mosaic_0001>

<llo_original>
// kernel: tpu_custom_call.1
$region0: #{tpu_custom_call.1}
  #allocation0 [shape = 'u32[]', space=smem, size = 0x4, offset = 0x4, fixed_abs, tag = 'smem constant byte address 0x4 - core index']
  #allocation1 [shape = 'u32[144,128]{1,0:T(1,128)}', space=vmem, size = 0x12000, scoped, tag = 'internal scratch']
  #allocation2 [shape = 'bf16[2,18,18,4]{3,2,1,0:T(8,128)(2,1)}', space=vmem, size = 0x36000, scoped, tag = 'scratch operand']
  #allocation3 [shape = 'bf16[512,36]{1,0:T(16,128)(2,1)}', space=vmem, size = 0x20000, scoped, tag = 'scratch operand']
  %s0 = inlined_call_operand.vmem [shape: f32[2,16,16,4], index: 0, kind: input, shape index: {}]
  %s1 = inlined_call_operand.vmem [shape: f32[1,4], index: 1, kind: input, shape index: {}]
  %s2 = inlined_call_operand.vmem [shape: f32[1,4], index: 2, kind: input, shape index: {}]
  %s3 = inlined_call_operand.vmem [shape: bf16[36,8], index: 3, kind: input, shape index: {}]
  %s4 = inlined_call_operand.vmem [shape: f32[2,16,16,8], index: 4, kind: output, shape index: {}]
  %s5 = sld [smem:[#allocation0]]
  $region26: #{tpu_custom_call.1} parent=0
    _
  %s7 = ssub.s32 1, %s5
  %s8 = scalar_select 0, %s7, %s5
  // Predicated region
  $region2: #{tpu_custom_call.1} parent=0 // pred_check
    _
  $region3: #{tpu_custom_call.1} parent=0 // pred_check_branch
    %10 = sbr.rel (0) target = $region5
  $region4: #{tpu_custom_call.1} parent=0 // pred_region
    _
  $region5: #{tpu_custom_call.1} parent=0 // pred_fallthru
    _
  // Predicated region
  $region6: #{tpu_custom_call.1} parent=0 // pred_check
    _
  $region7: #{tpu_custom_call.1} parent=0 // pred_check_branch
    %12 = sbr.rel (0) target = $region9
  $region8: #{tpu_custom_call.1} parent=0 // pred_region
    _
  $region9: #{tpu_custom_call.1} parent=0 // pred_fallthru
    _
  // Predicated region
  $region10: #{tpu_custom_call.1} parent=0 // pred_check
    _
  $region11: #{tpu_custom_call.1} parent=0 // pred_check_branch
    %14 = sbr.rel (0) target = $region13
  $region12: #{tpu_custom_call.1} parent=0 // pred_region
    _
  $region13: #{tpu_custom_call.1} parent=0 // pred_fallthru
    _
  // Predicated region
  $region14: #{tpu_custom_call.1} parent=0 // pred_check
    _
  $region15: #{tpu_custom_call.1} parent=0 // pred_check_branch
    %16 = sbr.rel (0) target = $region17
  $region16: #{tpu_custom_call.1} parent=0 // pred_region
    _
  $region17: #{tpu_custom_call.1} parent=0 // pred_fallthru
    _
  %v18 = vld [vmem:[%s1] sm:$0x1]
  %v19 = vld [vmem:[%s2] sm:$0x1]
  %vm20 = vcmask 27648
  %21 = vst.msk [vmem:[#allocation2] sm:$0xf] %vm20, 0
  %22 = vst.msk [vmem:[#allocation2 + $0x4] sm:$0xf] %vm20, 0
  %vm23 = vcmask 24576
  %24 = vst.msk [vmem:[#allocation2 + $0x8] sm:$0x1] %vm23, 0
  %25 = vst.msk [vmem:[#allocation2 + $0xd8] sm:$0xf] %vm20, 0
  %26 = vst.msk [vmem:[#allocation2 + $0xdc] sm:$0xf] %vm20, 0
  %27 = vst.msk [vmem:[#allocation2 + $0xe0] sm:$0x1] %vm23, 0
  %s28 = scalar_lea.vmem [#allocation2], 204
  %29 = vst.msk [vmem:[%s28] sm:$0xf] %vm20, 0
  %30 = vst.msk [vmem:[%s28 + $0x4] sm:$0xf] %vm20, 0
  %31 = vst.msk [vmem:[%s28 + $0x8] sm:$0x1] %vm23, 0
  %32 = vst.msk [vmem:[%s28 + $0xd8] sm:$0xf] %vm20, 0
  %33 = vst.msk [vmem:[%s28 + $0xdc] sm:$0xf] %vm20, 0
  %34 = vst.msk [vmem:[%s28 + $0xe0] sm:$0x1] %vm23, 0
  %vm35 = vcmask 24576
  %vm36 = vsmask.f32 256
  %vm37 = vmand %vm35, %vm36
  %v38 = vld [vmem:[#allocation2] sm:$0x1]
  %v39 = vsel %vm37, 0, %v38
  %40 = vst [vmem:[#allocation2] sm:$0x1] %v39
  %v41 = vld [vmem:[#allocation2 + $0xc] sm:$0x1]
  %v42 = vsel %vm37, 0, %v41
  %43 = vst [vmem:[#allocation2 + $0xc] sm:$0x1] %v42
  %v44 = vld [vmem:[#allocation2 + $0x18] sm:$0x1]
  %v45 = vsel %vm37, 0, %v44
  %46 = vst [vmem:[#allocation2 + $0x18] sm:$0x1] %v45
  %v47 = vld [vmem:[#allocation2 + $0x24] sm:$0x1]
  %v48 = vsel %vm37, 0, %v47
  %49 = vst [vmem:[#allocation2 + $0x24] sm:$0x1] %v48
  %v50 = vld [vmem:[#allocation2 + $0x30] sm:$0x1]
  %v51 = vsel %vm37, 0, %v50
  %52 = vst [vmem:[#allocation2 + $0x30] sm:$0x1] %v51
  %v53 = vld [vmem:[#allocation2 + $0x3c] sm:$0x1]
  %v54 = vsel %vm37, 0, %v53
  %55 = vst [vmem:[#allocation2 + $0x3c] sm:$0x1] %v54
  %v56 = vld [vmem:[#allocation2 + $0x48] sm:$0x1]
  %v57 = vsel %vm37, 0, %v56
  %58 = vst [vmem:[#allocation2 + $0x48] sm:$0x1] %v57
  %v59 = vld [vmem:[#allocation2 + $0x54] sm:$0x1]
  %v60 = vsel %vm37, 0, %v59
  %61 = vst [vmem:[#allocation2 + $0x54] sm:$0x1] %v60
  %v62 = vld [vmem:[#allocation2 + $0x60] sm:$0x1]
  %v63 = vsel %vm37, 0, %v62
  %64 = vst [vmem:[#allocation2 + $0x60] sm:$0x1] %v63
  %v65 = vld [vmem:[#allocation2 + $0x6c] sm:$0x1]
  %v66 = vsel %vm37, 0, %v65
  %67 = vst [vmem:[#allocation2 + $0x6c] sm:$0x1] %v66
  %v68 = vld [vmem:[#allocation2 + $0x78] sm:$0x1]
  %v69 = vsel %vm37, 0, %v68
  %70 = vst [vmem:[#allocation2 + $0x78] sm:$0x1] %v69
  %v71 = vld [vmem:[#allocation2 + $0x84] sm:$0x1]
  %v72 = vsel %vm37, 0, %v71
  %73 = vst [vmem:[#allocation2 + $0x84] sm:$0x1] %v72
  %v74 = vld [vmem:[#allocation2 + $0x90] sm:$0x1]
  %v75 = vsel %vm37, 0, %v74
  %76 = vst [vmem:[#allocation2 + $0x90] sm:$0x1] %v75
  %v77 = vld [vmem:[#allocation2 + $0x9c] sm:$0x1]
  %v78 = vsel %vm37, 0, %v77
  %79 = vst [vmem:[#allocation2 + $0x9c] sm:$0x1] %v78
  %v80 = vld [vmem:[#allocation2 + $0xa8] sm:$0x1]
  %v81 = vsel %vm37, 0, %v80
  %82 = vst [vmem:[#allocation2 + $0xa8] sm:$0x1] %v81
  %v83 = vld [vmem:[#allocation2 + $0xb4] sm:$0x1]
  %v84 = vsel %vm37, 0, %v83
  %85 = vst [vmem:[#allocation2 + $0xb4] sm:$0x1] %v84
  %v86 = vld [vmem:[#allocation2 + $0xc0] sm:$0x1]
  %v87 = vsel %vm37, 0, %v86
  %88 = vst [vmem:[#allocation2 + $0xc0] sm:$0x1] %v87
  %v89 = vld [vmem:[#allocation2 + $0xcc] sm:$0x1]
  %v90 = vsel %vm37, 0, %v89
  %91 = vst [vmem:[#allocation2 + $0xcc] sm:$0x1] %v90
  %v92 = vld [vmem:[#allocation2 + $0xd8] sm:$0x1]
  %v93 = vsel %vm37, 0, %v92
  %94 = vst [vmem:[#allocation2 + $0xd8] sm:$0x1] %v93
  %v95 = vld [vmem:[#allocation2 + $0xe4] sm:$0x1]
  %v96 = vsel %vm37, 0, %v95
  %97 = vst [vmem:[#allocation2 + $0xe4] sm:$0x1] %v96
  %v98 = vld [vmem:[#allocation2 + $0xf0] sm:$0x1]
  %v99 = vsel %vm37, 0, %v98
  %100 = vst [vmem:[#allocation2 + $0xf0] sm:$0x1] %v99
  %v101 = vld [vmem:[#allocation2 + $0xfc] sm:$0x1]
  %v102 = vsel %vm37, 0, %v101
  %103 = vst [vmem:[#allocation2 + $0xfc] sm:$0x1] %v102
  %v104 = vld [vmem:[#allocation2 + $0x108] sm:$0x1]
  %v105 = vsel %vm37, 0, %v104
  %106 = vst [vmem:[#allocation2 + $0x108] sm:$0x1] %v105
  %v107 = vld [vmem:[#allocation2 + $0x114] sm:$0x1]
  %v108 = vsel %vm37, 0, %v107
  %109 = vst [vmem:[#allocation2 + $0x114] sm:$0x1] %v108
  %v110 = vld [vmem:[#allocation2 + $0x120] sm:$0x1]
  %v111 = vsel %vm37, 0, %v110
  %112 = vst [vmem:[#allocation2 + $0x120] sm:$0x1] %v111
  %v113 = vld [vmem:[#allocation2 + $0x12c] sm:$0x1]
  %v114 = vsel %vm37, 0, %v113
  %115 = vst [vmem:[#allocation2 + $0x12c] sm:$0x1] %v114
  %v116 = vld [vmem:[#allocation2 + $0x138] sm:$0x1]
  %v117 = vsel %vm37, 0, %v116
  %118 = vst [vmem:[#allocation2 + $0x138] sm:$0x1] %v117
  %v119 = vld [vmem:[#allocation2 + $0x144] sm:$0x1]
  %v120 = vsel %vm37, 0, %v119
  %121 = vst [vmem:[#allocation2 + $0x144] sm:$0x1] %v120
  %v122 = vld [vmem:[#allocation2 + $0x150] sm:$0x1]
  %v123 = vsel %vm37, 0, %v122
  %124 = vst [vmem:[#allocation2 + $0x150] sm:$0x1] %v123
  %v125 = vld [vmem:[#allocation2 + $0x15c] sm:$0x1]
  %v126 = vsel %vm37, 0, %v125
  %127 = vst [vmem:[#allocation2 + $0x15c] sm:$0x1] %v126
  %v128 = vld [vmem:[#allocation2 + $0x168] sm:$0x1]
  %v129 = vsel %vm37, 0, %v128
  %130 = vst [vmem:[#allocation2 + $0x168] sm:$0x1] %v129
  %v131 = vld [vmem:[#allocation2 + $0x174] sm:$0x1]
  %v132 = vsel %vm37, 0, %v131
  %133 = vst [vmem:[#allocation2 + $0x174] sm:$0x1] %v132
  %v134 = vld [vmem:[#allocation2 + $0x180] sm:$0x1]
  %v135 = vsel %vm37, 0, %v134
  %136 = vst [vmem:[#allocation2 + $0x180] sm:$0x1] %v135
  %v137 = vld [vmem:[#allocation2 + $0x18c] sm:$0x1]
  %v138 = vsel %vm37, 0, %v137
  %139 = vst [vmem:[#allocation2 + $0x18c] sm:$0x1] %v138
  %v140 = vld [vmem:[#allocation2 + $0x198] sm:$0x1]
  %v141 = vsel %vm37, 0, %v140
  %142 = vst [vmem:[#allocation2 + $0x198] sm:$0x1] %v141
  %v143 = vld [vmem:[#allocation2 + $0x1a4] sm:$0x1]
  %v144 = vsel %vm37, 0, %v143
  %145 = vst [vmem:[#allocation2 + $0x1a4] sm:$0x1] %v144
  %vm146 = vsmask.f32 7938
  %vm147 = vmand %vm35, %vm146
  %v148 = vld [vmem:[#allocation2 + $0x8] sm:$0x1]
  %v149 = vsel %vm147, 0, %v148
  %150 = vst [vmem:[#allocation2 + $0x8] sm:$0x1] %v149
  %v151 = vld [vmem:[#allocation2 + $0x14] sm:$0x1]
  %v152 = vsel %vm147, 0, %v151
  %153 = vst [vmem:[#allocation2 + $0x14] sm:$0x1] %v152
  %v154 = vld [vmem:[#allocation2 + $0x20] sm:$0x1]
  %v155 = vsel %vm147, 0, %v154
  %156 = vst [vmem:[#allocation2 + $0x20] sm:$0x1] %v155
  %v157 = vld [vmem:[#allocation2 + $0x2c] sm:$0x1]
  %v158 = vsel %vm147, 0, %v157
  %159 = vst [vmem:[#allocation2 + $0x2c] sm:$0x1] %v158
  %v160 = vld [vmem:[#allocation2 + $0x38] sm:$0x1]
  %v161 = vsel %vm147, 0, %v160
  %162 = vst [vmem:[#allocation2 + $0x38] sm:$0x1] %v161
  %v163 = vld [vmem:[#allocation2 + $0x44] sm:$0x1]
  %v164 = vsel %vm147, 0, %v163
  %165 = vst [vmem:[#allocation2 + $0x44] sm:$0x1] %v164
  %v166 = vld [vmem:[#allocation2 + $0x50] sm:$0x1]
  %v167 = vsel %vm147, 0, %v166
  %168 = vst [vmem:[#allocation2 + $0x50] sm:$0x1] %v167
  %v169 = vld [vmem:[#allocation2 + $0x5c] sm:$0x1]
  %v170 = vsel %vm147, 0, %v169
  %171 = vst [vmem:[#allocation2 + $0x5c] sm:$0x1] %v170
  %v172 = vld [vmem:[#allocation2 + $0x68] sm:$0x1]
  %v173 = vsel %vm147, 0, %v172
  %174 = vst [vmem:[#allocation2 + $0x68] sm:$0x1] %v173
  %v175 = vld [vmem:[#allocation2 + $0x74] sm:$0x1]
  %v176 = vsel %vm147, 0, %v175
  %177 = vst [vmem:[#allocation2 + $0x74] sm:$0x1] %v176
  %v178 = vld [vmem:[#allocation2 + $0x80] sm:$0x1]
  %v179 = vsel %vm147, 0, %v178
  %180 = vst [vmem:[#allocation2 + $0x80] sm:$0x1] %v179
  %v181 = vld [vmem:[#allocation2 + $0x8c] sm:$0x1]
  %v182 = vsel %vm147, 0, %v181
  %183 = vst [vmem:[#allocation2 + $0x8c] sm:$0x1] %v182
  %v184 = vld [vmem:[#allocation2 + $0x98] sm:$0x1]
  %v185 = vsel %vm147, 0, %v184
  %186 = vst [vmem:[#allocation2 + $0x98] sm:$0x1] %v185
  %v187 = vld [vmem:[#allocation2 + $0xa4] sm:$0x1]
  %v188 = vsel %vm147, 0, %v187
  %189 = vst [vmem:[#allocation2 + $0xa4] sm:$0x1] %v188
  %v190 = vld [vmem:[#allocation2 + $0xb0] sm:$0x1]
  %v191 = vsel %vm147, 0, %v190
  %192 = vst [vmem:[#allocation2 + $0xb0] sm:$0x1] %v191
  %v193 = vld [vmem:[#allocation2 + $0xbc] sm:$0x1]
  %v194 = vsel %vm147, 0, %v193
  %195 = vst [vmem:[#allocation2 + $0xbc] sm:$0x1] %v194
  %v196 = vld [vmem:[#allocation2 + $0xc8] sm:$0x1]
  %v197 = vsel %vm147, 0, %v196
  %198 = vst [vmem:[#allocation2 + $0xc8] sm:$0x1] %v197
  %v199 = vld [vmem:[#allocation2 + $0xd4] sm:$0x1]
  %v200 = vsel %vm147, 0, %v199
  %201 = vst [vmem:[#allocation2 + $0xd4] sm:$0x1] %v200
  %v202 = vld [vmem:[#allocation2 + $0xe0] sm:$0x1]
  %v203 = vsel %vm147, 0, %v202
  %204 = vst [vmem:[#allocation2 + $0xe0] sm:$0x1] %v203
  %v205 = vld [vmem:[#allocation2 + $0xec] sm:$0x1]
  %v206 = vsel %vm147, 0, %v205
  %207 = vst [vmem:[#allocation2 + $0xec] sm:$0x1] %v206
  %v208 = vld [vmem:[#allocation2 + $0xf8] sm:$0x1]
  %v209 = vsel %vm147, 0, %v208
  %210 = vst [vmem:[#allocation2 + $0xf8] sm:$0x1] %v209
  %v211 = vld [vmem:[#allocation2 + $0x104] sm:$0x1]
  %v212 = vsel %vm147, 0, %v211
  %213 = vst [vmem:[#allocation2 + $0x104] sm:$0x1] %v212
  %v214 = vld [vmem:[#allocation2 + $0x110] sm:$0x1]
  %v215 = vsel %vm147, 0, %v214
  %216 = vst [vmem:[#allocation2 + $0x110] sm:$0x1] %v215
  %v217 = vld [vmem:[#allocation2 + $0x11c] sm:$0x1]
  %v218 = vsel %vm147, 0, %v217
  %219 = vst [vmem:[#allocation2 + $0x11c] sm:$0x1] %v218
  %v220 = vld [vmem:[#allocation2 + $0x128] sm:$0x1]
  %v221 = vsel %vm147, 0, %v220
  %222 = vst [vmem:[#allocation2 + $0x128] sm:$0x1] %v221
  %v223 = vld [vmem:[#allocation2 + $0x134] sm:$0x1]
  %v224 = vsel %vm147, 0, %v223
  %225 = vst [vmem:[#allocation2 + $0x134] sm:$0x1] %v224
  %v226 = vld [vmem:[#allocation2 + $0x140] sm:$0x1]
  %v227 = vsel %vm147, 0, %v226
  %228 = vst [vmem:[#allocation2 + $0x140] sm:$0x1] %v227
  %v229 = vld [vmem:[#allocation2 + $0x14c] sm:$0x1]
  %v230 = vsel %vm147, 0, %v229
  %231 = vst [vmem:[#allocation2 + $0x14c] sm:$0x1] %v230
  %v232 = vld [vmem:[#allocation2 + $0x158] sm:$0x1]
  %v233 = vsel %vm147, 0, %v232
  %234 = vst [vmem:[#allocation2 + $0x158] sm:$0x1] %v233
  %v235 = vld [vmem:[#allocation2 + $0x164] sm:$0x1]
  %v236 = vsel %vm147, 0, %v235
  %237 = vst [vmem:[#allocation2 + $0x164] sm:$0x1] %v236
  %v238 = vld [vmem:[#allocation2 + $0x170] sm:$0x1]
  %v239 = vsel %vm147, 0, %v238
  %240 = vst [vmem:[#allocation2 + $0x170] sm:$0x1] %v239
  %v241 = vld [vmem:[#allocation2 + $0x17c] sm:$0x1]
  %v242 = vsel %vm147, 0, %v241
  %243 = vst [vmem:[#allocation2 + $0x17c] sm:$0x1] %v242
  %v244 = vld [vmem:[#allocation2 + $0x188] sm:$0x1]
  %v245 = vsel %vm147, 0, %v244
  %246 = vst [vmem:[#allocation2 + $0x188] sm:$0x1] %v245
  %v247 = vld [vmem:[#allocation2 + $0x194] sm:$0x1]
  %v248 = vsel %vm147, 0, %v247
  %249 = vst [vmem:[#allocation2 + $0x194] sm:$0x1] %v248
  %v250 = vld [vmem:[#allocation2 + $0x1a0] sm:$0x1]
  %v251 = vsel %vm147, 0, %v250
  %252 = vst [vmem:[#allocation2 + $0x1a0] sm:$0x1] %v251
  %v253 = vld [vmem:[#allocation2 + $0x1ac] sm:$0x1]
  %v254 = vsel %vm147, 0, %v253
  %255 = vst [vmem:[#allocation2 + $0x1ac] sm:$0x1] %v254
  %v256 = vld [vmem:[%s0] sm:$0xff]
  %v257 = vld [vmem:[%s0 + $0x8] sm:$0xff]
  %v258 = vld [vmem:[%s0 + $0x10] sm:$0xff]
  %v259 = vld [vmem:[%s0 + $0x18] sm:$0xff]
  %v260 = vld [vmem:[%s0 + $0x20] sm:$0xff]
  %v261 = vld [vmem:[%s0 + $0x28] sm:$0xff]
  %v262 = vld [vmem:[%s0 + $0x30] sm:$0xff]
  %v263 = vld [vmem:[%s0 + $0x38] sm:$0xff]
  %v264 = vld [vmem:[%s0 + $0x40] sm:$0xff]
  %v265 = vld [vmem:[%s0 + $0x48] sm:$0xff]
  %v266 = vld [vmem:[%s0 + $0x50] sm:$0xff]
  %v267 = vld [vmem:[%s0 + $0x58] sm:$0xff]
  %v268 = vld [vmem:[%s0 + $0x60] sm:$0xff]
  %v269 = vld [vmem:[%s0 + $0x68] sm:$0xff]
  %v270 = vld [vmem:[%s0 + $0x70] sm:$0xff]
  %v271 = vld [vmem:[%s0 + $0x78] sm:$0xff]
  %v272 = vld [vmem:[%s0 + $0x80] sm:$0xff]
  %v273 = vld [vmem:[%s0 + $0x88] sm:$0xff]
  %v274 = vld [vmem:[%s0 + $0x90] sm:$0xff]
  %v275 = vld [vmem:[%s0 + $0x98] sm:$0xff]
  %v276 = vld [vmem:[%s0 + $0xa0] sm:$0xff]
  %v277 = vld [vmem:[%s0 + $0xa8] sm:$0xff]
  %v278 = vld [vmem:[%s0 + $0xb0] sm:$0xff]
  %v279 = vld [vmem:[%s0 + $0xb8] sm:$0xff]
  %v280 = vld [vmem:[%s0 + $0xc0] sm:$0xff]
  %v281 = vld [vmem:[%s0 + $0xc8] sm:$0xff]
  %v282 = vld [vmem:[%s0 + $0xd0] sm:$0xff]
  %v283 = vld [vmem:[%s0 + $0xd8] sm:$0xff]
  %v284 = vld [vmem:[%s0 + $0xe0] sm:$0xff]
  %v285 = vld [vmem:[%s0 + $0xe8] sm:$0xff]
  %v286 = vld [vmem:[%s0 + $0xf0] sm:$0xff]
  %v287 = vld [vmem:[%s0 + $0xf8] sm:$0xff]
  %v288 = vld [vmem:[%s0 + $0x100] sm:$0xff]
  %v289 = vld [vmem:[%s0 + $0x108] sm:$0xff]
  %v290 = vld [vmem:[%s0 + $0x110] sm:$0xff]
  %v291 = vld [vmem:[%s0 + $0x118] sm:$0xff]
  %v292 = vld [vmem:[%s0 + $0x120] sm:$0xff]
  %v293 = vld [vmem:[%s0 + $0x128] sm:$0xff]
  %v294 = vld [vmem:[%s0 + $0x130] sm:$0xff]
  %v295 = vld [vmem:[%s0 + $0x138] sm:$0xff]
  %v296 = vld [vmem:[%s0 + $0x140] sm:$0xff]
  %v297 = vld [vmem:[%s0 + $0x148] sm:$0xff]
  %v298 = vld [vmem:[%s0 + $0x150] sm:$0xff]
  %v299 = vld [vmem:[%s0 + $0x158] sm:$0xff]
  %v300 = vld [vmem:[%s0 + $0x160] sm:$0xff]
  %v301 = vld [vmem:[%s0 + $0x168] sm:$0xff]
  %v302 = vld [vmem:[%s0 + $0x170] sm:$0xff]
  %v303 = vld [vmem:[%s0 + $0x178] sm:$0xff]
  %v304 = vld [vmem:[%s0 + $0x180] sm:$0xff]
  %v305 = vld [vmem:[%s0 + $0x188] sm:$0xff]
  %v306 = vld [vmem:[%s0 + $0x190] sm:$0xff]
  %v307 = vld [vmem:[%s0 + $0x198] sm:$0xff]
  %v308 = vld [vmem:[%s0 + $0x1a0] sm:$0xff]
  %v309 = vld [vmem:[%s0 + $0x1a8] sm:$0xff]
  %v310 = vld [vmem:[%s0 + $0x1b0] sm:$0xff]
  %v311 = vld [vmem:[%s0 + $0x1b8] sm:$0xff]
  %v312 = vld [vmem:[%s0 + $0x1c0] sm:$0xff]
  %v313 = vld [vmem:[%s0 + $0x1c8] sm:$0xff]
  %v314 = vld [vmem:[%s0 + $0x1d0] sm:$0xff]
  %v315 = vld [vmem:[%s0 + $0x1d8] sm:$0xff]
  %v316 = vld [vmem:[%s0 + $0x1e0] sm:$0xff]
  %v317 = vld [vmem:[%s0 + $0x1e8] sm:$0xff]
  %v318 = vld [vmem:[%s0 + $0x1f0] sm:$0xff]
  %v319 = vld [vmem:[%s0 + $0x1f8] sm:$0xff]
  %v321 = vlaneseq
  %v322 = vshrl.u32 %v321, 7
  %v323 = vsub.s32 0, %v322
  %v324 = vrot.slane %v18, %v323
  %v326 = vmul.f32 %v256, %v324
  %v327 = vmul.f32 %v257, %v324
  %v328 = vmul.f32 %v258, %v324
  %v329 = vmul.f32 %v259, %v324
  %v330 = vmul.f32 %v260, %v324
  %v331 = vmul.f32 %v261, %v324
  %v332 = vmul.f32 %v262, %v324
  %v333 = vmul.f32 %v263, %v324
  %v334 = vmul.f32 %v264, %v324
  %v335 = vmul.f32 %v265, %v324
  %v336 = vmul.f32 %v266, %v324
  %v337 = vmul.f32 %v267, %v324
  %v338 = vmul.f32 %v268, %v324
  %v339 = vmul.f32 %v269, %v324
  %v340 = vmul.f32 %v270, %v324
  %v341 = vmul.f32 %v271, %v324
  %v342 = vmul.f32 %v272, %v324
  %v343 = vmul.f32 %v273, %v324
  %v344 = vmul.f32 %v274, %v324
  %v345 = vmul.f32 %v275, %v324
  %v346 = vmul.f32 %v276, %v324
  %v347 = vmul.f32 %v277, %v324
  %v348 = vmul.f32 %v278, %v324
  %v349 = vmul.f32 %v279, %v324
  %v350 = vmul.f32 %v280, %v324
  %v351 = vmul.f32 %v281, %v324
  %v352 = vmul.f32 %v282, %v324
  %v353 = vmul.f32 %v283, %v324
  %v354 = vmul.f32 %v284, %v324
  %v355 = vmul.f32 %v285, %v324
  %v356 = vmul.f32 %v286, %v324
  %v357 = vmul.f32 %v287, %v324
  %v358 = vmul.f32 %v288, %v324
  %v359 = vmul.f32 %v289, %v324
  %v360 = vmul.f32 %v290, %v324
  %v361 = vmul.f32 %v291, %v324
  %v362 = vmul.f32 %v292, %v324
  %v363 = vmul.f32 %v293, %v324
  %v364 = vmul.f32 %v294, %v324
  %v365 = vmul.f32 %v295, %v324
  %v366 = vmul.f32 %v296, %v324
  %v367 = vmul.f32 %v297, %v324
  %v368 = vmul.f32 %v298, %v324
  %v369 = vmul.f32 %v299, %v324
  %v370 = vmul.f32 %v300, %v324
  %v371 = vmul.f32 %v301, %v324
  %v372 = vmul.f32 %v302, %v324
  %v373 = vmul.f32 %v303, %v324
  %v374 = vmul.f32 %v304, %v324
  %v375 = vmul.f32 %v305, %v324
  %v376 = vmul.f32 %v306, %v324
  %v377 = vmul.f32 %v307, %v324
  %v378 = vmul.f32 %v308, %v324
  %v379 = vmul.f32 %v309, %v324
  %v380 = vmul.f32 %v310, %v324
  %v381 = vmul.f32 %v311, %v324
  %v382 = vmul.f32 %v312, %v324
  %v383 = vmul.f32 %v313, %v324
  %v384 = vmul.f32 %v314, %v324
  %v385 = vmul.f32 %v315, %v324
  %v386 = vmul.f32 %v316, %v324
  %v387 = vmul.f32 %v317, %v324
  %v388 = vmul.f32 %v318, %v324
  %v389 = vmul.f32 %v319, %v324
  %v391 = vlaneseq
  %v392 = vshrl.u32 %v391, 7
  %v393 = vsub.s32 0, %v392
  %v394 = vrot.slane %v19, %v393
  %v396 = vadd.f32 %v326, %v394
  %v397 = vadd.f32 %v327, %v394
  %v398 = vadd.f32 %v328, %v394
  %v399 = vadd.f32 %v329, %v394
  %v400 = vadd.f32 %v330, %v394
  %v401 = vadd.f32 %v331, %v394
  %v402 = vadd.f32 %v332, %v394
  %v403 = vadd.f32 %v333, %v394
  %v404 = vadd.f32 %v334, %v394
  %v405 = vadd.f32 %v335, %v394
  %v406 = vadd.f32 %v336, %v394
  %v407 = vadd.f32 %v337, %v394
  %v408 = vadd.f32 %v338, %v394
  %v409 = vadd.f32 %v339, %v394
  %v410 = vadd.f32 %v340, %v394
  %v411 = vadd.f32 %v341, %v394
  %v412 = vadd.f32 %v342, %v394
  %v413 = vadd.f32 %v343, %v394
  %v414 = vadd.f32 %v344, %v394
  %v415 = vadd.f32 %v345, %v394
  %v416 = vadd.f32 %v346, %v394
  %v417 = vadd.f32 %v347, %v394
  %v418 = vadd.f32 %v348, %v394
  %v419 = vadd.f32 %v349, %v394
  %v420 = vadd.f32 %v350, %v394
  %v421 = vadd.f32 %v351, %v394
  %v422 = vadd.f32 %v352, %v394
  %v423 = vadd.f32 %v353, %v394
  %v424 = vadd.f32 %v354, %v394
  %v425 = vadd.f32 %v355, %v394
  %v426 = vadd.f32 %v356, %v394
  %v427 = vadd.f32 %v357, %v394
  %v428 = vadd.f32 %v358, %v394
  %v429 = vadd.f32 %v359, %v394
  %v430 = vadd.f32 %v360, %v394
  %v431 = vadd.f32 %v361, %v394
  %v432 = vadd.f32 %v362, %v394
  %v433 = vadd.f32 %v363, %v394
  %v434 = vadd.f32 %v364, %v394
  %v435 = vadd.f32 %v365, %v394
  %v436 = vadd.f32 %v366, %v394
  %v437 = vadd.f32 %v367, %v394
  %v438 = vadd.f32 %v368, %v394
  %v439 = vadd.f32 %v369, %v394
  %v440 = vadd.f32 %v370, %v394
  %v441 = vadd.f32 %v371, %v394
  %v442 = vadd.f32 %v372, %v394
  %v443 = vadd.f32 %v373, %v394
  %v444 = vadd.f32 %v374, %v394
  %v445 = vadd.f32 %v375, %v394
  %v446 = vadd.f32 %v376, %v394
  %v447 = vadd.f32 %v377, %v394
  %v448 = vadd.f32 %v378, %v394
  %v449 = vadd.f32 %v379, %v394
  %v450 = vadd.f32 %v380, %v394
  %v451 = vadd.f32 %v381, %v394
  %v452 = vadd.f32 %v382, %v394
  %v453 = vadd.f32 %v383, %v394
  %v454 = vadd.f32 %v384, %v394
  %v455 = vadd.f32 %v385, %v394
  %v456 = vadd.f32 %v386, %v394
  %v457 = vadd.f32 %v387, %v394
  %v458 = vadd.f32 %v388, %v394
  %v459 = vadd.f32 %v389, %v394
  %v460 = vmax.f32 %v396, 0.0
  %v461 = vmax.f32 %v397, 0.0
  %v462 = vmax.f32 %v398, 0.0
  %v463 = vmax.f32 %v399, 0.0
  %v464 = vmax.f32 %v400, 0.0
  %v465 = vmax.f32 %v401, 0.0
  %v466 = vmax.f32 %v402, 0.0
  %v467 = vmax.f32 %v403, 0.0
  %v468 = vmax.f32 %v404, 0.0
  %v469 = vmax.f32 %v405, 0.0
  %v470 = vmax.f32 %v406, 0.0
  %v471 = vmax.f32 %v407, 0.0
  %v472 = vmax.f32 %v408, 0.0
  %v473 = vmax.f32 %v409, 0.0
  %v474 = vmax.f32 %v410, 0.0
  %v475 = vmax.f32 %v411, 0.0
  %v476 = vmax.f32 %v412, 0.0
  %v477 = vmax.f32 %v413, 0.0
  %v478 = vmax.f32 %v414, 0.0
  %v479 = vmax.f32 %v415, 0.0
  %v480 = vmax.f32 %v416, 0.0
  %v481 = vmax.f32 %v417, 0.0
  %v482 = vmax.f32 %v418, 0.0
  %v483 = vmax.f32 %v419, 0.0
  %v484 = vmax.f32 %v420, 0.0
  %v485 = vmax.f32 %v421, 0.0
  %v486 = vmax.f32 %v422, 0.0
  %v487 = vmax.f32 %v423, 0.0
  %v488 = vmax.f32 %v424, 0.0
  %v489 = vmax.f32 %v425, 0.0
  %v490 = vmax.f32 %v426, 0.0
  %v491 = vmax.f32 %v427, 0.0
  %v492 = vmax.f32 %v428, 0.0
  %v493 = vmax.f32 %v429, 0.0
  %v494 = vmax.f32 %v430, 0.0
  %v495 = vmax.f32 %v431, 0.0
  %v496 = vmax.f32 %v432, 0.0
  %v497 = vmax.f32 %v433, 0.0
  %v498 = vmax.f32 %v434, 0.0
  %v499 = vmax.f32 %v435, 0.0
  %v500 = vmax.f32 %v436, 0.0
  %v501 = vmax.f32 %v437, 0.0
  %v502 = vmax.f32 %v438, 0.0
  %v503 = vmax.f32 %v439, 0.0
  %v504 = vmax.f32 %v440, 0.0
  %v505 = vmax.f32 %v441, 0.0
  %v506 = vmax.f32 %v442, 0.0
  %v507 = vmax.f32 %v443, 0.0
  %v508 = vmax.f32 %v444, 0.0
  %v509 = vmax.f32 %v445, 0.0
  %v510 = vmax.f32 %v446, 0.0
  %v511 = vmax.f32 %v447, 0.0
  %v512 = vmax.f32 %v448, 0.0
  %v513 = vmax.f32 %v449, 0.0
  %v514 = vmax.f32 %v450, 0.0
  %v515 = vmax.f32 %v451, 0.0
  %v516 = vmax.f32 %v452, 0.0
  %v517 = vmax.f32 %v453, 0.0
  %v518 = vmax.f32 %v454, 0.0
  %v519 = vmax.f32 %v455, 0.0
  %v520 = vmax.f32 %v456, 0.0
  %v521 = vmax.f32 %v457, 0.0
  %v522 = vmax.f32 %v458, 0.0
  %v523 = vmax.f32 %v459, 0.0
  %v524 = vpack.c.bf16 %v461, %v460
  %v525 = vpack.c.bf16 %v463, %v462
  %v526 = vpack.c.bf16 %v465, %v464
  %v527 = vpack.c.bf16 %v467, %v466
  %v528 = vpack.c.bf16 %v469, %v468
  %v529 = vpack.c.bf16 %v471, %v470
  %v530 = vpack.c.bf16 %v473, %v472
  %v531 = vpack.c.bf16 %v475, %v474
  %v532 = vpack.c.bf16 %v477, %v476
  %v533 = vpack.c.bf16 %v479, %v478
  %v534 = vpack.c.bf16 %v481, %v480
  %v535 = vpack.c.bf16 %v483, %v482
  %v536 = vpack.c.bf16 %v485, %v484
  %v537 = vpack.c.bf16 %v487, %v486
  %v538 = vpack.c.bf16 %v489, %v488
  %v539 = vpack.c.bf16 %v491, %v490
  %v540 = vpack.c.bf16 %v493, %v492
  %v541 = vpack.c.bf16 %v495, %v494
  %v542 = vpack.c.bf16 %v497, %v496
  %v543 = vpack.c.bf16 %v499, %v498
  %v544 = vpack.c.bf16 %v501, %v500
  %v545 = vpack.c.bf16 %v503, %v502
  %v546 = vpack.c.bf16 %v505, %v504
  %v547 = vpack.c.bf16 %v507, %v506
  %v548 = vpack.c.bf16 %v509, %v508
  %v549 = vpack.c.bf16 %v511, %v510
  %v550 = vpack.c.bf16 %v513, %v512
  %v551 = vpack.c.bf16 %v515, %v514
  %v552 = vpack.c.bf16 %v517, %v516
  %v553 = vpack.c.bf16 %v519, %v518
  %v554 = vpack.c.bf16 %v521, %v520
  %v555 = vpack.c.bf16 %v523, %v522
  %v588 = vunpack.c.l.b16 %v524
  %v589 = vunpack.c.h.b16 %v524
  %v590 = vunpack.c.l.b16 %v525
  %v591 = vunpack.c.h.b16 %v525
  %v592 = vunpack.c.l.b16 %v526
  %v593 = vunpack.c.h.b16 %v526
  %v594 = vunpack.c.l.b16 %v527
  %v595 = vunpack.c.h.b16 %v527
  %v596 = vunpack.c.l.b16 %v528
  %v597 = vunpack.c.h.b16 %v528
  %v598 = vunpack.c.l.b16 %v529
  %v599 = vunpack.c.h.b16 %v529
  %v600 = vunpack.c.l.b16 %v530
  %v601 = vunpack.c.h.b16 %v530
  %v602 = vunpack.c.l.b16 %v531
  %v603 = vunpack.c.h.b16 %v531
  %v604 = vunpack.c.l.b16 %v532
  %v605 = vunpack.c.h.b16 %v532
  %v606 = vunpack.c.l.b16 %v533
  %v607 = vunpack.c.h.b16 %v533
  %v608 = vunpack.c.l.b16 %v534
  %v609 = vunpack.c.h.b16 %v534
  %v610 = vunpack.c.l.b16 %v535
  %v611 = vunpack.c.h.b16 %v535
  %v612 = vunpack.c.l.b16 %v536
  %v613 = vunpack.c.h.b16 %v536
  %v614 = vunpack.c.l.b16 %v537
  %v615 = vunpack.c.h.b16 %v537
  %v616 = vunpack.c.l.b16 %v538
  %v617 = vunpack.c.h.b16 %v538
  %v618 = vunpack.c.l.b16 %v539
  %v619 = vunpack.c.h.b16 %v539
  %v620 = vunpack.c.l.b16 %v540
  %v621 = vunpack.c.h.b16 %v540
  %v622 = vunpack.c.l.b16 %v541
  %v623 = vunpack.c.h.b16 %v541
  %v624 = vunpack.c.l.b16 %v542
  %v625 = vunpack.c.h.b16 %v542
  %v626 = vunpack.c.l.b16 %v543
  %v627 = vunpack.c.h.b16 %v543
  %v628 = vunpack.c.l.b16 %v544
  %v629 = vunpack.c.h.b16 %v544
  %v630 = vunpack.c.l.b16 %v545
  %v631 = vunpack.c.h.b16 %v545
  %v632 = vunpack.c.l.b16 %v546
  %v633 = vunpack.c.h.b16 %v546
  %v634 = vunpack.c.l.b16 %v547
  %v635 = vunpack.c.h.b16 %v547
  %v636 = vunpack.c.l.b16 %v548
  %v637 = vunpack.c.h.b16 %v548
  %v638 = vunpack.c.l.b16 %v549
  %v639 = vunpack.c.h.b16 %v549
  %v640 = vunpack.c.l.b16 %v550
  %v641 = vunpack.c.h.b16 %v550
  %v642 = vunpack.c.l.b16 %v551
  %v643 = vunpack.c.h.b16 %v551
  %v644 = vunpack.c.l.b16 %v552
  %v645 = vunpack.c.h.b16 %v552
  %v646 = vunpack.c.l.b16 %v553
  %v647 = vunpack.c.h.b16 %v553
  %v648 = vunpack.c.l.b16 %v554
  %v649 = vunpack.c.h.b16 %v554
  %v650 = vunpack.c.l.b16 %v555
  %v651 = vunpack.c.h.b16 %v555
  %v652 = vpack.c.b16 %v588, %v588
  %v653 = vpack.c.b16 %v589, %v589
  %v654 = vpack.c.b16 %v590, %v590
  %v655 = vpack.c.b16 %v591, %v591
  %v656 = vpack.c.b16 %v592, %v592
  %v657 = vpack.c.b16 %v593, %v593
  %v658 = vpack.c.b16 %v594, %v594
  %v659 = vpack.c.b16 %v595, %v595
  %v660 = vpack.c.b16 %v596, %v596
  %v661 = vpack.c.b16 %v597, %v597
  %v662 = vpack.c.b16 %v598, %v598
  %v663 = vpack.c.b16 %v599, %v599
  %v664 = vpack.c.b16 %v600, %v600
  %v665 = vpack.c.b16 %v601, %v601
  %v666 = vpack.c.b16 %v602, %v602
  %v667 = vpack.c.b16 %v603, %v603
  %v668 = vpack.c.b16 %v604, %v604
  %v669 = vpack.c.b16 %v605, %v605
  %v670 = vpack.c.b16 %v606, %v606
  %v671 = vpack.c.b16 %v607, %v607
  %v672 = vpack.c.b16 %v608, %v608
  %v673 = vpack.c.b16 %v609, %v609
  %v674 = vpack.c.b16 %v610, %v610
  %v675 = vpack.c.b16 %v611, %v611
  %v676 = vpack.c.b16 %v612, %v612
  %v677 = vpack.c.b16 %v613, %v613
  %v678 = vpack.c.b16 %v614, %v614
  %v679 = vpack.c.b16 %v615, %v615
  %v680 = vpack.c.b16 %v616, %v616
  %v681 = vpack.c.b16 %v617, %v617
  %v682 = vpack.c.b16 %v618, %v618
  %v683 = vpack.c.b16 %v619, %v619
  %v684 = vpack.c.b16 %v620, %v620
  %v685 = vpack.c.b16 %v621, %v621
  %v686 = vpack.c.b16 %v622, %v622
  %v687 = vpack.c.b16 %v623, %v623
  %v688 = vpack.c.b16 %v624, %v624
  %v689 = vpack.c.b16 %v625, %v625
  %v690 = vpack.c.b16 %v626, %v626
  %v691 = vpack.c.b16 %v627, %v627
  %v692 = vpack.c.b16 %v628, %v628
  %v693 = vpack.c.b16 %v629, %v629
  %v694 = vpack.c.b16 %v630, %v630
  %v695 = vpack.c.b16 %v631, %v631
  %v696 = vpack.c.b16 %v632, %v632
  %v697 = vpack.c.b16 %v633, %v633
  %v698 = vpack.c.b16 %v634, %v634
  %v699 = vpack.c.b16 %v635, %v635
  %v700 = vpack.c.b16 %v636, %v636
  %v701 = vpack.c.b16 %v637, %v637
  %v702 = vpack.c.b16 %v638, %v638
  %v703 = vpack.c.b16 %v639, %v639
  %v704 = vpack.c.b16 %v640, %v640
  %v705 = vpack.c.b16 %v641, %v641
  %v706 = vpack.c.b16 %v642, %v642
  %v707 = vpack.c.b16 %v643, %v643
  %v708 = vpack.c.b16 %v644, %v644
  %v709 = vpack.c.b16 %v645, %v645
  %v710 = vpack.c.b16 %v646, %v646
  %v711 = vpack.c.b16 %v647, %v647
  %v712 = vpack.c.b16 %v648, %v648
  %v713 = vpack.c.b16 %v649, %v649
  %v714 = vpack.c.b16 %v650, %v650
  %v715 = vpack.c.b16 %v651, %v651
  %vm716 = vsmask.f32 4368
  %vm717 = vmor %vm36, %vm716
  %v719 = vshrl.u32 %v652, 16
  %v721 = vrot.slane %v719, 7
  %v722 = vshll.u32 %v652, 16
  %v724 = vor.u32 %v721, %v722
  %v725 = vrot.slane %v721, 4
  %v727 = vshrl.u32 %v653, 16
  %v729 = vrot.slane %v727, 7
  %v730 = vshll.u32 %v653, 16
  %v732 = vor.u32 %v729, %v730
  %v733 = vsel %vm717, %v725, %v732
  %v734 = vrot.slane %v729, 4
  %v736 = vshrl.u32 %v654, 16
  %v738 = vrot.slane %v736, 7
  %v739 = vshll.u32 %v654, 16
  %v741 = vor.u32 %v738, %v739
  %v742 = vrot.slane %v738, 4
  %v744 = vshrl.u32 %v655, 16
  %v746 = vrot.slane %v744, 7
  %v747 = vshll.u32 %v655, 16
  %v749 = vor.u32 %v746, %v747
  %v750 = vsel %vm717, %v742, %v749
  %v751 = vrot.slane %v746, 4
  %v753 = vshrl.u32 %v656, 16
  %v755 = vrot.slane %v753, 7
  %v756 = vshll.u32 %v656, 16
  %v758 = vor.u32 %v755, %v756
  %v759 = vrot.slane %v755, 4
  %v761 = vshrl.u32 %v657, 16
  %v763 = vrot.slane %v761, 7
  %v764 = vshll.u32 %v657, 16
  %v766 = vor.u32 %v763, %v764
  %v767 = vsel %vm717, %v759, %v766
  %v768 = vrot.slane %v763, 4
  %v770 = vshrl.u32 %v658, 16
  %v772 = vrot.slane %v770, 7
  %v773 = vshll.u32 %v658, 16
  %v775 = vor.u32 %v772, %v773
  %v776 = vrot.slane %v772, 4
  %v778 = vshrl.u32 %v659, 16
  %v780 = vrot.slane %v778, 7
  %v781 = vshll.u32 %v659, 16
  %v783 = vor.u32 %v780, %v781
  %v784 = vsel %vm717, %v776, %v783
  %v785 = vrot.slane %v780, 4
  %v787 = vshrl.u32 %v660, 16
  %v789 = vrot.slane %v787, 7
  %v790 = vshll.u32 %v660, 16
  %v792 = vor.u32 %v789, %v790
  %v793 = vrot.slane %v789, 4
  %v795 = vshrl.u32 %v661, 16
  %v797 = vrot.slane %v795, 7
  %v798 = vshll.u32 %v661, 16
  %v800 = vor.u32 %v797, %v798
  %v801 = vsel %vm717, %v793, %v800
  %v802 = vrot.slane %v797, 4
  %v804 = vshrl.u32 %v662, 16
  %v806 = vrot.slane %v804, 7
  %v807 = vshll.u32 %v662, 16
  %v809 = vor.u32 %v806, %v807
  %v810 = vrot.slane %v806, 4
  %v812 = vshrl.u32 %v663, 16
  %v814 = vrot.slane %v812, 7
  %v815 = vshll.u32 %v663, 16
  %v817 = vor.u32 %v814, %v815
  %v818 = vsel %vm717, %v810, %v817
  %v819 = vrot.slane %v814, 4
  %v821 = vshrl.u32 %v664, 16
  %v823 = vrot.slane %v821, 7
  %v824 = vshll.u32 %v664, 16
  %v826 = vor.u32 %v823, %v824
  %v827 = vrot.slane %v823, 4
  %v829 = vshrl.u32 %v665, 16
  %v831 = vrot.slane %v829, 7
  %v832 = vshll.u32 %v665, 16
  %v834 = vor.u32 %v831, %v832
  %v835 = vsel %vm717, %v827, %v834
  %v836 = vrot.slane %v831, 4
  %v838 = vshrl.u32 %v666, 16
  %v840 = vrot.slane %v838, 7
  %v841 = vshll.u32 %v666, 16
  %v843 = vor.u32 %v840, %v841
  %v844 = vrot.slane %v840, 4
  %v846 = vshrl.u32 %v667, 16
  %v848 = vrot.slane %v846, 7
  %v849 = vshll.u32 %v667, 16
  %v851 = vor.u32 %v848, %v849
  %v852 = vsel %vm717, %v844, %v851
  %v853 = vrot.slane %v848, 4
  %v855 = vshrl.u32 %v668, 16
  %v857 = vrot.slane %v855, 7
  %v858 = vshll.u32 %v668, 16
  %v860 = vor.u32 %v857, %v858
  %v861 = vrot.slane %v857, 4
  %v863 = vshrl.u32 %v669, 16
  %v865 = vrot.slane %v863, 7
  %v866 = vshll.u32 %v669, 16
  %v868 = vor.u32 %v865, %v866
  %v869 = vsel %vm717, %v861, %v868
  %v870 = vrot.slane %v865, 4
  %v872 = vshrl.u32 %v670, 16
  %v874 = vrot.slane %v872, 7
  %v875 = vshll.u32 %v670, 16
  %v877 = vor.u32 %v874, %v875
  %v878 = vrot.slane %v874, 4
  %v880 = vshrl.u32 %v671, 16
  %v882 = vrot.slane %v880, 7
  %v883 = vshll.u32 %v671, 16
  %v885 = vor.u32 %v882, %v883
  %v886 = vsel %vm717, %v878, %v885
  %v887 = vrot.slane %v882, 4
  %v889 = vshrl.u32 %v672, 16
  %v891 = vrot.slane %v889, 7
  %v892 = vshll.u32 %v672, 16
  %v894 = vor.u32 %v891, %v892
  %v895 = vrot.slane %v891, 4
  %v897 = vshrl.u32 %v673, 16
  %v899 = vrot.slane %v897, 7
  %v900 = vshll.u32 %v673, 16
  %v902 = vor.u32 %v899, %v900
  %v903 = vsel %vm717, %v895, %v902
  %v904 = vrot.slane %v899, 4
  %v906 = vshrl.u32 %v674, 16
  %v908 = vrot.slane %v906, 7
  %v909 = vshll.u32 %v674, 16
  %v911 = vor.u32 %v908, %v909
  %v912 = vrot.slane %v908, 4
  %v914 = vshrl.u32 %v675, 16
  %v916 = vrot.slane %v914, 7
  %v917 = vshll.u32 %v675, 16
  %v919 = vor.u32 %v916, %v917
  %v920 = vsel %vm717, %v912, %v919
  %v921 = vrot.slane %v916, 4
  %v923 = vshrl.u32 %v676, 16
  %v925 = vrot.slane %v923, 7
  %v926 = vshll.u32 %v676, 16
  %v928 = vor.u32 %v925, %v926
  %v929 = vrot.slane %v925, 4
  %v931 = vshrl.u32 %v677, 16
  %v933 = vrot.slane %v931, 7
  %v934 = vshll.u32 %v677, 16
  %v936 = vor.u32 %v933, %v934
  %v937 = vsel %vm717, %v929, %v936
  %v938 = vrot.slane %v933, 4
  %v940 = vshrl.u32 %v678, 16
  %v942 = vrot.slane %v940, 7
  %v943 = vshll.u32 %v678, 16
  %v945 = vor.u32 %v942, %v943
  %v946 = vrot.slane %v942, 4
  %v948 = vshrl.u32 %v679, 16
  %v950 = vrot.slane %v948, 7
  %v951 = vshll.u32 %v679, 16
  %v953 = vor.u32 %v950, %v951
  %v954 = vsel %vm717, %v946, %v953
  %v955 = vrot.slane %v950, 4
  %v957 = vshrl.u32 %v680, 16
  %v959 = vrot.slane %v957, 7
  %v960 = vshll.u32 %v680, 16
  %v962 = vor.u32 %v959, %v960
  %v963 = vrot.slane %v959, 4
  %v965 = vshrl.u32 %v681, 16
  %v967 = vrot.slane %v965, 7
  %v968 = vshll.u32 %v681, 16
  %v970 = vor.u32 %v967, %v968
  %v971 = vsel %vm717, %v963, %v970
  %v972 = vrot.slane %v967, 4
  %v974 = vshrl.u32 %v682, 16
  %v976 = vrot.slane %v974, 7
  %v977 = vshll.u32 %v682, 16
  %v979 = vor.u32 %v976, %v977
  %v980 = vrot.slane %v976, 4
  %v982 = vshrl.u32 %v683, 16
  %v984 = vrot.slane %v982, 7
  %v985 = vshll.u32 %v683, 16
  %v987 = vor.u32 %v984, %v985
  %v988 = vsel %vm717, %v980, %v987
  %v989 = vrot.slane %v984, 4
  %v991 = vshrl.u32 %v684, 16
  %v993 = vrot.slane %v991, 7
  %v994 = vshll.u32 %v684, 16
  %v996 = vor.u32 %v993, %v994
  %v997 = vrot.slane %v993, 4
  %v999 = vshrl.u32 %v685, 16
  %v1001 = vrot.slane %v999, 7
  %v1002 = vshll.u32 %v685, 16
  %v1004 = vor.u32 %v1001, %v1002
  %v1005 = vsel %vm717, %v997, %v1004
  %v1006 = vrot.slane %v1001, 4
  %v1008 = vshrl.u32 %v686, 16
  %v1010 = vrot.slane %v1008, 7
  %v1011 = vshll.u32 %v686, 16
  %v1013 = vor.u32 %v1010, %v1011
  %v1014 = vrot.slane %v1010, 4
  %v1016 = vshrl.u32 %v687, 16
  %v1018 = vrot.slane %v1016, 7
  %v1019 = vshll.u32 %v687, 16
  %v1021 = vor.u32 %v1018, %v1019
  %v1022 = vsel %vm717, %v1014, %v1021
  %v1023 = vrot.slane %v1018, 4
  %v1025 = vshrl.u32 %v688, 16
  %v1027 = vrot.slane %v1025, 7
  %v1028 = vshll.u32 %v688, 16
  %v1030 = vor.u32 %v1027, %v1028
  %v1031 = vrot.slane %v1027, 4
  %v1033 = vshrl.u32 %v689, 16
  %v1035 = vrot.slane %v1033, 7
  %v1036 = vshll.u32 %v689, 16
  %v1038 = vor.u32 %v1035, %v1036
  %v1039 = vsel %vm717, %v1031, %v1038
  %v1040 = vrot.slane %v1035, 4
  %v1042 = vshrl.u32 %v690, 16
  %v1044 = vrot.slane %v1042, 7
  %v1045 = vshll.u32 %v690, 16
  %v1047 = vor.u32 %v1044, %v1045
  %v1048 = vrot.slane %v1044, 4
  %v1050 = vshrl.u32 %v691, 16
  %v1052 = vrot.slane %v1050, 7
  %v1053 = vshll.u32 %v691, 16
  %v1055 = vor.u32 %v1052, %v1053
  %v1056 = vsel %vm717, %v1048, %v1055
  %v1057 = vrot.slane %v1052, 4
  %v1059 = vshrl.u32 %v692, 16
  %v1061 = vrot.slane %v1059, 7
  %v1062 = vshll.u32 %v692, 16
  %v1064 = vor.u32 %v1061, %v1062
  %v1065 = vrot.slane %v1061, 4
  %v1067 = vshrl.u32 %v693, 16
  %v1069 = vrot.slane %v1067, 7
  %v1070 = vshll.u32 %v693, 16
  %v1072 = vor.u32 %v1069, %v1070
  %v1073 = vsel %vm717, %v1065, %v1072
  %v1074 = vrot.slane %v1069, 4
  %v1076 = vshrl.u32 %v694, 16
  %v1078 = vrot.slane %v1076, 7
  %v1079 = vshll.u32 %v694, 16
  %v1081 = vor.u32 %v1078, %v1079
  %v1082 = vrot.slane %v1078, 4
  %v1084 = vshrl.u32 %v695, 16
  %v1086 = vrot.slane %v1084, 7
  %v1087 = vshll.u32 %v695, 16
  %v1089 = vor.u32 %v1086, %v1087
  %v1090 = vsel %vm717, %v1082, %v1089
  %v1091 = vrot.slane %v1086, 4
  %v1093 = vshrl.u32 %v696, 16
  %v1095 = vrot.slane %v1093, 7
  %v1096 = vshll.u32 %v696, 16
  %v1098 = vor.u32 %v1095, %v1096
  %v1099 = vrot.slane %v1095, 4
  %v1101 = vshrl.u32 %v697, 16
  %v1103 = vrot.slane %v1101, 7
  %v1104 = vshll.u32 %v697, 16
  %v1106 = vor.u32 %v1103, %v1104
  %v1107 = vsel %vm717, %v1099, %v1106
  %v1108 = vrot.slane %v1103, 4
  %v1110 = vshrl.u32 %v698, 16
  %v1112 = vrot.slane %v1110, 7
  %v1113 = vshll.u32 %v698, 16
  %v1115 = vor.u32 %v1112, %v1113
  %v1116 = vrot.slane %v1112, 4
  %v1118 = vshrl.u32 %v699, 16
  %v1120 = vrot.slane %v1118, 7
  %v1121 = vshll.u32 %v699, 16
  %v1123 = vor.u32 %v1120, %v1121
  %v1124 = vsel %vm717, %v1116, %v1123
  %v1125 = vrot.slane %v1120, 4
  %v1127 = vshrl.u32 %v700, 16
  %v1129 = vrot.slane %v1127, 7
  %v1130 = vshll.u32 %v700, 16
  %v1132 = vor.u32 %v1129, %v1130
  %v1133 = vrot.slane %v1129, 4
  %v1135 = vshrl.u32 %v701, 16
  %v1137 = vrot.slane %v1135, 7
  %v1138 = vshll.u32 %v701, 16
  %v1140 = vor.u32 %v1137, %v1138
  %v1141 = vsel %vm717, %v1133, %v1140
  %v1142 = vrot.slane %v1137, 4
  %v1144 = vshrl.u32 %v702, 16
  %v1146 = vrot.slane %v1144, 7
  %v1147 = vshll.u32 %v702, 16
  %v1149 = vor.u32 %v1146, %v1147
  %v1150 = vrot.slane %v1146, 4
  %v1152 = vshrl.u32 %v703, 16
  %v1154 = vrot.slane %v1152, 7
  %v1155 = vshll.u32 %v703, 16
  %v1157 = vor.u32 %v1154, %v1155
  %v1158 = vsel %vm717, %v1150, %v1157
  %v1159 = vrot.slane %v1154, 4
  %v1161 = vshrl.u32 %v704, 16
  %v1163 = vrot.slane %v1161, 7
  %v1164 = vshll.u32 %v704, 16
  %v1166 = vor.u32 %v1163, %v1164
  %v1167 = vrot.slane %v1163, 4
  %v1169 = vshrl.u32 %v705, 16
  %v1171 = vrot.slane %v1169, 7
  %v1172 = vshll.u32 %v705, 16
  %v1174 = vor.u32 %v1171, %v1172
  %v1175 = vsel %vm717, %v1167, %v1174
  %v1176 = vrot.slane %v1171, 4
  %v1178 = vshrl.u32 %v706, 16
  %v1180 = vrot.slane %v1178, 7
  %v1181 = vshll.u32 %v706, 16
  %v1183 = vor.u32 %v1180, %v1181
  %v1184 = vrot.slane %v1180, 4
  %v1186 = vshrl.u32 %v707, 16
  %v1188 = vrot.slane %v1186, 7
  %v1189 = vshll.u32 %v707, 16
  %v1191 = vor.u32 %v1188, %v1189
  %v1192 = vsel %vm717, %v1184, %v1191
  %v1193 = vrot.slane %v1188, 4
  %v1195 = vshrl.u32 %v708, 16
  %v1197 = vrot.slane %v1195, 7
  %v1198 = vshll.u32 %v708, 16
  %v1200 = vor.u32 %v1197, %v1198
  %v1201 = vrot.slane %v1197, 4
  %v1203 = vshrl.u32 %v709, 16
  %v1205 = vrot.slane %v1203, 7
  %v1206 = vshll.u32 %v709, 16
  %v1208 = vor.u32 %v1205, %v1206
  %v1209 = vsel %vm717, %v1201, %v1208
  %v1210 = vrot.slane %v1205, 4
  %v1212 = vshrl.u32 %v710, 16
  %v1214 = vrot.slane %v1212, 7
  %v1215 = vshll.u32 %v710, 16
  %v1217 = vor.u32 %v1214, %v1215
  %v1218 = vrot.slane %v1214, 4
  %v1220 = vshrl.u32 %v711, 16
  %v1222 = vrot.slane %v1220, 7
  %v1223 = vshll.u32 %v711, 16
  %v1225 = vor.u32 %v1222, %v1223
  %v1226 = vsel %vm717, %v1218, %v1225
  %v1227 = vrot.slane %v1222, 4
  %v1229 = vshrl.u32 %v712, 16
  %v1231 = vrot.slane %v1229, 7
  %v1232 = vshll.u32 %v712, 16
  %v1234 = vor.u32 %v1231, %v1232
  %v1235 = vrot.slane %v1231, 4
  %v1237 = vshrl.u32 %v713, 16
  %v1239 = vrot.slane %v1237, 7
  %v1240 = vshll.u32 %v713, 16
  %v1242 = vor.u32 %v1239, %v1240
  %v1243 = vsel %vm717, %v1235, %v1242
  %v1244 = vrot.slane %v1239, 4
  %v1246 = vshrl.u32 %v714, 16
  %v1248 = vrot.slane %v1246, 7
  %v1249 = vshll.u32 %v714, 16
  %v1251 = vor.u32 %v1248, %v1249
  %v1252 = vrot.slane %v1248, 4
  %v1254 = vshrl.u32 %v715, 16
  %v1256 = vrot.slane %v1254, 7
  %v1257 = vshll.u32 %v715, 16
  %v1259 = vor.u32 %v1256, %v1257
  %v1260 = vsel %vm717, %v1252, %v1259
  %v1261 = vrot.slane %v1256, 4
  %s1358 = scalar_lea.vmem [#allocation2], 12
  %vm1359 = vcmask 27648
  %vm1360 = vmand %vm1359, %vm146
  %v1361 = vld [vmem:[%s1358] sm:$0xf]
  %v1362 = vsel %vm1360, %v724, %v1361
  %1363 = vst [vmem:[%s1358] sm:$0xf] %v1362
  %1364 = vst.msk [vmem:[%s1358 + $0x4] sm:$0xf] %vm20, %v733
  %v1365 = vld [vmem:[%s1358 + $0x8] sm:$0x1]
  %v1366 = vsel %vm37, %v734, %v1365
  %1367 = vst [vmem:[%s1358 + $0x8] sm:$0x1] %v1366
  %v1368 = vld [vmem:[%s1358 + $0xc] sm:$0xf]
  %v1369 = vsel %vm1360, %v741, %v1368
  %1370 = vst [vmem:[%s1358 + $0xc] sm:$0xf] %v1369
  %1371 = vst.msk [vmem:[%s1358 + $0x10] sm:$0xf] %vm20, %v750
  %v1372 = vld [vmem:[%s1358 + $0x14] sm:$0x1]
  %v1373 = vsel %vm37, %v751, %v1372
  %1374 = vst [vmem:[%s1358 + $0x14] sm:$0x1] %v1373
  %v1375 = vld [vmem:[%s1358 + $0x18] sm:$0xf]
  %v1376 = vsel %vm1360, %v758, %v1375
  %1377 = vst [vmem:[%s1358 + $0x18] sm:$0xf] %v1376
  %1378 = vst.msk [vmem:[%s1358 + $0x1c] sm:$0xf] %vm20, %v767
  %v1379 = vld [vmem:[%s1358 + $0x20] sm:$0x1]
  %v1380 = vsel %vm37, %v768, %v1379
  %1381 = vst [vmem:[%s1358 + $0x20] sm:$0x1] %v1380
  %v1382 = vld [vmem:[%s1358 + $0x24] sm:$0xf]
  %v1383 = vsel %vm1360, %v775, %v1382
  %1384 = vst [vmem:[%s1358 + $0x24] sm:$0xf] %v1383
  %1385 = vst.msk [vmem:[%s1358 + $0x28] sm:$0xf] %vm20, %v784
  %v1386 = vld [vmem:[%s1358 + $0x2c] sm:$0x1]
  %v1387 = vsel %vm37, %v785, %v1386
  %1388 = vst [vmem:[%s1358 + $0x2c] sm:$0x1] %v1387
  %v1389 = vld [vmem:[%s1358 + $0x30] sm:$0xf]
  %v1390 = vsel %vm1360, %v792, %v1389
  %1391 = vst [vmem:[%s1358 + $0x30] sm:$0xf] %v1390
  %1392 = vst.msk [vmem:[%s1358 + $0x34] sm:$0xf] %vm20, %v801
  %v1393 = vld [vmem:[%s1358 + $0x38] sm:$0x1]
  %v1394 = vsel %vm37, %v802, %v1393
  %1395 = vst [vmem:[%s1358 + $0x38] sm:$0x1] %v1394
  %v1396 = vld [vmem:[%s1358 + $0x3c] sm:$0xf]
  %v1397 = vsel %vm1360, %v809, %v1396
  %1398 = vst [vmem:[%s1358 + $0x3c] sm:$0xf] %v1397
  %1399 = vst.msk [vmem:[%s1358 + $0x40] sm:$0xf] %vm20, %v818
  %v1400 = vld [vmem:[%s1358 + $0x44] sm:$0x1]
  %v1401 = vsel %vm37, %v819, %v1400
  %1402 = vst [vmem:[%s1358 + $0x44] sm:$0x1] %v1401
  %v1403 = vld [vmem:[%s1358 + $0x48] sm:$0xf]
  %v1404 = vsel %vm1360, %v826, %v1403
  %1405 = vst [vmem:[%s1358 + $0x48] sm:$0xf] %v1404
  %1406 = vst.msk [vmem:[%s1358 + $0x4c] sm:$0xf] %vm20, %v835
  %v1407 = vld [vmem:[%s1358 + $0x50] sm:$0x1]
  %v1408 = vsel %vm37, %v836, %v1407
  %1409 = vst [vmem:[%s1358 + $0x50] sm:$0x1] %v1408
  %v1410 = vld [vmem:[%s1358 + $0x54] sm:$0xf]
  %v1411 = vsel %vm1360, %v843, %v1410
  %1412 = vst [vmem:[%s1358 + $0x54] sm:$0xf] %v1411
  %1413 = vst.msk [vmem:[%s1358 + $0x58] sm:$0xf] %vm20, %v852
  %v1414 = vld [vmem:[%s1358 + $0x5c] sm:$0x1]
  %v1415 = vsel %vm37, %v853, %v1414
  %1416 = vst [vmem:[%s1358 + $0x5c] sm:$0x1] %v1415
  %v1417 = vld [vmem:[%s1358 + $0x60] sm:$0xf]
  %v1418 = vsel %vm1360, %v860, %v1417
  %1419 = vst [vmem:[%s1358 + $0x60] sm:$0xf] %v1418
  %1420 = vst.msk [vmem:[%s1358 + $0x64] sm:$0xf] %vm20, %v869
  %v1421 = vld [vmem:[%s1358 + $0x68] sm:$0x1]
  %v1422 = vsel %vm37, %v870, %v1421
  %1423 = vst [vmem:[%s1358 + $0x68] sm:$0x1] %v1422
  %v1424 = vld [vmem:[%s1358 + $0x6c] sm:$0xf]
  %v1425 = vsel %vm1360, %v877, %v1424
  %1426 = vst [vmem:[%s1358 + $0x6c] sm:$0xf] %v1425
  %1427 = vst.msk [vmem:[%s1358 + $0x70] sm:$0xf] %vm20, %v886
  %v1428 = vld [vmem:[%s1358 + $0x74] sm:$0x1]
  %v1429 = vsel %vm37, %v887, %v1428
  %1430 = vst [vmem:[%s1358 + $0x74] sm:$0x1] %v1429
  %v1431 = vld [vmem:[%s1358 + $0x78] sm:$0xf]
  %v1432 = vsel %vm1360, %v894, %v1431
  %1433 = vst [vmem:[%s1358 + $0x78] sm:$0xf] %v1432
  %1434 = vst.msk [vmem:[%s1358 + $0x7c] sm:$0xf] %vm20, %v903
  %v1435 = vld [vmem:[%s1358 + $0x80] sm:$0x1]
  %v1436 = vsel %vm37, %v904, %v1435
  %1437 = vst [vmem:[%s1358 + $0x80] sm:$0x1] %v1436
  %v1438 = vld [vmem:[%s1358 + $0x84] sm:$0xf]
  %v1439 = vsel %vm1360, %v911, %v1438
  %1440 = vst [vmem:[%s1358 + $0x84] sm:$0xf] %v1439
  %1441 = vst.msk [vmem:[%s1358 + $0x88] sm:$0xf] %vm20, %v920
  %v1442 = vld [vmem:[%s1358 + $0x8c] sm:$0x1]
  %v1443 = vsel %vm37, %v921, %v1442
  %1444 = vst [vmem:[%s1358 + $0x8c] sm:$0x1] %v1443
  %v1445 = vld [vmem:[%s1358 + $0x90] sm:$0xf]
  %v1446 = vsel %vm1360, %v928, %v1445
  %1447 = vst [vmem:[%s1358 + $0x90] sm:$0xf] %v1446
  %1448 = vst.msk [vmem:[%s1358 + $0x94] sm:$0xf] %vm20, %v937
  %v1449 = vld [vmem:[%s1358 + $0x98] sm:$0x1]
  %v1450 = vsel %vm37, %v938, %v1449
  %1451 = vst [vmem:[%s1358 + $0x98] sm:$0x1] %v1450
  %v1452 = vld [vmem:[%s1358 + $0x9c] sm:$0xf]
  %v1453 = vsel %vm1360, %v945, %v1452
  %1454 = vst [vmem:[%s1358 + $0x9c] sm:$0xf] %v1453
  %1455 = vst.msk [vmem:[%s1358 + $0xa0] sm:$0xf] %vm20, %v954
  %v1456 = vld [vmem:[%s1358 + $0xa4] sm:$0x1]
  %v1457 = vsel %vm37, %v955, %v1456
  %1458 = vst [vmem:[%s1358 + $0xa4] sm:$0x1] %v1457
  %v1459 = vld [vmem:[%s1358 + $0xa8] sm:$0xf]
  %v1460 = vsel %vm1360, %v962, %v1459
  %1461 = vst [vmem:[%s1358 + $0xa8] sm:$0xf] %v1460
  %1462 = vst.msk [vmem:[%s1358 + $0xac] sm:$0xf] %vm20, %v971
  %v1463 = vld [vmem:[%s1358 + $0xb0] sm:$0x1]
  %v1464 = vsel %vm37, %v972, %v1463
  %1465 = vst [vmem:[%s1358 + $0xb0] sm:$0x1] %v1464
  %v1466 = vld [vmem:[%s1358 + $0xb4] sm:$0xf]
  %v1467 = vsel %vm1360, %v979, %v1466
  %1468 = vst [vmem:[%s1358 + $0xb4] sm:$0xf] %v1467
  %1469 = vst.msk [vmem:[%s1358 + $0xb8] sm:$0xf] %vm20, %v988
  %v1470 = vld [vmem:[%s1358 + $0xbc] sm:$0x1]
  %v1471 = vsel %vm37, %v989, %v1470
  %1472 = vst [vmem:[%s1358 + $0xbc] sm:$0x1] %v1471
  %v1473 = vld [vmem:[%s1358 + $0xd8] sm:$0xf]
  %v1474 = vsel %vm1360, %v996, %v1473
  %1475 = vst [vmem:[%s1358 + $0xd8] sm:$0xf] %v1474
  %1476 = vst.msk [vmem:[%s1358 + $0xdc] sm:$0xf] %vm20, %v1005
  %v1477 = vld [vmem:[%s1358 + $0xe0] sm:$0x1]
  %v1478 = vsel %vm37, %v1006, %v1477
  %1479 = vst [vmem:[%s1358 + $0xe0] sm:$0x1] %v1478
  %v1480 = vld [vmem:[%s1358 + $0xe4] sm:$0xf]
  %v1481 = vsel %vm1360, %v1013, %v1480
  %1482 = vst [vmem:[%s1358 + $0xe4] sm:$0xf] %v1481
  %1483 = vst.msk [vmem:[%s1358 + $0xe8] sm:$0xf] %vm20, %v1022
  %v1484 = vld [vmem:[%s1358 + $0xec] sm:$0x1]
  %v1485 = vsel %vm37, %v1023, %v1484
  %1486 = vst [vmem:[%s1358 + $0xec] sm:$0x1] %v1485
  %v1487 = vld [vmem:[%s1358 + $0xf0] sm:$0xf]
  %v1488 = vsel %vm1360, %v1030, %v1487
  %1489 = vst [vmem:[%s1358 + $0xf0] sm:$0xf] %v1488
  %1490 = vst.msk [vmem:[%s1358 + $0xf4] sm:$0xf] %vm20, %v1039
  %v1491 = vld [vmem:[%s1358 + $0xf8] sm:$0x1]
  %v1492 = vsel %vm37, %v1040, %v1491
  %1493 = vst [vmem:[%s1358 + $0xf8] sm:$0x1] %v1492
  %v1494 = vld [vmem:[%s1358 + $0xfc] sm:$0xf]
  %v1495 = vsel %vm1360, %v1047, %v1494
  %1496 = vst [vmem:[%s1358 + $0xfc] sm:$0xf] %v1495
  %1497 = vst.msk [vmem:[%s1358 + $0x100] sm:$0xf] %vm20, %v1056
  %v1498 = vld [vmem:[%s1358 + $0x104] sm:$0x1]
  %v1499 = vsel %vm37, %v1057, %v1498
  %1500 = vst [vmem:[%s1358 + $0x104] sm:$0x1] %v1499
  %v1501 = vld [vmem:[%s1358 + $0x108] sm:$0xf]
  %v1502 = vsel %vm1360, %v1064, %v1501
  %1503 = vst [vmem:[%s1358 + $0x108] sm:$0xf] %v1502
  %1504 = vst.msk [vmem:[%s1358 + $0x10c] sm:$0xf] %vm20, %v1073
  %v1505 = vld [vmem:[%s1358 + $0x110] sm:$0x1]
  %v1506 = vsel %vm37, %v1074, %v1505
  %1507 = vst [vmem:[%s1358 + $0x110] sm:$0x1] %v1506
  %v1508 = vld [vmem:[%s1358 + $0x114] sm:$0xf]
  %v1509 = vsel %vm1360, %v1081, %v1508
  %1510 = vst [vmem:[%s1358 + $0x114] sm:$0xf] %v1509
  %1511 = vst.msk [vmem:[%s1358 + $0x118] sm:$0xf] %vm20, %v1090
  %v1512 = vld [vmem:[%s1358 + $0x11c] sm:$0x1]
  %v1513 = vsel %vm37, %v1091, %v1512
  %1514 = vst [vmem:[%s1358 + $0x11c] sm:$0x1] %v1513
  %v1515 = vld [vmem:[%s1358 + $0x120] sm:$0xf]
  %v1516 = vsel %vm1360, %v1098, %v1515
  %1517 = vst [vmem:[%s1358 + $0x120] sm:$0xf] %v1516
  %1518 = vst.msk [vmem:[%s1358 + $0x124] sm:$0xf] %vm20, %v1107
  %v1519 = vld [vmem:[%s1358 + $0x128] sm:$0x1]
  %v1520 = vsel %vm37, %v1108, %v1519
  %1521 = vst [vmem:[%s1358 + $0x128] sm:$0x1] %v1520
  %v1522 = vld [vmem:[%s1358 + $0x12c] sm:$0xf]
  %v1523 = vsel %vm1360, %v1115, %v1522
  %1524 = vst [vmem:[%s1358 + $0x12c] sm:$0xf] %v1523
  %1525 = vst.msk [vmem:[%s1358 + $0x130] sm:$0xf] %vm20, %v1124
  %v1526 = vld [vmem:[%s1358 + $0x134] sm:$0x1]
  %v1527 = vsel %vm37, %v1125, %v1526
  %1528 = vst [vmem:[%s1358 + $0x134] sm:$0x1] %v1527
  %v1529 = vld [vmem:[%s1358 + $0x138] sm:$0xf]
  %v1530 = vsel %vm1360, %v1132, %v1529
  %1531 = vst [vmem:[%s1358 + $0x138] sm:$0xf] %v1530
  %1532 = vst.msk [vmem:[%s1358 + $0x13c] sm:$0xf] %vm20, %v1141
  %v1533 = vld [vmem:[%s1358 + $0x140] sm:$0x1]
  %v1534 = vsel %vm37, %v1142, %v1533
  %1535 = vst [vmem:[%s1358 + $0x140] sm:$0x1] %v1534
  %v1536 = vld [vmem:[%s1358 + $0x144] sm:$0xf]
  %v1537 = vsel %vm1360, %v1149, %v1536
  %1538 = vst [vmem:[%s1358 + $0x144] sm:$0xf] %v1537
  %1539 = vst.msk [vmem:[%s1358 + $0x148] sm:$0xf] %vm20, %v1158
  %v1540 = vld [vmem:[%s1358 + $0x14c] sm:$0x1]
  %v1541 = vsel %vm37, %v1159, %v1540
  %1542 = vst [vmem:[%s1358 + $0x14c] sm:$0x1] %v1541
  %v1543 = vld [vmem:[%s1358 + $0x150] sm:$0xf]
  %v1544 = vsel %vm1360, %v1166, %v1543
  %1545 = vst [vmem:[%s1358 + $0x150] sm:$0xf] %v1544
  %1546 = vst.msk [vmem:[%s1358 + $0x154] sm:$0xf] %vm20, %v1175
  %v1547 = vld [vmem:[%s1358 + $0x158] sm:$0x1]
  %v1548 = vsel %vm37, %v1176, %v1547
  %1549 = vst [vmem:[%s1358 + $0x158] sm:$0x1] %v1548
  %v1550 = vld [vmem:[%s1358 + $0x15c] sm:$0xf]
  %v1551 = vsel %vm1360, %v1183, %v1550
  %1552 = vst [vmem:[%s1358 + $0x15c] sm:$0xf] %v1551
  %1553 = vst.msk [vmem:[%s1358 + $0x160] sm:$0xf] %vm20, %v1192
  %v1554 = vld [vmem:[%s1358 + $0x164] sm:$0x1]
  %v1555 = vsel %vm37, %v1193, %v1554
  %1556 = vst [vmem:[%s1358 + $0x164] sm:$0x1] %v1555
  %v1557 = vld [vmem:[%s1358 + $0x168] sm:$0xf]
  %v1558 = vsel %vm1360, %v1200, %v1557
  %1559 = vst [vmem:[%s1358 + $0x168] sm:$0xf] %v1558
  %1560 = vst.msk [vmem:[%s1358 + $0x16c] sm:$0xf] %vm20, %v1209
  %v1561 = vld [vmem:[%s1358 + $0x170] sm:$0x1]
  %v1562 = vsel %vm37, %v1210, %v1561
  %1563 = vst [vmem:[%s1358 + $0x170] sm:$0x1] %v1562
  %v1564 = vld [vmem:[%s1358 + $0x174] sm:$0xf]
  %v1565 = vsel %vm1360, %v1217, %v1564
  %1566 = vst [vmem:[%s1358 + $0x174] sm:$0xf] %v1565
  %1567 = vst.msk [vmem:[%s1358 + $0x178] sm:$0xf] %vm20, %v1226
  %v1568 = vld [vmem:[%s1358 + $0x17c] sm:$0x1]
  %v1569 = vsel %vm37, %v1227, %v1568
  %1570 = vst [vmem:[%s1358 + $0x17c] sm:$0x1] %v1569
  %v1571 = vld [vmem:[%s1358 + $0x180] sm:$0xf]
  %v1572 = vsel %vm1360, %v1234, %v1571
  %1573 = vst [vmem:[%s1358 + $0x180] sm:$0xf] %v1572
  %1574 = vst.msk [vmem:[%s1358 + $0x184] sm:$0xf] %vm20, %v1243
  %v1575 = vld [vmem:[%s1358 + $0x188] sm:$0x1]
  %v1576 = vsel %vm37, %v1244, %v1575
  %1577 = vst [vmem:[%s1358 + $0x188] sm:$0x1] %v1576
  %v1578 = vld [vmem:[%s1358 + $0x18c] sm:$0xf]
  %v1579 = vsel %vm1360, %v1251, %v1578
  %1580 = vst [vmem:[%s1358 + $0x18c] sm:$0xf] %v1579
  %1581 = vst.msk [vmem:[%s1358 + $0x190] sm:$0xf] %vm20, %v1260
  %v1582 = vld [vmem:[%s1358 + $0x194] sm:$0x1]
  %v1583 = vsel %vm37, %v1261, %v1582
  %1584 = vst [vmem:[%s1358 + $0x194] sm:$0x1] %v1583
  %v1585 = vld [vmem:[#allocation2] sm:$0xf]
  %v1586 = vld [vmem:[#allocation2 + $0x4] sm:$0xf]
  %v1587 = vld [vmem:[#allocation2 + $0xc] sm:$0xf]
  %v1588 = vld [vmem:[#allocation2 + $0x10] sm:$0xf]
  %v1589 = vld [vmem:[#allocation2 + $0x18] sm:$0xf]
  %v1590 = vld [vmem:[#allocation2 + $0x1c] sm:$0xf]
  %v1591 = vld [vmem:[#allocation2 + $0x24] sm:$0xf]
  %v1592 = vld [vmem:[#allocation2 + $0x28] sm:$0xf]
  %v1593 = vld [vmem:[#allocation2 + $0x30] sm:$0xf]
  %v1594 = vld [vmem:[#allocation2 + $0x34] sm:$0xf]
  %v1595 = vld [vmem:[#allocation2 + $0x3c] sm:$0xf]
  %v1596 = vld [vmem:[#allocation2 + $0x40] sm:$0xf]
  %v1597 = vld [vmem:[#allocation2 + $0x48] sm:$0xf]
  %v1598 = vld [vmem:[#allocation2 + $0x4c] sm:$0xf]
  %v1599 = vld [vmem:[#allocation2 + $0x54] sm:$0xf]
  %v1600 = vld [vmem:[#allocation2 + $0x58] sm:$0xf]
  %v1601 = vld [vmem:[#allocation2 + $0x60] sm:$0xf]
  %v1602 = vld [vmem:[#allocation2 + $0x64] sm:$0xf]
  %v1603 = vld [vmem:[#allocation2 + $0x6c] sm:$0xf]
  %v1604 = vld [vmem:[#allocation2 + $0x70] sm:$0xf]
  %v1605 = vld [vmem:[#allocation2 + $0x78] sm:$0xf]
  %v1606 = vld [vmem:[#allocation2 + $0x7c] sm:$0xf]
  %v1607 = vld [vmem:[#allocation2 + $0x84] sm:$0xf]
  %v1608 = vld [vmem:[#allocation2 + $0x88] sm:$0xf]
  %v1609 = vld [vmem:[#allocation2 + $0x90] sm:$0xf]
  %v1610 = vld [vmem:[#allocation2 + $0x94] sm:$0xf]
  %v1611 = vld [vmem:[#allocation2 + $0x9c] sm:$0xf]
  %v1612 = vld [vmem:[#allocation2 + $0xa0] sm:$0xf]
  %v1613 = vld [vmem:[#allocation2 + $0xa8] sm:$0xf]
  %v1614 = vld [vmem:[#allocation2 + $0xac] sm:$0xf]
  %v1615 = vld [vmem:[#allocation2 + $0xb4] sm:$0xf]
  %v1616 = vld [vmem:[#allocation2 + $0xb8] sm:$0xf]
  %v1617 = vld [vmem:[#allocation2 + $0xd8] sm:$0xf]
  %v1618 = vld [vmem:[#allocation2 + $0xdc] sm:$0xf]
  %v1619 = vld [vmem:[#allocation2 + $0xe4] sm:$0xf]
  %v1620 = vld [vmem:[#allocation2 + $0xe8] sm:$0xf]
  %v1621 = vld [vmem:[#allocation2 + $0xf0] sm:$0xf]
  %v1622 = vld [vmem:[#allocation2 + $0xf4] sm:$0xf]
  %v1623 = vld [vmem:[#allocation2 + $0xfc] sm:$0xf]
  %v1624 = vld [vmem:[#allocation2 + $0x100] sm:$0xf]
  %v1625 = vld [vmem:[#allocation2 + $0x108] sm:$0xf]
  %v1626 = vld [vmem:[#allocation2 + $0x10c] sm:$0xf]
  %v1627 = vld [vmem:[#allocation2 + $0x114] sm:$0xf]
  %v1628 = vld [vmem:[#allocation2 + $0x118] sm:$0xf]
  %v1629 = vld [vmem:[#allocation2 + $0x120] sm:$0xf]
  %v1630 = vld [vmem:[#allocation2 + $0x124] sm:$0xf]
  %v1631 = vld [vmem:[#allocation2 + $0x12c] sm:$0xf]
  %v1632 = vld [vmem:[#allocation2 + $0x130] sm:$0xf]
  %v1633 = vld [vmem:[#allocation2 + $0x138] sm:$0xf]
  %v1634 = vld [vmem:[#allocation2 + $0x13c] sm:$0xf]
  %v1635 = vld [vmem:[#allocation2 + $0x144] sm:$0xf]
  %v1636 = vld [vmem:[#allocation2 + $0x148] sm:$0xf]
  %v1637 = vld [vmem:[#allocation2 + $0x150] sm:$0xf]
  %v1638 = vld [vmem:[#allocation2 + $0x154] sm:$0xf]
  %v1639 = vld [vmem:[#allocation2 + $0x15c] sm:$0xf]
  %v1640 = vld [vmem:[#allocation2 + $0x160] sm:$0xf]
  %v1641 = vld [vmem:[#allocation2 + $0x168] sm:$0xf]
  %v1642 = vld [vmem:[#allocation2 + $0x16c] sm:$0xf]
  %v1643 = vld [vmem:[#allocation2 + $0x174] sm:$0xf]
  %v1644 = vld [vmem:[#allocation2 + $0x178] sm:$0xf]
  %v1645 = vld [vmem:[#allocation2 + $0x180] sm:$0xf]
  %v1646 = vld [vmem:[#allocation2 + $0x184] sm:$0xf]
  %v1647 = vld [vmem:[#allocation2 + $0x18c] sm:$0xf]
  %v1648 = vld [vmem:[#allocation2 + $0x190] sm:$0xf]
  %v1713 = vunpack.c.l.b16 %v1585
  %v1714 = vunpack.c.l.b16 %v1586
  %v1715 = vunpack.c.l.b16 %v1587
  %v1716 = vunpack.c.l.b16 %v1588
  %v1717 = vunpack.c.l.b16 %v1589
  %v1718 = vunpack.c.l.b16 %v1590
  %v1719 = vunpack.c.l.b16 %v1591
  %v1720 = vunpack.c.l.b16 %v1592
  %v1721 = vunpack.c.l.b16 %v1593
  %v1722 = vunpack.c.l.b16 %v1594
  %v1723 = vunpack.c.l.b16 %v1595
  %v1724 = vunpack.c.l.b16 %v1596
  %v1725 = vunpack.c.l.b16 %v1597
  %v1726 = vunpack.c.l.b16 %v1598
  %v1727 = vunpack.c.l.b16 %v1599
  %v1728 = vunpack.c.l.b16 %v1600
  %v1729 = vunpack.c.l.b16 %v1601
  %v1730 = vunpack.c.l.b16 %v1602
  %v1731 = vunpack.c.l.b16 %v1603
  %v1732 = vunpack.c.l.b16 %v1604
  %v1733 = vunpack.c.l.b16 %v1605
  %v1734 = vunpack.c.l.b16 %v1606
  %v1735 = vunpack.c.l.b16 %v1607
  %v1736 = vunpack.c.l.b16 %v1608
  %v1737 = vunpack.c.l.b16 %v1609
  %v1738 = vunpack.c.l.b16 %v1610
  %v1739 = vunpack.c.l.b16 %v1611
  %v1740 = vunpack.c.l.b16 %v1612
  %v1741 = vunpack.c.l.b16 %v1613
  %v1742 = vunpack.c.l.b16 %v1614
  %v1743 = vunpack.c.l.b16 %v1615
  %v1744 = vunpack.c.l.b16 %v1616
  %v1745 = vunpack.c.l.b16 %v1617
  %v1746 = vunpack.c.l.b16 %v1618
  %v1747 = vunpack.c.l.b16 %v1619
  %v1748 = vunpack.c.l.b16 %v1620
  %v1749 = vunpack.c.l.b16 %v1621
  %v1750 = vunpack.c.l.b16 %v1622
  %v1751 = vunpack.c.l.b16 %v1623
  %v1752 = vunpack.c.l.b16 %v1624
  %v1753 = vunpack.c.l.b16 %v1625
  %v1754 = vunpack.c.l.b16 %v1626
  %v1755 = vunpack.c.l.b16 %v1627
  %v1756 = vunpack.c.l.b16 %v1628
  %v1757 = vunpack.c.l.b16 %v1629
  %v1758 = vunpack.c.l.b16 %v1630
  %v1759 = vunpack.c.l.b16 %v1631
  %v1760 = vunpack.c.l.b16 %v1632
  %v1761 = vunpack.c.l.b16 %v1633
  %v1762 = vunpack.c.l.b16 %v1634
  %v1763 = vunpack.c.l.b16 %v1635
  %v1764 = vunpack.c.l.b16 %v1636
  %v1765 = vunpack.c.l.b16 %v1637
  %v1766 = vunpack.c.l.b16 %v1638
  %v1767 = vunpack.c.l.b16 %v1639
  %v1768 = vunpack.c.l.b16 %v1640
  %v1769 = vunpack.c.l.b16 %v1641
  %v1770 = vunpack.c.l.b16 %v1642
  %v1771 = vunpack.c.l.b16 %v1643
  %v1772 = vunpack.c.l.b16 %v1644
  %v1773 = vunpack.c.l.b16 %v1645
  %v1774 = vunpack.c.l.b16 %v1646
  %v1775 = vunpack.c.l.b16 %v1647
  %v1776 = vunpack.c.l.b16 %v1648
  %v1777 = vpack.c.b16 %v1714, %v1713
  %v1778 = vpack.c.b16 %v1716, %v1715
  %v1779 = vpack.c.b16 %v1718, %v1717
  %v1780 = vpack.c.b16 %v1720, %v1719
  %v1781 = vpack.c.b16 %v1722, %v1721
  %v1782 = vpack.c.b16 %v1724, %v1723
  %v1783 = vpack.c.b16 %v1726, %v1725
  %v1784 = vpack.c.b16 %v1728, %v1727
  %v1785 = vpack.c.b16 %v1730, %v1729
  %v1786 = vpack.c.b16 %v1732, %v1731
  %v1787 = vpack.c.b16 %v1734, %v1733
  %v1788 = vpack.c.b16 %v1736, %v1735
  %v1789 = vpack.c.b16 %v1738, %v1737
  %v1790 = vpack.c.b16 %v1740, %v1739
  %v1791 = vpack.c.b16 %v1742, %v1741
  %v1792 = vpack.c.b16 %v1744, %v1743
  %v1793 = vpack.c.b16 %v1746, %v1745
  %v1794 = vpack.c.b16 %v1748, %v1747
  %v1795 = vpack.c.b16 %v1750, %v1749
  %v1796 = vpack.c.b16 %v1752, %v1751
  %v1797 = vpack.c.b16 %v1754, %v1753
  %v1798 = vpack.c.b16 %v1756, %v1755
  %v1799 = vpack.c.b16 %v1758, %v1757
  %v1800 = vpack.c.b16 %v1760, %v1759
  %v1801 = vpack.c.b16 %v1762, %v1761
  %v1802 = vpack.c.b16 %v1764, %v1763
  %v1803 = vpack.c.b16 %v1766, %v1765
  %v1804 = vpack.c.b16 %v1768, %v1767
  %v1805 = vpack.c.b16 %v1770, %v1769
  %v1806 = vpack.c.b16 %v1772, %v1771
  %v1807 = vpack.c.b16 %v1774, %v1773
  %v1808 = vpack.c.b16 %v1776, %v1775
  %vm1841 = vcmask 31744
  %1842 = vst.msk [vmem:[#allocation3] sm:$0xff] %vm1841, %v1777
  %1843 = vst.msk [vmem:[#allocation3 + $0x8] sm:$0xff] %vm1841, %v1778
  %1844 = vst.msk [vmem:[#allocation3 + $0x10] sm:$0xff] %vm1841, %v1779
  %1845 = vst.msk [vmem:[#allocation3 + $0x18] sm:$0xff] %vm1841, %v1780
  %1846 = vst.msk [vmem:[#allocation3 + $0x20] sm:$0xff] %vm1841, %v1781
  %1847 = vst.msk [vmem:[#allocation3 + $0x28] sm:$0xff] %vm1841, %v1782
  %1848 = vst.msk [vmem:[#allocation3 + $0x30] sm:$0xff] %vm1841, %v1783
  %1849 = vst.msk [vmem:[#allocation3 + $0x38] sm:$0xff] %vm1841, %v1784
  %1850 = vst.msk [vmem:[#allocation3 + $0x40] sm:$0xff] %vm1841, %v1785
  %1851 = vst.msk [vmem:[#allocation3 + $0x48] sm:$0xff] %vm1841, %v1786
  %1852 = vst.msk [vmem:[#allocation3 + $0x50] sm:$0xff] %vm1841, %v1787
  %1853 = vst.msk [vmem:[#allocation3 + $0x58] sm:$0xff] %vm1841, %v1788
  %1854 = vst.msk [vmem:[#allocation3 + $0x60] sm:$0xff] %vm1841, %v1789
  %1855 = vst.msk [vmem:[#allocation3 + $0x68] sm:$0xff] %vm1841, %v1790
  %1856 = vst.msk [vmem:[#allocation3 + $0x70] sm:$0xff] %vm1841, %v1791
  %1857 = vst.msk [vmem:[#allocation3 + $0x78] sm:$0xff] %vm1841, %v1792
  %1858 = vst.msk [vmem:[#allocation3 + $0x80] sm:$0xff] %vm1841, %v1793
  %1859 = vst.msk [vmem:[#allocation3 + $0x88] sm:$0xff] %vm1841, %v1794
  %1860 = vst.msk [vmem:[#allocation3 + $0x90] sm:$0xff] %vm1841, %v1795
  %1861 = vst.msk [vmem:[#allocation3 + $0x98] sm:$0xff] %vm1841, %v1796
  %1862 = vst.msk [vmem:[#allocation3 + $0xa0] sm:$0xff] %vm1841, %v1797
  %1863 = vst.msk [vmem:[#allocation3 + $0xa8] sm:$0xff] %vm1841, %v1798
  %1864 = vst.msk [vmem:[#allocation3 + $0xb0] sm:$0xff] %vm1841, %v1799
  %1865 = vst.msk [vmem:[#allocation3 + $0xb8] sm:$0xff] %vm1841, %v1800
  %1866 = vst.msk [vmem:[#allocation3 + $0xc0] sm:$0xff] %vm1841, %v1801
  %1867 = vst.msk [vmem:[#allocation3 + $0xc8] sm:$0xff] %vm1841, %v1802
  %1868 = vst.msk [vmem:[#allocation3 + $0xd0] sm:$0xff] %vm1841, %v1803
  %1869 = vst.msk [vmem:[#allocation3 + $0xd8] sm:$0xff] %vm1841, %v1804
  %1870 = vst.msk [vmem:[#allocation3 + $0xe0] sm:$0xff] %vm1841, %v1805
  %1871 = vst.msk [vmem:[#allocation3 + $0xe8] sm:$0xff] %vm1841, %v1806
  %1872 = vst.msk [vmem:[#allocation3 + $0xf0] sm:$0xff] %vm1841, %v1807
  %1873 = vst.msk [vmem:[#allocation3 + $0xf8] sm:$0xff] %vm1841, %v1808
  %v1874 = vld [vmem:[#allocation2] sm:$0xf]
  %v1875 = vld [vmem:[#allocation2 + $0x4] sm:$0xf]
  %v1876 = vld [vmem:[#allocation2 + $0x8] sm:$0x1]
  %v1877 = vld [vmem:[#allocation2 + $0xc] sm:$0xf]
  %v1878 = vld [vmem:[#allocation2 + $0x10] sm:$0xf]
  %v1879 = vld [vmem:[#allocation2 + $0x14] sm:$0x1]
  %v1880 = vld [vmem:[#allocation2 + $0x18] sm:$0xf]
  %v1881 = vld [vmem:[#allocation2 + $0x1c] sm:$0xf]
  %v1882 = vld [vmem:[#allocation2 + $0x20] sm:$0x1]
  %v1883 = vld [vmem:[#allocation2 + $0x24] sm:$0xf]
  %v1884 = vld [vmem:[#allocation2 + $0x28] sm:$0xf]
  %v1885 = vld [vmem:[#allocation2 + $0x2c] sm:$0x1]
  %v1886 = vld [vmem:[#allocation2 + $0x30] sm:$0xf]
  %v1887 = vld [vmem:[#allocation2 + $0x34] sm:$0xf]
  %v1888 = vld [vmem:[#allocation2 + $0x38] sm:$0x1]
  %v1889 = vld [vmem:[#allocation2 + $0x3c] sm:$0xf]
  %v1890 = vld [vmem:[#allocation2 + $0x40] sm:$0xf]
  %v1891 = vld [vmem:[#allocation2 + $0x44] sm:$0x1]
  %v1892 = vld [vmem:[#allocation2 + $0x48] sm:$0xf]
  %v1893 = vld [vmem:[#allocation2 + $0x4c] sm:$0xf]
  %v1894 = vld [vmem:[#allocation2 + $0x50] sm:$0x1]
  %v1895 = vld [vmem:[#allocation2 + $0x54] sm:$0xf]
  %v1896 = vld [vmem:[#allocation2 + $0x58] sm:$0xf]
  %v1897 = vld [vmem:[#allocation2 + $0x5c] sm:$0x1]
  %v1898 = vld [vmem:[#allocation2 + $0x60] sm:$0xf]
  %v1899 = vld [vmem:[#allocation2 + $0x64] sm:$0xf]
  %v1900 = vld [vmem:[#allocation2 + $0x68] sm:$0x1]
  %v1901 = vld [vmem:[#allocation2 + $0x6c] sm:$0xf]
  %v1902 = vld [vmem:[#allocation2 + $0x70] sm:$0xf]
  %v1903 = vld [vmem:[#allocation2 + $0x74] sm:$0x1]
  %v1904 = vld [vmem:[#allocation2 + $0x78] sm:$0xf]
  %v1905 = vld [vmem:[#allocation2 + $0x7c] sm:$0xf]
  %v1906 = vld [vmem:[#allocation2 + $0x80] sm:$0x1]
  %v1907 = vld [vmem:[#allocation2 + $0x84] sm:$0xf]
  %v1908 = vld [vmem:[#allocation2 + $0x88] sm:$0xf]
  %v1909 = vld [vmem:[#allocation2 + $0x8c] sm:$0x1]
  %v1910 = vld [vmem:[#allocation2 + $0x90] sm:$0xf]
  %v1911 = vld [vmem:[#allocation2 + $0x94] sm:$0xf]
  %v1912 = vld [vmem:[#allocation2 + $0x98] sm:$0x1]
  %v1913 = vld [vmem:[#allocation2 + $0x9c] sm:$0xf]
  %v1914 = vld [vmem:[#allocation2 + $0xa0] sm:$0xf]
  %v1915 = vld [vmem:[#allocation2 + $0xa4] sm:$0x1]
  %v1916 = vld [vmem:[#allocation2 + $0xa8] sm:$0xf]
  %v1917 = vld [vmem:[#allocation2 + $0xac] sm:$0xf]
  %v1918 = vld [vmem:[#allocation2 + $0xb0] sm:$0x1]
  %v1919 = vld [vmem:[#allocation2 + $0xb4] sm:$0xf]
  %v1920 = vld [vmem:[#allocation2 + $0xb8] sm:$0xf]
  %v1921 = vld [vmem:[#allocation2 + $0xbc] sm:$0x1]
  %v1922 = vld [vmem:[#allocation2 + $0xd8] sm:$0xf]
  %v1923 = vld [vmem:[#allocation2 + $0xdc] sm:$0xf]
  %v1924 = vld [vmem:[#allocation2 + $0xe0] sm:$0x1]
  %v1925 = vld [vmem:[#allocation2 + $0xe4] sm:$0xf]
  %v1926 = vld [vmem:[#allocation2 + $0xe8] sm:$0xf]
  %v1927 = vld [vmem:[#allocation2 + $0xec] sm:$0x1]
  %v1928 = vld [vmem:[#allocation2 + $0xf0] sm:$0xf]
  %v1929 = vld [vmem:[#allocation2 + $0xf4] sm:$0xf]
  %v1930 = vld [vmem:[#allocation2 + $0xf8] sm:$0x1]
  %v1931 = vld [vmem:[#allocation2 + $0xfc] sm:$0xf]
  %v1932 = vld [vmem:[#allocation2 + $0x100] sm:$0xf]
  %v1933 = vld [vmem:[#allocation2 + $0x104] sm:$0x1]
  %v1934 = vld [vmem:[#allocation2 + $0x108] sm:$0xf]
  %v1935 = vld [vmem:[#allocation2 + $0x10c] sm:$0xf]
  %v1936 = vld [vmem:[#allocation2 + $0x110] sm:$0x1]
  %v1937 = vld [vmem:[#allocation2 + $0x114] sm:$0xf]
  %v1938 = vld [vmem:[#allocation2 + $0x118] sm:$0xf]
  %v1939 = vld [vmem:[#allocation2 + $0x11c] sm:$0x1]
  %v1940 = vld [vmem:[#allocation2 + $0x120] sm:$0xf]
  %v1941 = vld [vmem:[#allocation2 + $0x124] sm:$0xf]
  %v1942 = vld [vmem:[#allocation2 + $0x128] sm:$0x1]
  %v1943 = vld [vmem:[#allocation2 + $0x12c] sm:$0xf]
  %v1944 = vld [vmem:[#allocation2 + $0x130] sm:$0xf]
  %v1945 = vld [vmem:[#allocation2 + $0x134] sm:$0x1]
  %v1946 = vld [vmem:[#allocation2 + $0x138] sm:$0xf]
  %v1947 = vld [vmem:[#allocation2 + $0x13c] sm:$0xf]
  %v1948 = vld [vmem:[#allocation2 + $0x140] sm:$0x1]
  %v1949 = vld [vmem:[#allocation2 + $0x144] sm:$0xf]
  %v1950 = vld [vmem:[#allocation2 + $0x148] sm:$0xf]
  %v1951 = vld [vmem:[#allocation2 + $0x14c] sm:$0x1]
  %v1952 = vld [vmem:[#allocation2 + $0x150] sm:$0xf]
  %v1953 = vld [vmem:[#allocation2 + $0x154] sm:$0xf]
  %v1954 = vld [vmem:[#allocation2 + $0x158] sm:$0x1]
  %v1955 = vld [vmem:[#allocation2 + $0x15c] sm:$0xf]
  %v1956 = vld [vmem:[#allocation2 + $0x160] sm:$0xf]
  %v1957 = vld [vmem:[#allocation2 + $0x164] sm:$0x1]
  %v1958 = vld [vmem:[#allocation2 + $0x168] sm:$0xf]
  %v1959 = vld [vmem:[#allocation2 + $0x16c] sm:$0xf]
  %v1960 = vld [vmem:[#allocation2 + $0x170] sm:$0x1]
  %v1961 = vld [vmem:[#allocation2 + $0x174] sm:$0xf]
  %v1962 = vld [vmem:[#allocation2 + $0x178] sm:$0xf]
  %v1963 = vld [vmem:[#allocation2 + $0x17c] sm:$0x1]
  %v1964 = vld [vmem:[#allocation2 + $0x180] sm:$0xf]
  %v1965 = vld [vmem:[#allocation2 + $0x184] sm:$0xf]
  %v1966 = vld [vmem:[#allocation2 + $0x188] sm:$0x1]
  %v1967 = vld [vmem:[#allocation2 + $0x18c] sm:$0xf]
  %v1968 = vld [vmem:[#allocation2 + $0x190] sm:$0xf]
  %v1969 = vld [vmem:[#allocation2 + $0x194] sm:$0x1]
  %vm1970 = vsmask.f32 3328
  %vm1971 = vsmask.f32 7440
  %vm1972 = vmor %vm1970, %vm1971
  %v1974 = vshrl.u32 %v1874, 16
  %v1976 = vrot.slane %v1974, 4
  %v1977 = vshll.u32 %v1874, 16
  %v1979 = vrot.slane %v1977, 5
  %v1980 = vor.u32 %v1976, %v1979
  %v1981 = vrot.slane %v1980, 4
  %v1983 = vshll.u32 %v1875, 16
  %v1985 = vrot.slane %v1983, 5
  %v1986 = vsel %vm1972, %v1981, %v1985
  %v1987 = vshrl.u32 %v1875, 16
  %v1989 = vrot.slane %v1987, 4
  %v1990 = vor.u32 %v1989, %v1985
  %v1991 = vrot.slane %v1990, 4
  %v1993 = vshll.u32 %v1876, 16
  %v1995 = vrot.slane %v1993, 5
  %v1996 = vsel %vm1972, %v1991, %v1995
  %v1998 = vshrl.u32 %v1877, 16
  %v2000 = vrot.slane %v1998, 4
  %v2001 = vshll.u32 %v1877, 16
  %v2003 = vrot.slane %v2001, 5
  %v2004 = vor.u32 %v2000, %v2003
  %v2005 = vrot.slane %v2004, 4
  %v2007 = vshll.u32 %v1878, 16
  %v2009 = vrot.slane %v2007, 5
  %v2010 = vsel %vm1972, %v2005, %v2009
  %v2011 = vshrl.u32 %v1878, 16
  %v2013 = vrot.slane %v2011, 4
  %v2014 = vor.u32 %v2013, %v2009
  %v2015 = vrot.slane %v2014, 4
  %v2017 = vshll.u32 %v1879, 16
  %v2019 = vrot.slane %v2017, 5
  %v2020 = vsel %vm1972, %v2015, %v2019
  %v2022 = vshrl.u32 %v1880, 16
  %v2024 = vrot.slane %v2022, 4
  %v2025 = vshll.u32 %v1880, 16
  %v2027 = vrot.slane %v2025, 5
  %v2028 = vor.u32 %v2024, %v2027
  %v2029 = vrot.slane %v2028, 4
  %v2031 = vshll.u32 %v1881, 16
  %v2033 = vrot.slane %v2031, 5
  %v2034 = vsel %vm1972, %v2029, %v2033
  %v2035 = vshrl.u32 %v1881, 16
  %v2037 = vrot.slane %v2035, 4
  %v2038 = vor.u32 %v2037, %v2033
  %v2039 = vrot.slane %v2038, 4
  %v2041 = vshll.u32 %v1882, 16
  %v2043 = vrot.slane %v2041, 5
  %v2044 = vsel %vm1972, %v2039, %v2043
  %v2046 = vshrl.u32 %v1883, 16
  %v2048 = vrot.slane %v2046, 4
  %v2049 = vshll.u32 %v1883, 16
  %v2051 = vrot.slane %v2049, 5
  %v2052 = vor.u32 %v2048, %v2051
  %v2053 = vrot.slane %v2052, 4
  %v2055 = vshll.u32 %v1884, 16
  %v2057 = vrot.slane %v2055, 5
  %v2058 = vsel %vm1972, %v2053, %v2057
  %v2059 = vshrl.u32 %v1884, 16
  %v2061 = vrot.slane %v2059, 4
  %v2062 = vor.u32 %v2061, %v2057
  %v2063 = vrot.slane %v2062, 4
  %v2065 = vshll.u32 %v1885, 16
  %v2067 = vrot.slane %v2065, 5
  %v2068 = vsel %vm1972, %v2063, %v2067
  %v2070 = vshrl.u32 %v1886, 16
  %v2072 = vrot.slane %v2070, 4
  %v2073 = vshll.u32 %v1886, 16
  %v2075 = vrot.slane %v2073, 5
  %v2076 = vor.u32 %v2072, %v2075
  %v2077 = vrot.slane %v2076, 4
  %v2079 = vshll.u32 %v1887, 16
  %v2081 = vrot.slane %v2079, 5
  %v2082 = vsel %vm1972, %v2077, %v2081
  %v2083 = vshrl.u32 %v1887, 16
  %v2085 = vrot.slane %v2083, 4
  %v2086 = vor.u32 %v2085, %v2081
  %v2087 = vrot.slane %v2086, 4
  %v2089 = vshll.u32 %v1888, 16
  %v2091 = vrot.slane %v2089, 5
  %v2092 = vsel %vm1972, %v2087, %v2091
  %v2094 = vshrl.u32 %v1889, 16
  %v2096 = vrot.slane %v2094, 4
  %v2097 = vshll.u32 %v1889, 16
  %v2099 = vrot.slane %v2097, 5
  %v2100 = vor.u32 %v2096, %v2099
  %v2101 = vrot.slane %v2100, 4
  %v2103 = vshll.u32 %v1890, 16
  %v2105 = vrot.slane %v2103, 5
  %v2106 = vsel %vm1972, %v2101, %v2105
  %v2107 = vshrl.u32 %v1890, 16
  %v2109 = vrot.slane %v2107, 4
  %v2110 = vor.u32 %v2109, %v2105
  %v2111 = vrot.slane %v2110, 4
  %v2113 = vshll.u32 %v1891, 16
  %v2115 = vrot.slane %v2113, 5
  %v2116 = vsel %vm1972, %v2111, %v2115
  %v2118 = vshrl.u32 %v1892, 16
  %v2120 = vrot.slane %v2118, 4
  %v2121 = vshll.u32 %v1892, 16
  %v2123 = vrot.slane %v2121, 5
  %v2124 = vor.u32 %v2120, %v2123
  %v2125 = vrot.slane %v2124, 4
  %v2127 = vshll.u32 %v1893, 16
  %v2129 = vrot.slane %v2127, 5
  %v2130 = vsel %vm1972, %v2125, %v2129
  %v2131 = vshrl.u32 %v1893, 16
  %v2133 = vrot.slane %v2131, 4
  %v2134 = vor.u32 %v2133, %v2129
  %v2135 = vrot.slane %v2134, 4
  %v2137 = vshll.u32 %v1894, 16
  %v2139 = vrot.slane %v2137, 5
  %v2140 = vsel %vm1972, %v2135, %v2139
  %v2142 = vshrl.u32 %v1895, 16
  %v2144 = vrot.slane %v2142, 4
  %v2145 = vshll.u32 %v1895, 16
  %v2147 = vrot.slane %v2145, 5
  %v2148 = vor.u32 %v2144, %v2147
  %v2149 = vrot.slane %v2148, 4
  %v2151 = vshll.u32 %v1896, 16
  %v2153 = vrot.slane %v2151, 5
  %v2154 = vsel %vm1972, %v2149, %v2153
  %v2155 = vshrl.u32 %v1896, 16
  %v2157 = vrot.slane %v2155, 4
  %v2158 = vor.u32 %v2157, %v2153
  %v2159 = vrot.slane %v2158, 4
  %v2161 = vshll.u32 %v1897, 16
  %v2163 = vrot.slane %v2161, 5
  %v2164 = vsel %vm1972, %v2159, %v2163
  %v2166 = vshrl.u32 %v1898, 16
  %v2168 = vrot.slane %v2166, 4
  %v2169 = vshll.u32 %v1898, 16
  %v2171 = vrot.slane %v2169, 5
  %v2172 = vor.u32 %v2168, %v2171
  %v2173 = vrot.slane %v2172, 4
  %v2175 = vshll.u32 %v1899, 16
  %v2177 = vrot.slane %v2175, 5
  %v2178 = vsel %vm1972, %v2173, %v2177
  %v2179 = vshrl.u32 %v1899, 16
  %v2181 = vrot.slane %v2179, 4
  %v2182 = vor.u32 %v2181, %v2177
  %v2183 = vrot.slane %v2182, 4
  %v2185 = vshll.u32 %v1900, 16
  %v2187 = vrot.slane %v2185, 5
  %v2188 = vsel %vm1972, %v2183, %v2187
  %v2190 = vshrl.u32 %v1901, 16
  %v2192 = vrot.slane %v2190, 4
  %v2193 = vshll.u32 %v1901, 16
  %v2195 = vrot.slane %v2193, 5
  %v2196 = vor.u32 %v2192, %v2195
  %v2197 = vrot.slane %v2196, 4
  %v2199 = vshll.u32 %v1902, 16
  %v2201 = vrot.slane %v2199, 5
  %v2202 = vsel %vm1972, %v2197, %v2201
  %v2203 = vshrl.u32 %v1902, 16
  %v2205 = vrot.slane %v2203, 4
  %v2206 = vor.u32 %v2205, %v2201
  %v2207 = vrot.slane %v2206, 4
  %v2209 = vshll.u32 %v1903, 16
  %v2211 = vrot.slane %v2209, 5
  %v2212 = vsel %vm1972, %v2207, %v2211
  %v2214 = vshrl.u32 %v1904, 16
  %v2216 = vrot.slane %v2214, 4
  %v2217 = vshll.u32 %v1904, 16
  %v2219 = vrot.slane %v2217, 5
  %v2220 = vor.u32 %v2216, %v2219
  %v2221 = vrot.slane %v2220, 4
  %v2223 = vshll.u32 %v1905, 16
  %v2225 = vrot.slane %v2223, 5
  %v2226 = vsel %vm1972, %v2221, %v2225
  %v2227 = vshrl.u32 %v1905, 16
  %v2229 = vrot.slane %v2227, 4
  %v2230 = vor.u32 %v2229, %v2225
  %v2231 = vrot.slane %v2230, 4
  %v2233 = vshll.u32 %v1906, 16
  %v2235 = vrot.slane %v2233, 5
  %v2236 = vsel %vm1972, %v2231, %v2235
  %v2238 = vshrl.u32 %v1907, 16
  %v2240 = vrot.slane %v2238, 4
  %v2241 = vshll.u32 %v1907, 16
  %v2243 = vrot.slane %v2241, 5
  %v2244 = vor.u32 %v2240, %v2243
  %v2245 = vrot.slane %v2244, 4
  %v2247 = vshll.u32 %v1908, 16
  %v2249 = vrot.slane %v2247, 5
  %v2250 = vsel %vm1972, %v2245, %v2249
  %v2251 = vshrl.u32 %v1908, 16
  %v2253 = vrot.slane %v2251, 4
  %v2254 = vor.u32 %v2253, %v2249
  %v2255 = vrot.slane %v2254, 4
  %v2257 = vshll.u32 %v1909, 16
  %v2259 = vrot.slane %v2257, 5
  %v2260 = vsel %vm1972, %v2255, %v2259
  %v2262 = vshrl.u32 %v1910, 16
  %v2264 = vrot.slane %v2262, 4
  %v2265 = vshll.u32 %v1910, 16
  %v2267 = vrot.slane %v2265, 5
  %v2268 = vor.u32 %v2264, %v2267
  %v2269 = vrot.slane %v2268, 4
  %v2271 = vshll.u32 %v1911, 16
  %v2273 = vrot.slane %v2271, 5
  %v2274 = vsel %vm1972, %v2269, %v2273
  %v2275 = vshrl.u32 %v1911, 16
  %v2277 = vrot.slane %v2275, 4
  %v2278 = vor.u32 %v2277, %v2273
  %v2279 = vrot.slane %v2278, 4
  %v2281 = vshll.u32 %v1912, 16
  %v2283 = vrot.slane %v2281, 5
  %v2284 = vsel %vm1972, %v2279, %v2283
  %v2286 = vshrl.u32 %v1913, 16
  %v2288 = vrot.slane %v2286, 4
  %v2289 = vshll.u32 %v1913, 16
  %v2291 = vrot.slane %v2289, 5
  %v2292 = vor.u32 %v2288, %v2291
  %v2293 = vrot.slane %v2292, 4
  %v2295 = vshll.u32 %v1914, 16
  %v2297 = vrot.slane %v2295, 5
  %v2298 = vsel %vm1972, %v2293, %v2297
  %v2299 = vshrl.u32 %v1914, 16
  %v2301 = vrot.slane %v2299, 4
  %v2302 = vor.u32 %v2301, %v2297
  %v2303 = vrot.slane %v2302, 4
  %v2305 = vshll.u32 %v1915, 16
  %v2307 = vrot.slane %v2305, 5
  %v2308 = vsel %vm1972, %v2303, %v2307
  %v2310 = vshrl.u32 %v1916, 16
  %v2312 = vrot.slane %v2310, 4
  %v2313 = vshll.u32 %v1916, 16
  %v2315 = vrot.slane %v2313, 5
  %v2316 = vor.u32 %v2312, %v2315
  %v2317 = vrot.slane %v2316, 4
  %v2319 = vshll.u32 %v1917, 16
  %v2321 = vrot.slane %v2319, 5
  %v2322 = vsel %vm1972, %v2317, %v2321
  %v2323 = vshrl.u32 %v1917, 16
  %v2325 = vrot.slane %v2323, 4
  %v2326 = vor.u32 %v2325, %v2321
  %v2327 = vrot.slane %v2326, 4
  %v2329 = vshll.u32 %v1918, 16
  %v2331 = vrot.slane %v2329, 5
  %v2332 = vsel %vm1972, %v2327, %v2331
  %v2334 = vshrl.u32 %v1919, 16
  %v2336 = vrot.slane %v2334, 4
  %v2337 = vshll.u32 %v1919, 16
  %v2339 = vrot.slane %v2337, 5
  %v2340 = vor.u32 %v2336, %v2339
  %v2341 = vrot.slane %v2340, 4
  %v2343 = vshll.u32 %v1920, 16
  %v2345 = vrot.slane %v2343, 5
  %v2346 = vsel %vm1972, %v2341, %v2345
  %v2347 = vshrl.u32 %v1920, 16
  %v2349 = vrot.slane %v2347, 4
  %v2350 = vor.u32 %v2349, %v2345
  %v2351 = vrot.slane %v2350, 4
  %v2353 = vshll.u32 %v1921, 16
  %v2355 = vrot.slane %v2353, 5
  %v2356 = vsel %vm1972, %v2351, %v2355
  %v2358 = vshrl.u32 %v1922, 16
  %v2360 = vrot.slane %v2358, 4
  %v2361 = vshll.u32 %v1922, 16
  %v2363 = vrot.slane %v2361, 5
  %v2364 = vor.u32 %v2360, %v2363
  %v2365 = vrot.slane %v2364, 4
  %v2367 = vshll.u32 %v1923, 16
  %v2369 = vrot.slane %v2367, 5
  %v2370 = vsel %vm1972, %v2365, %v2369
  %v2371 = vshrl.u32 %v1923, 16
  %v2373 = vrot.slane %v2371, 4
  %v2374 = vor.u32 %v2373, %v2369
  %v2375 = vrot.slane %v2374, 4
  %v2377 = vshll.u32 %v1924, 16
  %v2379 = vrot.slane %v2377, 5
  %v2380 = vsel %vm1972, %v2375, %v2379
  %v2382 = vshrl.u32 %v1925, 16
  %v2384 = vrot.slane %v2382, 4
  %v2385 = vshll.u32 %v1925, 16
  %v2387 = vrot.slane %v2385, 5
  %v2388 = vor.u32 %v2384, %v2387
  %v2389 = vrot.slane %v2388, 4
  %v2391 = vshll.u32 %v1926, 16
  %v2393 = vrot.slane %v2391, 5
  %v2394 = vsel %vm1972, %v2389, %v2393
  %v2395 = vshrl.u32 %v1926, 16
  %v2397 = vrot.slane %v2395, 4
  %v2398 = vor.u32 %v2397, %v2393
  %v2399 = vrot.slane %v2398, 4
  %v2401 = vshll.u32 %v1927, 16
  %v2403 = vrot.slane %v2401, 5
  %v2404 = vsel %vm1972, %v2399, %v2403
  %v2406 = vshrl.u32 %v1928, 16
  %v2408 = vrot.slane %v2406, 4
  %v2409 = vshll.u32 %v1928, 16
  %v2411 = vrot.slane %v2409, 5
  %v2412 = vor.u32 %v2408, %v2411
  %v2413 = vrot.slane %v2412, 4
  %v2415 = vshll.u32 %v1929, 16
  %v2417 = vrot.slane %v2415, 5
  %v2418 = vsel %vm1972, %v2413, %v2417
  %v2419 = vshrl.u32 %v1929, 16
  %v2421 = vrot.slane %v2419, 4
  %v2422 = vor.u32 %v2421, %v2417
  %v2423 = vrot.slane %v2422, 4
  %v2425 = vshll.u32 %v1930, 16
  %v2427 = vrot.slane %v2425, 5
  %v2428 = vsel %vm1972, %v2423, %v2427
  %v2430 = vshrl.u32 %v1931, 16
  %v2432 = vrot.slane %v2430, 4
  %v2433 = vshll.u32 %v1931, 16
  %v2435 = vrot.slane %v2433, 5
  %v2436 = vor.u32 %v2432, %v2435
  %v2437 = vrot.slane %v2436, 4
  %v2439 = vshll.u32 %v1932, 16
  %v2441 = vrot.slane %v2439, 5
  %v2442 = vsel %vm1972, %v2437, %v2441
  %v2443 = vshrl.u32 %v1932, 16
  %v2445 = vrot.slane %v2443, 4
  %v2446 = vor.u32 %v2445, %v2441
  %v2447 = vrot.slane %v2446, 4
  %v2449 = vshll.u32 %v1933, 16
  %v2451 = vrot.slane %v2449, 5
  %v2452 = vsel %vm1972, %v2447, %v2451
  %v2454 = vshrl.u32 %v1934, 16
  %v2456 = vrot.slane %v2454, 4
  %v2457 = vshll.u32 %v1934, 16
  %v2459 = vrot.slane %v2457, 5
  %v2460 = vor.u32 %v2456, %v2459
  %v2461 = vrot.slane %v2460, 4
  %v2463 = vshll.u32 %v1935, 16
  %v2465 = vrot.slane %v2463, 5
  %v2466 = vsel %vm1972, %v2461, %v2465
  %v2467 = vshrl.u32 %v1935, 16
  %v2469 = vrot.slane %v2467, 4
  %v2470 = vor.u32 %v2469, %v2465
  %v2471 = vrot.slane %v2470, 4
  %v2473 = vshll.u32 %v1936, 16
  %v2475 = vrot.slane %v2473, 5
  %v2476 = vsel %vm1972, %v2471, %v2475
  %v2478 = vshrl.u32 %v1937, 16
  %v2480 = vrot.slane %v2478, 4
  %v2481 = vshll.u32 %v1937, 16
  %v2483 = vrot.slane %v2481, 5
  %v2484 = vor.u32 %v2480, %v2483
  %v2485 = vrot.slane %v2484, 4
  %v2487 = vshll.u32 %v1938, 16
  %v2489 = vrot.slane %v2487, 5
  %v2490 = vsel %vm1972, %v2485, %v2489
  %v2491 = vshrl.u32 %v1938, 16
  %v2493 = vrot.slane %v2491, 4
  %v2494 = vor.u32 %v2493, %v2489
  %v2495 = vrot.slane %v2494, 4
  %v2497 = vshll.u32 %v1939, 16
  %v2499 = vrot.slane %v2497, 5
  %v2500 = vsel %vm1972, %v2495, %v2499
  %v2502 = vshrl.u32 %v1940, 16
  %v2504 = vrot.slane %v2502, 4
  %v2505 = vshll.u32 %v1940, 16
  %v2507 = vrot.slane %v2505, 5
  %v2508 = vor.u32 %v2504, %v2507
  %v2509 = vrot.slane %v2508, 4
  %v2511 = vshll.u32 %v1941, 16
  %v2513 = vrot.slane %v2511, 5
  %v2514 = vsel %vm1972, %v2509, %v2513
  %v2515 = vshrl.u32 %v1941, 16
  %v2517 = vrot.slane %v2515, 4
  %v2518 = vor.u32 %v2517, %v2513
  %v2519 = vrot.slane %v2518, 4
  %v2521 = vshll.u32 %v1942, 16
  %v2523 = vrot.slane %v2521, 5
  %v2524 = vsel %vm1972, %v2519, %v2523
  %v2526 = vshrl.u32 %v1943, 16
  %v2528 = vrot.slane %v2526, 4
  %v2529 = vshll.u32 %v1943, 16
  %v2531 = vrot.slane %v2529, 5
  %v2532 = vor.u32 %v2528, %v2531
  %v2533 = vrot.slane %v2532, 4
  %v2535 = vshll.u32 %v1944, 16
  %v2537 = vrot.slane %v2535, 5
  %v2538 = vsel %vm1972, %v2533, %v2537
  %v2539 = vshrl.u32 %v1944, 16
  %v2541 = vrot.slane %v2539, 4
  %v2542 = vor.u32 %v2541, %v2537
  %v2543 = vrot.slane %v2542, 4
  %v2545 = vshll.u32 %v1945, 16
  %v2547 = vrot.slane %v2545, 5
  %v2548 = vsel %vm1972, %v2543, %v2547
  %v2550 = vshrl.u32 %v1946, 16
  %v2552 = vrot.slane %v2550, 4
  %v2553 = vshll.u32 %v1946, 16
  %v2555 = vrot.slane %v2553, 5
  %v2556 = vor.u32 %v2552, %v2555
  %v2557 = vrot.slane %v2556, 4
  %v2559 = vshll.u32 %v1947, 16
  %v2561 = vrot.slane %v2559, 5
  %v2562 = vsel %vm1972, %v2557, %v2561
  %v2563 = vshrl.u32 %v1947, 16
  %v2565 = vrot.slane %v2563, 4
  %v2566 = vor.u32 %v2565, %v2561
  %v2567 = vrot.slane %v2566, 4
  %v2569 = vshll.u32 %v1948, 16
  %v2571 = vrot.slane %v2569, 5
  %v2572 = vsel %vm1972, %v2567, %v2571
  %v2574 = vshrl.u32 %v1949, 16
  %v2576 = vrot.slane %v2574, 4
  %v2577 = vshll.u32 %v1949, 16
  %v2579 = vrot.slane %v2577, 5
  %v2580 = vor.u32 %v2576, %v2579
  %v2581 = vrot.slane %v2580, 4
  %v2583 = vshll.u32 %v1950, 16
  %v2585 = vrot.slane %v2583, 5
  %v2586 = vsel %vm1972, %v2581, %v2585
  %v2587 = vshrl.u32 %v1950, 16
  %v2589 = vrot.slane %v2587, 4
  %v2590 = vor.u32 %v2589, %v2585
  %v2591 = vrot.slane %v2590, 4
  %v2593 = vshll.u32 %v1951, 16
  %v2595 = vrot.slane %v2593, 5
  %v2596 = vsel %vm1972, %v2591, %v2595
  %v2598 = vshrl.u32 %v1952, 16
  %v2600 = vrot.slane %v2598, 4
  %v2601 = vshll.u32 %v1952, 16
  %v2603 = vrot.slane %v2601, 5
  %v2604 = vor.u32 %v2600, %v2603
  %v2605 = vrot.slane %v2604, 4
  %v2607 = vshll.u32 %v1953, 16
  %v2609 = vrot.slane %v2607, 5
  %v2610 = vsel %vm1972, %v2605, %v2609
  %v2611 = vshrl.u32 %v1953, 16
  %v2613 = vrot.slane %v2611, 4
  %v2614 = vor.u32 %v2613, %v2609
  %v2615 = vrot.slane %v2614, 4
  %v2617 = vshll.u32 %v1954, 16
  %v2619 = vrot.slane %v2617, 5
  %v2620 = vsel %vm1972, %v2615, %v2619
  %v2622 = vshrl.u32 %v1955, 16
  %v2624 = vrot.slane %v2622, 4
  %v2625 = vshll.u32 %v1955, 16
  %v2627 = vrot.slane %v2625, 5
  %v2628 = vor.u32 %v2624, %v2627
  %v2629 = vrot.slane %v2628, 4
  %v2631 = vshll.u32 %v1956, 16
  %v2633 = vrot.slane %v2631, 5
  %v2634 = vsel %vm1972, %v2629, %v2633
  %v2635 = vshrl.u32 %v1956, 16
  %v2637 = vrot.slane %v2635, 4
  %v2638 = vor.u32 %v2637, %v2633
  %v2639 = vrot.slane %v2638, 4
  %v2641 = vshll.u32 %v1957, 16
  %v2643 = vrot.slane %v2641, 5
  %v2644 = vsel %vm1972, %v2639, %v2643
  %v2646 = vshrl.u32 %v1958, 16
  %v2648 = vrot.slane %v2646, 4
  %v2649 = vshll.u32 %v1958, 16
  %v2651 = vrot.slane %v2649, 5
  %v2652 = vor.u32 %v2648, %v2651
  %v2653 = vrot.slane %v2652, 4
  %v2655 = vshll.u32 %v1959, 16
  %v2657 = vrot.slane %v2655, 5
  %v2658 = vsel %vm1972, %v2653, %v2657
  %v2659 = vshrl.u32 %v1959, 16
  %v2661 = vrot.slane %v2659, 4
  %v2662 = vor.u32 %v2661, %v2657
  %v2663 = vrot.slane %v2662, 4
  %v2665 = vshll.u32 %v1960, 16
  %v2667 = vrot.slane %v2665, 5
  %v2668 = vsel %vm1972, %v2663, %v2667
  %v2670 = vshrl.u32 %v1961, 16
  %v2672 = vrot.slane %v2670, 4
  %v2673 = vshll.u32 %v1961, 16
  %v2675 = vrot.slane %v2673, 5
  %v2676 = vor.u32 %v2672, %v2675
  %v2677 = vrot.slane %v2676, 4
  %v2679 = vshll.u32 %v1962, 16
  %v2681 = vrot.slane %v2679, 5
  %v2682 = vsel %vm1972, %v2677, %v2681
  %v2683 = vshrl.u32 %v1962, 16
  %v2685 = vrot.slane %v2683, 4
  %v2686 = vor.u32 %v2685, %v2681
  %v2687 = vrot.slane %v2686, 4
  %v2689 = vshll.u32 %v1963, 16
  %v2691 = vrot.slane %v2689, 5
  %v2692 = vsel %vm1972, %v2687, %v2691
  %v2694 = vshrl.u32 %v1964, 16
  %v2696 = vrot.slane %v2694, 4
  %v2697 = vshll.u32 %v1964, 16
  %v2699 = vrot.slane %v2697, 5
  %v2700 = vor.u32 %v2696, %v2699
  %v2701 = vrot.slane %v2700, 4
  %v2703 = vshll.u32 %v1965, 16
  %v2705 = vrot.slane %v2703, 5
  %v2706 = vsel %vm1972, %v2701, %v2705
  %v2707 = vshrl.u32 %v1965, 16
  %v2709 = vrot.slane %v2707, 4
  %v2710 = vor.u32 %v2709, %v2705
  %v2711 = vrot.slane %v2710, 4
  %v2713 = vshll.u32 %v1966, 16
  %v2715 = vrot.slane %v2713, 5
  %v2716 = vsel %vm1972, %v2711, %v2715
  %v2718 = vshrl.u32 %v1967, 16
  %v2720 = vrot.slane %v2718, 4
  %v2721 = vshll.u32 %v1967, 16
  %v2723 = vrot.slane %v2721, 5
  %v2724 = vor.u32 %v2720, %v2723
  %v2725 = vrot.slane %v2724, 4
  %v2727 = vshll.u32 %v1968, 16
  %v2729 = vrot.slane %v2727, 5
  %v2730 = vsel %vm1972, %v2725, %v2729
  %v2731 = vshrl.u32 %v1968, 16
  %v2733 = vrot.slane %v2731, 4
  %v2734 = vor.u32 %v2733, %v2729
  %v2735 = vrot.slane %v2734, 4
  %v2737 = vshll.u32 %v1969, 16
  %v2739 = vrot.slane %v2737, 5
  %v2740 = vsel %vm1972, %v2735, %v2739
  %v2741 = vunpack.c.l.b16 %v1986
  %v2742 = vunpack.c.l.b16 %v1996
  %v2743 = vunpack.c.l.b16 %v2010
  %v2744 = vunpack.c.l.b16 %v2020
  %v2745 = vunpack.c.l.b16 %v2034
  %v2746 = vunpack.c.l.b16 %v2044
  %v2747 = vunpack.c.l.b16 %v2058
  %v2748 = vunpack.c.l.b16 %v2068
  %v2749 = vunpack.c.l.b16 %v2082
  %v2750 = vunpack.c.l.b16 %v2092
  %v2751 = vunpack.c.l.b16 %v2106
  %v2752 = vunpack.c.l.b16 %v2116
  %v2753 = vunpack.c.l.b16 %v2130
  %v2754 = vunpack.c.l.b16 %v2140
  %v2755 = vunpack.c.l.b16 %v2154
  %v2756 = vunpack.c.l.b16 %v2164
  %v2757 = vunpack.c.l.b16 %v2178
  %v2758 = vunpack.c.l.b16 %v2188
  %v2759 = vunpack.c.l.b16 %v2202
  %v2760 = vunpack.c.l.b16 %v2212
  %v2761 = vunpack.c.l.b16 %v2226
  %v2762 = vunpack.c.l.b16 %v2236
  %v2763 = vunpack.c.l.b16 %v2250
  %v2764 = vunpack.c.l.b16 %v2260
  %v2765 = vunpack.c.l.b16 %v2274
  %v2766 = vunpack.c.l.b16 %v2284
  %v2767 = vunpack.c.l.b16 %v2298
  %v2768 = vunpack.c.l.b16 %v2308
  %v2769 = vunpack.c.l.b16 %v2322
  %v2770 = vunpack.c.l.b16 %v2332
  %v2771 = vunpack.c.l.b16 %v2346
  %v2772 = vunpack.c.l.b16 %v2356
  %v2773 = vunpack.c.l.b16 %v2370
  %v2774 = vunpack.c.l.b16 %v2380
  %v2775 = vunpack.c.l.b16 %v2394
  %v2776 = vunpack.c.l.b16 %v2404
  %v2777 = vunpack.c.l.b16 %v2418
  %v2778 = vunpack.c.l.b16 %v2428
  %v2779 = vunpack.c.l.b16 %v2442
  %v2780 = vunpack.c.l.b16 %v2452
  %v2781 = vunpack.c.l.b16 %v2466
  %v2782 = vunpack.c.l.b16 %v2476
  %v2783 = vunpack.c.l.b16 %v2490
  %v2784 = vunpack.c.l.b16 %v2500
  %v2785 = vunpack.c.l.b16 %v2514
  %v2786 = vunpack.c.l.b16 %v2524
  %v2787 = vunpack.c.l.b16 %v2538
  %v2788 = vunpack.c.l.b16 %v2548
  %v2789 = vunpack.c.l.b16 %v2562
  %v2790 = vunpack.c.l.b16 %v2572
  %v2791 = vunpack.c.l.b16 %v2586
  %v2792 = vunpack.c.l.b16 %v2596
  %v2793 = vunpack.c.l.b16 %v2610
  %v2794 = vunpack.c.l.b16 %v2620
  %v2795 = vunpack.c.l.b16 %v2634
  %v2796 = vunpack.c.l.b16 %v2644
  %v2797 = vunpack.c.l.b16 %v2658
  %v2798 = vunpack.c.l.b16 %v2668
  %v2799 = vunpack.c.l.b16 %v2682
  %v2800 = vunpack.c.l.b16 %v2692
  %v2801 = vunpack.c.l.b16 %v2706
  %v2802 = vunpack.c.l.b16 %v2716
  %v2803 = vunpack.c.l.b16 %v2730
  %v2804 = vunpack.c.l.b16 %v2740
  %v2805 = vpack.c.b16 %v2742, %v2741
  %v2806 = vpack.c.b16 %v2744, %v2743
  %v2807 = vpack.c.b16 %v2746, %v2745
  %v2808 = vpack.c.b16 %v2748, %v2747
  %v2809 = vpack.c.b16 %v2750, %v2749
  %v2810 = vpack.c.b16 %v2752, %v2751
  %v2811 = vpack.c.b16 %v2754, %v2753
  %v2812 = vpack.c.b16 %v2756, %v2755
  %v2813 = vpack.c.b16 %v2758, %v2757
  %v2814 = vpack.c.b16 %v2760, %v2759
  %v2815 = vpack.c.b16 %v2762, %v2761
  %v2816 = vpack.c.b16 %v2764, %v2763
  %v2817 = vpack.c.b16 %v2766, %v2765
  %v2818 = vpack.c.b16 %v2768, %v2767
  %v2819 = vpack.c.b16 %v2770, %v2769
  %v2820 = vpack.c.b16 %v2772, %v2771
  %v2821 = vpack.c.b16 %v2774, %v2773
  %v2822 = vpack.c.b16 %v2776, %v2775
  %v2823 = vpack.c.b16 %v2778, %v2777
  %v2824 = vpack.c.b16 %v2780, %v2779
  %v2825 = vpack.c.b16 %v2782, %v2781
  %v2826 = vpack.c.b16 %v2784, %v2783
  %v2827 = vpack.c.b16 %v2786, %v2785
  %v2828 = vpack.c.b16 %v2788, %v2787
  %v2829 = vpack.c.b16 %v2790, %v2789
  %v2830 = vpack.c.b16 %v2792, %v2791
  %v2831 = vpack.c.b16 %v2794, %v2793
  %v2832 = vpack.c.b16 %v2796, %v2795
  %v2833 = vpack.c.b16 %v2798, %v2797
  %v2834 = vpack.c.b16 %v2800, %v2799
  %v2835 = vpack.c.b16 %v2802, %v2801
  %v2836 = vpack.c.b16 %v2804, %v2803
  %2837 = vrot.lane.b32.xlu0 %v2805, 4
  %v2838 = vpop.permute.xlu0 %2837
  %2839 = vrot.lane.b32.xlu0 %v2806, 4
  %v2840 = vpop.permute.xlu0 %2839
  %2841 = vrot.lane.b32.xlu0 %v2807, 4
  %v2842 = vpop.permute.xlu0 %2841
  %2843 = vrot.lane.b32.xlu0 %v2808, 4
  %v2844 = vpop.permute.xlu0 %2843
  %2845 = vrot.lane.b32.xlu0 %v2809, 4
  %v2846 = vpop.permute.xlu0 %2845
  %2847 = vrot.lane.b32.xlu0 %v2810, 4
  %v2848 = vpop.permute.xlu0 %2847
  %2849 = vrot.lane.b32.xlu0 %v2811, 4
  %v2850 = vpop.permute.xlu0 %2849
  %2851 = vrot.lane.b32.xlu0 %v2812, 4
  %v2852 = vpop.permute.xlu0 %2851
  %2853 = vrot.lane.b32.xlu0 %v2813, 4
  %v2854 = vpop.permute.xlu0 %2853
  %2855 = vrot.lane.b32.xlu0 %v2814, 4
  %v2856 = vpop.permute.xlu0 %2855
  %2857 = vrot.lane.b32.xlu0 %v2815, 4
  %v2858 = vpop.permute.xlu0 %2857
  %2859 = vrot.lane.b32.xlu0 %v2816, 4
  %v2860 = vpop.permute.xlu0 %2859
  %2861 = vrot.lane.b32.xlu0 %v2817, 4
  %v2862 = vpop.permute.xlu0 %2861
  %2863 = vrot.lane.b32.xlu0 %v2818, 4
  %v2864 = vpop.permute.xlu0 %2863
  %2865 = vrot.lane.b32.xlu0 %v2819, 4
  %v2866 = vpop.permute.xlu0 %2865
  %2867 = vrot.lane.b32.xlu0 %v2820, 4
  %v2868 = vpop.permute.xlu0 %2867
  %2869 = vrot.lane.b32.xlu0 %v2821, 4
  %v2870 = vpop.permute.xlu0 %2869
  %2871 = vrot.lane.b32.xlu0 %v2822, 4
  %v2872 = vpop.permute.xlu0 %2871
  %2873 = vrot.lane.b32.xlu0 %v2823, 4
  %v2874 = vpop.permute.xlu0 %2873
  %2875 = vrot.lane.b32.xlu0 %v2824, 4
  %v2876 = vpop.permute.xlu0 %2875
  %2877 = vrot.lane.b32.xlu0 %v2825, 4
  %v2878 = vpop.permute.xlu0 %2877
  %2879 = vrot.lane.b32.xlu0 %v2826, 4
  %v2880 = vpop.permute.xlu0 %2879
  %2881 = vrot.lane.b32.xlu0 %v2827, 4
  %v2882 = vpop.permute.xlu0 %2881
  %2883 = vrot.lane.b32.xlu0 %v2828, 4
  %v2884 = vpop.permute.xlu0 %2883
  %2885 = vrot.lane.b32.xlu0 %v2829, 4
  %v2886 = vpop.permute.xlu0 %2885
  %2887 = vrot.lane.b32.xlu0 %v2830, 4
  %v2888 = vpop.permute.xlu0 %2887
  %2889 = vrot.lane.b32.xlu0 %v2831, 4
  %v2890 = vpop.permute.xlu0 %2889
  %2891 = vrot.lane.b32.xlu0 %v2832, 4
  %v2892 = vpop.permute.xlu0 %2891
  %2893 = vrot.lane.b32.xlu0 %v2833, 4
  %v2894 = vpop.permute.xlu0 %2893
  %2895 = vrot.lane.b32.xlu0 %v2834, 4
  %v2896 = vpop.permute.xlu0 %2895
  %2897 = vrot.lane.b32.xlu0 %v2835, 4
  %v2898 = vpop.permute.xlu0 %2897
  %2899 = vrot.lane.b32.xlu0 %v2836, 4
  %v2900 = vpop.permute.xlu0 %2899
  %vm2933 = vcmask 64544
  %2934 = vst.msk [vmem:[#allocation3] sm:$0xff] %vm2933, %v2838
  %2935 = vst.msk [vmem:[#allocation3 + $0x8] sm:$0xff] %vm2933, %v2840
  %2936 = vst.msk [vmem:[#allocation3 + $0x10] sm:$0xff] %vm2933, %v2842
  %2937 = vst.msk [vmem:[#allocation3 + $0x18] sm:$0xff] %vm2933, %v2844
  %2938 = vst.msk [vmem:[#allocation3 + $0x20] sm:$0xff] %vm2933, %v2846
  %2939 = vst.msk [vmem:[#allocation3 + $0x28] sm:$0xff] %vm2933, %v2848
  %2940 = vst.msk [vmem:[#allocation3 + $0x30] sm:$0xff] %vm2933, %v2850
  %2941 = vst.msk [vmem:[#allocation3 + $0x38] sm:$0xff] %vm2933, %v2852
  %2942 = vst.msk [vmem:[#allocation3 + $0x40] sm:$0xff] %vm2933, %v2854
  %2943 = vst.msk [vmem:[#allocation3 + $0x48] sm:$0xff] %vm2933, %v2856
  %2944 = vst.msk [vmem:[#allocation3 + $0x50] sm:$0xff] %vm2933, %v2858
  %2945 = vst.msk [vmem:[#allocation3 + $0x58] sm:$0xff] %vm2933, %v2860
  %2946 = vst.msk [vmem:[#allocation3 + $0x60] sm:$0xff] %vm2933, %v2862
  %2947 = vst.msk [vmem:[#allocation3 + $0x68] sm:$0xff] %vm2933, %v2864
  %2948 = vst.msk [vmem:[#allocation3 + $0x70] sm:$0xff] %vm2933, %v2866
  %2949 = vst.msk [vmem:[#allocation3 + $0x78] sm:$0xff] %vm2933, %v2868
  %2950 = vst.msk [vmem:[#allocation3 + $0x80] sm:$0xff] %vm2933, %v2870
  %2951 = vst.msk [vmem:[#allocation3 + $0x88] sm:$0xff] %vm2933, %v2872
  %2952 = vst.msk [vmem:[#allocation3 + $0x90] sm:$0xff] %vm2933, %v2874
  %2953 = vst.msk [vmem:[#allocation3 + $0x98] sm:$0xff] %vm2933, %v2876
  %2954 = vst.msk [vmem:[#allocation3 + $0xa0] sm:$0xff] %vm2933, %v2878
  %2955 = vst.msk [vmem:[#allocation3 + $0xa8] sm:$0xff] %vm2933, %v2880
  %2956 = vst.msk [vmem:[#allocation3 + $0xb0] sm:$0xff] %vm2933, %v2882
  %2957 = vst.msk [vmem:[#allocation3 + $0xb8] sm:$0xff] %vm2933, %v2884
  %2958 = vst.msk [vmem:[#allocation3 + $0xc0] sm:$0xff] %vm2933, %v2886
  %2959 = vst.msk [vmem:[#allocation3 + $0xc8] sm:$0xff] %vm2933, %v2888
  %2960 = vst.msk [vmem:[#allocation3 + $0xd0] sm:$0xff] %vm2933, %v2890
  %2961 = vst.msk [vmem:[#allocation3 + $0xd8] sm:$0xff] %vm2933, %v2892
  %2962 = vst.msk [vmem:[#allocation3 + $0xe0] sm:$0xff] %vm2933, %v2894
  %2963 = vst.msk [vmem:[#allocation3 + $0xe8] sm:$0xff] %vm2933, %v2896
  %2964 = vst.msk [vmem:[#allocation3 + $0xf0] sm:$0xff] %vm2933, %v2898
  %2965 = vst.msk [vmem:[#allocation3 + $0xf8] sm:$0xff] %vm2933, %v2900
  %v2966 = vld [vmem:[#allocation2] sm:$0xe]
  %v2967 = vld [vmem:[#allocation2 + $0x4] sm:$0xf]
  %v2968 = vld [vmem:[#allocation2 + $0x8] sm:$0x1]
  %v2969 = vld [vmem:[#allocation2 + $0xc] sm:$0xe]
  %v2970 = vld [vmem:[#allocation2 + $0x10] sm:$0xf]
  %v2971 = vld [vmem:[#allocation2 + $0x14] sm:$0x1]
  %v2972 = vld [vmem:[#allocation2 + $0x18] sm:$0xe]
  %v2973 = vld [vmem:[#allocation2 + $0x1c] sm:$0xf]
  %v2974 = vld [vmem:[#allocation2 + $0x20] sm:$0x1]
  %v2975 = vld [vmem:[#allocation2 + $0x24] sm:$0xe]
  %v2976 = vld [vmem:[#allocation2 + $0x28] sm:$0xf]
  %v2977 = vld [vmem:[#allocation2 + $0x2c] sm:$0x1]
  %v2978 = vld [vmem:[#allocation2 + $0x30] sm:$0xe]
  %v2979 = vld [vmem:[#allocation2 + $0x34] sm:$0xf]
  %v2980 = vld [vmem:[#allocation2 + $0x38] sm:$0x1]
  %v2981 = vld [vmem:[#allocation2 + $0x3c] sm:$0xe]
  %v2982 = vld [vmem:[#allocation2 + $0x40] sm:$0xf]
  %v2983 = vld [vmem:[#allocation2 + $0x44] sm:$0x1]
  %v2984 = vld [vmem:[#allocation2 + $0x48] sm:$0xe]
  %v2985 = vld [vmem:[#allocation2 + $0x4c] sm:$0xf]
  %v2986 = vld [vmem:[#allocation2 + $0x50] sm:$0x1]
  %v2987 = vld [vmem:[#allocation2 + $0x54] sm:$0xe]
  %v2988 = vld [vmem:[#allocation2 + $0x58] sm:$0xf]
  %v2989 = vld [vmem:[#allocation2 + $0x5c] sm:$0x1]
  %v2990 = vld [vmem:[#allocation2 + $0x60] sm:$0xe]
  %v2991 = vld [vmem:[#allocation2 + $0x64] sm:$0xf]
  %v2992 = vld [vmem:[#allocation2 + $0x68] sm:$0x1]
  %v2993 = vld [vmem:[#allocation2 + $0x6c] sm:$0xe]
  %v2994 = vld [vmem:[#allocation2 + $0x70] sm:$0xf]
  %v2995 = vld [vmem:[#allocation2 + $0x74] sm:$0x1]
  %v2996 = vld [vmem:[#allocation2 + $0x78] sm:$0xe]
  %v2997 = vld [vmem:[#allocation2 + $0x7c] sm:$0xf]
  %v2998 = vld [vmem:[#allocation2 + $0x80] sm:$0x1]
  %v2999 = vld [vmem:[#allocation2 + $0x84] sm:$0xe]
  %v3000 = vld [vmem:[#allocation2 + $0x88] sm:$0xf]
  %v3001 = vld [vmem:[#allocation2 + $0x8c] sm:$0x1]
  %v3002 = vld [vmem:[#allocation2 + $0x90] sm:$0xe]
  %v3003 = vld [vmem:[#allocation2 + $0x94] sm:$0xf]
  %v3004 = vld [vmem:[#allocation2 + $0x98] sm:$0x1]
  %v3005 = vld [vmem:[#allocation2 + $0x9c] sm:$0xe]
  %v3006 = vld [vmem:[#allocation2 + $0xa0] sm:$0xf]
  %v3007 = vld [vmem:[#allocation2 + $0xa4] sm:$0x1]
  %v3008 = vld [vmem:[#allocation2 + $0xa8] sm:$0xe]
  %v3009 = vld [vmem:[#allocation2 + $0xac] sm:$0xf]
  %v3010 = vld [vmem:[#allocation2 + $0xb0] sm:$0x1]
  %v3011 = vld [vmem:[#allocation2 + $0xb4] sm:$0xe]
  %v3012 = vld [vmem:[#allocation2 + $0xb8] sm:$0xf]
  %v3013 = vld [vmem:[#allocation2 + $0xbc] sm:$0x1]
  %v3014 = vld [vmem:[#allocation2 + $0xd8] sm:$0xe]
  %v3015 = vld [vmem:[#allocation2 + $0xdc] sm:$0xf]
  %v3016 = vld [vmem:[#allocation2 + $0xe0] sm:$0x1]
  %v3017 = vld [vmem:[#allocation2 + $0xe4] sm:$0xe]
  %v3018 = vld [vmem:[#allocation2 + $0xe8] sm:$0xf]
  %v3019 = vld [vmem:[#allocation2 + $0xec] sm:$0x1]
  %v3020 = vld [vmem:[#allocation2 + $0xf0] sm:$0xe]
  %v3021 = vld [vmem:[#allocation2 + $0xf4] sm:$0xf]
  %v3022 = vld [vmem:[#allocation2 + $0xf8] sm:$0x1]
  %v3023 = vld [vmem:[#allocation2 + $0xfc] sm:$0xe]
  %v3024 = vld [vmem:[#allocation2 + $0x100] sm:$0xf]
  %v3025 = vld [vmem:[#allocation2 + $0x104] sm:$0x1]
  %v3026 = vld [vmem:[#allocation2 + $0x108] sm:$0xe]
  %v3027 = vld [vmem:[#allocation2 + $0x10c] sm:$0xf]
  %v3028 = vld [vmem:[#allocation2 + $0x110] sm:$0x1]
  %v3029 = vld [vmem:[#allocation2 + $0x114] sm:$0xe]
  %v3030 = vld [vmem:[#allocation2 + $0x118] sm:$0xf]
  %v3031 = vld [vmem:[#allocation2 + $0x11c] sm:$0x1]
  %v3032 = vld [vmem:[#allocation2 + $0x120] sm:$0xe]
  %v3033 = vld [vmem:[#allocation2 + $0x124] sm:$0xf]
  %v3034 = vld [vmem:[#allocation2 + $0x128] sm:$0x1]
  %v3035 = vld [vmem:[#allocation2 + $0x12c] sm:$0xe]
  %v3036 = vld [vmem:[#allocation2 + $0x130] sm:$0xf]
  %v3037 = vld [vmem:[#allocation2 + $0x134] sm:$0x1]
  %v3038 = vld [vmem:[#allocation2 + $0x138] sm:$0xe]
  %v3039 = vld [vmem:[#allocation2 + $0x13c] sm:$0xf]
  %v3040 = vld [vmem:[#allocation2 + $0x140] sm:$0x1]
  %v3041 = vld [vmem:[#allocation2 + $0x144] sm:$0xe]
  %v3042 = vld [vmem:[#allocation2 + $0x148] sm:$0xf]
  %v3043 = vld [vmem:[#allocation2 + $0x14c] sm:$0x1]
  %v3044 = vld [vmem:[#allocation2 + $0x150] sm:$0xe]
  %v3045 = vld [vmem:[#allocation2 + $0x154] sm:$0xf]
  %v3046 = vld [vmem:[#allocation2 + $0x158] sm:$0x1]
  %v3047 = vld [vmem:[#allocation2 + $0x15c] sm:$0xe]
  %v3048 = vld [vmem:[#allocation2 + $0x160] sm:$0xf]
  %v3049 = vld [vmem:[#allocation2 + $0x164] sm:$0x1]
  %v3050 = vld [vmem:[#allocation2 + $0x168] sm:$0xe]
  %v3051 = vld [vmem:[#allocation2 + $0x16c] sm:$0xf]
  %v3052 = vld [vmem:[#allocation2 + $0x170] sm:$0x1]
  %v3053 = vld [vmem:[#allocation2 + $0x174] sm:$0xe]
  %v3054 = vld [vmem:[#allocation2 + $0x178] sm:$0xf]
  %v3055 = vld [vmem:[#allocation2 + $0x17c] sm:$0x1]
  %v3056 = vld [vmem:[#allocation2 + $0x180] sm:$0xe]
  %v3057 = vld [vmem:[#allocation2 + $0x184] sm:$0xf]
  %v3058 = vld [vmem:[#allocation2 + $0x188] sm:$0x1]
  %v3059 = vld [vmem:[#allocation2 + $0x18c] sm:$0xe]
  %v3060 = vld [vmem:[#allocation2 + $0x190] sm:$0xf]
  %v3061 = vld [vmem:[#allocation2 + $0x194] sm:$0x1]
  %vm3158 = vcmask 1042432
  %vm3159 = vcmask 1046532
  %vm3160 = vmor %vm3158, %vm3159
  %v3161 = vrot.slane %v2966, 5
  %v3162 = vrot.slane %v3161, 4
  %v3163 = vrot.slane %v2967, 5
  %v3164 = vsel %vm3160, %v3162, %v3163
  %v3165 = vrot.slane %v3163, 4
  %v3166 = vrot.slane %v2968, 5
  %v3167 = vsel %vm3160, %v3165, %v3166
  %v3168 = vrot.slane %v2969, 5
  %v3169 = vrot.slane %v3168, 4
  %v3170 = vrot.slane %v2970, 5
  %v3171 = vsel %vm3160, %v3169, %v3170
  %v3172 = vrot.slane %v3170, 4
  %v3173 = vrot.slane %v2971, 5
  %v3174 = vsel %vm3160, %v3172, %v3173
  %v3175 = vrot.slane %v2972, 5
  %v3176 = vrot.slane %v3175, 4
  %v3177 = vrot.slane %v2973, 5
  %v3178 = vsel %vm3160, %v3176, %v3177
  %v3179 = vrot.slane %v3177, 4
  %v3180 = vrot.slane %v2974, 5
  %v3181 = vsel %vm3160, %v3179, %v3180
  %v3182 = vrot.slane %v2975, 5
  %v3183 = vrot.slane %v3182, 4
  %v3184 = vrot.slane %v2976, 5
  %v3185 = vsel %vm3160, %v3183, %v3184
  %v3186 = vrot.slane %v3184, 4
  %v3187 = vrot.slane %v2977, 5
  %v3188 = vsel %vm3160, %v3186, %v3187
  %v3189 = vrot.slane %v2978, 5
  %v3190 = vrot.slane %v3189, 4
  %v3191 = vrot.slane %v2979, 5
  %v3192 = vsel %vm3160, %v3190, %v3191
  %v3193 = vrot.slane %v3191, 4
  %v3194 = vrot.slane %v2980, 5
  %v3195 = vsel %vm3160, %v3193, %v3194
  %v3196 = vrot.slane %v2981, 5
  %v3197 = vrot.slane %v3196, 4
  %v3198 = vrot.slane %v2982, 5
  %v3199 = vsel %vm3160, %v3197, %v3198
  %v3200 = vrot.slane %v3198, 4
  %v3201 = vrot.slane %v2983, 5
  %v3202 = vsel %vm3160, %v3200, %v3201
  %v3203 = vrot.slane %v2984, 5
  %v3204 = vrot.slane %v3203, 4
  %v3205 = vrot.slane %v2985, 5
  %v3206 = vsel %vm3160, %v3204, %v3205
  %v3207 = vrot.slane %v3205, 4
  %v3208 = vrot.slane %v2986, 5
  %v3209 = vsel %vm3160, %v3207, %v3208
  %v3210 = vrot.slane %v2987, 5
  %v3211 = vrot.slane %v3210, 4
  %v3212 = vrot.slane %v2988, 5
  %v3213 = vsel %vm3160, %v3211, %v3212
  %v3214 = vrot.slane %v3212, 4
  %v3215 = vrot.slane %v2989, 5
  %v3216 = vsel %vm3160, %v3214, %v3215
  %v3217 = vrot.slane %v2990, 5
  %v3218 = vrot.slane %v3217, 4
  %v3219 = vrot.slane %v2991, 5
  %v3220 = vsel %vm3160, %v3218, %v3219
  %v3221 = vrot.slane %v3219, 4
  %v3222 = vrot.slane %v2992, 5
  %v3223 = vsel %vm3160, %v3221, %v3222
  %v3224 = vrot.slane %v2993, 5
  %v3225 = vrot.slane %v3224, 4
  %v3226 = vrot.slane %v2994, 5
  %v3227 = vsel %vm3160, %v3225, %v3226
  %v3228 = vrot.slane %v3226, 4
  %v3229 = vrot.slane %v2995, 5
  %v3230 = vsel %vm3160, %v3228, %v3229
  %v3231 = vrot.slane %v2996, 5
  %v3232 = vrot.slane %v3231, 4
  %v3233 = vrot.slane %v2997, 5
  %v3234 = vsel %vm3160, %v3232, %v3233
  %v3235 = vrot.slane %v3233, 4
  %v3236 = vrot.slane %v2998, 5
  %v3237 = vsel %vm3160, %v3235, %v3236
  %v3238 = vrot.slane %v2999, 5
  %v3239 = vrot.slane %v3238, 4
  %v3240 = vrot.slane %v3000, 5
  %v3241 = vsel %vm3160, %v3239, %v3240
  %v3242 = vrot.slane %v3240, 4
  %v3243 = vrot.slane %v3001, 5
  %v3244 = vsel %vm3160, %v3242, %v3243
  %v3245 = vrot.slane %v3002, 5
  %v3246 = vrot.slane %v3245, 4
  %v3247 = vrot.slane %v3003, 5
  %v3248 = vsel %vm3160, %v3246, %v3247
  %v3249 = vrot.slane %v3247, 4
  %v3250 = vrot.slane %v3004, 5
  %v3251 = vsel %vm3160, %v3249, %v3250
  %v3252 = vrot.slane %v3005, 5
  %v3253 = vrot.slane %v3252, 4
  %v3254 = vrot.slane %v3006, 5
  %v3255 = vsel %vm3160, %v3253, %v3254
  %v3256 = vrot.slane %v3254, 4
  %v3257 = vrot.slane %v3007, 5
  %v3258 = vsel %vm3160, %v3256, %v3257
  %v3259 = vrot.slane %v3008, 5
  %v3260 = vrot.slane %v3259, 4
  %v3261 = vrot.slane %v3009, 5
  %v3262 = vsel %vm3160, %v3260, %v3261
  %v3263 = vrot.slane %v3261, 4
  %v3264 = vrot.slane %v3010, 5
  %v3265 = vsel %vm3160, %v3263, %v3264
  %v3266 = vrot.slane %v3011, 5
  %v3267 = vrot.slane %v3266, 4
  %v3268 = vrot.slane %v3012, 5
  %v3269 = vsel %vm3160, %v3267, %v3268
  %v3270 = vrot.slane %v3268, 4
  %v3271 = vrot.slane %v3013, 5
  %v3272 = vsel %vm3160, %v3270, %v3271
  %v3273 = vrot.slane %v3014, 5
  %v3274 = vrot.slane %v3273, 4
  %v3275 = vrot.slane %v3015, 5
  %v3276 = vsel %vm3160, %v3274, %v3275
  %v3277 = vrot.slane %v3275, 4
  %v3278 = vrot.slane %v3016, 5
  %v3279 = vsel %vm3160, %v3277, %v3278
  %v3280 = vrot.slane %v3017, 5
  %v3281 = vrot.slane %v3280, 4
  %v3282 = vrot.slane %v3018, 5
  %v3283 = vsel %vm3160, %v3281, %v3282
  %v3284 = vrot.slane %v3282, 4
  %v3285 = vrot.slane %v3019, 5
  %v3286 = vsel %vm3160, %v3284, %v3285
  %v3287 = vrot.slane %v3020, 5
  %v3288 = vrot.slane %v3287, 4
  %v3289 = vrot.slane %v3021, 5
  %v3290 = vsel %vm3160, %v3288, %v3289
  %v3291 = vrot.slane %v3289, 4
  %v3292 = vrot.slane %v3022, 5
  %v3293 = vsel %vm3160, %v3291, %v3292
  %v3294 = vrot.slane %v3023, 5
  %v3295 = vrot.slane %v3294, 4
  %v3296 = vrot.slane %v3024, 5
  %v3297 = vsel %vm3160, %v3295, %v3296
  %v3298 = vrot.slane %v3296, 4
  %v3299 = vrot.slane %v3025, 5
  %v3300 = vsel %vm3160, %v3298, %v3299
  %v3301 = vrot.slane %v3026, 5
  %v3302 = vrot.slane %v3301, 4
  %v3303 = vrot.slane %v3027, 5
  %v3304 = vsel %vm3160, %v3302, %v3303
  %v3305 = vrot.slane %v3303, 4
  %v3306 = vrot.slane %v3028, 5
  %v3307 = vsel %vm3160, %v3305, %v3306
  %v3308 = vrot.slane %v3029, 5
  %v3309 = vrot.slane %v3308, 4
  %v3310 = vrot.slane %v3030, 5
  %v3311 = vsel %vm3160, %v3309, %v3310
  %v3312 = vrot.slane %v3310, 4
  %v3313 = vrot.slane %v3031, 5
  %v3314 = vsel %vm3160, %v3312, %v3313
  %v3315 = vrot.slane %v3032, 5
  %v3316 = vrot.slane %v3315, 4
  %v3317 = vrot.slane %v3033, 5
  %v3318 = vsel %vm3160, %v3316, %v3317
  %v3319 = vrot.slane %v3317, 4
  %v3320 = vrot.slane %v3034, 5
  %v3321 = vsel %vm3160, %v3319, %v3320
  %v3322 = vrot.slane %v3035, 5
  %v3323 = vrot.slane %v3322, 4
  %v3324 = vrot.slane %v3036, 5
  %v3325 = vsel %vm3160, %v3323, %v3324
  %v3326 = vrot.slane %v3324, 4
  %v3327 = vrot.slane %v3037, 5
  %v3328 = vsel %vm3160, %v3326, %v3327
  %v3329 = vrot.slane %v3038, 5
  %v3330 = vrot.slane %v3329, 4
  %v3331 = vrot.slane %v3039, 5
  %v3332 = vsel %vm3160, %v3330, %v3331
  %v3333 = vrot.slane %v3331, 4
  %v3334 = vrot.slane %v3040, 5
  %v3335 = vsel %vm3160, %v3333, %v3334
  %v3336 = vrot.slane %v3041, 5
  %v3337 = vrot.slane %v3336, 4
  %v3338 = vrot.slane %v3042, 5
  %v3339 = vsel %vm3160, %v3337, %v3338
  %v3340 = vrot.slane %v3338, 4
  %v3341 = vrot.slane %v3043, 5
  %v3342 = vsel %vm3160, %v3340, %v3341
  %v3343 = vrot.slane %v3044, 5
  %v3344 = vrot.slane %v3343, 4
  %v3345 = vrot.slane %v3045, 5
  %v3346 = vsel %vm3160, %v3344, %v3345
  %v3347 = vrot.slane %v3345, 4
  %v3348 = vrot.slane %v3046, 5
  %v3349 = vsel %vm3160, %v3347, %v3348
  %v3350 = vrot.slane %v3047, 5
  %v3351 = vrot.slane %v3350, 4
  %v3352 = vrot.slane %v3048, 5
  %v3353 = vsel %vm3160, %v3351, %v3352
  %v3354 = vrot.slane %v3352, 4
  %v3355 = vrot.slane %v3049, 5
  %v3356 = vsel %vm3160, %v3354, %v3355
  %v3357 = vrot.slane %v3050, 5
  %v3358 = vrot.slane %v3357, 4
  %v3359 = vrot.slane %v3051, 5
  %v3360 = vsel %vm3160, %v3358, %v3359
  %v3361 = vrot.slane %v3359, 4
  %v3362 = vrot.slane %v3052, 5
  %v3363 = vsel %vm3160, %v3361, %v3362
  %v3364 = vrot.slane %v3053, 5
  %v3365 = vrot.slane %v3364, 4
  %v3366 = vrot.slane %v3054, 5
  %v3367 = vsel %vm3160, %v3365, %v3366
  %v3368 = vrot.slane %v3366, 4
  %v3369 = vrot.slane %v3055, 5
  %v3370 = vsel %vm3160, %v3368, %v3369
  %v3371 = vrot.slane %v3056, 5
  %v3372 = vrot.slane %v3371, 4
  %v3373 = vrot.slane %v3057, 5
  %v3374 = vsel %vm3160, %v3372, %v3373
  %v3375 = vrot.slane %v3373, 4
  %v3376 = vrot.slane %v3058, 5
  %v3377 = vsel %vm3160, %v3375, %v3376
  %v3378 = vrot.slane %v3059, 5
  %v3379 = vrot.slane %v3378, 4
  %v3380 = vrot.slane %v3060, 5
  %v3381 = vsel %vm3160, %v3379, %v3380
  %v3382 = vrot.slane %v3380, 4
  %v3383 = vrot.slane %v3061, 5
  %v3384 = vsel %vm3160, %v3382, %v3383
  %v3385 = vunpack.c.l.b16 %v3164
  %v3386 = vunpack.c.l.b16 %v3167
  %v3387 = vunpack.c.l.b16 %v3171
  %v3388 = vunpack.c.l.b16 %v3174
  %v3389 = vunpack.c.l.b16 %v3178
  %v3390 = vunpack.c.l.b16 %v3181
  %v3391 = vunpack.c.l.b16 %v3185
  %v3392 = vunpack.c.l.b16 %v3188
  %v3393 = vunpack.c.l.b16 %v3192
  %v3394 = vunpack.c.l.b16 %v3195
  %v3395 = vunpack.c.l.b16 %v3199
  %v3396 = vunpack.c.l.b16 %v3202
  %v3397 = vunpack.c.l.b16 %v3206
  %v3398 = vunpack.c.l.b16 %v3209
  %v3399 = vunpack.c.l.b16 %v3213
  %v3400 = vunpack.c.l.b16 %v3216
  %v3401 = vunpack.c.l.b16 %v3220
  %v3402 = vunpack.c.l.b16 %v3223
  %v3403 = vunpack.c.l.b16 %v3227
  %v3404 = vunpack.c.l.b16 %v3230
  %v3405 = vunpack.c.l.b16 %v3234
  %v3406 = vunpack.c.l.b16 %v3237
  %v3407 = vunpack.c.l.b16 %v3241
  %v3408 = vunpack.c.l.b16 %v3244
  %v3409 = vunpack.c.l.b16 %v3248
  %v3410 = vunpack.c.l.b16 %v3251
  %v3411 = vunpack.c.l.b16 %v3255
  %v3412 = vunpack.c.l.b16 %v3258
  %v3413 = vunpack.c.l.b16 %v3262
  %v3414 = vunpack.c.l.b16 %v3265
  %v3415 = vunpack.c.l.b16 %v3269
  %v3416 = vunpack.c.l.b16 %v3272
  %v3417 = vunpack.c.l.b16 %v3276
  %v3418 = vunpack.c.l.b16 %v3279
  %v3419 = vunpack.c.l.b16 %v3283
  %v3420 = vunpack.c.l.b16 %v3286
  %v3421 = vunpack.c.l.b16 %v3290
  %v3422 = vunpack.c.l.b16 %v3293
  %v3423 = vunpack.c.l.b16 %v3297
  %v3424 = vunpack.c.l.b16 %v3300
  %v3425 = vunpack.c.l.b16 %v3304
  %v3426 = vunpack.c.l.b16 %v3307
  %v3427 = vunpack.c.l.b16 %v3311
  %v3428 = vunpack.c.l.b16 %v3314
  %v3429 = vunpack.c.l.b16 %v3318
  %v3430 = vunpack.c.l.b16 %v3321
  %v3431 = vunpack.c.l.b16 %v3325
  %v3432 = vunpack.c.l.b16 %v3328
  %v3433 = vunpack.c.l.b16 %v3332
  %v3434 = vunpack.c.l.b16 %v3335
  %v3435 = vunpack.c.l.b16 %v3339
  %v3436 = vunpack.c.l.b16 %v3342
  %v3437 = vunpack.c.l.b16 %v3346
  %v3438 = vunpack.c.l.b16 %v3349
  %v3439 = vunpack.c.l.b16 %v3353
  %v3440 = vunpack.c.l.b16 %v3356
  %v3441 = vunpack.c.l.b16 %v3360
  %v3442 = vunpack.c.l.b16 %v3363
  %v3443 = vunpack.c.l.b16 %v3367
  %v3444 = vunpack.c.l.b16 %v3370
  %v3445 = vunpack.c.l.b16 %v3374
  %v3446 = vunpack.c.l.b16 %v3377
  %v3447 = vunpack.c.l.b16 %v3381
  %v3448 = vunpack.c.l.b16 %v3384
  %v3449 = vpack.c.b16 %v3386, %v3385
  %v3450 = vpack.c.b16 %v3388, %v3387
  %v3451 = vpack.c.b16 %v3390, %v3389
  %v3452 = vpack.c.b16 %v3392, %v3391
  %v3453 = vpack.c.b16 %v3394, %v3393
  %v3454 = vpack.c.b16 %v3396, %v3395
  %v3455 = vpack.c.b16 %v3398, %v3397
  %v3456 = vpack.c.b16 %v3400, %v3399
  %v3457 = vpack.c.b16 %v3402, %v3401
  %v3458 = vpack.c.b16 %v3404, %v3403
  %v3459 = vpack.c.b16 %v3406, %v3405
  %v3460 = vpack.c.b16 %v3408, %v3407
  %v3461 = vpack.c.b16 %v3410, %v3409
  %v3462 = vpack.c.b16 %v3412, %v3411
  %v3463 = vpack.c.b16 %v3414, %v3413
  %v3464 = vpack.c.b16 %v3416, %v3415
  %v3465 = vpack.c.b16 %v3418, %v3417
  %v3466 = vpack.c.b16 %v3420, %v3419
  %v3467 = vpack.c.b16 %v3422, %v3421
  %v3468 = vpack.c.b16 %v3424, %v3423
  %v3469 = vpack.c.b16 %v3426, %v3425
  %v3470 = vpack.c.b16 %v3428, %v3427
  %v3471 = vpack.c.b16 %v3430, %v3429
  %v3472 = vpack.c.b16 %v3432, %v3431
  %v3473 = vpack.c.b16 %v3434, %v3433
  %v3474 = vpack.c.b16 %v3436, %v3435
  %v3475 = vpack.c.b16 %v3438, %v3437
  %v3476 = vpack.c.b16 %v3440, %v3439
  %v3477 = vpack.c.b16 %v3442, %v3441
  %v3478 = vpack.c.b16 %v3444, %v3443
  %v3479 = vpack.c.b16 %v3446, %v3445
  %v3480 = vpack.c.b16 %v3448, %v3447
  %3481 = vrot.lane.b32.xlu0 %v3449, 8
  %v3482 = vpop.permute.xlu0 %3481
  %3483 = vrot.lane.b32.xlu0 %v3450, 8
  %v3484 = vpop.permute.xlu0 %3483
  %3485 = vrot.lane.b32.xlu0 %v3451, 8
  %v3486 = vpop.permute.xlu0 %3485
  %3487 = vrot.lane.b32.xlu0 %v3452, 8
  %v3488 = vpop.permute.xlu0 %3487
  %3489 = vrot.lane.b32.xlu0 %v3453, 8
  %v3490 = vpop.permute.xlu0 %3489
  %3491 = vrot.lane.b32.xlu0 %v3454, 8
  %v3492 = vpop.permute.xlu0 %3491
  %3493 = vrot.lane.b32.xlu0 %v3455, 8
  %v3494 = vpop.permute.xlu0 %3493
  %3495 = vrot.lane.b32.xlu0 %v3456, 8
  %v3496 = vpop.permute.xlu0 %3495
  %3497 = vrot.lane.b32.xlu0 %v3457, 8
  %v3498 = vpop.permute.xlu0 %3497
  %3499 = vrot.lane.b32.xlu0 %v3458, 8
  %v3500 = vpop.permute.xlu0 %3499
  %3501 = vrot.lane.b32.xlu0 %v3459, 8
  %v3502 = vpop.permute.xlu0 %3501
  %3503 = vrot.lane.b32.xlu0 %v3460, 8
  %v3504 = vpop.permute.xlu0 %3503
  %3505 = vrot.lane.b32.xlu0 %v3461, 8
  %v3506 = vpop.permute.xlu0 %3505
  %3507 = vrot.lane.b32.xlu0 %v3462, 8
  %v3508 = vpop.permute.xlu0 %3507
  %3509 = vrot.lane.b32.xlu0 %v3463, 8
  %v3510 = vpop.permute.xlu0 %3509
  %3511 = vrot.lane.b32.xlu0 %v3464, 8
  %v3512 = vpop.permute.xlu0 %3511
  %3513 = vrot.lane.b32.xlu0 %v3465, 8
  %v3514 = vpop.permute.xlu0 %3513
  %3515 = vrot.lane.b32.xlu0 %v3466, 8
  %v3516 = vpop.permute.xlu0 %3515
  %3517 = vrot.lane.b32.xlu0 %v3467, 8
  %v3518 = vpop.permute.xlu0 %3517
  %3519 = vrot.lane.b32.xlu0 %v3468, 8
  %v3520 = vpop.permute.xlu0 %3519
  %3521 = vrot.lane.b32.xlu0 %v3469, 8
  %v3522 = vpop.permute.xlu0 %3521
  %3523 = vrot.lane.b32.xlu0 %v3470, 8
  %v3524 = vpop.permute.xlu0 %3523
  %3525 = vrot.lane.b32.xlu0 %v3471, 8
  %v3526 = vpop.permute.xlu0 %3525
  %3527 = vrot.lane.b32.xlu0 %v3472, 8
  %v3528 = vpop.permute.xlu0 %3527
  %3529 = vrot.lane.b32.xlu0 %v3473, 8
  %v3530 = vpop.permute.xlu0 %3529
  %3531 = vrot.lane.b32.xlu0 %v3474, 8
  %v3532 = vpop.permute.xlu0 %3531
  %3533 = vrot.lane.b32.xlu0 %v3475, 8
  %v3534 = vpop.permute.xlu0 %3533
  %3535 = vrot.lane.b32.xlu0 %v3476, 8
  %v3536 = vpop.permute.xlu0 %3535
  %3537 = vrot.lane.b32.xlu0 %v3477, 8
  %v3538 = vpop.permute.xlu0 %3537
  %3539 = vrot.lane.b32.xlu0 %v3478, 8
  %v3540 = vpop.permute.xlu0 %3539
  %3541 = vrot.lane.b32.xlu0 %v3479, 8
  %v3542 = vpop.permute.xlu0 %3541
  %3543 = vrot.lane.b32.xlu0 %v3480, 8
  %v3544 = vpop.permute.xlu0 %3543
  %vm3577 = vcmask 97344
  %3578 = vst.msk [vmem:[#allocation3] sm:$0xff] %vm3577, %v3482
  %3579 = vst.msk [vmem:[#allocation3 + $0x8] sm:$0xff] %vm3577, %v3484
  %3580 = vst.msk [vmem:[#allocation3 + $0x10] sm:$0xff] %vm3577, %v3486
  %3581 = vst.msk [vmem:[#allocation3 + $0x18] sm:$0xff] %vm3577, %v3488
  %3582 = vst.msk [vmem:[#allocation3 + $0x20] sm:$0xff] %vm3577, %v3490
  %3583 = vst.msk [vmem:[#allocation3 + $0x28] sm:$0xff] %vm3577, %v3492
  %3584 = vst.msk [vmem:[#allocation3 + $0x30] sm:$0xff] %vm3577, %v3494
  %3585 = vst.msk [vmem:[#allocation3 + $0x38] sm:$0xff] %vm3577, %v3496
  %3586 = vst.msk [vmem:[#allocation3 + $0x40] sm:$0xff] %vm3577, %v3498
  %3587 = vst.msk [vmem:[#allocation3 + $0x48] sm:$0xff] %vm3577, %v3500
  %3588 = vst.msk [vmem:[#allocation3 + $0x50] sm:$0xff] %vm3577, %v3502
  %3589 = vst.msk [vmem:[#allocation3 + $0x58] sm:$0xff] %vm3577, %v3504
  %3590 = vst.msk [vmem:[#allocation3 + $0x60] sm:$0xff] %vm3577, %v3506
  %3591 = vst.msk [vmem:[#allocation3 + $0x68] sm:$0xff] %vm3577, %v3508
  %3592 = vst.msk [vmem:[#allocation3 + $0x70] sm:$0xff] %vm3577, %v3510
  %3593 = vst.msk [vmem:[#allocation3 + $0x78] sm:$0xff] %vm3577, %v3512
  %3594 = vst.msk [vmem:[#allocation3 + $0x80] sm:$0xff] %vm3577, %v3514
  %3595 = vst.msk [vmem:[#allocation3 + $0x88] sm:$0xff] %vm3577, %v3516
  %3596 = vst.msk [vmem:[#allocation3 + $0x90] sm:$0xff] %vm3577, %v3518
  %3597 = vst.msk [vmem:[#allocation3 + $0x98] sm:$0xff] %vm3577, %v3520
  %3598 = vst.msk [vmem:[#allocation3 + $0xa0] sm:$0xff] %vm3577, %v3522
  %3599 = vst.msk [vmem:[#allocation3 + $0xa8] sm:$0xff] %vm3577, %v3524
  %3600 = vst.msk [vmem:[#allocation3 + $0xb0] sm:$0xff] %vm3577, %v3526
  %3601 = vst.msk [vmem:[#allocation3 + $0xb8] sm:$0xff] %vm3577, %v3528
  %3602 = vst.msk [vmem:[#allocation3 + $0xc0] sm:$0xff] %vm3577, %v3530
  %3603 = vst.msk [vmem:[#allocation3 + $0xc8] sm:$0xff] %vm3577, %v3532
  %3604 = vst.msk [vmem:[#allocation3 + $0xd0] sm:$0xff] %vm3577, %v3534
  %3605 = vst.msk [vmem:[#allocation3 + $0xd8] sm:$0xff] %vm3577, %v3536
  %3606 = vst.msk [vmem:[#allocation3 + $0xe0] sm:$0xff] %vm3577, %v3538
  %3607 = vst.msk [vmem:[#allocation3 + $0xe8] sm:$0xff] %vm3577, %v3540
  %3608 = vst.msk [vmem:[#allocation3 + $0xf0] sm:$0xff] %vm3577, %v3542
  %3609 = vst.msk [vmem:[#allocation3 + $0xf8] sm:$0xff] %vm3577, %v3544
  %v3610 = vld [vmem:[%s1358] sm:$0xf]
  %v3611 = vld [vmem:[%s1358 + $0x4] sm:$0xf]
  %v3612 = vld [vmem:[%s1358 + $0xc] sm:$0xf]
  %v3613 = vld [vmem:[%s1358 + $0x10] sm:$0xf]
  %v3614 = vld [vmem:[%s1358 + $0x18] sm:$0xf]
  %v3615 = vld [vmem:[%s1358 + $0x1c] sm:$0xf]
  %v3616 = vld [vmem:[%s1358 + $0x24] sm:$0xf]
  %v3617 = vld [vmem:[%s1358 + $0x28] sm:$0xf]
  %v3618 = vld [vmem:[%s1358 + $0x30] sm:$0xf]
  %v3619 = vld [vmem:[%s1358 + $0x34] sm:$0xf]
  %v3620 = vld [vmem:[%s1358 + $0x3c] sm:$0xf]
  %v3621 = vld [vmem:[%s1358 + $0x40] sm:$0xf]
  %v3622 = vld [vmem:[%s1358 + $0x48] sm:$0xf]
  %v3623 = vld [vmem:[%s1358 + $0x4c] sm:$0xf]
  %v3624 = vld [vmem:[%s1358 + $0x54] sm:$0xf]
  %v3625 = vld [vmem:[%s1358 + $0x58] sm:$0xf]
  %v3626 = vld [vmem:[%s1358 + $0x60] sm:$0xf]
  %v3627 = vld [vmem:[%s1358 + $0x64] sm:$0xf]
  %v3628 = vld [vmem:[%s1358 + $0x6c] sm:$0xf]
  %v3629 = vld [vmem:[%s1358 + $0x70] sm:$0xf]
  %v3630 = vld [vmem:[%s1358 + $0x78] sm:$0xf]
  %v3631 = vld [vmem:[%s1358 + $0x7c] sm:$0xf]
  %v3632 = vld [vmem:[%s1358 + $0x84] sm:$0xf]
  %v3633 = vld [vmem:[%s1358 + $0x88] sm:$0xf]
  %v3634 = vld [vmem:[%s1358 + $0x90] sm:$0xf]
  %v3635 = vld [vmem:[%s1358 + $0x94] sm:$0xf]
  %v3636 = vld [vmem:[%s1358 + $0x9c] sm:$0xf]
  %v3637 = vld [vmem:[%s1358 + $0xa0] sm:$0xf]
  %v3638 = vld [vmem:[%s1358 + $0xa8] sm:$0xf]
  %v3639 = vld [vmem:[%s1358 + $0xac] sm:$0xf]
  %v3640 = vld [vmem:[%s1358 + $0xb4] sm:$0xf]
  %v3641 = vld [vmem:[%s1358 + $0xb8] sm:$0xf]
  %v3642 = vld [vmem:[%s1358 + $0xd8] sm:$0xf]
  %v3643 = vld [vmem:[%s1358 + $0xdc] sm:$0xf]
  %v3644 = vld [vmem:[%s1358 + $0xe4] sm:$0xf]
  %v3645 = vld [vmem:[%s1358 + $0xe8] sm:$0xf]
  %v3646 = vld [vmem:[%s1358 + $0xf0] sm:$0xf]
  %v3647 = vld [vmem:[%s1358 + $0xf4] sm:$0xf]
  %v3648 = vld [vmem:[%s1358 + $0xfc] sm:$0xf]
  %v3649 = vld [vmem:[%s1358 + $0x100] sm:$0xf]
  %v3650 = vld [vmem:[%s1358 + $0x108] sm:$0xf]
  %v3651 = vld [vmem:[%s1358 + $0x10c] sm:$0xf]
  %v3652 = vld [vmem:[%s1358 + $0x114] sm:$0xf]
  %v3653 = vld [vmem:[%s1358 + $0x118] sm:$0xf]
  %v3654 = vld [vmem:[%s1358 + $0x120] sm:$0xf]
  %v3655 = vld [vmem:[%s1358 + $0x124] sm:$0xf]
  %v3656 = vld [vmem:[%s1358 + $0x12c] sm:$0xf]
  %v3657 = vld [vmem:[%s1358 + $0x130] sm:$0xf]
  %v3658 = vld [vmem:[%s1358 + $0x138] sm:$0xf]
  %v3659 = vld [vmem:[%s1358 + $0x13c] sm:$0xf]
  %v3660 = vld [vmem:[%s1358 + $0x144] sm:$0xf]
  %v3661 = vld [vmem:[%s1358 + $0x148] sm:$0xf]
  %v3662 = vld [vmem:[%s1358 + $0x150] sm:$0xf]
  %v3663 = vld [vmem:[%s1358 + $0x154] sm:$0xf]
  %v3664 = vld [vmem:[%s1358 + $0x15c] sm:$0xf]
  %v3665 = vld [vmem:[%s1358 + $0x160] sm:$0xf]
  %v3666 = vld [vmem:[%s1358 + $0x168] sm:$0xf]
  %v3667 = vld [vmem:[%s1358 + $0x16c] sm:$0xf]
  %v3668 = vld [vmem:[%s1358 + $0x174] sm:$0xf]
  %v3669 = vld [vmem:[%s1358 + $0x178] sm:$0xf]
  %v3670 = vld [vmem:[%s1358 + $0x180] sm:$0xf]
  %v3671 = vld [vmem:[%s1358 + $0x184] sm:$0xf]
  %v3672 = vld [vmem:[%s1358 + $0x18c] sm:$0xf]
  %v3673 = vld [vmem:[%s1358 + $0x190] sm:$0xf]
  %v3738 = vunpack.c.l.b16 %v3610
  %v3739 = vunpack.c.l.b16 %v3611
  %v3740 = vunpack.c.l.b16 %v3612
  %v3741 = vunpack.c.l.b16 %v3613
  %v3742 = vunpack.c.l.b16 %v3614
  %v3743 = vunpack.c.l.b16 %v3615
  %v3744 = vunpack.c.l.b16 %v3616
  %v3745 = vunpack.c.l.b16 %v3617
  %v3746 = vunpack.c.l.b16 %v3618
  %v3747 = vunpack.c.l.b16 %v3619
  %v3748 = vunpack.c.l.b16 %v3620
  %v3749 = vunpack.c.l.b16 %v3621
  %v3750 = vunpack.c.l.b16 %v3622
  %v3751 = vunpack.c.l.b16 %v3623
  %v3752 = vunpack.c.l.b16 %v3624
  %v3753 = vunpack.c.l.b16 %v3625
  %v3754 = vunpack.c.l.b16 %v3626
  %v3755 = vunpack.c.l.b16 %v3627
  %v3756 = vunpack.c.l.b16 %v3628
  %v3757 = vunpack.c.l.b16 %v3629
  %v3758 = vunpack.c.l.b16 %v3630
  %v3759 = vunpack.c.l.b16 %v3631
  %v3760 = vunpack.c.l.b16 %v3632
  %v3761 = vunpack.c.l.b16 %v3633
  %v3762 = vunpack.c.l.b16 %v3634
  %v3763 = vunpack.c.l.b16 %v3635
  %v3764 = vunpack.c.l.b16 %v3636
  %v3765 = vunpack.c.l.b16 %v3637
  %v3766 = vunpack.c.l.b16 %v3638
  %v3767 = vunpack.c.l.b16 %v3639
  %v3768 = vunpack.c.l.b16 %v3640
  %v3769 = vunpack.c.l.b16 %v3641
  %v3770 = vunpack.c.l.b16 %v3642
  %v3771 = vunpack.c.l.b16 %v3643
  %v3772 = vunpack.c.l.b16 %v3644
  %v3773 = vunpack.c.l.b16 %v3645
  %v3774 = vunpack.c.l.b16 %v3646
  %v3775 = vunpack.c.l.b16 %v3647
  %v3776 = vunpack.c.l.b16 %v3648
  %v3777 = vunpack.c.l.b16 %v3649
  %v3778 = vunpack.c.l.b16 %v3650
  %v3779 = vunpack.c.l.b16 %v3651
  %v3780 = vunpack.c.l.b16 %v3652
  %v3781 = vunpack.c.l.b16 %v3653
  %v3782 = vunpack.c.l.b16 %v3654
  %v3783 = vunpack.c.l.b16 %v3655
  %v3784 = vunpack.c.l.b16 %v3656
  %v3785 = vunpack.c.l.b16 %v3657
  %v3786 = vunpack.c.l.b16 %v3658
  %v3787 = vunpack.c.l.b16 %v3659
  %v3788 = vunpack.c.l.b16 %v3660
  %v3789 = vunpack.c.l.b16 %v3661
  %v3790 = vunpack.c.l.b16 %v3662
  %v3791 = vunpack.c.l.b16 %v3663
  %v3792 = vunpack.c.l.b16 %v3664
  %v3793 = vunpack.c.l.b16 %v3665
  %v3794 = vunpack.c.l.b16 %v3666
  %v3795 = vunpack.c.l.b16 %v3667
  %v3796 = vunpack.c.l.b16 %v3668
  %v3797 = vunpack.c.l.b16 %v3669
  %v3798 = vunpack.c.l.b16 %v3670
  %v3799 = vunpack.c.l.b16 %v3671
  %v3800 = vunpack.c.l.b16 %v3672
  %v3801 = vunpack.c.l.b16 %v3673
  %v3802 = vpack.c.b16 %v3739, %v3738
  %v3803 = vpack.c.b16 %v3741, %v3740
  %v3804 = vpack.c.b16 %v3743, %v3742
  %v3805 = vpack.c.b16 %v3745, %v3744
  %v3806 = vpack.c.b16 %v3747, %v3746
  %v3807 = vpack.c.b16 %v3749, %v3748
  %v3808 = vpack.c.b16 %v3751, %v3750
  %v3809 = vpack.c.b16 %v3753, %v3752
  %v3810 = vpack.c.b16 %v3755, %v3754
  %v3811 = vpack.c.b16 %v3757, %v3756
  %v3812 = vpack.c.b16 %v3759, %v3758
  %v3813 = vpack.c.b16 %v3761, %v3760
  %v3814 = vpack.c.b16 %v3763, %v3762
  %v3815 = vpack.c.b16 %v3765, %v3764
  %v3816 = vpack.c.b16 %v3767, %v3766
  %v3817 = vpack.c.b16 %v3769, %v3768
  %v3818 = vpack.c.b16 %v3771, %v3770
  %v3819 = vpack.c.b16 %v3773, %v3772
  %v3820 = vpack.c.b16 %v3775, %v3774
  %v3821 = vpack.c.b16 %v3777, %v3776
  %v3822 = vpack.c.b16 %v3779, %v3778
  %v3823 = vpack.c.b16 %v3781, %v3780
  %v3824 = vpack.c.b16 %v3783, %v3782
  %v3825 = vpack.c.b16 %v3785, %v3784
  %v3826 = vpack.c.b16 %v3787, %v3786
  %v3827 = vpack.c.b16 %v3789, %v3788
  %v3828 = vpack.c.b16 %v3791, %v3790
  %v3829 = vpack.c.b16 %v3793, %v3792
  %v3830 = vpack.c.b16 %v3795, %v3794
  %v3831 = vpack.c.b16 %v3797, %v3796
  %v3832 = vpack.c.b16 %v3799, %v3798
  %v3833 = vpack.c.b16 %v3801, %v3800
  %3834 = vrot.lane.b32.xlu0 %v3802, 12
  %v3835 = vpop.permute.xlu0 %3834
  %3836 = vrot.lane.b32.xlu0 %v3803, 12
  %v3837 = vpop.permute.xlu0 %3836
  %3838 = vrot.lane.b32.xlu0 %v3804, 12
  %v3839 = vpop.permute.xlu0 %3838
  %3840 = vrot.lane.b32.xlu0 %v3805, 12
  %v3841 = vpop.permute.xlu0 %3840
  %3842 = vrot.lane.b32.xlu0 %v3806, 12
  %v3843 = vpop.permute.xlu0 %3842
  %3844 = vrot.lane.b32.xlu0 %v3807, 12
  %v3845 = vpop.permute.xlu0 %3844
  %3846 = vrot.lane.b32.xlu0 %v3808, 12
  %v3847 = vpop.permute.xlu0 %3846
  %3848 = vrot.lane.b32.xlu0 %v3809, 12
  %v3849 = vpop.permute.xlu0 %3848
  %3850 = vrot.lane.b32.xlu0 %v3810, 12
  %v3851 = vpop.permute.xlu0 %3850
  %3852 = vrot.lane.b32.xlu0 %v3811, 12
  %v3853 = vpop.permute.xlu0 %3852
  %3854 = vrot.lane.b32.xlu0 %v3812, 12
  %v3855 = vpop.permute.xlu0 %3854
  %3856 = vrot.lane.b32.xlu0 %v3813, 12
  %v3857 = vpop.permute.xlu0 %3856
  %3858 = vrot.lane.b32.xlu0 %v3814, 12
  %v3859 = vpop.permute.xlu0 %3858
  %3860 = vrot.lane.b32.xlu0 %v3815, 12
  %v3861 = vpop.permute.xlu0 %3860
  %3862 = vrot.lane.b32.xlu0 %v3816, 12
  %v3863 = vpop.permute.xlu0 %3862
  %3864 = vrot.lane.b32.xlu0 %v3817, 12
  %v3865 = vpop.permute.xlu0 %3864
  %3866 = vrot.lane.b32.xlu0 %v3818, 12
  %v3867 = vpop.permute.xlu0 %3866
  %3868 = vrot.lane.b32.xlu0 %v3819, 12
  %v3869 = vpop.permute.xlu0 %3868
  %3870 = vrot.lane.b32.xlu0 %v3820, 12
  %v3871 = vpop.permute.xlu0 %3870
  %3872 = vrot.lane.b32.xlu0 %v3821, 12
  %v3873 = vpop.permute.xlu0 %3872
  %3874 = vrot.lane.b32.xlu0 %v3822, 12
  %v3875 = vpop.permute.xlu0 %3874
  %3876 = vrot.lane.b32.xlu0 %v3823, 12
  %v3877 = vpop.permute.xlu0 %3876
  %3878 = vrot.lane.b32.xlu0 %v3824, 12
  %v3879 = vpop.permute.xlu0 %3878
  %3880 = vrot.lane.b32.xlu0 %v3825, 12
  %v3881 = vpop.permute.xlu0 %3880
  %3882 = vrot.lane.b32.xlu0 %v3826, 12
  %v3883 = vpop.permute.xlu0 %3882
  %3884 = vrot.lane.b32.xlu0 %v3827, 12
  %v3885 = vpop.permute.xlu0 %3884
  %3886 = vrot.lane.b32.xlu0 %v3828, 12
  %v3887 = vpop.permute.xlu0 %3886
  %3888 = vrot.lane.b32.xlu0 %v3829, 12
  %v3889 = vpop.permute.xlu0 %3888
  %3890 = vrot.lane.b32.xlu0 %v3830, 12
  %v3891 = vpop.permute.xlu0 %3890
  %3892 = vrot.lane.b32.xlu0 %v3831, 12
  %v3893 = vpop.permute.xlu0 %3892
  %3894 = vrot.lane.b32.xlu0 %v3832, 12
  %v3895 = vpop.permute.xlu0 %3894
  %3896 = vrot.lane.b32.xlu0 %v3833, 12
  %v3897 = vpop.permute.xlu0 %3896
  %vm3930 = vcmask 130144
  %3931 = vst.msk [vmem:[#allocation3] sm:$0xff] %vm3930, %v3835
  %3932 = vst.msk [vmem:[#allocation3 + $0x8] sm:$0xff] %vm3930, %v3837
  %3933 = vst.msk [vmem:[#allocation3 + $0x10] sm:$0xff] %vm3930, %v3839
  %3934 = vst.msk [vmem:[#allocation3 + $0x18] sm:$0xff] %vm3930, %v3841
  %3935 = vst.msk [vmem:[#allocation3 + $0x20] sm:$0xff] %vm3930, %v3843
  %3936 = vst.msk [vmem:[#allocation3 + $0x28] sm:$0xff] %vm3930, %v3845
  %3937 = vst.msk [vmem:[#allocation3 + $0x30] sm:$0xff] %vm3930, %v3847
  %3938 = vst.msk [vmem:[#allocation3 + $0x38] sm:$0xff] %vm3930, %v3849
  %3939 = vst.msk [vmem:[#allocation3 + $0x40] sm:$0xff] %vm3930, %v3851
  %3940 = vst.msk [vmem:[#allocation3 + $0x48] sm:$0xff] %vm3930, %v3853
  %3941 = vst.msk [vmem:[#allocation3 + $0x50] sm:$0xff] %vm3930, %v3855
  %3942 = vst.msk [vmem:[#allocation3 + $0x58] sm:$0xff] %vm3930, %v3857
  %3943 = vst.msk [vmem:[#allocation3 + $0x60] sm:$0xff] %vm3930, %v3859
  %3944 = vst.msk [vmem:[#allocation3 + $0x68] sm:$0xff] %vm3930, %v3861
  %3945 = vst.msk [vmem:[#allocation3 + $0x70] sm:$0xff] %vm3930, %v3863
  %3946 = vst.msk [vmem:[#allocation3 + $0x78] sm:$0xff] %vm3930, %v3865
  %3947 = vst.msk [vmem:[#allocation3 + $0x80] sm:$0xff] %vm3930, %v3867
  %3948 = vst.msk [vmem:[#allocation3 + $0x88] sm:$0xff] %vm3930, %v3869
  %3949 = vst.msk [vmem:[#allocation3 + $0x90] sm:$0xff] %vm3930, %v3871
  %3950 = vst.msk [vmem:[#allocation3 + $0x98] sm:$0xff] %vm3930, %v3873
  %3951 = vst.msk [vmem:[#allocation3 + $0xa0] sm:$0xff] %vm3930, %v3875
  %3952 = vst.msk [vmem:[#allocation3 + $0xa8] sm:$0xff] %vm3930, %v3877
  %3953 = vst.msk [vmem:[#allocation3 + $0xb0] sm:$0xff] %vm3930, %v3879
  %3954 = vst.msk [vmem:[#allocation3 + $0xb8] sm:$0xff] %vm3930, %v3881
  %3955 = vst.msk [vmem:[#allocation3 + $0xc0] sm:$0xff] %vm3930, %v3883
  %3956 = vst.msk [vmem:[#allocation3 + $0xc8] sm:$0xff] %vm3930, %v3885
  %3957 = vst.msk [vmem:[#allocation3 + $0xd0] sm:$0xff] %vm3930, %v3887
  %3958 = vst.msk [vmem:[#allocation3 + $0xd8] sm:$0xff] %vm3930, %v3889
  %3959 = vst.msk [vmem:[#allocation3 + $0xe0] sm:$0xff] %vm3930, %v3891
  %3960 = vst.msk [vmem:[#allocation3 + $0xe8] sm:$0xff] %vm3930, %v3893
  %3961 = vst.msk [vmem:[#allocation3 + $0xf0] sm:$0xff] %vm3930, %v3895
  %3962 = vst.msk [vmem:[#allocation3 + $0xf8] sm:$0xff] %vm3930, %v3897
  %v3963 = vld [vmem:[%s1358] sm:$0xf]
  %v3964 = vld [vmem:[%s1358 + $0x4] sm:$0xf]
  %v3965 = vld [vmem:[%s1358 + $0x8] sm:$0x1]
  %v3966 = vld [vmem:[%s1358 + $0xc] sm:$0xf]
  %v3967 = vld [vmem:[%s1358 + $0x10] sm:$0xf]
  %v3968 = vld [vmem:[%s1358 + $0x14] sm:$0x1]
  %v3969 = vld [vmem:[%s1358 + $0x18] sm:$0xf]
  %v3970 = vld [vmem:[%s1358 + $0x1c] sm:$0xf]
  %v3971 = vld [vmem:[%s1358 + $0x20] sm:$0x1]
  %v3972 = vld [vmem:[%s1358 + $0x24] sm:$0xf]
  %v3973 = vld [vmem:[%s1358 + $0x28] sm:$0xf]
  %v3974 = vld [vmem:[%s1358 + $0x2c] sm:$0x1]
  %v3975 = vld [vmem:[%s1358 + $0x30] sm:$0xf]
  %v3976 = vld [vmem:[%s1358 + $0x34] sm:$0xf]
  %v3977 = vld [vmem:[%s1358 + $0x38] sm:$0x1]
  %v3978 = vld [vmem:[%s1358 + $0x3c] sm:$0xf]
  %v3979 = vld [vmem:[%s1358 + $0x40] sm:$0xf]
  %v3980 = vld [vmem:[%s1358 + $0x44] sm:$0x1]
  %v3981 = vld [vmem:[%s1358 + $0x48] sm:$0xf]
  %v3982 = vld [vmem:[%s1358 + $0x4c] sm:$0xf]
  %v3983 = vld [vmem:[%s1358 + $0x50] sm:$0x1]
  %v3984 = vld [vmem:[%s1358 + $0x54] sm:$0xf]
  %v3985 = vld [vmem:[%s1358 + $0x58] sm:$0xf]
  %v3986 = vld [vmem:[%s1358 + $0x5c] sm:$0x1]
  %v3987 = vld [vmem:[%s1358 + $0x60] sm:$0xf]
  %v3988 = vld [vmem:[%s1358 + $0x64] sm:$0xf]
  %v3989 = vld [vmem:[%s1358 + $0x68] sm:$0x1]
  %v3990 = vld [vmem:[%s1358 + $0x6c] sm:$0xf]
  %v3991 = vld [vmem:[%s1358 + $0x70] sm:$0xf]
  %v3992 = vld [vmem:[%s1358 + $0x74] sm:$0x1]
  %v3993 = vld [vmem:[%s1358 + $0x78] sm:$0xf]
  %v3994 = vld [vmem:[%s1358 + $0x7c] sm:$0xf]
  %v3995 = vld [vmem:[%s1358 + $0x80] sm:$0x1]
  %v3996 = vld [vmem:[%s1358 + $0x84] sm:$0xf]
  %v3997 = vld [vmem:[%s1358 + $0x88] sm:$0xf]
  %v3998 = vld [vmem:[%s1358 + $0x8c] sm:$0x1]
  %v3999 = vld [vmem:[%s1358 + $0x90] sm:$0xf]
  %v4000 = vld [vmem:[%s1358 + $0x94] sm:$0xf]
  %v4001 = vld [vmem:[%s1358 + $0x98] sm:$0x1]
  %v4002 = vld [vmem:[%s1358 + $0x9c] sm:$0xf]
  %v4003 = vld [vmem:[%s1358 + $0xa0] sm:$0xf]
  %v4004 = vld [vmem:[%s1358 + $0xa4] sm:$0x1]
  %v4005 = vld [vmem:[%s1358 + $0xa8] sm:$0xf]
  %v4006 = vld [vmem:[%s1358 + $0xac] sm:$0xf]
  %v4007 = vld [vmem:[%s1358 + $0xb0] sm:$0x1]
  %v4008 = vld [vmem:[%s1358 + $0xb4] sm:$0xf]
  %v4009 = vld [vmem:[%s1358 + $0xb8] sm:$0xf]
  %v4010 = vld [vmem:[%s1358 + $0xbc] sm:$0x1]
  %v4011 = vld [vmem:[%s1358 + $0xd8] sm:$0xf]
  %v4012 = vld [vmem:[%s1358 + $0xdc] sm:$0xf]
  %v4013 = vld [vmem:[%s1358 + $0xe0] sm:$0x1]
  %v4014 = vld [vmem:[%s1358 + $0xe4] sm:$0xf]
  %v4015 = vld [vmem:[%s1358 + $0xe8] sm:$0xf]
  %v4016 = vld [vmem:[%s1358 + $0xec] sm:$0x1]
  %v4017 = vld [vmem:[%s1358 + $0xf0] sm:$0xf]
  %v4018 = vld [vmem:[%s1358 + $0xf4] sm:$0xf]
  %v4019 = vld [vmem:[%s1358 + $0xf8] sm:$0x1]
  %v4020 = vld [vmem:[%s1358 + $0xfc] sm:$0xf]
  %v4021 = vld [vmem:[%s1358 + $0x100] sm:$0xf]
  %v4022 = vld [vmem:[%s1358 + $0x104] sm:$0x1]
  %v4023 = vld [vmem:[%s1358 + $0x108] sm:$0xf]
  %v4024 = vld [vmem:[%s1358 + $0x10c] sm:$0xf]
  %v4025 = vld [vmem:[%s1358 + $0x110] sm:$0x1]
  %v4026 = vld [vmem:[%s1358 + $0x114] sm:$0xf]
  %v4027 = vld [vmem:[%s1358 + $0x118] sm:$0xf]
  %v4028 = vld [vmem:[%s1358 + $0x11c] sm:$0x1]
  %v4029 = vld [vmem:[%s1358 + $0x120] sm:$0xf]
  %v4030 = vld [vmem:[%s1358 + $0x124] sm:$0xf]
  %v4031 = vld [vmem:[%s1358 + $0x128] sm:$0x1]
  %v4032 = vld [vmem:[%s1358 + $0x12c] sm:$0xf]
  %v4033 = vld [vmem:[%s1358 + $0x130] sm:$0xf]
  %v4034 = vld [vmem:[%s1358 + $0x134] sm:$0x1]
  %v4035 = vld [vmem:[%s1358 + $0x138] sm:$0xf]
  %v4036 = vld [vmem:[%s1358 + $0x13c] sm:$0xf]
  %v4037 = vld [vmem:[%s1358 + $0x140] sm:$0x1]
  %v4038 = vld [vmem:[%s1358 + $0x144] sm:$0xf]
  %v4039 = vld [vmem:[%s1358 + $0x148] sm:$0xf]
  %v4040 = vld [vmem:[%s1358 + $0x14c] sm:$0x1]
  %v4041 = vld [vmem:[%s1358 + $0x150] sm:$0xf]
  %v4042 = vld [vmem:[%s1358 + $0x154] sm:$0xf]
  %v4043 = vld [vmem:[%s1358 + $0x158] sm:$0x1]
  %v4044 = vld [vmem:[%s1358 + $0x15c] sm:$0xf]
  %v4045 = vld [vmem:[%s1358 + $0x160] sm:$0xf]
  %v4046 = vld [vmem:[%s1358 + $0x164] sm:$0x1]
  %v4047 = vld [vmem:[%s1358 + $0x168] sm:$0xf]
  %v4048 = vld [vmem:[%s1358 + $0x16c] sm:$0xf]
  %v4049 = vld [vmem:[%s1358 + $0x170] sm:$0x1]
  %v4050 = vld [vmem:[%s1358 + $0x174] sm:$0xf]
  %v4051 = vld [vmem:[%s1358 + $0x178] sm:$0xf]
  %v4052 = vld [vmem:[%s1358 + $0x17c] sm:$0x1]
  %v4053 = vld [vmem:[%s1358 + $0x180] sm:$0xf]
  %v4054 = vld [vmem:[%s1358 + $0x184] sm:$0xf]
  %v4055 = vld [vmem:[%s1358 + $0x188] sm:$0x1]
  %v4056 = vld [vmem:[%s1358 + $0x18c] sm:$0xf]
  %v4057 = vld [vmem:[%s1358 + $0x190] sm:$0xf]
  %v4058 = vld [vmem:[%s1358 + $0x194] sm:$0x1]
  %v4060 = vshrl.u32 %v3963, 16
  %v4062 = vrot.slane %v4060, 4
  %v4063 = vshll.u32 %v3963, 16
  %v4065 = vrot.slane %v4063, 5
  %v4066 = vor.u32 %v4062, %v4065
  %v4067 = vrot.slane %v4066, 4
  %v4069 = vshll.u32 %v3964, 16
  %v4071 = vrot.slane %v4069, 5
  %v4072 = vsel %vm1972, %v4067, %v4071
  %v4073 = vshrl.u32 %v3964, 16
  %v4075 = vrot.slane %v4073, 4
  %v4076 = vor.u32 %v4075, %v4071
  %v4077 = vrot.slane %v4076, 4
  %v4079 = vshll.u32 %v3965, 16
  %v4081 = vrot.slane %v4079, 5
  %v4082 = vsel %vm1972, %v4077, %v4081
  %v4084 = vshrl.u32 %v3966, 16
  %v4086 = vrot.slane %v4084, 4
  %v4087 = vshll.u32 %v3966, 16
  %v4089 = vrot.slane %v4087, 5
  %v4090 = vor.u32 %v4086, %v4089
  %v4091 = vrot.slane %v4090, 4
  %v4093 = vshll.u32 %v3967, 16
  %v4095 = vrot.slane %v4093, 5
  %v4096 = vsel %vm1972, %v4091, %v4095
  %v4097 = vshrl.u32 %v3967, 16
  %v4099 = vrot.slane %v4097, 4
  %v4100 = vor.u32 %v4099, %v4095
  %v4101 = vrot.slane %v4100, 4
  %v4103 = vshll.u32 %v3968, 16
  %v4105 = vrot.slane %v4103, 5
  %v4106 = vsel %vm1972, %v4101, %v4105
  %v4108 = vshrl.u32 %v3969, 16
  %v4110 = vrot.slane %v4108, 4
  %v4111 = vshll.u32 %v3969, 16
  %v4113 = vrot.slane %v4111, 5
  %v4114 = vor.u32 %v4110, %v4113
  %v4115 = vrot.slane %v4114, 4
  %v4117 = vshll.u32 %v3970, 16
  %v4119 = vrot.slane %v4117, 5
  %v4120 = vsel %vm1972, %v4115, %v4119
  %v4121 = vshrl.u32 %v3970, 16
  %v4123 = vrot.slane %v4121, 4
  %v4124 = vor.u32 %v4123, %v4119
  %v4125 = vrot.slane %v4124, 4
  %v4127 = vshll.u32 %v3971, 16
  %v4129 = vrot.slane %v4127, 5
  %v4130 = vsel %vm1972, %v4125, %v4129
  %v4132 = vshrl.u32 %v3972, 16
  %v4134 = vrot.slane %v4132, 4
  %v4135 = vshll.u32 %v3972, 16
  %v4137 = vrot.slane %v4135, 5
  %v4138 = vor.u32 %v4134, %v4137
  %v4139 = vrot.slane %v4138, 4
  %v4141 = vshll.u32 %v3973, 16
  %v4143 = vrot.slane %v4141, 5
  %v4144 = vsel %vm1972, %v4139, %v4143
  %v4145 = vshrl.u32 %v3973, 16
  %v4147 = vrot.slane %v4145, 4
  %v4148 = vor.u32 %v4147, %v4143
  %v4149 = vrot.slane %v4148, 4
  %v4151 = vshll.u32 %v3974, 16
  %v4153 = vrot.slane %v4151, 5
  %v4154 = vsel %vm1972, %v4149, %v4153
  %v4156 = vshrl.u32 %v3975, 16
  %v4158 = vrot.slane %v4156, 4
  %v4159 = vshll.u32 %v3975, 16
  %v4161 = vrot.slane %v4159, 5
  %v4162 = vor.u32 %v4158, %v4161
  %v4163 = vrot.slane %v4162, 4
  %v4165 = vshll.u32 %v3976, 16
  %v4167 = vrot.slane %v4165, 5
  %v4168 = vsel %vm1972, %v4163, %v4167
  %v4169 = vshrl.u32 %v3976, 16
  %v4171 = vrot.slane %v4169, 4
  %v4172 = vor.u32 %v4171, %v4167
  %v4173 = vrot.slane %v4172, 4
  %v4175 = vshll.u32 %v3977, 16
  %v4177 = vrot.slane %v4175, 5
  %v4178 = vsel %vm1972, %v4173, %v4177
  %v4180 = vshrl.u32 %v3978, 16
  %v4182 = vrot.slane %v4180, 4
  %v4183 = vshll.u32 %v3978, 16
  %v4185 = vrot.slane %v4183, 5
  %v4186 = vor.u32 %v4182, %v4185
  %v4187 = vrot.slane %v4186, 4
  %v4189 = vshll.u32 %v3979, 16
  %v4191 = vrot.slane %v4189, 5
  %v4192 = vsel %vm1972, %v4187, %v4191
  %v4193 = vshrl.u32 %v3979, 16
  %v4195 = vrot.slane %v4193, 4
  %v4196 = vor.u32 %v4195, %v4191
  %v4197 = vrot.slane %v4196, 4
  %v4199 = vshll.u32 %v3980, 16
  %v4201 = vrot.slane %v4199, 5
  %v4202 = vsel %vm1972, %v4197, %v4201
  %v4204 = vshrl.u32 %v3981, 16
  %v4206 = vrot.slane %v4204, 4
  %v4207 = vshll.u32 %v3981, 16
  %v4209 = vrot.slane %v4207, 5
  %v4210 = vor.u32 %v4206, %v4209
  %v4211 = vrot.slane %v4210, 4
  %v4213 = vshll.u32 %v3982, 16
  %v4215 = vrot.slane %v4213, 5
  %v4216 = vsel %vm1972, %v4211, %v4215
  %v4217 = vshrl.u32 %v3982, 16
  %v4219 = vrot.slane %v4217, 4
  %v4220 = vor.u32 %v4219, %v4215
  %v4221 = vrot.slane %v4220, 4
  %v4223 = vshll.u32 %v3983, 16
  %v4225 = vrot.slane %v4223, 5
  %v4226 = vsel %vm1972, %v4221, %v4225
  %v4228 = vshrl.u32 %v3984, 16
  %v4230 = vrot.slane %v4228, 4
  %v4231 = vshll.u32 %v3984, 16
  %v4233 = vrot.slane %v4231, 5
  %v4234 = vor.u32 %v4230, %v4233
  %v4235 = vrot.slane %v4234, 4
  %v4237 = vshll.u32 %v3985, 16
  %v4239 = vrot.slane %v4237, 5
  %v4240 = vsel %vm1972, %v4235, %v4239
  %v4241 = vshrl.u32 %v3985, 16
  %v4243 = vrot.slane %v4241, 4
  %v4244 = vor.u32 %v4243, %v4239
  %v4245 = vrot.slane %v4244, 4
  %v4247 = vshll.u32 %v3986, 16
  %v4249 = vrot.slane %v4247, 5
  %v4250 = vsel %vm1972, %v4245, %v4249
  %v4252 = vshrl.u32 %v3987, 16
  %v4254 = vrot.slane %v4252, 4
  %v4255 = vshll.u32 %v3987, 16
  %v4257 = vrot.slane %v4255, 5
  %v4258 = vor.u32 %v4254, %v4257
  %v4259 = vrot.slane %v4258, 4
  %v4261 = vshll.u32 %v3988, 16
  %v4263 = vrot.slane %v4261, 5
  %v4264 = vsel %vm1972, %v4259, %v4263
  %v4265 = vshrl.u32 %v3988, 16
  %v4267 = vrot.slane %v4265, 4
  %v4268 = vor.u32 %v4267, %v4263
  %v4269 = vrot.slane %v4268, 4
  %v4271 = vshll.u32 %v3989, 16
  %v4273 = vrot.slane %v4271, 5
  %v4274 = vsel %vm1972, %v4269, %v4273
  %v4276 = vshrl.u32 %v3990, 16
  %v4278 = vrot.slane %v4276, 4
  %v4279 = vshll.u32 %v3990, 16
  %v4281 = vrot.slane %v4279, 5
  %v4282 = vor.u32 %v4278, %v4281
  %v4283 = vrot.slane %v4282, 4
  %v4285 = vshll.u32 %v3991, 16
  %v4287 = vrot.slane %v4285, 5
  %v4288 = vsel %vm1972, %v4283, %v4287
  %v4289 = vshrl.u32 %v3991, 16
  %v4291 = vrot.slane %v4289, 4
  %v4292 = vor.u32 %v4291, %v4287
  %v4293 = vrot.slane %v4292, 4
  %v4295 = vshll.u32 %v3992, 16
  %v4297 = vrot.slane %v4295, 5
  %v4298 = vsel %vm1972, %v4293, %v4297
  %v4300 = vshrl.u32 %v3993, 16
  %v4302 = vrot.slane %v4300, 4
  %v4303 = vshll.u32 %v3993, 16
  %v4305 = vrot.slane %v4303, 5
  %v4306 = vor.u32 %v4302, %v4305
  %v4307 = vrot.slane %v4306, 4
  %v4309 = vshll.u32 %v3994, 16
  %v4311 = vrot.slane %v4309, 5
  %v4312 = vsel %vm1972, %v4307, %v4311
  %v4313 = vshrl.u32 %v3994, 16
  %v4315 = vrot.slane %v4313, 4
  %v4316 = vor.u32 %v4315, %v4311
  %v4317 = vrot.slane %v4316, 4
  %v4319 = vshll.u32 %v3995, 16
  %v4321 = vrot.slane %v4319, 5
  %v4322 = vsel %vm1972, %v4317, %v4321
  %v4324 = vshrl.u32 %v3996, 16
  %v4326 = vrot.slane %v4324, 4
  %v4327 = vshll.u32 %v3996, 16
  %v4329 = vrot.slane %v4327, 5
  %v4330 = vor.u32 %v4326, %v4329
  %v4331 = vrot.slane %v4330, 4
  %v4333 = vshll.u32 %v3997, 16
  %v4335 = vrot.slane %v4333, 5
  %v4336 = vsel %vm1972, %v4331, %v4335
  %v4337 = vshrl.u32 %v3997, 16
  %v4339 = vrot.slane %v4337, 4
  %v4340 = vor.u32 %v4339, %v4335
  %v4341 = vrot.slane %v4340, 4
  %v4343 = vshll.u32 %v3998, 16
  %v4345 = vrot.slane %v4343, 5
  %v4346 = vsel %vm1972, %v4341, %v4345
  %v4348 = vshrl.u32 %v3999, 16
  %v4350 = vrot.slane %v4348, 4
  %v4351 = vshll.u32 %v3999, 16
  %v4353 = vrot.slane %v4351, 5
  %v4354 = vor.u32 %v4350, %v4353
  %v4355 = vrot.slane %v4354, 4
  %v4357 = vshll.u32 %v4000, 16
  %v4359 = vrot.slane %v4357, 5
  %v4360 = vsel %vm1972, %v4355, %v4359
  %v4361 = vshrl.u32 %v4000, 16
  %v4363 = vrot.slane %v4361, 4
  %v4364 = vor.u32 %v4363, %v4359
  %v4365 = vrot.slane %v4364, 4
  %v4367 = vshll.u32 %v4001, 16
  %v4369 = vrot.slane %v4367, 5
  %v4370 = vsel %vm1972, %v4365, %v4369
  %v4372 = vshrl.u32 %v4002, 16
  %v4374 = vrot.slane %v4372, 4
  %v4375 = vshll.u32 %v4002, 16
  %v4377 = vrot.slane %v4375, 5
  %v4378 = vor.u32 %v4374, %v4377
  %v4379 = vrot.slane %v4378, 4
  %v4381 = vshll.u32 %v4003, 16
  %v4383 = vrot.slane %v4381, 5
  %v4384 = vsel %vm1972, %v4379, %v4383
  %v4385 = vshrl.u32 %v4003, 16
  %v4387 = vrot.slane %v4385, 4
  %v4388 = vor.u32 %v4387, %v4383
  %v4389 = vrot.slane %v4388, 4
  %v4391 = vshll.u32 %v4004, 16
  %v4393 = vrot.slane %v4391, 5
  %v4394 = vsel %vm1972, %v4389, %v4393
  %v4396 = vshrl.u32 %v4005, 16
  %v4398 = vrot.slane %v4396, 4
  %v4399 = vshll.u32 %v4005, 16
  %v4401 = vrot.slane %v4399, 5
  %v4402 = vor.u32 %v4398, %v4401
  %v4403 = vrot.slane %v4402, 4
  %v4405 = vshll.u32 %v4006, 16
  %v4407 = vrot.slane %v4405, 5
  %v4408 = vsel %vm1972, %v4403, %v4407
  %v4409 = vshrl.u32 %v4006, 16
  %v4411 = vrot.slane %v4409, 4
  %v4412 = vor.u32 %v4411, %v4407
  %v4413 = vrot.slane %v4412, 4
  %v4415 = vshll.u32 %v4007, 16
  %v4417 = vrot.slane %v4415, 5
  %v4418 = vsel %vm1972, %v4413, %v4417
  %v4420 = vshrl.u32 %v4008, 16
  %v4422 = vrot.slane %v4420, 4
  %v4423 = vshll.u32 %v4008, 16
  %v4425 = vrot.slane %v4423, 5
  %v4426 = vor.u32 %v4422, %v4425
  %v4427 = vrot.slane %v4426, 4
  %v4429 = vshll.u32 %v4009, 16
  %v4431 = vrot.slane %v4429, 5
  %v4432 = vsel %vm1972, %v4427, %v4431
  %v4433 = vshrl.u32 %v4009, 16
  %v4435 = vrot.slane %v4433, 4
  %v4436 = vor.u32 %v4435, %v4431
  %v4437 = vrot.slane %v4436, 4
  %v4439 = vshll.u32 %v4010, 16
  %v4441 = vrot.slane %v4439, 5
  %v4442 = vsel %vm1972, %v4437, %v4441
  %v4444 = vshrl.u32 %v4011, 16
  %v4446 = vrot.slane %v4444, 4
  %v4447 = vshll.u32 %v4011, 16
  %v4449 = vrot.slane %v4447, 5
  %v4450 = vor.u32 %v4446, %v4449
  %v4451 = vrot.slane %v4450, 4
  %v4453 = vshll.u32 %v4012, 16
  %v4455 = vrot.slane %v4453, 5
  %v4456 = vsel %vm1972, %v4451, %v4455
  %v4457 = vshrl.u32 %v4012, 16
  %v4459 = vrot.slane %v4457, 4
  %v4460 = vor.u32 %v4459, %v4455
  %v4461 = vrot.slane %v4460, 4
  %v4463 = vshll.u32 %v4013, 16
  %v4465 = vrot.slane %v4463, 5
  %v4466 = vsel %vm1972, %v4461, %v4465
  %v4468 = vshrl.u32 %v4014, 16
  %v4470 = vrot.slane %v4468, 4
  %v4471 = vshll.u32 %v4014, 16
  %v4473 = vrot.slane %v4471, 5
  %v4474 = vor.u32 %v4470, %v4473
  %v4475 = vrot.slane %v4474, 4
  %v4477 = vshll.u32 %v4015, 16
  %v4479 = vrot.slane %v4477, 5
  %v4480 = vsel %vm1972, %v4475, %v4479
  %v4481 = vshrl.u32 %v4015, 16
  %v4483 = vrot.slane %v4481, 4
  %v4484 = vor.u32 %v4483, %v4479
  %v4485 = vrot.slane %v4484, 4
  %v4487 = vshll.u32 %v4016, 16
  %v4489 = vrot.slane %v4487, 5
  %v4490 = vsel %vm1972, %v4485, %v4489
  %v4492 = vshrl.u32 %v4017, 16
  %v4494 = vrot.slane %v4492, 4
  %v4495 = vshll.u32 %v4017, 16
  %v4497 = vrot.slane %v4495, 5
  %v4498 = vor.u32 %v4494, %v4497
  %v4499 = vrot.slane %v4498, 4
  %v4501 = vshll.u32 %v4018, 16
  %v4503 = vrot.slane %v4501, 5
  %v4504 = vsel %vm1972, %v4499, %v4503
  %v4505 = vshrl.u32 %v4018, 16
  %v4507 = vrot.slane %v4505, 4
  %v4508 = vor.u32 %v4507, %v4503
  %v4509 = vrot.slane %v4508, 4
  %v4511 = vshll.u32 %v4019, 16
  %v4513 = vrot.slane %v4511, 5
  %v4514 = vsel %vm1972, %v4509, %v4513
  %v4516 = vshrl.u32 %v4020, 16
  %v4518 = vrot.slane %v4516, 4
  %v4519 = vshll.u32 %v4020, 16
  %v4521 = vrot.slane %v4519, 5
  %v4522 = vor.u32 %v4518, %v4521
  %v4523 = vrot.slane %v4522, 4
  %v4525 = vshll.u32 %v4021, 16
  %v4527 = vrot.slane %v4525, 5
  %v4528 = vsel %vm1972, %v4523, %v4527
  %v4529 = vshrl.u32 %v4021, 16
  %v4531 = vrot.slane %v4529, 4
  %v4532 = vor.u32 %v4531, %v4527
  %v4533 = vrot.slane %v4532, 4
  %v4535 = vshll.u32 %v4022, 16
  %v4537 = vrot.slane %v4535, 5
  %v4538 = vsel %vm1972, %v4533, %v4537
  %v4540 = vshrl.u32 %v4023, 16
  %v4542 = vrot.slane %v4540, 4
  %v4543 = vshll.u32 %v4023, 16
  %v4545 = vrot.slane %v4543, 5
  %v4546 = vor.u32 %v4542, %v4545
  %v4547 = vrot.slane %v4546, 4
  %v4549 = vshll.u32 %v4024, 16
  %v4551 = vrot.slane %v4549, 5
  %v4552 = vsel %vm1972, %v4547, %v4551
  %v4553 = vshrl.u32 %v4024, 16
  %v4555 = vrot.slane %v4553, 4
  %v4556 = vor.u32 %v4555, %v4551
  %v4557 = vrot.slane %v4556, 4
  %v4559 = vshll.u32 %v4025, 16
  %v4561 = vrot.slane %v4559, 5
  %v4562 = vsel %vm1972, %v4557, %v4561
  %v4564 = vshrl.u32 %v4026, 16
  %v4566 = vrot.slane %v4564, 4
  %v4567 = vshll.u32 %v4026, 16
  %v4569 = vrot.slane %v4567, 5
  %v4570 = vor.u32 %v4566, %v4569
  %v4571 = vrot.slane %v4570, 4
  %v4573 = vshll.u32 %v4027, 16
  %v4575 = vrot.slane %v4573, 5
  %v4576 = vsel %vm1972, %v4571, %v4575
  %v4577 = vshrl.u32 %v4027, 16
  %v4579 = vrot.slane %v4577, 4
  %v4580 = vor.u32 %v4579, %v4575
  %v4581 = vrot.slane %v4580, 4
  %v4583 = vshll.u32 %v4028, 16
  %v4585 = vrot.slane %v4583, 5
  %v4586 = vsel %vm1972, %v4581, %v4585
  %v4588 = vshrl.u32 %v4029, 16
  %v4590 = vrot.slane %v4588, 4
  %v4591 = vshll.u32 %v4029, 16
  %v4593 = vrot.slane %v4591, 5
  %v4594 = vor.u32 %v4590, %v4593
  %v4595 = vrot.slane %v4594, 4
  %v4597 = vshll.u32 %v4030, 16
  %v4599 = vrot.slane %v4597, 5
  %v4600 = vsel %vm1972, %v4595, %v4599
  %v4601 = vshrl.u32 %v4030, 16
  %v4603 = vrot.slane %v4601, 4
  %v4604 = vor.u32 %v4603, %v4599
  %v4605 = vrot.slane %v4604, 4
  %v4607 = vshll.u32 %v4031, 16
  %v4609 = vrot.slane %v4607, 5
  %v4610 = vsel %vm1972, %v4605, %v4609
  %v4612 = vshrl.u32 %v4032, 16
  %v4614 = vrot.slane %v4612, 4
  %v4615 = vshll.u32 %v4032, 16
  %v4617 = vrot.slane %v4615, 5
  %v4618 = vor.u32 %v4614, %v4617
  %v4619 = vrot.slane %v4618, 4
  %v4621 = vshll.u32 %v4033, 16
  %v4623 = vrot.slane %v4621, 5
  %v4624 = vsel %vm1972, %v4619, %v4623
  %v4625 = vshrl.u32 %v4033, 16
  %v4627 = vrot.slane %v4625, 4
  %v4628 = vor.u32 %v4627, %v4623
  %v4629 = vrot.slane %v4628, 4
  %v4631 = vshll.u32 %v4034, 16
  %v4633 = vrot.slane %v4631, 5
  %v4634 = vsel %vm1972, %v4629, %v4633
  %v4636 = vshrl.u32 %v4035, 16
  %v4638 = vrot.slane %v4636, 4
  %v4639 = vshll.u32 %v4035, 16
  %v4641 = vrot.slane %v4639, 5
  %v4642 = vor.u32 %v4638, %v4641
  %v4643 = vrot.slane %v4642, 4
  %v4645 = vshll.u32 %v4036, 16
  %v4647 = vrot.slane %v4645, 5
  %v4648 = vsel %vm1972, %v4643, %v4647
  %v4649 = vshrl.u32 %v4036, 16
  %v4651 = vrot.slane %v4649, 4
  %v4652 = vor.u32 %v4651, %v4647
  %v4653 = vrot.slane %v4652, 4
  %v4655 = vshll.u32 %v4037, 16
  %v4657 = vrot.slane %v4655, 5
  %v4658 = vsel %vm1972, %v4653, %v4657
  %v4660 = vshrl.u32 %v4038, 16
  %v4662 = vrot.slane %v4660, 4
  %v4663 = vshll.u32 %v4038, 16
  %v4665 = vrot.slane %v4663, 5
  %v4666 = vor.u32 %v4662, %v4665
  %v4667 = vrot.slane %v4666, 4
  %v4669 = vshll.u32 %v4039, 16
  %v4671 = vrot.slane %v4669, 5
  %v4672 = vsel %vm1972, %v4667, %v4671
  %v4673 = vshrl.u32 %v4039, 16
  %v4675 = vrot.slane %v4673, 4
  %v4676 = vor.u32 %v4675, %v4671
  %v4677 = vrot.slane %v4676, 4
  %v4679 = vshll.u32 %v4040, 16
  %v4681 = vrot.slane %v4679, 5
  %v4682 = vsel %vm1972, %v4677, %v4681
  %v4684 = vshrl.u32 %v4041, 16
  %v4686 = vrot.slane %v4684, 4
  %v4687 = vshll.u32 %v4041, 16
  %v4689 = vrot.slane %v4687, 5
  %v4690 = vor.u32 %v4686, %v4689
  %v4691 = vrot.slane %v4690, 4
  %v4693 = vshll.u32 %v4042, 16
  %v4695 = vrot.slane %v4693, 5
  %v4696 = vsel %vm1972, %v4691, %v4695
  %v4697 = vshrl.u32 %v4042, 16
  %v4699 = vrot.slane %v4697, 4
  %v4700 = vor.u32 %v4699, %v4695
  %v4701 = vrot.slane %v4700, 4
  %v4703 = vshll.u32 %v4043, 16
  %v4705 = vrot.slane %v4703, 5
  %v4706 = vsel %vm1972, %v4701, %v4705
  %v4708 = vshrl.u32 %v4044, 16
  %v4710 = vrot.slane %v4708, 4
  %v4711 = vshll.u32 %v4044, 16
  %v4713 = vrot.slane %v4711, 5
  %v4714 = vor.u32 %v4710, %v4713
  %v4715 = vrot.slane %v4714, 4
  %v4717 = vshll.u32 %v4045, 16
  %v4719 = vrot.slane %v4717, 5
  %v4720 = vsel %vm1972, %v4715, %v4719
  %v4721 = vshrl.u32 %v4045, 16
  %v4723 = vrot.slane %v4721, 4
  %v4724 = vor.u32 %v4723, %v4719
  %v4725 = vrot.slane %v4724, 4
  %v4727 = vshll.u32 %v4046, 16
  %v4729 = vrot.slane %v4727, 5
  %v4730 = vsel %vm1972, %v4725, %v4729
  %v4732 = vshrl.u32 %v4047, 16
  %v4734 = vrot.slane %v4732, 4
  %v4735 = vshll.u32 %v4047, 16
  %v4737 = vrot.slane %v4735, 5
  %v4738 = vor.u32 %v4734, %v4737
  %v4739 = vrot.slane %v4738, 4
  %v4741 = vshll.u32 %v4048, 16
  %v4743 = vrot.slane %v4741, 5
  %v4744 = vsel %vm1972, %v4739, %v4743
  %v4745 = vshrl.u32 %v4048, 16
  %v4747 = vrot.slane %v4745, 4
  %v4748 = vor.u32 %v4747, %v4743
  %v4749 = vrot.slane %v4748, 4
  %v4751 = vshll.u32 %v4049, 16
  %v4753 = vrot.slane %v4751, 5
  %v4754 = vsel %vm1972, %v4749, %v4753
  %v4756 = vshrl.u32 %v4050, 16
  %v4758 = vrot.slane %v4756, 4
  %v4759 = vshll.u32 %v4050, 16
  %v4761 = vrot.slane %v4759, 5
  %v4762 = vor.u32 %v4758, %v4761
  %v4763 = vrot.slane %v4762, 4
  %v4765 = vshll.u32 %v4051, 16
  %v4767 = vrot.slane %v4765, 5
  %v4768 = vsel %vm1972, %v4763, %v4767
  %v4769 = vshrl.u32 %v4051, 16
  %v4771 = vrot.slane %v4769, 4
  %v4772 = vor.u32 %v4771, %v4767
  %v4773 = vrot.slane %v4772, 4
  %v4775 = vshll.u32 %v4052, 16
  %v4777 = vrot.slane %v4775, 5
  %v4778 = vsel %vm1972, %v4773, %v4777
  %v4780 = vshrl.u32 %v4053, 16
  %v4782 = vrot.slane %v4780, 4
  %v4783 = vshll.u32 %v4053, 16
  %v4785 = vrot.slane %v4783, 5
  %v4786 = vor.u32 %v4782, %v4785
  %v4787 = vrot.slane %v4786, 4
  %v4789 = vshll.u32 %v4054, 16
  %v4791 = vrot.slane %v4789, 5
  %v4792 = vsel %vm1972, %v4787, %v4791
  %v4793 = vshrl.u32 %v4054, 16
  %v4795 = vrot.slane %v4793, 4
  %v4796 = vor.u32 %v4795, %v4791
  %v4797 = vrot.slane %v4796, 4
  %v4799 = vshll.u32 %v4055, 16
  %v4801 = vrot.slane %v4799, 5
  %v4802 = vsel %vm1972, %v4797, %v4801
  %v4804 = vshrl.u32 %v4056, 16
  %v4806 = vrot.slane %v4804, 4
  %v4807 = vshll.u32 %v4056, 16
  %v4809 = vrot.slane %v4807, 5
  %v4810 = vor.u32 %v4806, %v4809
  %v4811 = vrot.slane %v4810, 4
  %v4813 = vshll.u32 %v4057, 16
  %v4815 = vrot.slane %v4813, 5
  %v4816 = vsel %vm1972, %v4811, %v4815
  %v4817 = vshrl.u32 %v4057, 16
  %v4819 = vrot.slane %v4817, 4
  %v4820 = vor.u32 %v4819, %v4815
  %v4821 = vrot.slane %v4820, 4
  %v4823 = vshll.u32 %v4058, 16
  %v4825 = vrot.slane %v4823, 5
  %v4826 = vsel %vm1972, %v4821, %v4825
  %v4827 = vunpack.c.l.b16 %v4072
  %v4828 = vunpack.c.l.b16 %v4082
  %v4829 = vunpack.c.l.b16 %v4096
  %v4830 = vunpack.c.l.b16 %v4106
  %v4831 = vunpack.c.l.b16 %v4120
  %v4832 = vunpack.c.l.b16 %v4130
  %v4833 = vunpack.c.l.b16 %v4144
  %v4834 = vunpack.c.l.b16 %v4154
  %v4835 = vunpack.c.l.b16 %v4168
  %v4836 = vunpack.c.l.b16 %v4178
  %v4837 = vunpack.c.l.b16 %v4192
  %v4838 = vunpack.c.l.b16 %v4202
  %v4839 = vunpack.c.l.b16 %v4216
  %v4840 = vunpack.c.l.b16 %v4226
  %v4841 = vunpack.c.l.b16 %v4240
  %v4842 = vunpack.c.l.b16 %v4250
  %v4843 = vunpack.c.l.b16 %v4264
  %v4844 = vunpack.c.l.b16 %v4274
  %v4845 = vunpack.c.l.b16 %v4288
  %v4846 = vunpack.c.l.b16 %v4298
  %v4847 = vunpack.c.l.b16 %v4312
  %v4848 = vunpack.c.l.b16 %v4322
  %v4849 = vunpack.c.l.b16 %v4336
  %v4850 = vunpack.c.l.b16 %v4346
  %v4851 = vunpack.c.l.b16 %v4360
  %v4852 = vunpack.c.l.b16 %v4370
  %v4853 = vunpack.c.l.b16 %v4384
  %v4854 = vunpack.c.l.b16 %v4394
  %v4855 = vunpack.c.l.b16 %v4408
  %v4856 = vunpack.c.l.b16 %v4418
  %v4857 = vunpack.c.l.b16 %v4432
  %v4858 = vunpack.c.l.b16 %v4442
  %v4859 = vunpack.c.l.b16 %v4456
  %v4860 = vunpack.c.l.b16 %v4466
  %v4861 = vunpack.c.l.b16 %v4480
  %v4862 = vunpack.c.l.b16 %v4490
  %v4863 = vunpack.c.l.b16 %v4504
  %v4864 = vunpack.c.l.b16 %v4514
  %v4865 = vunpack.c.l.b16 %v4528
  %v4866 = vunpack.c.l.b16 %v4538
  %v4867 = vunpack.c.l.b16 %v4552
  %v4868 = vunpack.c.l.b16 %v4562
  %v4869 = vunpack.c.l.b16 %v4576
  %v4870 = vunpack.c.l.b16 %v4586
  %v4871 = vunpack.c.l.b16 %v4600
  %v4872 = vunpack.c.l.b16 %v4610
  %v4873 = vunpack.c.l.b16 %v4624
  %v4874 = vunpack.c.l.b16 %v4634
  %v4875 = vunpack.c.l.b16 %v4648
  %v4876 = vunpack.c.l.b16 %v4658
  %v4877 = vunpack.c.l.b16 %v4672
  %v4878 = vunpack.c.l.b16 %v4682
  %v4879 = vunpack.c.l.b16 %v4696
  %v4880 = vunpack.c.l.b16 %v4706
  %v4881 = vunpack.c.l.b16 %v4720
  %v4882 = vunpack.c.l.b16 %v4730
  %v4883 = vunpack.c.l.b16 %v4744
  %v4884 = vunpack.c.l.b16 %v4754
  %v4885 = vunpack.c.l.b16 %v4768
  %v4886 = vunpack.c.l.b16 %v4778
  %v4887 = vunpack.c.l.b16 %v4792
  %v4888 = vunpack.c.l.b16 %v4802
  %v4889 = vunpack.c.l.b16 %v4816
  %v4890 = vunpack.c.l.b16 %v4826
  %v4891 = vpack.c.b16 %v4828, %v4827
  %v4892 = vpack.c.b16 %v4830, %v4829
  %v4893 = vpack.c.b16 %v4832, %v4831
  %v4894 = vpack.c.b16 %v4834, %v4833
  %v4895 = vpack.c.b16 %v4836, %v4835
  %v4896 = vpack.c.b16 %v4838, %v4837
  %v4897 = vpack.c.b16 %v4840, %v4839
  %v4898 = vpack.c.b16 %v4842, %v4841
  %v4899 = vpack.c.b16 %v4844, %v4843
  %v4900 = vpack.c.b16 %v4846, %v4845
  %v4901 = vpack.c.b16 %v4848, %v4847
  %v4902 = vpack.c.b16 %v4850, %v4849
  %v4903 = vpack.c.b16 %v4852, %v4851
  %v4904 = vpack.c.b16 %v4854, %v4853
  %v4905 = vpack.c.b16 %v4856, %v4855
  %v4906 = vpack.c.b16 %v4858, %v4857
  %v4907 = vpack.c.b16 %v4860, %v4859
  %v4908 = vpack.c.b16 %v4862, %v4861
  %v4909 = vpack.c.b16 %v4864, %v4863
  %v4910 = vpack.c.b16 %v4866, %v4865
  %v4911 = vpack.c.b16 %v4868, %v4867
  %v4912 = vpack.c.b16 %v4870, %v4869
  %v4913 = vpack.c.b16 %v4872, %v4871
  %v4914 = vpack.c.b16 %v4874, %v4873
  %v4915 = vpack.c.b16 %v4876, %v4875
  %v4916 = vpack.c.b16 %v4878, %v4877
  %v4917 = vpack.c.b16 %v4880, %v4879
  %v4918 = vpack.c.b16 %v4882, %v4881
  %v4919 = vpack.c.b16 %v4884, %v4883
  %v4920 = vpack.c.b16 %v4886, %v4885
  %v4921 = vpack.c.b16 %v4888, %v4887
  %v4922 = vpack.c.b16 %v4890, %v4889
  %4923 = vrot.lane.b32.xlu0 %v4891, 16
  %v4924 = vpop.permute.xlu0 %4923
  %4925 = vrot.lane.b32.xlu0 %v4892, 16
  %v4926 = vpop.permute.xlu0 %4925
  %4927 = vrot.lane.b32.xlu0 %v4893, 16
  %v4928 = vpop.permute.xlu0 %4927
  %4929 = vrot.lane.b32.xlu0 %v4894, 16
  %v4930 = vpop.permute.xlu0 %4929
  %4931 = vrot.lane.b32.xlu0 %v4895, 16
  %v4932 = vpop.permute.xlu0 %4931
  %4933 = vrot.lane.b32.xlu0 %v4896, 16
  %v4934 = vpop.permute.xlu0 %4933
  %4935 = vrot.lane.b32.xlu0 %v4897, 16
  %v4936 = vpop.permute.xlu0 %4935
  %4937 = vrot.lane.b32.xlu0 %v4898, 16
  %v4938 = vpop.permute.xlu0 %4937
  %4939 = vrot.lane.b32.xlu0 %v4899, 16
  %v4940 = vpop.permute.xlu0 %4939
  %4941 = vrot.lane.b32.xlu0 %v4900, 16
  %v4942 = vpop.permute.xlu0 %4941
  %4943 = vrot.lane.b32.xlu0 %v4901, 16
  %v4944 = vpop.permute.xlu0 %4943
  %4945 = vrot.lane.b32.xlu0 %v4902, 16
  %v4946 = vpop.permute.xlu0 %4945
  %4947 = vrot.lane.b32.xlu0 %v4903, 16
  %v4948 = vpop.permute.xlu0 %4947
  %4949 = vrot.lane.b32.xlu0 %v4904, 16
  %v4950 = vpop.permute.xlu0 %4949
  %4951 = vrot.lane.b32.xlu0 %v4905, 16
  %v4952 = vpop.permute.xlu0 %4951
  %4953 = vrot.lane.b32.xlu0 %v4906, 16
  %v4954 = vpop.permute.xlu0 %4953
  %4955 = vrot.lane.b32.xlu0 %v4907, 16
  %v4956 = vpop.permute.xlu0 %4955
  %4957 = vrot.lane.b32.xlu0 %v4908, 16
  %v4958 = vpop.permute.xlu0 %4957
  %4959 = vrot.lane.b32.xlu0 %v4909, 16
  %v4960 = vpop.permute.xlu0 %4959
  %4961 = vrot.lane.b32.xlu0 %v4910, 16
  %v4962 = vpop.permute.xlu0 %4961
  %4963 = vrot.lane.b32.xlu0 %v4911, 16
  %v4964 = vpop.permute.xlu0 %4963
  %4965 = vrot.lane.b32.xlu0 %v4912, 16
  %v4966 = vpop.permute.xlu0 %4965
  %4967 = vrot.lane.b32.xlu0 %v4913, 16
  %v4968 = vpop.permute.xlu0 %4967
  %4969 = vrot.lane.b32.xlu0 %v4914, 16
  %v4970 = vpop.permute.xlu0 %4969
  %4971 = vrot.lane.b32.xlu0 %v4915, 16
  %v4972 = vpop.permute.xlu0 %4971
  %4973 = vrot.lane.b32.xlu0 %v4916, 16
  %v4974 = vpop.permute.xlu0 %4973
  %4975 = vrot.lane.b32.xlu0 %v4917, 16
  %v4976 = vpop.permute.xlu0 %4975
  %4977 = vrot.lane.b32.xlu0 %v4918, 16
  %v4978 = vpop.permute.xlu0 %4977
  %4979 = vrot.lane.b32.xlu0 %v4919, 16
  %v4980 = vpop.permute.xlu0 %4979
  %4981 = vrot.lane.b32.xlu0 %v4920, 16
  %v4982 = vpop.permute.xlu0 %4981
  %4983 = vrot.lane.b32.xlu0 %v4921, 16
  %v4984 = vpop.permute.xlu0 %4983
  %4985 = vrot.lane.b32.xlu0 %v4922, 16
  %v4986 = vpop.permute.xlu0 %4985
  %vm5019 = vcmask 162944
  %5020 = vst.msk [vmem:[#allocation3] sm:$0xff] %vm5019, %v4924
  %5021 = vst.msk [vmem:[#allocation3 + $0x8] sm:$0xff] %vm5019, %v4926
  %5022 = vst.msk [vmem:[#allocation3 + $0x10] sm:$0xff] %vm5019, %v4928
  %5023 = vst.msk [vmem:[#allocation3 + $0x18] sm:$0xff] %vm5019, %v4930
  %5024 = vst.msk [vmem:[#allocation3 + $0x20] sm:$0xff] %vm5019, %v4932
  %5025 = vst.msk [vmem:[#allocation3 + $0x28] sm:$0xff] %vm5019, %v4934
  %5026 = vst.msk [vmem:[#allocation3 + $0x30] sm:$0xff] %vm5019, %v4936
  %5027 = vst.msk [vmem:[#allocation3 + $0x38] sm:$0xff] %vm5019, %v4938
  %5028 = vst.msk [vmem:[#allocation3 + $0x40] sm:$0xff] %vm5019, %v4940
  %5029 = vst.msk [vmem:[#allocation3 + $0x48] sm:$0xff] %vm5019, %v4942
  %5030 = vst.msk [vmem:[#allocation3 + $0x50] sm:$0xff] %vm5019, %v4944
  %5031 = vst.msk [vmem:[#allocation3 + $0x58] sm:$0xff] %vm5019, %v4946
  %5032 = vst.msk [vmem:[#allocation3 + $0x60] sm:$0xff] %vm5019, %v4948
  %5033 = vst.msk [vmem:[#allocation3 + $0x68] sm:$0xff] %vm5019, %v4950
  %5034 = vst.msk [vmem:[#allocation3 + $0x70] sm:$0xff] %vm5019, %v4952
  %5035 = vst.msk [vmem:[#allocation3 + $0x78] sm:$0xff] %vm5019, %v4954
  %5036 = vst.msk [vmem:[#allocation3 + $0x80] sm:$0xff] %vm5019, %v4956
  %5037 = vst.msk [vmem:[#allocation3 + $0x88] sm:$0xff] %vm5019, %v4958
  %5038 = vst.msk [vmem:[#allocation3 + $0x90] sm:$0xff] %vm5019, %v4960
  %5039 = vst.msk [vmem:[#allocation3 + $0x98] sm:$0xff] %vm5019, %v4962
  %5040 = vst.msk [vmem:[#allocation3 + $0xa0] sm:$0xff] %vm5019, %v4964
  %5041 = vst.msk [vmem:[#allocation3 + $0xa8] sm:$0xff] %vm5019, %v4966
  %5042 = vst.msk [vmem:[#allocation3 + $0xb0] sm:$0xff] %vm5019, %v4968
  %5043 = vst.msk [vmem:[#allocation3 + $0xb8] sm:$0xff] %vm5019, %v4970
  %5044 = vst.msk [vmem:[#allocation3 + $0xc0] sm:$0xff] %vm5019, %v4972
  %5045 = vst.msk [vmem:[#allocation3 + $0xc8] sm:$0xff] %vm5019, %v4974
  %5046 = vst.msk [vmem:[#allocation3 + $0xd0] sm:$0xff] %vm5019, %v4976
  %5047 = vst.msk [vmem:[#allocation3 + $0xd8] sm:$0xff] %vm5019, %v4978
  %5048 = vst.msk [vmem:[#allocation3 + $0xe0] sm:$0xff] %vm5019, %v4980
  %5049 = vst.msk [vmem:[#allocation3 + $0xe8] sm:$0xff] %vm5019, %v4982
  %5050 = vst.msk [vmem:[#allocation3 + $0xf0] sm:$0xff] %vm5019, %v4984
  %5051 = vst.msk [vmem:[#allocation3 + $0xf8] sm:$0xff] %vm5019, %v4986
  %v5052 = vld [vmem:[%s1358] sm:$0xe]
  %v5053 = vld [vmem:[%s1358 + $0x4] sm:$0xf]
  %v5054 = vld [vmem:[%s1358 + $0x8] sm:$0x1]
  %v5055 = vld [vmem:[%s1358 + $0xc] sm:$0xe]
  %v5056 = vld [vmem:[%s1358 + $0x10] sm:$0xf]
  %v5057 = vld [vmem:[%s1358 + $0x14] sm:$0x1]
  %v5058 = vld [vmem:[%s1358 + $0x18] sm:$0xe]
  %v5059 = vld [vmem:[%s1358 + $0x1c] sm:$0xf]
  %v5060 = vld [vmem:[%s1358 + $0x20] sm:$0x1]
  %v5061 = vld [vmem:[%s1358 + $0x24] sm:$0xe]
  %v5062 = vld [vmem:[%s1358 + $0x28] sm:$0xf]
  %v5063 = vld [vmem:[%s1358 + $0x2c] sm:$0x1]
  %v5064 = vld [vmem:[%s1358 + $0x30] sm:$0xe]
  %v5065 = vld [vmem:[%s1358 + $0x34] sm:$0xf]
  %v5066 = vld [vmem:[%s1358 + $0x38] sm:$0x1]
  %v5067 = vld [vmem:[%s1358 + $0x3c] sm:$0xe]
  %v5068 = vld [vmem:[%s1358 + $0x40] sm:$0xf]
  %v5069 = vld [vmem:[%s1358 + $0x44] sm:$0x1]
  %v5070 = vld [vmem:[%s1358 + $0x48] sm:$0xe]
  %v5071 = vld [vmem:[%s1358 + $0x4c] sm:$0xf]
  %v5072 = vld [vmem:[%s1358 + $0x50] sm:$0x1]
  %v5073 = vld [vmem:[%s1358 + $0x54] sm:$0xe]
  %v5074 = vld [vmem:[%s1358 + $0x58] sm:$0xf]
  %v5075 = vld [vmem:[%s1358 + $0x5c] sm:$0x1]
  %v5076 = vld [vmem:[%s1358 + $0x60] sm:$0xe]
  %v5077 = vld [vmem:[%s1358 + $0x64] sm:$0xf]
  %v5078 = vld [vmem:[%s1358 + $0x68] sm:$0x1]
  %v5079 = vld [vmem:[%s1358 + $0x6c] sm:$0xe]
  %v5080 = vld [vmem:[%s1358 + $0x70] sm:$0xf]
  %v5081 = vld [vmem:[%s1358 + $0x74] sm:$0x1]
  %v5082 = vld [vmem:[%s1358 + $0x78] sm:$0xe]
  %v5083 = vld [vmem:[%s1358 + $0x7c] sm:$0xf]
  %v5084 = vld [vmem:[%s1358 + $0x80] sm:$0x1]
  %v5085 = vld [vmem:[%s1358 + $0x84] sm:$0xe]
  %v5086 = vld [vmem:[%s1358 + $0x88] sm:$0xf]
  %v5087 = vld [vmem:[%s1358 + $0x8c] sm:$0x1]
  %v5088 = vld [vmem:[%s1358 + $0x90] sm:$0xe]
  %v5089 = vld [vmem:[%s1358 + $0x94] sm:$0xf]
  %v5090 = vld [vmem:[%s1358 + $0x98] sm:$0x1]
  %v5091 = vld [vmem:[%s1358 + $0x9c] sm:$0xe]
  %v5092 = vld [vmem:[%s1358 + $0xa0] sm:$0xf]
  %v5093 = vld [vmem:[%s1358 + $0xa4] sm:$0x1]
  %v5094 = vld [vmem:[%s1358 + $0xa8] sm:$0xe]
  %v5095 = vld [vmem:[%s1358 + $0xac] sm:$0xf]
  %v5096 = vld [vmem:[%s1358 + $0xb0] sm:$0x1]
  %v5097 = vld [vmem:[%s1358 + $0xb4] sm:$0xe]
  %v5098 = vld [vmem:[%s1358 + $0xb8] sm:$0xf]
  %v5099 = vld [vmem:[%s1358 + $0xbc] sm:$0x1]
  %v5100 = vld [vmem:[%s1358 + $0xd8] sm:$0xe]
  %v5101 = vld [vmem:[%s1358 + $0xdc] sm:$0xf]
  %v5102 = vld [vmem:[%s1358 + $0xe0] sm:$0x1]
  %v5103 = vld [vmem:[%s1358 + $0xe4] sm:$0xe]
  %v5104 = vld [vmem:[%s1358 + $0xe8] sm:$0xf]
  %v5105 = vld [vmem:[%s1358 + $0xec] sm:$0x1]
  %v5106 = vld [vmem:[%s1358 + $0xf0] sm:$0xe]
  %v5107 = vld [vmem:[%s1358 + $0xf4] sm:$0xf]
  %v5108 = vld [vmem:[%s1358 + $0xf8] sm:$0x1]
  %v5109 = vld [vmem:[%s1358 + $0xfc] sm:$0xe]
  %v5110 = vld [vmem:[%s1358 + $0x100] sm:$0xf]
  %v5111 = vld [vmem:[%s1358 + $0x104] sm:$0x1]
  %v5112 = vld [vmem:[%s1358 + $0x108] sm:$0xe]
  %v5113 = vld [vmem:[%s1358 + $0x10c] sm:$0xf]
  %v5114 = vld [vmem:[%s1358 + $0x110] sm:$0x1]
  %v5115 = vld [vmem:[%s1358 + $0x114] sm:$0xe]
  %v5116 = vld [vmem:[%s1358 + $0x118] sm:$0xf]
  %v5117 = vld [vmem:[%s1358 + $0x11c] sm:$0x1]
  %v5118 = vld [vmem:[%s1358 + $0x120] sm:$0xe]
  %v5119 = vld [vmem:[%s1358 + $0x124] sm:$0xf]
  %v5120 = vld [vmem:[%s1358 + $0x128] sm:$0x1]
  %v5121 = vld [vmem:[%s1358 + $0x12c] sm:$0xe]
  %v5122 = vld [vmem:[%s1358 + $0x130] sm:$0xf]
  %v5123 = vld [vmem:[%s1358 + $0x134] sm:$0x1]
  %v5124 = vld [vmem:[%s1358 + $0x138] sm:$0xe]
  %v5125 = vld [vmem:[%s1358 + $0x13c] sm:$0xf]
  %v5126 = vld [vmem:[%s1358 + $0x140] sm:$0x1]
  %v5127 = vld [vmem:[%s1358 + $0x144] sm:$0xe]
  %v5128 = vld [vmem:[%s1358 + $0x148] sm:$0xf]
  %v5129 = vld [vmem:[%s1358 + $0x14c] sm:$0x1]
  %v5130 = vld [vmem:[%s1358 + $0x150] sm:$0xe]
  %v5131 = vld [vmem:[%s1358 + $0x154] sm:$0xf]
  %v5132 = vld [vmem:[%s1358 + $0x158] sm:$0x1]
  %v5133 = vld [vmem:[%s1358 + $0x15c] sm:$0xe]
  %v5134 = vld [vmem:[%s1358 + $0x160] sm:$0xf]
  %v5135 = vld [vmem:[%s1358 + $0x164] sm:$0x1]
  %v5136 = vld [vmem:[%s1358 + $0x168] sm:$0xe]
  %v5137 = vld [vmem:[%s1358 + $0x16c] sm:$0xf]
  %v5138 = vld [vmem:[%s1358 + $0x170] sm:$0x1]
  %v5139 = vld [vmem:[%s1358 + $0x174] sm:$0xe]
  %v5140 = vld [vmem:[%s1358 + $0x178] sm:$0xf]
  %v5141 = vld [vmem:[%s1358 + $0x17c] sm:$0x1]
  %v5142 = vld [vmem:[%s1358 + $0x180] sm:$0xe]
  %v5143 = vld [vmem:[%s1358 + $0x184] sm:$0xf]
  %v5144 = vld [vmem:[%s1358 + $0x188] sm:$0x1]
  %v5145 = vld [vmem:[%s1358 + $0x18c] sm:$0xe]
  %v5146 = vld [vmem:[%s1358 + $0x190] sm:$0xf]
  %v5147 = vld [vmem:[%s1358 + $0x194] sm:$0x1]
  %v5244 = vrot.slane %v5052, 5
  %v5245 = vrot.slane %v5244, 4
  %v5246 = vrot.slane %v5053, 5
  %v5247 = vsel %vm3160, %v5245, %v5246
  %v5248 = vrot.slane %v5246, 4
  %v5249 = vrot.slane %v5054, 5
  %v5250 = vsel %vm3160, %v5248, %v5249
  %v5251 = vrot.slane %v5055, 5
  %v5252 = vrot.slane %v5251, 4
  %v5253 = vrot.slane %v5056, 5
  %v5254 = vsel %vm3160, %v5252, %v5253
  %v5255 = vrot.slane %v5253, 4
  %v5256 = vrot.slane %v5057, 5
  %v5257 = vsel %vm3160, %v5255, %v5256
  %v5258 = vrot.slane %v5058, 5
  %v5259 = vrot.slane %v5258, 4
  %v5260 = vrot.slane %v5059, 5
  %v5261 = vsel %vm3160, %v5259, %v5260
  %v5262 = vrot.slane %v5260, 4
  %v5263 = vrot.slane %v5060, 5
  %v5264 = vsel %vm3160, %v5262, %v5263
  %v5265 = vrot.slane %v5061, 5
  %v5266 = vrot.slane %v5265, 4
  %v5267 = vrot.slane %v5062, 5
  %v5268 = vsel %vm3160, %v5266, %v5267
  %v5269 = vrot.slane %v5267, 4
  %v5270 = vrot.slane %v5063, 5
  %v5271 = vsel %vm3160, %v5269, %v5270
  %v5272 = vrot.slane %v5064, 5
  %v5273 = vrot.slane %v5272, 4
  %v5274 = vrot.slane %v5065, 5
  %v5275 = vsel %vm3160, %v5273, %v5274
  %v5276 = vrot.slane %v5274, 4
  %v5277 = vrot.slane %v5066, 5
  %v5278 = vsel %vm3160, %v5276, %v5277
  %v5279 = vrot.slane %v5067, 5
  %v5280 = vrot.slane %v5279, 4
  %v5281 = vrot.slane %v5068, 5
  %v5282 = vsel %vm3160, %v5280, %v5281
  %v5283 = vrot.slane %v5281, 4
  %v5284 = vrot.slane %v5069, 5
  %v5285 = vsel %vm3160, %v5283, %v5284
  %v5286 = vrot.slane %v5070, 5
  %v5287 = vrot.slane %v5286, 4
  %v5288 = vrot.slane %v5071, 5
  %v5289 = vsel %vm3160, %v5287, %v5288
  %v5290 = vrot.slane %v5288, 4
  %v5291 = vrot.slane %v5072, 5
  %v5292 = vsel %vm3160, %v5290, %v5291
  %v5293 = vrot.slane %v5073, 5
  %v5294 = vrot.slane %v5293, 4
  %v5295 = vrot.slane %v5074, 5
  %v5296 = vsel %vm3160, %v5294, %v5295
  %v5297 = vrot.slane %v5295, 4
  %v5298 = vrot.slane %v5075, 5
  %v5299 = vsel %vm3160, %v5297, %v5298
  %v5300 = vrot.slane %v5076, 5
  %v5301 = vrot.slane %v5300, 4
  %v5302 = vrot.slane %v5077, 5
  %v5303 = vsel %vm3160, %v5301, %v5302
  %v5304 = vrot.slane %v5302, 4
  %v5305 = vrot.slane %v5078, 5
  %v5306 = vsel %vm3160, %v5304, %v5305
  %v5307 = vrot.slane %v5079, 5
  %v5308 = vrot.slane %v5307, 4
  %v5309 = vrot.slane %v5080, 5
  %v5310 = vsel %vm3160, %v5308, %v5309
  %v5311 = vrot.slane %v5309, 4
  %v5312 = vrot.slane %v5081, 5
  %v5313 = vsel %vm3160, %v5311, %v5312
  %v5314 = vrot.slane %v5082, 5
  %v5315 = vrot.slane %v5314, 4
  %v5316 = vrot.slane %v5083, 5
  %v5317 = vsel %vm3160, %v5315, %v5316
  %v5318 = vrot.slane %v5316, 4
  %v5319 = vrot.slane %v5084, 5
  %v5320 = vsel %vm3160, %v5318, %v5319
  %v5321 = vrot.slane %v5085, 5
  %v5322 = vrot.slane %v5321, 4
  %v5323 = vrot.slane %v5086, 5
  %v5324 = vsel %vm3160, %v5322, %v5323
  %v5325 = vrot.slane %v5323, 4
  %v5326 = vrot.slane %v5087, 5
  %v5327 = vsel %vm3160, %v5325, %v5326
  %v5328 = vrot.slane %v5088, 5
  %v5329 = vrot.slane %v5328, 4
  %v5330 = vrot.slane %v5089, 5
  %v5331 = vsel %vm3160, %v5329, %v5330
  %v5332 = vrot.slane %v5330, 4
  %v5333 = vrot.slane %v5090, 5
  %v5334 = vsel %vm3160, %v5332, %v5333
  %v5335 = vrot.slane %v5091, 5
  %v5336 = vrot.slane %v5335, 4
  %v5337 = vrot.slane %v5092, 5
  %v5338 = vsel %vm3160, %v5336, %v5337
  %v5339 = vrot.slane %v5337, 4
  %v5340 = vrot.slane %v5093, 5
  %v5341 = vsel %vm3160, %v5339, %v5340
  %v5342 = vrot.slane %v5094, 5
  %v5343 = vrot.slane %v5342, 4
  %v5344 = vrot.slane %v5095, 5
  %v5345 = vsel %vm3160, %v5343, %v5344
  %v5346 = vrot.slane %v5344, 4
  %v5347 = vrot.slane %v5096, 5
  %v5348 = vsel %vm3160, %v5346, %v5347
  %v5349 = vrot.slane %v5097, 5
  %v5350 = vrot.slane %v5349, 4
  %v5351 = vrot.slane %v5098, 5
  %v5352 = vsel %vm3160, %v5350, %v5351
  %v5353 = vrot.slane %v5351, 4
  %v5354 = vrot.slane %v5099, 5
  %v5355 = vsel %vm3160, %v5353, %v5354
  %v5356 = vrot.slane %v5100, 5
  %v5357 = vrot.slane %v5356, 4
  %v5358 = vrot.slane %v5101, 5
  %v5359 = vsel %vm3160, %v5357, %v5358
  %v5360 = vrot.slane %v5358, 4
  %v5361 = vrot.slane %v5102, 5
  %v5362 = vsel %vm3160, %v5360, %v5361
  %v5363 = vrot.slane %v5103, 5
  %v5364 = vrot.slane %v5363, 4
  %v5365 = vrot.slane %v5104, 5
  %v5366 = vsel %vm3160, %v5364, %v5365
  %v5367 = vrot.slane %v5365, 4
  %v5368 = vrot.slane %v5105, 5
  %v5369 = vsel %vm3160, %v5367, %v5368
  %v5370 = vrot.slane %v5106, 5
  %v5371 = vrot.slane %v5370, 4
  %v5372 = vrot.slane %v5107, 5
  %v5373 = vsel %vm3160, %v5371, %v5372
  %v5374 = vrot.slane %v5372, 4
  %v5375 = vrot.slane %v5108, 5
  %v5376 = vsel %vm3160, %v5374, %v5375
  %v5377 = vrot.slane %v5109, 5
  %v5378 = vrot.slane %v5377, 4
  %v5379 = vrot.slane %v5110, 5
  %v5380 = vsel %vm3160, %v5378, %v5379
  %v5381 = vrot.slane %v5379, 4
  %v5382 = vrot.slane %v5111, 5
  %v5383 = vsel %vm3160, %v5381, %v5382
  %v5384 = vrot.slane %v5112, 5
  %v5385 = vrot.slane %v5384, 4
  %v5386 = vrot.slane %v5113, 5
  %v5387 = vsel %vm3160, %v5385, %v5386
  %v5388 = vrot.slane %v5386, 4
  %v5389 = vrot.slane %v5114, 5
  %v5390 = vsel %vm3160, %v5388, %v5389
  %v5391 = vrot.slane %v5115, 5
  %v5392 = vrot.slane %v5391, 4
  %v5393 = vrot.slane %v5116, 5
  %v5394 = vsel %vm3160, %v5392, %v5393
  %v5395 = vrot.slane %v5393, 4
  %v5396 = vrot.slane %v5117, 5
  %v5397 = vsel %vm3160, %v5395, %v5396
  %v5398 = vrot.slane %v5118, 5
  %v5399 = vrot.slane %v5398, 4
  %v5400 = vrot.slane %v5119, 5
  %v5401 = vsel %vm3160, %v5399, %v5400
  %v5402 = vrot.slane %v5400, 4
  %v5403 = vrot.slane %v5120, 5
  %v5404 = vsel %vm3160, %v5402, %v5403
  %v5405 = vrot.slane %v5121, 5
  %v5406 = vrot.slane %v5405, 4
  %v5407 = vrot.slane %v5122, 5
  %v5408 = vsel %vm3160, %v5406, %v5407
  %v5409 = vrot.slane %v5407, 4
  %v5410 = vrot.slane %v5123, 5
  %v5411 = vsel %vm3160, %v5409, %v5410
  %v5412 = vrot.slane %v5124, 5
  %v5413 = vrot.slane %v5412, 4
  %v5414 = vrot.slane %v5125, 5
  %v5415 = vsel %vm3160, %v5413, %v5414
  %v5416 = vrot.slane %v5414, 4
  %v5417 = vrot.slane %v5126, 5
  %v5418 = vsel %vm3160, %v5416, %v5417
  %v5419 = vrot.slane %v5127, 5
  %v5420 = vrot.slane %v5419, 4
  %v5421 = vrot.slane %v5128, 5
  %v5422 = vsel %vm3160, %v5420, %v5421
  %v5423 = vrot.slane %v5421, 4
  %v5424 = vrot.slane %v5129, 5
  %v5425 = vsel %vm3160, %v5423, %v5424
  %v5426 = vrot.slane %v5130, 5
  %v5427 = vrot.slane %v5426, 4
  %v5428 = vrot.slane %v5131, 5
  %v5429 = vsel %vm3160, %v5427, %v5428
  %v5430 = vrot.slane %v5428, 4
  %v5431 = vrot.slane %v5132, 5
  %v5432 = vsel %vm3160, %v5430, %v5431
  %v5433 = vrot.slane %v5133, 5
  %v5434 = vrot.slane %v5433, 4
  %v5435 = vrot.slane %v5134, 5
  %v5436 = vsel %vm3160, %v5434, %v5435
  %v5437 = vrot.slane %v5435, 4
  %v5438 = vrot.slane %v5135, 5
  %v5439 = vsel %vm3160, %v5437, %v5438
  %v5440 = vrot.slane %v5136, 5
  %v5441 = vrot.slane %v5440, 4
  %v5442 = vrot.slane %v5137, 5
  %v5443 = vsel %vm3160, %v5441, %v5442
  %v5444 = vrot.slane %v5442, 4
  %v5445 = vrot.slane %v5138, 5
  %v5446 = vsel %vm3160, %v5444, %v5445
  %v5447 = vrot.slane %v5139, 5
  %v5448 = vrot.slane %v5447, 4
  %v5449 = vrot.slane %v5140, 5
  %v5450 = vsel %vm3160, %v5448, %v5449
  %v5451 = vrot.slane %v5449, 4
  %v5452 = vrot.slane %v5141, 5
  %v5453 = vsel %vm3160, %v5451, %v5452
  %v5454 = vrot.slane %v5142, 5
  %v5455 = vrot.slane %v5454, 4
  %v5456 = vrot.slane %v5143, 5
  %v5457 = vsel %vm3160, %v5455, %v5456
  %v5458 = vrot.slane %v5456, 4
  %v5459 = vrot.slane %v5144, 5
  %v5460 = vsel %vm3160, %v5458, %v5459
  %v5461 = vrot.slane %v5145, 5
  %v5462 = vrot.slane %v5461, 4
  %v5463 = vrot.slane %v5146, 5
  %v5464 = vsel %vm3160, %v5462, %v5463
  %v5465 = vrot.slane %v5463, 4
  %v5466 = vrot.slane %v5147, 5
  %v5467 = vsel %vm3160, %v5465, %v5466
  %v5468 = vunpack.c.l.b16 %v5247
  %v5469 = vunpack.c.l.b16 %v5250
  %v5470 = vunpack.c.l.b16 %v5254
  %v5471 = vunpack.c.l.b16 %v5257
  %v5472 = vunpack.c.l.b16 %v5261
  %v5473 = vunpack.c.l.b16 %v5264
  %v5474 = vunpack.c.l.b16 %v5268
  %v5475 = vunpack.c.l.b16 %v5271
  %v5476 = vunpack.c.l.b16 %v5275
  %v5477 = vunpack.c.l.b16 %v5278
  %v5478 = vunpack.c.l.b16 %v5282
  %v5479 = vunpack.c.l.b16 %v5285
  %v5480 = vunpack.c.l.b16 %v5289
  %v5481 = vunpack.c.l.b16 %v5292
  %v5482 = vunpack.c.l.b16 %v5296
  %v5483 = vunpack.c.l.b16 %v5299
  %v5484 = vunpack.c.l.b16 %v5303
  %v5485 = vunpack.c.l.b16 %v5306
  %v5486 = vunpack.c.l.b16 %v5310
  %v5487 = vunpack.c.l.b16 %v5313
  %v5488 = vunpack.c.l.b16 %v5317
  %v5489 = vunpack.c.l.b16 %v5320
  %v5490 = vunpack.c.l.b16 %v5324
  %v5491 = vunpack.c.l.b16 %v5327
  %v5492 = vunpack.c.l.b16 %v5331
  %v5493 = vunpack.c.l.b16 %v5334
  %v5494 = vunpack.c.l.b16 %v5338
  %v5495 = vunpack.c.l.b16 %v5341
  %v5496 = vunpack.c.l.b16 %v5345
  %v5497 = vunpack.c.l.b16 %v5348
  %v5498 = vunpack.c.l.b16 %v5352
  %v5499 = vunpack.c.l.b16 %v5355
  %v5500 = vunpack.c.l.b16 %v5359
  %v5501 = vunpack.c.l.b16 %v5362
  %v5502 = vunpack.c.l.b16 %v5366
  %v5503 = vunpack.c.l.b16 %v5369
  %v5504 = vunpack.c.l.b16 %v5373
  %v5505 = vunpack.c.l.b16 %v5376
  %v5506 = vunpack.c.l.b16 %v5380
  %v5507 = vunpack.c.l.b16 %v5383
  %v5508 = vunpack.c.l.b16 %v5387
  %v5509 = vunpack.c.l.b16 %v5390
  %v5510 = vunpack.c.l.b16 %v5394
  %v5511 = vunpack.c.l.b16 %v5397
  %v5512 = vunpack.c.l.b16 %v5401
  %v5513 = vunpack.c.l.b16 %v5404
  %v5514 = vunpack.c.l.b16 %v5408
  %v5515 = vunpack.c.l.b16 %v5411
  %v5516 = vunpack.c.l.b16 %v5415
  %v5517 = vunpack.c.l.b16 %v5418
  %v5518 = vunpack.c.l.b16 %v5422
  %v5519 = vunpack.c.l.b16 %v5425
  %v5520 = vunpack.c.l.b16 %v5429
  %v5521 = vunpack.c.l.b16 %v5432
  %v5522 = vunpack.c.l.b16 %v5436
  %v5523 = vunpack.c.l.b16 %v5439
  %v5524 = vunpack.c.l.b16 %v5443
  %v5525 = vunpack.c.l.b16 %v5446
  %v5526 = vunpack.c.l.b16 %v5450
  %v5527 = vunpack.c.l.b16 %v5453
  %v5528 = vunpack.c.l.b16 %v5457
  %v5529 = vunpack.c.l.b16 %v5460
  %v5530 = vunpack.c.l.b16 %v5464
  %v5531 = vunpack.c.l.b16 %v5467
  %v5532 = vpack.c.b16 %v5469, %v5468
  %v5533 = vpack.c.b16 %v5471, %v5470
  %v5534 = vpack.c.b16 %v5473, %v5472
  %v5535 = vpack.c.b16 %v5475, %v5474
  %v5536 = vpack.c.b16 %v5477, %v5476
  %v5537 = vpack.c.b16 %v5479, %v5478
  %v5538 = vpack.c.b16 %v5481, %v5480
  %v5539 = vpack.c.b16 %v5483, %v5482
  %v5540 = vpack.c.b16 %v5485, %v5484
  %v5541 = vpack.c.b16 %v5487, %v5486
  %v5542 = vpack.c.b16 %v5489, %v5488
  %v5543 = vpack.c.b16 %v5491, %v5490
  %v5544 = vpack.c.b16 %v5493, %v5492
  %v5545 = vpack.c.b16 %v5495, %v5494
  %v5546 = vpack.c.b16 %v5497, %v5496
  %v5547 = vpack.c.b16 %v5499, %v5498
  %v5548 = vpack.c.b16 %v5501, %v5500
  %v5549 = vpack.c.b16 %v5503, %v5502
  %v5550 = vpack.c.b16 %v5505, %v5504
  %v5551 = vpack.c.b16 %v5507, %v5506
  %v5552 = vpack.c.b16 %v5509, %v5508
  %v5553 = vpack.c.b16 %v5511, %v5510
  %v5554 = vpack.c.b16 %v5513, %v5512
  %v5555 = vpack.c.b16 %v5515, %v5514
  %v5556 = vpack.c.b16 %v5517, %v5516
  %v5557 = vpack.c.b16 %v5519, %v5518
  %v5558 = vpack.c.b16 %v5521, %v5520
  %v5559 = vpack.c.b16 %v5523, %v5522
  %v5560 = vpack.c.b16 %v5525, %v5524
  %v5561 = vpack.c.b16 %v5527, %v5526
  %v5562 = vpack.c.b16 %v5529, %v5528
  %v5563 = vpack.c.b16 %v5531, %v5530
  %5564 = vrot.lane.b32.xlu0 %v5532, 20
  %v5565 = vpop.permute.xlu0 %5564
  %5566 = vrot.lane.b32.xlu0 %v5533, 20
  %v5567 = vpop.permute.xlu0 %5566
  %5568 = vrot.lane.b32.xlu0 %v5534, 20
  %v5569 = vpop.permute.xlu0 %5568
  %5570 = vrot.lane.b32.xlu0 %v5535, 20
  %v5571 = vpop.permute.xlu0 %5570
  %5572 = vrot.lane.b32.xlu0 %v5536, 20
  %v5573 = vpop.permute.xlu0 %5572
  %5574 = vrot.lane.b32.xlu0 %v5537, 20
  %v5575 = vpop.permute.xlu0 %5574
  %5576 = vrot.lane.b32.xlu0 %v5538, 20
  %v5577 = vpop.permute.xlu0 %5576
  %5578 = vrot.lane.b32.xlu0 %v5539, 20
  %v5579 = vpop.permute.xlu0 %5578
  %5580 = vrot.lane.b32.xlu0 %v5540, 20
  %v5581 = vpop.permute.xlu0 %5580
  %5582 = vrot.lane.b32.xlu0 %v5541, 20
  %v5583 = vpop.permute.xlu0 %5582
  %5584 = vrot.lane.b32.xlu0 %v5542, 20
  %v5585 = vpop.permute.xlu0 %5584
  %5586 = vrot.lane.b32.xlu0 %v5543, 20
  %v5587 = vpop.permute.xlu0 %5586
  %5588 = vrot.lane.b32.xlu0 %v5544, 20
  %v5589 = vpop.permute.xlu0 %5588
  %5590 = vrot.lane.b32.xlu0 %v5545, 20
  %v5591 = vpop.permute.xlu0 %5590
  %5592 = vrot.lane.b32.xlu0 %v5546, 20
  %v5593 = vpop.permute.xlu0 %5592
  %5594 = vrot.lane.b32.xlu0 %v5547, 20
  %v5595 = vpop.permute.xlu0 %5594
  %5596 = vrot.lane.b32.xlu0 %v5548, 20
  %v5597 = vpop.permute.xlu0 %5596
  %5598 = vrot.lane.b32.xlu0 %v5549, 20
  %v5599 = vpop.permute.xlu0 %5598
  %5600 = vrot.lane.b32.xlu0 %v5550, 20
  %v5601 = vpop.permute.xlu0 %5600
  %5602 = vrot.lane.b32.xlu0 %v5551, 20
  %v5603 = vpop.permute.xlu0 %5602
  %5604 = vrot.lane.b32.xlu0 %v5552, 20
  %v5605 = vpop.permute.xlu0 %5604
  %5606 = vrot.lane.b32.xlu0 %v5553, 20
  %v5607 = vpop.permute.xlu0 %5606
  %5608 = vrot.lane.b32.xlu0 %v5554, 20
  %v5609 = vpop.permute.xlu0 %5608
  %5610 = vrot.lane.b32.xlu0 %v5555, 20
  %v5611 = vpop.permute.xlu0 %5610
  %5612 = vrot.lane.b32.xlu0 %v5556, 20
  %v5613 = vpop.permute.xlu0 %5612
  %5614 = vrot.lane.b32.xlu0 %v5557, 20
  %v5615 = vpop.permute.xlu0 %5614
  %5616 = vrot.lane.b32.xlu0 %v5558, 20
  %v5617 = vpop.permute.xlu0 %5616
  %5618 = vrot.lane.b32.xlu0 %v5559, 20
  %v5619 = vpop.permute.xlu0 %5618
  %5620 = vrot.lane.b32.xlu0 %v5560, 20
  %v5621 = vpop.permute.xlu0 %5620
  %5622 = vrot.lane.b32.xlu0 %v5561, 20
  %v5623 = vpop.permute.xlu0 %5622
  %5624 = vrot.lane.b32.xlu0 %v5562, 20
  %v5625 = vpop.permute.xlu0 %5624
  %5626 = vrot.lane.b32.xlu0 %v5563, 20
  %v5627 = vpop.permute.xlu0 %5626
  %vm5660 = vcmask 195744
  %5661 = vst.msk [vmem:[#allocation3] sm:$0xff] %vm5660, %v5565
  %5662 = vst.msk [vmem:[#allocation3 + $0x8] sm:$0xff] %vm5660, %v5567
  %5663 = vst.msk [vmem:[#allocation3 + $0x10] sm:$0xff] %vm5660, %v5569
  %5664 = vst.msk [vmem:[#allocation3 + $0x18] sm:$0xff] %vm5660, %v5571
  %5665 = vst.msk [vmem:[#allocation3 + $0x20] sm:$0xff] %vm5660, %v5573
  %5666 = vst.msk [vmem:[#allocation3 + $0x28] sm:$0xff] %vm5660, %v5575
  %5667 = vst.msk [vmem:[#allocation3 + $0x30] sm:$0xff] %vm5660, %v5577
  %5668 = vst.msk [vmem:[#allocation3 + $0x38] sm:$0xff] %vm5660, %v5579
  %5669 = vst.msk [vmem:[#allocation3 + $0x40] sm:$0xff] %vm5660, %v5581
  %5670 = vst.msk [vmem:[#allocation3 + $0x48] sm:$0xff] %vm5660, %v5583
  %5671 = vst.msk [vmem:[#allocation3 + $0x50] sm:$0xff] %vm5660, %v5585
  %5672 = vst.msk [vmem:[#allocation3 + $0x58] sm:$0xff] %vm5660, %v5587
  %5673 = vst.msk [vmem:[#allocation3 + $0x60] sm:$0xff] %vm5660, %v5589
  %5674 = vst.msk [vmem:[#allocation3 + $0x68] sm:$0xff] %vm5660, %v5591
  %5675 = vst.msk [vmem:[#allocation3 + $0x70] sm:$0xff] %vm5660, %v5593
  %5676 = vst.msk [vmem:[#allocation3 + $0x78] sm:$0xff] %vm5660, %v5595
  %5677 = vst.msk [vmem:[#allocation3 + $0x80] sm:$0xff] %vm5660, %v5597
  %5678 = vst.msk [vmem:[#allocation3 + $0x88] sm:$0xff] %vm5660, %v5599
  %5679 = vst.msk [vmem:[#allocation3 + $0x90] sm:$0xff] %vm5660, %v5601
  %5680 = vst.msk [vmem:[#allocation3 + $0x98] sm:$0xff] %vm5660, %v5603
  %5681 = vst.msk [vmem:[#allocation3 + $0xa0] sm:$0xff] %vm5660, %v5605
  %5682 = vst.msk [vmem:[#allocation3 + $0xa8] sm:$0xff] %vm5660, %v5607
  %5683 = vst.msk [vmem:[#allocation3 + $0xb0] sm:$0xff] %vm5660, %v5609
  %5684 = vst.msk [vmem:[#allocation3 + $0xb8] sm:$0xff] %vm5660, %v5611
  %5685 = vst.msk [vmem:[#allocation3 + $0xc0] sm:$0xff] %vm5660, %v5613
  %5686 = vst.msk [vmem:[#allocation3 + $0xc8] sm:$0xff] %vm5660, %v5615
  %5687 = vst.msk [vmem:[#allocation3 + $0xd0] sm:$0xff] %vm5660, %v5617
  %5688 = vst.msk [vmem:[#allocation3 + $0xd8] sm:$0xff] %vm5660, %v5619
  %5689 = vst.msk [vmem:[#allocation3 + $0xe0] sm:$0xff] %vm5660, %v5621
  %5690 = vst.msk [vmem:[#allocation3 + $0xe8] sm:$0xff] %vm5660, %v5623
  %5691 = vst.msk [vmem:[#allocation3 + $0xf0] sm:$0xff] %vm5660, %v5625
  %5692 = vst.msk [vmem:[#allocation3 + $0xf8] sm:$0xff] %vm5660, %v5627
  %s5693 = scalar_lea.vmem [#allocation2], 24
  %v5694 = vld [vmem:[%s5693] sm:$0xf]
  %v5695 = vld [vmem:[%s5693 + $0x4] sm:$0xf]
  %v5696 = vld [vmem:[%s5693 + $0xc] sm:$0xf]
  %v5697 = vld [vmem:[%s5693 + $0x10] sm:$0xf]
  %v5698 = vld [vmem:[%s5693 + $0x18] sm:$0xf]
  %v5699 = vld [vmem:[%s5693 + $0x1c] sm:$0xf]
  %v5700 = vld [vmem:[%s5693 + $0x24] sm:$0xf]
  %v5701 = vld [vmem:[%s5693 + $0x28] sm:$0xf]
  %v5702 = vld [vmem:[%s5693 + $0x30] sm:$0xf]
  %v5703 = vld [vmem:[%s5693 + $0x34] sm:$0xf]
  %v5704 = vld [vmem:[%s5693 + $0x3c] sm:$0xf]
  %v5705 = vld [vmem:[%s5693 + $0x40] sm:$0xf]
  %v5706 = vld [vmem:[%s5693 + $0x48] sm:$0xf]
  %v5707 = vld [vmem:[%s5693 + $0x4c] sm:$0xf]
  %v5708 = vld [vmem:[%s5693 + $0x54] sm:$0xf]
  %v5709 = vld [vmem:[%s5693 + $0x58] sm:$0xf]
  %v5710 = vld [vmem:[%s5693 + $0x60] sm:$0xf]
  %v5711 = vld [vmem:[%s5693 + $0x64] sm:$0xf]
  %v5712 = vld [vmem:[%s5693 + $0x6c] sm:$0xf]
  %v5713 = vld [vmem:[%s5693 + $0x70] sm:$0xf]
  %v5714 = vld [vmem:[%s5693 + $0x78] sm:$0xf]
  %v5715 = vld [vmem:[%s5693 + $0x7c] sm:$0xf]
  %v5716 = vld [vmem:[%s5693 + $0x84] sm:$0xf]
  %v5717 = vld [vmem:[%s5693 + $0x88] sm:$0xf]
  %v5718 = vld [vmem:[%s5693 + $0x90] sm:$0xf]
  %v5719 = vld [vmem:[%s5693 + $0x94] sm:$0xf]
  %v5720 = vld [vmem:[%s5693 + $0x9c] sm:$0xf]
  %v5721 = vld [vmem:[%s5693 + $0xa0] sm:$0xf]
  %v5722 = vld [vmem:[%s5693 + $0xa8] sm:$0xf]
  %v5723 = vld [vmem:[%s5693 + $0xac] sm:$0xf]
  %v5724 = vld [vmem:[%s5693 + $0xb4] sm:$0xf]
  %v5725 = vld [vmem:[%s5693 + $0xb8] sm:$0xf]
  %v5726 = vld [vmem:[%s5693 + $0xd8] sm:$0xf]
  %v5727 = vld [vmem:[%s5693 + $0xdc] sm:$0xf]
  %v5728 = vld [vmem:[%s5693 + $0xe4] sm:$0xf]
  %v5729 = vld [vmem:[%s5693 + $0xe8] sm:$0xf]
  %v5730 = vld [vmem:[%s5693 + $0xf0] sm:$0xf]
  %v5731 = vld [vmem:[%s5693 + $0xf4] sm:$0xf]
  %v5732 = vld [vmem:[%s5693 + $0xfc] sm:$0xf]
  %v5733 = vld [vmem:[%s5693 + $0x100] sm:$0xf]
  %v5734 = vld [vmem:[%s5693 + $0x108] sm:$0xf]
  %v5735 = vld [vmem:[%s5693 + $0x10c] sm:$0xf]
  %v5736 = vld [vmem:[%s5693 + $0x114] sm:$0xf]
  %v5737 = vld [vmem:[%s5693 + $0x118] sm:$0xf]
  %v5738 = vld [vmem:[%s5693 + $0x120] sm:$0xf]
  %v5739 = vld [vmem:[%s5693 + $0x124] sm:$0xf]
  %v5740 = vld [vmem:[%s5693 + $0x12c] sm:$0xf]
  %v5741 = vld [vmem:[%s5693 + $0x130] sm:$0xf]
  %v5742 = vld [vmem:[%s5693 + $0x138] sm:$0xf]
  %v5743 = vld [vmem:[%s5693 + $0x13c] sm:$0xf]
  %v5744 = vld [vmem:[%s5693 + $0x144] sm:$0xf]
  %v5745 = vld [vmem:[%s5693 + $0x148] sm:$0xf]
  %v5746 = vld [vmem:[%s5693 + $0x150] sm:$0xf]
  %v5747 = vld [vmem:[%s5693 + $0x154] sm:$0xf]
  %v5748 = vld [vmem:[%s5693 + $0x15c] sm:$0xf]
  %v5749 = vld [vmem:[%s5693 + $0x160] sm:$0xf]
  %v5750 = vld [vmem:[%s5693 + $0x168] sm:$0xf]
  %v5751 = vld [vmem:[%s5693 + $0x16c] sm:$0xf]
  %v5752 = vld [vmem:[%s5693 + $0x174] sm:$0xf]
  %v5753 = vld [vmem:[%s5693 + $0x178] sm:$0xf]
  %v5754 = vld [vmem:[%s5693 + $0x180] sm:$0xf]
  %v5755 = vld [vmem:[%s5693 + $0x184] sm:$0xf]
  %v5756 = vld [vmem:[%s5693 + $0x18c] sm:$0xf]
  %v5757 = vld [vmem:[%s5693 + $0x190] sm:$0xf]
  %v5822 = vunpack.c.l.b16 %v5694
  %v5823 = vunpack.c.l.b16 %v5695
  %v5824 = vunpack.c.l.b16 %v5696
  %v5825 = vunpack.c.l.b16 %v5697
  %v5826 = vunpack.c.l.b16 %v5698
  %v5827 = vunpack.c.l.b16 %v5699
  %v5828 = vunpack.c.l.b16 %v5700
  %v5829 = vunpack.c.l.b16 %v5701
  %v5830 = vunpack.c.l.b16 %v5702
  %v5831 = vunpack.c.l.b16 %v5703
  %v5832 = vunpack.c.l.b16 %v5704
  %v5833 = vunpack.c.l.b16 %v5705
  %v5834 = vunpack.c.l.b16 %v5706
  %v5835 = vunpack.c.l.b16 %v5707
  %v5836 = vunpack.c.l.b16 %v5708
  %v5837 = vunpack.c.l.b16 %v5709
  %v5838 = vunpack.c.l.b16 %v5710
  %v5839 = vunpack.c.l.b16 %v5711
  %v5840 = vunpack.c.l.b16 %v5712
  %v5841 = vunpack.c.l.b16 %v5713
  %v5842 = vunpack.c.l.b16 %v5714
  %v5843 = vunpack.c.l.b16 %v5715
  %v5844 = vunpack.c.l.b16 %v5716
  %v5845 = vunpack.c.l.b16 %v5717
  %v5846 = vunpack.c.l.b16 %v5718
  %v5847 = vunpack.c.l.b16 %v5719
  %v5848 = vunpack.c.l.b16 %v5720
  %v5849 = vunpack.c.l.b16 %v5721
  %v5850 = vunpack.c.l.b16 %v5722
  %v5851 = vunpack.c.l.b16 %v5723
  %v5852 = vunpack.c.l.b16 %v5724
  %v5853 = vunpack.c.l.b16 %v5725
  %v5854 = vunpack.c.l.b16 %v5726
  %v5855 = vunpack.c.l.b16 %v5727
  %v5856 = vunpack.c.l.b16 %v5728
  %v5857 = vunpack.c.l.b16 %v5729
  %v5858 = vunpack.c.l.b16 %v5730
  %v5859 = vunpack.c.l.b16 %v5731
  %v5860 = vunpack.c.l.b16 %v5732
  %v5861 = vunpack.c.l.b16 %v5733
  %v5862 = vunpack.c.l.b16 %v5734
  %v5863 = vunpack.c.l.b16 %v5735
  %v5864 = vunpack.c.l.b16 %v5736
  %v5865 = vunpack.c.l.b16 %v5737
  %v5866 = vunpack.c.l.b16 %v5738
  %v5867 = vunpack.c.l.b16 %v5739
  %v5868 = vunpack.c.l.b16 %v5740
  %v5869 = vunpack.c.l.b16 %v5741
  %v5870 = vunpack.c.l.b16 %v5742
  %v5871 = vunpack.c.l.b16 %v5743
  %v5872 = vunpack.c.l.b16 %v5744
  %v5873 = vunpack.c.l.b16 %v5745
  %v5874 = vunpack.c.l.b16 %v5746
  %v5875 = vunpack.c.l.b16 %v5747
  %v5876 = vunpack.c.l.b16 %v5748
  %v5877 = vunpack.c.l.b16 %v5749
  %v5878 = vunpack.c.l.b16 %v5750
  %v5879 = vunpack.c.l.b16 %v5751
  %v5880 = vunpack.c.l.b16 %v5752
  %v5881 = vunpack.c.l.b16 %v5753
  %v5882 = vunpack.c.l.b16 %v5754
  %v5883 = vunpack.c.l.b16 %v5755
  %v5884 = vunpack.c.l.b16 %v5756
  %v5885 = vunpack.c.l.b16 %v5757
  %v5886 = vpack.c.b16 %v5823, %v5822
  %v5887 = vpack.c.b16 %v5825, %v5824
  %v5888 = vpack.c.b16 %v5827, %v5826
  %v5889 = vpack.c.b16 %v5829, %v5828
  %v5890 = vpack.c.b16 %v5831, %v5830
  %v5891 = vpack.c.b16 %v5833, %v5832
  %v5892 = vpack.c.b16 %v5835, %v5834
  %v5893 = vpack.c.b16 %v5837, %v5836
  %v5894 = vpack.c.b16 %v5839, %v5838
  %v5895 = vpack.c.b16 %v5841, %v5840
  %v5896 = vpack.c.b16 %v5843, %v5842
  %v5897 = vpack.c.b16 %v5845, %v5844
  %v5898 = vpack.c.b16 %v5847, %v5846
  %v5899 = vpack.c.b16 %v5849, %v5848
  %v5900 = vpack.c.b16 %v5851, %v5850
  %v5901 = vpack.c.b16 %v5853, %v5852
  %v5902 = vpack.c.b16 %v5855, %v5854
  %v5903 = vpack.c.b16 %v5857, %v5856
  %v5904 = vpack.c.b16 %v5859, %v5858
  %v5905 = vpack.c.b16 %v5861, %v5860
  %v5906 = vpack.c.b16 %v5863, %v5862
  %v5907 = vpack.c.b16 %v5865, %v5864
  %v5908 = vpack.c.b16 %v5867, %v5866
  %v5909 = vpack.c.b16 %v5869, %v5868
  %v5910 = vpack.c.b16 %v5871, %v5870
  %v5911 = vpack.c.b16 %v5873, %v5872
  %v5912 = vpack.c.b16 %v5875, %v5874
  %v5913 = vpack.c.b16 %v5877, %v5876
  %v5914 = vpack.c.b16 %v5879, %v5878
  %v5915 = vpack.c.b16 %v5881, %v5880
  %v5916 = vpack.c.b16 %v5883, %v5882
  %v5917 = vpack.c.b16 %v5885, %v5884
  %5918 = vrot.lane.b32.xlu0 %v5886, 24
  %v5919 = vpop.permute.xlu0 %5918
  %5920 = vrot.lane.b32.xlu0 %v5887, 24
  %v5921 = vpop.permute.xlu0 %5920
  %5922 = vrot.lane.b32.xlu0 %v5888, 24
  %v5923 = vpop.permute.xlu0 %5922
  %5924 = vrot.lane.b32.xlu0 %v5889, 24
  %v5925 = vpop.permute.xlu0 %5924
  %5926 = vrot.lane.b32.xlu0 %v5890, 24
  %v5927 = vpop.permute.xlu0 %5926
  %5928 = vrot.lane.b32.xlu0 %v5891, 24
  %v5929 = vpop.permute.xlu0 %5928
  %5930 = vrot.lane.b32.xlu0 %v5892, 24
  %v5931 = vpop.permute.xlu0 %5930
  %5932 = vrot.lane.b32.xlu0 %v5893, 24
  %v5933 = vpop.permute.xlu0 %5932
  %5934 = vrot.lane.b32.xlu0 %v5894, 24
  %v5935 = vpop.permute.xlu0 %5934
  %5936 = vrot.lane.b32.xlu0 %v5895, 24
  %v5937 = vpop.permute.xlu0 %5936
  %5938 = vrot.lane.b32.xlu0 %v5896, 24
  %v5939 = vpop.permute.xlu0 %5938
  %5940 = vrot.lane.b32.xlu0 %v5897, 24
  %v5941 = vpop.permute.xlu0 %5940
  %5942 = vrot.lane.b32.xlu0 %v5898, 24
  %v5943 = vpop.permute.xlu0 %5942
  %5944 = vrot.lane.b32.xlu0 %v5899, 24
  %v5945 = vpop.permute.xlu0 %5944
  %5946 = vrot.lane.b32.xlu0 %v5900, 24
  %v5947 = vpop.permute.xlu0 %5946
  %5948 = vrot.lane.b32.xlu0 %v5901, 24
  %v5949 = vpop.permute.xlu0 %5948
  %5950 = vrot.lane.b32.xlu0 %v5902, 24
  %v5951 = vpop.permute.xlu0 %5950
  %5952 = vrot.lane.b32.xlu0 %v5903, 24
  %v5953 = vpop.permute.xlu0 %5952
  %5954 = vrot.lane.b32.xlu0 %v5904, 24
  %v5955 = vpop.permute.xlu0 %5954
  %5956 = vrot.lane.b32.xlu0 %v5905, 24
  %v5957 = vpop.permute.xlu0 %5956
  %5958 = vrot.lane.b32.xlu0 %v5906, 24
  %v5959 = vpop.permute.xlu0 %5958
  %5960 = vrot.lane.b32.xlu0 %v5907, 24
  %v5961 = vpop.permute.xlu0 %5960
  %5962 = vrot.lane.b32.xlu0 %v5908, 24
  %v5963 = vpop.permute.xlu0 %5962
  %5964 = vrot.lane.b32.xlu0 %v5909, 24
  %v5965 = vpop.permute.xlu0 %5964
  %5966 = vrot.lane.b32.xlu0 %v5910, 24
  %v5967 = vpop.permute.xlu0 %5966
  %5968 = vrot.lane.b32.xlu0 %v5911, 24
  %v5969 = vpop.permute.xlu0 %5968
  %5970 = vrot.lane.b32.xlu0 %v5912, 24
  %v5971 = vpop.permute.xlu0 %5970
  %5972 = vrot.lane.b32.xlu0 %v5913, 24
  %v5973 = vpop.permute.xlu0 %5972
  %5974 = vrot.lane.b32.xlu0 %v5914, 24
  %v5975 = vpop.permute.xlu0 %5974
  %5976 = vrot.lane.b32.xlu0 %v5915, 24
  %v5977 = vpop.permute.xlu0 %5976
  %5978 = vrot.lane.b32.xlu0 %v5916, 24
  %v5979 = vpop.permute.xlu0 %5978
  %5980 = vrot.lane.b32.xlu0 %v5917, 24
  %v5981 = vpop.permute.xlu0 %5980
  %vm6014 = vcmask 228544
  %6015 = vst.msk [vmem:[#allocation3] sm:$0xff] %vm6014, %v5919
  %6016 = vst.msk [vmem:[#allocation3 + $0x8] sm:$0xff] %vm6014, %v5921
  %6017 = vst.msk [vmem:[#allocation3 + $0x10] sm:$0xff] %vm6014, %v5923
  %6018 = vst.msk [vmem:[#allocation3 + $0x18] sm:$0xff] %vm6014, %v5925
  %6019 = vst.msk [vmem:[#allocation3 + $0x20] sm:$0xff] %vm6014, %v5927
  %6020 = vst.msk [vmem:[#allocation3 + $0x28] sm:$0xff] %vm6014, %v5929
  %6021 = vst.msk [vmem:[#allocation3 + $0x30] sm:$0xff] %vm6014, %v5931
  %6022 = vst.msk [vmem:[#allocation3 + $0x38] sm:$0xff] %vm6014, %v5933
  %6023 = vst.msk [vmem:[#allocation3 + $0x40] sm:$0xff] %vm6014, %v5935
  %6024 = vst.msk [vmem:[#allocation3 + $0x48] sm:$0xff] %vm6014, %v5937
  %6025 = vst.msk [vmem:[#allocation3 + $0x50] sm:$0xff] %vm6014, %v5939
  %6026 = vst.msk [vmem:[#allocation3 + $0x58] sm:$0xff] %vm6014, %v5941
  %6027 = vst.msk [vmem:[#allocation3 + $0x60] sm:$0xff] %vm6014, %v5943
  %6028 = vst.msk [vmem:[#allocation3 + $0x68] sm:$0xff] %vm6014, %v5945
  %6029 = vst.msk [vmem:[#allocation3 + $0x70] sm:$0xff] %vm6014, %v5947
  %6030 = vst.msk [vmem:[#allocation3 + $0x78] sm:$0xff] %vm6014, %v5949
  %6031 = vst.msk [vmem:[#allocation3 + $0x80] sm:$0xff] %vm6014, %v5951
  %6032 = vst.msk [vmem:[#allocation3 + $0x88] sm:$0xff] %vm6014, %v5953
  %6033 = vst.msk [vmem:[#allocation3 + $0x90] sm:$0xff] %vm6014, %v5955
  %6034 = vst.msk [vmem:[#allocation3 + $0x98] sm:$0xff] %vm6014, %v5957
  %6035 = vst.msk [vmem:[#allocation3 + $0xa0] sm:$0xff] %vm6014, %v5959
  %6036 = vst.msk [vmem:[#allocation3 + $0xa8] sm:$0xff] %vm6014, %v5961
  %6037 = vst.msk [vmem:[#allocation3 + $0xb0] sm:$0xff] %vm6014, %v5963
  %6038 = vst.msk [vmem:[#allocation3 + $0xb8] sm:$0xff] %vm6014, %v5965
  %6039 = vst.msk [vmem:[#allocation3 + $0xc0] sm:$0xff] %vm6014, %v5967
  %6040 = vst.msk [vmem:[#allocation3 + $0xc8] sm:$0xff] %vm6014, %v5969
  %6041 = vst.msk [vmem:[#allocation3 + $0xd0] sm:$0xff] %vm6014, %v5971
  %6042 = vst.msk [vmem:[#allocation3 + $0xd8] sm:$0xff] %vm6014, %v5973
  %6043 = vst.msk [vmem:[#allocation3 + $0xe0] sm:$0xff] %vm6014, %v5975
  %6044 = vst.msk [vmem:[#allocation3 + $0xe8] sm:$0xff] %vm6014, %v5977
  %6045 = vst.msk [vmem:[#allocation3 + $0xf0] sm:$0xff] %vm6014, %v5979
  %6046 = vst.msk [vmem:[#allocation3 + $0xf8] sm:$0xff] %vm6014, %v5981
  %v6047 = vld [vmem:[%s5693] sm:$0xf]
  %v6048 = vld [vmem:[%s5693 + $0x4] sm:$0xf]
  %v6049 = vld [vmem:[%s5693 + $0x8] sm:$0x1]
  %v6050 = vld [vmem:[%s5693 + $0xc] sm:$0xf]
  %v6051 = vld [vmem:[%s5693 + $0x10] sm:$0xf]
  %v6052 = vld [vmem:[%s5693 + $0x14] sm:$0x1]
  %v6053 = vld [vmem:[%s5693 + $0x18] sm:$0xf]
  %v6054 = vld [vmem:[%s5693 + $0x1c] sm:$0xf]
  %v6055 = vld [vmem:[%s5693 + $0x20] sm:$0x1]
  %v6056 = vld [vmem:[%s5693 + $0x24] sm:$0xf]
  %v6057 = vld [vmem:[%s5693 + $0x28] sm:$0xf]
  %v6058 = vld [vmem:[%s5693 + $0x2c] sm:$0x1]
  %v6059 = vld [vmem:[%s5693 + $0x30] sm:$0xf]
  %v6060 = vld [vmem:[%s5693 + $0x34] sm:$0xf]
  %v6061 = vld [vmem:[%s5693 + $0x38] sm:$0x1]
  %v6062 = vld [vmem:[%s5693 + $0x3c] sm:$0xf]
  %v6063 = vld [vmem:[%s5693 + $0x40] sm:$0xf]
  %v6064 = vld [vmem:[%s5693 + $0x44] sm:$0x1]
  %v6065 = vld [vmem:[%s5693 + $0x48] sm:$0xf]
  %v6066 = vld [vmem:[%s5693 + $0x4c] sm:$0xf]
  %v6067 = vld [vmem:[%s5693 + $0x50] sm:$0x1]
  %v6068 = vld [vmem:[%s5693 + $0x54] sm:$0xf]
  %v6069 = vld [vmem:[%s5693 + $0x58] sm:$0xf]
  %v6070 = vld [vmem:[%s5693 + $0x5c] sm:$0x1]
  %v6071 = vld [vmem:[%s5693 + $0x60] sm:$0xf]
  %v6072 = vld [vmem:[%s5693 + $0x64] sm:$0xf]
  %v6073 = vld [vmem:[%s5693 + $0x68] sm:$0x1]
  %v6074 = vld [vmem:[%s5693 + $0x6c] sm:$0xf]
  %v6075 = vld [vmem:[%s5693 + $0x70] sm:$0xf]
  %v6076 = vld [vmem:[%s5693 + $0x74] sm:$0x1]
  %v6077 = vld [vmem:[%s5693 + $0x78] sm:$0xf]
  %v6078 = vld [vmem:[%s5693 + $0x7c] sm:$0xf]
  %v6079 = vld [vmem:[%s5693 + $0x80] sm:$0x1]
  %v6080 = vld [vmem:[%s5693 + $0x84] sm:$0xf]
  %v6081 = vld [vmem:[%s5693 + $0x88] sm:$0xf]
  %v6082 = vld [vmem:[%s5693 + $0x8c] sm:$0x1]
  %v6083 = vld [vmem:[%s5693 + $0x90] sm:$0xf]
  %v6084 = vld [vmem:[%s5693 + $0x94] sm:$0xf]
  %v6085 = vld [vmem:[%s5693 + $0x98] sm:$0x1]
  %v6086 = vld [vmem:[%s5693 + $0x9c] sm:$0xf]
  %v6087 = vld [vmem:[%s5693 + $0xa0] sm:$0xf]
  %v6088 = vld [vmem:[%s5693 + $0xa4] sm:$0x1]
  %v6089 = vld [vmem:[%s5693 + $0xa8] sm:$0xf]
  %v6090 = vld [vmem:[%s5693 + $0xac] sm:$0xf]
  %v6091 = vld [vmem:[%s5693 + $0xb0] sm:$0x1]
  %v6092 = vld [vmem:[%s5693 + $0xb4] sm:$0xf]
  %v6093 = vld [vmem:[%s5693 + $0xb8] sm:$0xf]
  %v6094 = vld [vmem:[%s5693 + $0xbc] sm:$0x1]
  %v6095 = vld [vmem:[%s5693 + $0xd8] sm:$0xf]
  %v6096 = vld [vmem:[%s5693 + $0xdc] sm:$0xf]
  %v6097 = vld [vmem:[%s5693 + $0xe0] sm:$0x1]
  %v6098 = vld [vmem:[%s5693 + $0xe4] sm:$0xf]
  %v6099 = vld [vmem:[%s5693 + $0xe8] sm:$0xf]
  %v6100 = vld [vmem:[%s5693 + $0xec] sm:$0x1]
  %v6101 = vld [vmem:[%s5693 + $0xf0] sm:$0xf]
  %v6102 = vld [vmem:[%s5693 + $0xf4] sm:$0xf]
  %v6103 = vld [vmem:[%s5693 + $0xf8] sm:$0x1]
  %v6104 = vld [vmem:[%s5693 + $0xfc] sm:$0xf]
  %v6105 = vld [vmem:[%s5693 + $0x100] sm:$0xf]
  %v6106 = vld [vmem:[%s5693 + $0x104] sm:$0x1]
  %v6107 = vld [vmem:[%s5693 + $0x108] sm:$0xf]
  %v6108 = vld [vmem:[%s5693 + $0x10c] sm:$0xf]
  %v6109 = vld [vmem:[%s5693 + $0x110] sm:$0x1]
  %v6110 = vld [vmem:[%s5693 + $0x114] sm:$0xf]
  %v6111 = vld [vmem:[%s5693 + $0x118] sm:$0xf]
  %v6112 = vld [vmem:[%s5693 + $0x11c] sm:$0x1]
  %v6113 = vld [vmem:[%s5693 + $0x120] sm:$0xf]
  %v6114 = vld [vmem:[%s5693 + $0x124] sm:$0xf]
  %v6115 = vld [vmem:[%s5693 + $0x128] sm:$0x1]
  %v6116 = vld [vmem:[%s5693 + $0x12c] sm:$0xf]
  %v6117 = vld [vmem:[%s5693 + $0x130] sm:$0xf]
  %v6118 = vld [vmem:[%s5693 + $0x134] sm:$0x1]
  %v6119 = vld [vmem:[%s5693 + $0x138] sm:$0xf]
  %v6120 = vld [vmem:[%s5693 + $0x13c] sm:$0xf]
  %v6121 = vld [vmem:[%s5693 + $0x140] sm:$0x1]
  %v6122 = vld [vmem:[%s5693 + $0x144] sm:$0xf]
  %v6123 = vld [vmem:[%s5693 + $0x148] sm:$0xf]
  %v6124 = vld [vmem:[%s5693 + $0x14c] sm:$0x1]
  %v6125 = vld [vmem:[%s5693 + $0x150] sm:$0xf]
  %v6126 = vld [vmem:[%s5693 + $0x154] sm:$0xf]
  %v6127 = vld [vmem:[%s5693 + $0x158] sm:$0x1]
  %v6128 = vld [vmem:[%s5693 + $0x15c] sm:$0xf]
  %v6129 = vld [vmem:[%s5693 + $0x160] sm:$0xf]
  %v6130 = vld [vmem:[%s5693 + $0x164] sm:$0x1]
  %v6131 = vld [vmem:[%s5693 + $0x168] sm:$0xf]
  %v6132 = vld [vmem:[%s5693 + $0x16c] sm:$0xf]
  %v6133 = vld [vmem:[%s5693 + $0x170] sm:$0x1]
  %v6134 = vld [vmem:[%s5693 + $0x174] sm:$0xf]
  %v6135 = vld [vmem:[%s5693 + $0x178] sm:$0xf]
  %v6136 = vld [vmem:[%s5693 + $0x17c] sm:$0x1]
  %v6137 = vld [vmem:[%s5693 + $0x180] sm:$0xf]
  %v6138 = vld [vmem:[%s5693 + $0x184] sm:$0xf]
  %v6139 = vld [vmem:[%s5693 + $0x188] sm:$0x1]
  %v6140 = vld [vmem:[%s5693 + $0x18c] sm:$0xf]
  %v6141 = vld [vmem:[%s5693 + $0x190] sm:$0xf]
  %v6142 = vld [vmem:[%s5693 + $0x194] sm:$0x1]
  %v6144 = vshrl.u32 %v6047, 16
  %v6146 = vrot.slane %v6144, 4
  %v6147 = vshll.u32 %v6047, 16
  %v6149 = vrot.slane %v6147, 5
  %v6150 = vor.u32 %v6146, %v6149
  %v6151 = vrot.slane %v6150, 4
  %v6153 = vshll.u32 %v6048, 16
  %v6155 = vrot.slane %v6153, 5
  %v6156 = vsel %vm1972, %v6151, %v6155
  %v6157 = vshrl.u32 %v6048, 16
  %v6159 = vrot.slane %v6157, 4
  %v6160 = vor.u32 %v6159, %v6155
  %v6161 = vrot.slane %v6160, 4
  %v6163 = vshll.u32 %v6049, 16
  %v6165 = vrot.slane %v6163, 5
  %v6166 = vsel %vm1972, %v6161, %v6165
  %v6168 = vshrl.u32 %v6050, 16
  %v6170 = vrot.slane %v6168, 4
  %v6171 = vshll.u32 %v6050, 16
  %v6173 = vrot.slane %v6171, 5
  %v6174 = vor.u32 %v6170, %v6173
  %v6175 = vrot.slane %v6174, 4
  %v6177 = vshll.u32 %v6051, 16
  %v6179 = vrot.slane %v6177, 5
  %v6180 = vsel %vm1972, %v6175, %v6179
  %v6181 = vshrl.u32 %v6051, 16
  %v6183 = vrot.slane %v6181, 4
  %v6184 = vor.u32 %v6183, %v6179
  %v6185 = vrot.slane %v6184, 4
  %v6187 = vshll.u32 %v6052, 16
  %v6189 = vrot.slane %v6187, 5
  %v6190 = vsel %vm1972, %v6185, %v6189
  %v6192 = vshrl.u32 %v6053, 16
  %v6194 = vrot.slane %v6192, 4
  %v6195 = vshll.u32 %v6053, 16
  %v6197 = vrot.slane %v6195, 5
  %v6198 = vor.u32 %v6194, %v6197
  %v6199 = vrot.slane %v6198, 4
  %v6201 = vshll.u32 %v6054, 16
  %v6203 = vrot.slane %v6201, 5
  %v6204 = vsel %vm1972, %v6199, %v6203
  %v6205 = vshrl.u32 %v6054, 16
  %v6207 = vrot.slane %v6205, 4
  %v6208 = vor.u32 %v6207, %v6203
  %v6209 = vrot.slane %v6208, 4
  %v6211 = vshll.u32 %v6055, 16
  %v6213 = vrot.slane %v6211, 5
  %v6214 = vsel %vm1972, %v6209, %v6213
  %v6216 = vshrl.u32 %v6056, 16
  %v6218 = vrot.slane %v6216, 4
  %v6219 = vshll.u32 %v6056, 16
  %v6221 = vrot.slane %v6219, 5
  %v6222 = vor.u32 %v6218, %v6221
  %v6223 = vrot.slane %v6222, 4
  %v6225 = vshll.u32 %v6057, 16
  %v6227 = vrot.slane %v6225, 5
  %v6228 = vsel %vm1972, %v6223, %v6227
  %v6229 = vshrl.u32 %v6057, 16
  %v6231 = vrot.slane %v6229, 4
  %v6232 = vor.u32 %v6231, %v6227
  %v6233 = vrot.slane %v6232, 4
  %v6235 = vshll.u32 %v6058, 16
  %v6237 = vrot.slane %v6235, 5
  %v6238 = vsel %vm1972, %v6233, %v6237
  %v6240 = vshrl.u32 %v6059, 16
  %v6242 = vrot.slane %v6240, 4
  %v6243 = vshll.u32 %v6059, 16
  %v6245 = vrot.slane %v6243, 5
  %v6246 = vor.u32 %v6242, %v6245
  %v6247 = vrot.slane %v6246, 4
  %v6249 = vshll.u32 %v6060, 16
  %v6251 = vrot.slane %v6249, 5
  %v6252 = vsel %vm1972, %v6247, %v6251
  %v6253 = vshrl.u32 %v6060, 16
  %v6255 = vrot.slane %v6253, 4
  %v6256 = vor.u32 %v6255, %v6251
  %v6257 = vrot.slane %v6256, 4
  %v6259 = vshll.u32 %v6061, 16
  %v6261 = vrot.slane %v6259, 5
  %v6262 = vsel %vm1972, %v6257, %v6261
  %v6264 = vshrl.u32 %v6062, 16
  %v6266 = vrot.slane %v6264, 4
  %v6267 = vshll.u32 %v6062, 16
  %v6269 = vrot.slane %v6267, 5
  %v6270 = vor.u32 %v6266, %v6269
  %v6271 = vrot.slane %v6270, 4
  %v6273 = vshll.u32 %v6063, 16
  %v6275 = vrot.slane %v6273, 5
  %v6276 = vsel %vm1972, %v6271, %v6275
  %v6277 = vshrl.u32 %v6063, 16
  %v6279 = vrot.slane %v6277, 4
  %v6280 = vor.u32 %v6279, %v6275
  %v6281 = vrot.slane %v6280, 4
  %v6283 = vshll.u32 %v6064, 16
  %v6285 = vrot.slane %v6283, 5
  %v6286 = vsel %vm1972, %v6281, %v6285
  %v6288 = vshrl.u32 %v6065, 16
  %v6290 = vrot.slane %v6288, 4
  %v6291 = vshll.u32 %v6065, 16
  %v6293 = vrot.slane %v6291, 5
  %v6294 = vor.u32 %v6290, %v6293
  %v6295 = vrot.slane %v6294, 4
  %v6297 = vshll.u32 %v6066, 16
  %v6299 = vrot.slane %v6297, 5
  %v6300 = vsel %vm1972, %v6295, %v6299
  %v6301 = vshrl.u32 %v6066, 16
  %v6303 = vrot.slane %v6301, 4
  %v6304 = vor.u32 %v6303, %v6299
  %v6305 = vrot.slane %v6304, 4
  %v6307 = vshll.u32 %v6067, 16
  %v6309 = vrot.slane %v6307, 5
  %v6310 = vsel %vm1972, %v6305, %v6309
  %v6312 = vshrl.u32 %v6068, 16
  %v6314 = vrot.slane %v6312, 4
  %v6315 = vshll.u32 %v6068, 16
  %v6317 = vrot.slane %v6315, 5
  %v6318 = vor.u32 %v6314, %v6317
  %v6319 = vrot.slane %v6318, 4
  %v6321 = vshll.u32 %v6069, 16
  %v6323 = vrot.slane %v6321, 5
  %v6324 = vsel %vm1972, %v6319, %v6323
  %v6325 = vshrl.u32 %v6069, 16
  %v6327 = vrot.slane %v6325, 4
  %v6328 = vor.u32 %v6327, %v6323
  %v6329 = vrot.slane %v6328, 4
  %v6331 = vshll.u32 %v6070, 16
  %v6333 = vrot.slane %v6331, 5
  %v6334 = vsel %vm1972, %v6329, %v6333
  %v6336 = vshrl.u32 %v6071, 16
  %v6338 = vrot.slane %v6336, 4
  %v6339 = vshll.u32 %v6071, 16
  %v6341 = vrot.slane %v6339, 5
  %v6342 = vor.u32 %v6338, %v6341
  %v6343 = vrot.slane %v6342, 4
  %v6345 = vshll.u32 %v6072, 16
  %v6347 = vrot.slane %v6345, 5
  %v6348 = vsel %vm1972, %v6343, %v6347
  %v6349 = vshrl.u32 %v6072, 16
  %v6351 = vrot.slane %v6349, 4
  %v6352 = vor.u32 %v6351, %v6347
  %v6353 = vrot.slane %v6352, 4
  %v6355 = vshll.u32 %v6073, 16
  %v6357 = vrot.slane %v6355, 5
  %v6358 = vsel %vm1972, %v6353, %v6357
  %v6360 = vshrl.u32 %v6074, 16
  %v6362 = vrot.slane %v6360, 4
  %v6363 = vshll.u32 %v6074, 16
  %v6365 = vrot.slane %v6363, 5
  %v6366 = vor.u32 %v6362, %v6365
  %v6367 = vrot.slane %v6366, 4
  %v6369 = vshll.u32 %v6075, 16
  %v6371 = vrot.slane %v6369, 5
  %v6372 = vsel %vm1972, %v6367, %v6371
  %v6373 = vshrl.u32 %v6075, 16
  %v6375 = vrot.slane %v6373, 4
  %v6376 = vor.u32 %v6375, %v6371
  %v6377 = vrot.slane %v6376, 4
  %v6379 = vshll.u32 %v6076, 16
  %v6381 = vrot.slane %v6379, 5
  %v6382 = vsel %vm1972, %v6377, %v6381
  %v6384 = vshrl.u32 %v6077, 16
  %v6386 = vrot.slane %v6384, 4
  %v6387 = vshll.u32 %v6077, 16
  %v6389 = vrot.slane %v6387, 5
  %v6390 = vor.u32 %v6386, %v6389
  %v6391 = vrot.slane %v6390, 4
  %v6393 = vshll.u32 %v6078, 16
  %v6395 = vrot.slane %v6393, 5
  %v6396 = vsel %vm1972, %v6391, %v6395
  %v6397 = vshrl.u32 %v6078, 16
  %v6399 = vrot.slane %v6397, 4
  %v6400 = vor.u32 %v6399, %v6395
  %v6401 = vrot.slane %v6400, 4
  %v6403 = vshll.u32 %v6079, 16
  %v6405 = vrot.slane %v6403, 5
  %v6406 = vsel %vm1972, %v6401, %v6405
  %v6408 = vshrl.u32 %v6080, 16
  %v6410 = vrot.slane %v6408, 4
  %v6411 = vshll.u32 %v6080, 16
  %v6413 = vrot.slane %v6411, 5
  %v6414 = vor.u32 %v6410, %v6413
  %v6415 = vrot.slane %v6414, 4
  %v6417 = vshll.u32 %v6081, 16
  %v6419 = vrot.slane %v6417, 5
  %v6420 = vsel %vm1972, %v6415, %v6419
  %v6421 = vshrl.u32 %v6081, 16
  %v6423 = vrot.slane %v6421, 4
  %v6424 = vor.u32 %v6423, %v6419
  %v6425 = vrot.slane %v6424, 4
  %v6427 = vshll.u32 %v6082, 16
  %v6429 = vrot.slane %v6427, 5
  %v6430 = vsel %vm1972, %v6425, %v6429
  %v6432 = vshrl.u32 %v6083, 16
  %v6434 = vrot.slane %v6432, 4
  %v6435 = vshll.u32 %v6083, 16
  %v6437 = vrot.slane %v6435, 5
  %v6438 = vor.u32 %v6434, %v6437
  %v6439 = vrot.slane %v6438, 4
  %v6441 = vshll.u32 %v6084, 16
  %v6443 = vrot.slane %v6441, 5
  %v6444 = vsel %vm1972, %v6439, %v6443
  %v6445 = vshrl.u32 %v6084, 16
  %v6447 = vrot.slane %v6445, 4
  %v6448 = vor.u32 %v6447, %v6443
  %v6449 = vrot.slane %v6448, 4
  %v6451 = vshll.u32 %v6085, 16
  %v6453 = vrot.slane %v6451, 5
  %v6454 = vsel %vm1972, %v6449, %v6453
  %v6456 = vshrl.u32 %v6086, 16
  %v6458 = vrot.slane %v6456, 4
  %v6459 = vshll.u32 %v6086, 16
  %v6461 = vrot.slane %v6459, 5
  %v6462 = vor.u32 %v6458, %v6461
  %v6463 = vrot.slane %v6462, 4
  %v6465 = vshll.u32 %v6087, 16
  %v6467 = vrot.slane %v6465, 5
  %v6468 = vsel %vm1972, %v6463, %v6467
  %v6469 = vshrl.u32 %v6087, 16
  %v6471 = vrot.slane %v6469, 4
  %v6472 = vor.u32 %v6471, %v6467
  %v6473 = vrot.slane %v6472, 4
  %v6475 = vshll.u32 %v6088, 16
  %v6477 = vrot.slane %v6475, 5
  %v6478 = vsel %vm1972, %v6473, %v6477
  %v6480 = vshrl.u32 %v6089, 16
  %v6482 = vrot.slane %v6480, 4
  %v6483 = vshll.u32 %v6089, 16
  %v6485 = vrot.slane %v6483, 5
  %v6486 = vor.u32 %v6482, %v6485
  %v6487 = vrot.slane %v6486, 4
  %v6489 = vshll.u32 %v6090, 16
  %v6491 = vrot.slane %v6489, 5
  %v6492 = vsel %vm1972, %v6487, %v6491
  %v6493 = vshrl.u32 %v6090, 16
  %v6495 = vrot.slane %v6493, 4
  %v6496 = vor.u32 %v6495, %v6491
  %v6497 = vrot.slane %v6496, 4
  %v6499 = vshll.u32 %v6091, 16
  %v6501 = vrot.slane %v6499, 5
  %v6502 = vsel %vm1972, %v6497, %v6501
  %v6504 = vshrl.u32 %v6092, 16
  %v6506 = vrot.slane %v6504, 4
  %v6507 = vshll.u32 %v6092, 16
  %v6509 = vrot.slane %v6507, 5
  %v6510 = vor.u32 %v6506, %v6509
  %v6511 = vrot.slane %v6510, 4
  %v6513 = vshll.u32 %v6093, 16
  %v6515 = vrot.slane %v6513, 5
  %v6516 = vsel %vm1972, %v6511, %v6515
  %v6517 = vshrl.u32 %v6093, 16
  %v6519 = vrot.slane %v6517, 4
  %v6520 = vor.u32 %v6519, %v6515
  %v6521 = vrot.slane %v6520, 4
  %v6523 = vshll.u32 %v6094, 16
  %v6525 = vrot.slane %v6523, 5
  %v6526 = vsel %vm1972, %v6521, %v6525
  %v6528 = vshrl.u32 %v6095, 16
  %v6530 = vrot.slane %v6528, 4
  %v6531 = vshll.u32 %v6095, 16
  %v6533 = vrot.slane %v6531, 5
  %v6534 = vor.u32 %v6530, %v6533
  %v6535 = vrot.slane %v6534, 4
  %v6537 = vshll.u32 %v6096, 16
  %v6539 = vrot.slane %v6537, 5
  %v6540 = vsel %vm1972, %v6535, %v6539
  %v6541 = vshrl.u32 %v6096, 16
  %v6543 = vrot.slane %v6541, 4
  %v6544 = vor.u32 %v6543, %v6539
  %v6545 = vrot.slane %v6544, 4
  %v6547 = vshll.u32 %v6097, 16
  %v6549 = vrot.slane %v6547, 5
  %v6550 = vsel %vm1972, %v6545, %v6549
  %v6552 = vshrl.u32 %v6098, 16
  %v6554 = vrot.slane %v6552, 4
  %v6555 = vshll.u32 %v6098, 16
  %v6557 = vrot.slane %v6555, 5
  %v6558 = vor.u32 %v6554, %v6557
  %v6559 = vrot.slane %v6558, 4
  %v6561 = vshll.u32 %v6099, 16
  %v6563 = vrot.slane %v6561, 5
  %v6564 = vsel %vm1972, %v6559, %v6563
  %v6565 = vshrl.u32 %v6099, 16
  %v6567 = vrot.slane %v6565, 4
  %v6568 = vor.u32 %v6567, %v6563
  %v6569 = vrot.slane %v6568, 4
  %v6571 = vshll.u32 %v6100, 16
  %v6573 = vrot.slane %v6571, 5
  %v6574 = vsel %vm1972, %v6569, %v6573
  %v6576 = vshrl.u32 %v6101, 16
  %v6578 = vrot.slane %v6576, 4
  %v6579 = vshll.u32 %v6101, 16
  %v6581 = vrot.slane %v6579, 5
  %v6582 = vor.u32 %v6578, %v6581
  %v6583 = vrot.slane %v6582, 4
  %v6585 = vshll.u32 %v6102, 16
  %v6587 = vrot.slane %v6585, 5
  %v6588 = vsel %vm1972, %v6583, %v6587
  %v6589 = vshrl.u32 %v6102, 16
  %v6591 = vrot.slane %v6589, 4
  %v6592 = vor.u32 %v6591, %v6587
  %v6593 = vrot.slane %v6592, 4
  %v6595 = vshll.u32 %v6103, 16
  %v6597 = vrot.slane %v6595, 5
  %v6598 = vsel %vm1972, %v6593, %v6597
  %v6600 = vshrl.u32 %v6104, 16
  %v6602 = vrot.slane %v6600, 4
  %v6603 = vshll.u32 %v6104, 16
  %v6605 = vrot.slane %v6603, 5
  %v6606 = vor.u32 %v6602, %v6605
  %v6607 = vrot.slane %v6606, 4
  %v6609 = vshll.u32 %v6105, 16
  %v6611 = vrot.slane %v6609, 5
  %v6612 = vsel %vm1972, %v6607, %v6611
  %v6613 = vshrl.u32 %v6105, 16
  %v6615 = vrot.slane %v6613, 4
  %v6616 = vor.u32 %v6615, %v6611
  %v6617 = vrot.slane %v6616, 4
  %v6619 = vshll.u32 %v6106, 16
  %v6621 = vrot.slane %v6619, 5
  %v6622 = vsel %vm1972, %v6617, %v6621
  %v6624 = vshrl.u32 %v6107, 16
  %v6626 = vrot.slane %v6624, 4
  %v6627 = vshll.u32 %v6107, 16
  %v6629 = vrot.slane %v6627, 5
  %v6630 = vor.u32 %v6626, %v6629
  %v6631 = vrot.slane %v6630, 4
  %v6633 = vshll.u32 %v6108, 16
  %v6635 = vrot.slane %v6633, 5
  %v6636 = vsel %vm1972, %v6631, %v6635
  %v6637 = vshrl.u32 %v6108, 16
  %v6639 = vrot.slane %v6637, 4
  %v6640 = vor.u32 %v6639, %v6635
  %v6641 = vrot.slane %v6640, 4
  %v6643 = vshll.u32 %v6109, 16
  %v6645 = vrot.slane %v6643, 5
  %v6646 = vsel %vm1972, %v6641, %v6645
  %v6648 = vshrl.u32 %v6110, 16
  %v6650 = vrot.slane %v6648, 4
  %v6651 = vshll.u32 %v6110, 16
  %v6653 = vrot.slane %v6651, 5
  %v6654 = vor.u32 %v6650, %v6653
  %v6655 = vrot.slane %v6654, 4
  %v6657 = vshll.u32 %v6111, 16
  %v6659 = vrot.slane %v6657, 5
  %v6660 = vsel %vm1972, %v6655, %v6659
  %v6661 = vshrl.u32 %v6111, 16
  %v6663 = vrot.slane %v6661, 4
  %v6664 = vor.u32 %v6663, %v6659
  %v6665 = vrot.slane %v6664, 4
  %v6667 = vshll.u32 %v6112, 16
  %v6669 = vrot.slane %v6667, 5
  %v6670 = vsel %vm1972, %v6665, %v6669
  %v6672 = vshrl.u32 %v6113, 16
  %v6674 = vrot.slane %v6672, 4
  %v6675 = vshll.u32 %v6113, 16
  %v6677 = vrot.slane %v6675, 5
  %v6678 = vor.u32 %v6674, %v6677
  %v6679 = vrot.slane %v6678, 4
  %v6681 = vshll.u32 %v6114, 16
  %v6683 = vrot.slane %v6681, 5
  %v6684 = vsel %vm1972, %v6679, %v6683
  %v6685 = vshrl.u32 %v6114, 16
  %v6687 = vrot.slane %v6685, 4
  %v6688 = vor.u32 %v6687, %v6683
  %v6689 = vrot.slane %v6688, 4
  %v6691 = vshll.u32 %v6115, 16
  %v6693 = vrot.slane %v6691, 5
  %v6694 = vsel %vm1972, %v6689, %v6693
  %v6696 = vshrl.u32 %v6116, 16
  %v6698 = vrot.slane %v6696, 4
  %v6699 = vshll.u32 %v6116, 16
  %v6701 = vrot.slane %v6699, 5
  %v6702 = vor.u32 %v6698, %v6701
  %v6703 = vrot.slane %v6702, 4
  %v6705 = vshll.u32 %v6117, 16
  %v6707 = vrot.slane %v6705, 5
  %v6708 = vsel %vm1972, %v6703, %v6707
  %v6709 = vshrl.u32 %v6117, 16
  %v6711 = vrot.slane %v6709, 4
  %v6712 = vor.u32 %v6711, %v6707
  %v6713 = vrot.slane %v6712, 4
  %v6715 = vshll.u32 %v6118, 16
  %v6717 = vrot.slane %v6715, 5
  %v6718 = vsel %vm1972, %v6713, %v6717
  %v6720 = vshrl.u32 %v6119, 16
  %v6722 = vrot.slane %v6720, 4
  %v6723 = vshll.u32 %v6119, 16
  %v6725 = vrot.slane %v6723, 5
  %v6726 = vor.u32 %v6722, %v6725
  %v6727 = vrot.slane %v6726, 4
  %v6729 = vshll.u32 %v6120, 16
  %v6731 = vrot.slane %v6729, 5
  %v6732 = vsel %vm1972, %v6727, %v6731
  %v6733 = vshrl.u32 %v6120, 16
  %v6735 = vrot.slane %v6733, 4
  %v6736 = vor.u32 %v6735, %v6731
  %v6737 = vrot.slane %v6736, 4
  %v6739 = vshll.u32 %v6121, 16
  %v6741 = vrot.slane %v6739, 5
  %v6742 = vsel %vm1972, %v6737, %v6741
  %v6744 = vshrl.u32 %v6122, 16
  %v6746 = vrot.slane %v6744, 4
  %v6747 = vshll.u32 %v6122, 16
  %v6749 = vrot.slane %v6747, 5
  %v6750 = vor.u32 %v6746, %v6749
  %v6751 = vrot.slane %v6750, 4
  %v6753 = vshll.u32 %v6123, 16
  %v6755 = vrot.slane %v6753, 5
  %v6756 = vsel %vm1972, %v6751, %v6755
  %v6757 = vshrl.u32 %v6123, 16
  %v6759 = vrot.slane %v6757, 4
  %v6760 = vor.u32 %v6759, %v6755
  %v6761 = vrot.slane %v6760, 4
  %v6763 = vshll.u32 %v6124, 16
  %v6765 = vrot.slane %v6763, 5
  %v6766 = vsel %vm1972, %v6761, %v6765
  %v6768 = vshrl.u32 %v6125, 16
  %v6770 = vrot.slane %v6768, 4
  %v6771 = vshll.u32 %v6125, 16
  %v6773 = vrot.slane %v6771, 5
  %v6774 = vor.u32 %v6770, %v6773
  %v6775 = vrot.slane %v6774, 4
  %v6777 = vshll.u32 %v6126, 16
  %v6779 = vrot.slane %v6777, 5
  %v6780 = vsel %vm1972, %v6775, %v6779
  %v6781 = vshrl.u32 %v6126, 16
  %v6783 = vrot.slane %v6781, 4
  %v6784 = vor.u32 %v6783, %v6779
  %v6785 = vrot.slane %v6784, 4
  %v6787 = vshll.u32 %v6127, 16
  %v6789 = vrot.slane %v6787, 5
  %v6790 = vsel %vm1972, %v6785, %v6789
  %v6792 = vshrl.u32 %v6128, 16
  %v6794 = vrot.slane %v6792, 4
  %v6795 = vshll.u32 %v6128, 16
  %v6797 = vrot.slane %v6795, 5
  %v6798 = vor.u32 %v6794, %v6797
  %v6799 = vrot.slane %v6798, 4
  %v6801 = vshll.u32 %v6129, 16
  %v6803 = vrot.slane %v6801, 5
  %v6804 = vsel %vm1972, %v6799, %v6803
  %v6805 = vshrl.u32 %v6129, 16
  %v6807 = vrot.slane %v6805, 4
  %v6808 = vor.u32 %v6807, %v6803
  %v6809 = vrot.slane %v6808, 4
  %v6811 = vshll.u32 %v6130, 16
  %v6813 = vrot.slane %v6811, 5
  %v6814 = vsel %vm1972, %v6809, %v6813
  %v6816 = vshrl.u32 %v6131, 16
  %v6818 = vrot.slane %v6816, 4
  %v6819 = vshll.u32 %v6131, 16
  %v6821 = vrot.slane %v6819, 5
  %v6822 = vor.u32 %v6818, %v6821
  %v6823 = vrot.slane %v6822, 4
  %v6825 = vshll.u32 %v6132, 16
  %v6827 = vrot.slane %v6825, 5
  %v6828 = vsel %vm1972, %v6823, %v6827
  %v6829 = vshrl.u32 %v6132, 16
  %v6831 = vrot.slane %v6829, 4
  %v6832 = vor.u32 %v6831, %v6827
  %v6833 = vrot.slane %v6832, 4
  %v6835 = vshll.u32 %v6133, 16
  %v6837 = vrot.slane %v6835, 5
  %v6838 = vsel %vm1972, %v6833, %v6837
  %v6840 = vshrl.u32 %v6134, 16
  %v6842 = vrot.slane %v6840, 4
  %v6843 = vshll.u32 %v6134, 16
  %v6845 = vrot.slane %v6843, 5
  %v6846 = vor.u32 %v6842, %v6845
  %v6847 = vrot.slane %v6846, 4
  %v6849 = vshll.u32 %v6135, 16
  %v6851 = vrot.slane %v6849, 5
  %v6852 = vsel %vm1972, %v6847, %v6851
  %v6853 = vshrl.u32 %v6135, 16
  %v6855 = vrot.slane %v6853, 4
  %v6856 = vor.u32 %v6855, %v6851
  %v6857 = vrot.slane %v6856, 4
  %v6859 = vshll.u32 %v6136, 16
  %v6861 = vrot.slane %v6859, 5
  %v6862 = vsel %vm1972, %v6857, %v6861
  %v6864 = vshrl.u32 %v6137, 16
  %v6866 = vrot.slane %v6864, 4
  %v6867 = vshll.u32 %v6137, 16
  %v6869 = vrot.slane %v6867, 5
  %v6870 = vor.u32 %v6866, %v6869
  %v6871 = vrot.slane %v6870, 4
  %v6873 = vshll.u32 %v6138, 16
  %v6875 = vrot.slane %v6873, 5
  %v6876 = vsel %vm1972, %v6871, %v6875
  %v6877 = vshrl.u32 %v6138, 16
  %v6879 = vrot.slane %v6877, 4
  %v6880 = vor.u32 %v6879, %v6875
  %v6881 = vrot.slane %v6880, 4
  %v6883 = vshll.u32 %v6139, 16
  %v6885 = vrot.slane %v6883, 5
  %v6886 = vsel %vm1972, %v6881, %v6885
  %v6888 = vshrl.u32 %v6140, 16
  %v6890 = vrot.slane %v6888, 4
  %v6891 = vshll.u32 %v6140, 16
  %v6893 = vrot.slane %v6891, 5
  %v6894 = vor.u32 %v6890, %v6893
  %v6895 = vrot.slane %v6894, 4
  %v6897 = vshll.u32 %v6141, 16
  %v6899 = vrot.slane %v6897, 5
  %v6900 = vsel %vm1972, %v6895, %v6899
  %v6901 = vshrl.u32 %v6141, 16
  %v6903 = vrot.slane %v6901, 4
  %v6904 = vor.u32 %v6903, %v6899
  %v6905 = vrot.slane %v6904, 4
  %v6907 = vshll.u32 %v6142, 16
  %v6909 = vrot.slane %v6907, 5
  %v6910 = vsel %vm1972, %v6905, %v6909
  %v6911 = vunpack.c.l.b16 %v6156
  %v6912 = vunpack.c.l.b16 %v6166
  %v6913 = vunpack.c.l.b16 %v6180
  %v6914 = vunpack.c.l.b16 %v6190
  %v6915 = vunpack.c.l.b16 %v6204
  %v6916 = vunpack.c.l.b16 %v6214
  %v6917 = vunpack.c.l.b16 %v6228
  %v6918 = vunpack.c.l.b16 %v6238
  %v6919 = vunpack.c.l.b16 %v6252
  %v6920 = vunpack.c.l.b16 %v6262
  %v6921 = vunpack.c.l.b16 %v6276
  %v6922 = vunpack.c.l.b16 %v6286
  %v6923 = vunpack.c.l.b16 %v6300
  %v6924 = vunpack.c.l.b16 %v6310
  %v6925 = vunpack.c.l.b16 %v6324
  %v6926 = vunpack.c.l.b16 %v6334
  %v6927 = vunpack.c.l.b16 %v6348
  %v6928 = vunpack.c.l.b16 %v6358
  %v6929 = vunpack.c.l.b16 %v6372
  %v6930 = vunpack.c.l.b16 %v6382
  %v6931 = vunpack.c.l.b16 %v6396
  %v6932 = vunpack.c.l.b16 %v6406
  %v6933 = vunpack.c.l.b16 %v6420
  %v6934 = vunpack.c.l.b16 %v6430
  %v6935 = vunpack.c.l.b16 %v6444
  %v6936 = vunpack.c.l.b16 %v6454
  %v6937 = vunpack.c.l.b16 %v6468
  %v6938 = vunpack.c.l.b16 %v6478
  %v6939 = vunpack.c.l.b16 %v6492
  %v6940 = vunpack.c.l.b16 %v6502
  %v6941 = vunpack.c.l.b16 %v6516
  %v6942 = vunpack.c.l.b16 %v6526
  %v6943 = vunpack.c.l.b16 %v6540
  %v6944 = vunpack.c.l.b16 %v6550
  %v6945 = vunpack.c.l.b16 %v6564
  %v6946 = vunpack.c.l.b16 %v6574
  %v6947 = vunpack.c.l.b16 %v6588
  %v6948 = vunpack.c.l.b16 %v6598
  %v6949 = vunpack.c.l.b16 %v6612
  %v6950 = vunpack.c.l.b16 %v6622
  %v6951 = vunpack.c.l.b16 %v6636
  %v6952 = vunpack.c.l.b16 %v6646
  %v6953 = vunpack.c.l.b16 %v6660
  %v6954 = vunpack.c.l.b16 %v6670
  %v6955 = vunpack.c.l.b16 %v6684
  %v6956 = vunpack.c.l.b16 %v6694
  %v6957 = vunpack.c.l.b16 %v6708
  %v6958 = vunpack.c.l.b16 %v6718
  %v6959 = vunpack.c.l.b16 %v6732
  %v6960 = vunpack.c.l.b16 %v6742
  %v6961 = vunpack.c.l.b16 %v6756
  %v6962 = vunpack.c.l.b16 %v6766
  %v6963 = vunpack.c.l.b16 %v6780
  %v6964 = vunpack.c.l.b16 %v6790
  %v6965 = vunpack.c.l.b16 %v6804
  %v6966 = vunpack.c.l.b16 %v6814
  %v6967 = vunpack.c.l.b16 %v6828
  %v6968 = vunpack.c.l.b16 %v6838
  %v6969 = vunpack.c.l.b16 %v6852
  %v6970 = vunpack.c.l.b16 %v6862
  %v6971 = vunpack.c.l.b16 %v6876
  %v6972 = vunpack.c.l.b16 %v6886
  %v6973 = vunpack.c.l.b16 %v6900
  %v6974 = vunpack.c.l.b16 %v6910
  %v6975 = vpack.c.b16 %v6912, %v6911
  %v6976 = vpack.c.b16 %v6914, %v6913
  %v6977 = vpack.c.b16 %v6916, %v6915
  %v6978 = vpack.c.b16 %v6918, %v6917
  %v6979 = vpack.c.b16 %v6920, %v6919
  %v6980 = vpack.c.b16 %v6922, %v6921
  %v6981 = vpack.c.b16 %v6924, %v6923
  %v6982 = vpack.c.b16 %v6926, %v6925
  %v6983 = vpack.c.b16 %v6928, %v6927
  %v6984 = vpack.c.b16 %v6930, %v6929
  %v6985 = vpack.c.b16 %v6932, %v6931
  %v6986 = vpack.c.b16 %v6934, %v6933
  %v6987 = vpack.c.b16 %v6936, %v6935
  %v6988 = vpack.c.b16 %v6938, %v6937
  %v6989 = vpack.c.b16 %v6940, %v6939
  %v6990 = vpack.c.b16 %v6942, %v6941
  %v6991 = vpack.c.b16 %v6944, %v6943
  %v6992 = vpack.c.b16 %v6946, %v6945
  %v6993 = vpack.c.b16 %v6948, %v6947
  %v6994 = vpack.c.b16 %v6950, %v6949
  %v6995 = vpack.c.b16 %v6952, %v6951
  %v6996 = vpack.c.b16 %v6954, %v6953
  %v6997 = vpack.c.b16 %v6956, %v6955
  %v6998 = vpack.c.b16 %v6958, %v6957
  %v6999 = vpack.c.b16 %v6960, %v6959
  %v7000 = vpack.c.b16 %v6962, %v6961
  %v7001 = vpack.c.b16 %v6964, %v6963
  %v7002 = vpack.c.b16 %v6966, %v6965
  %v7003 = vpack.c.b16 %v6968, %v6967
  %v7004 = vpack.c.b16 %v6970, %v6969
  %v7005 = vpack.c.b16 %v6972, %v6971
  %v7006 = vpack.c.b16 %v6974, %v6973
  %7007 = vrot.lane.b32.xlu0 %v6975, 28
  %v7008 = vpop.permute.xlu0 %7007
  %7009 = vrot.lane.b32.xlu0 %v6976, 28
  %v7010 = vpop.permute.xlu0 %7009
  %7011 = vrot.lane.b32.xlu0 %v6977, 28
  %v7012 = vpop.permute.xlu0 %7011
  %7013 = vrot.lane.b32.xlu0 %v6978, 28
  %v7014 = vpop.permute.xlu0 %7013
  %7015 = vrot.lane.b32.xlu0 %v6979, 28
  %v7016 = vpop.permute.xlu0 %7015
  %7017 = vrot.lane.b32.xlu0 %v6980, 28
  %v7018 = vpop.permute.xlu0 %7017
  %7019 = vrot.lane.b32.xlu0 %v6981, 28
  %v7020 = vpop.permute.xlu0 %7019
  %7021 = vrot.lane.b32.xlu0 %v6982, 28
  %v7022 = vpop.permute.xlu0 %7021
  %7023 = vrot.lane.b32.xlu0 %v6983, 28
  %v7024 = vpop.permute.xlu0 %7023
  %7025 = vrot.lane.b32.xlu0 %v6984, 28
  %v7026 = vpop.permute.xlu0 %7025
  %7027 = vrot.lane.b32.xlu0 %v6985, 28
  %v7028 = vpop.permute.xlu0 %7027
  %7029 = vrot.lane.b32.xlu0 %v6986, 28
  %v7030 = vpop.permute.xlu0 %7029
  %7031 = vrot.lane.b32.xlu0 %v6987, 28
  %v7032 = vpop.permute.xlu0 %7031
  %7033 = vrot.lane.b32.xlu0 %v6988, 28
  %v7034 = vpop.permute.xlu0 %7033
  %7035 = vrot.lane.b32.xlu0 %v6989, 28
  %v7036 = vpop.permute.xlu0 %7035
  %7037 = vrot.lane.b32.xlu0 %v6990, 28
  %v7038 = vpop.permute.xlu0 %7037
  %7039 = vrot.lane.b32.xlu0 %v6991, 28
  %v7040 = vpop.permute.xlu0 %7039
  %7041 = vrot.lane.b32.xlu0 %v6992, 28
  %v7042 = vpop.permute.xlu0 %7041
  %7043 = vrot.lane.b32.xlu0 %v6993, 28
  %v7044 = vpop.permute.xlu0 %7043
  %7045 = vrot.lane.b32.xlu0 %v6994, 28
  %v7046 = vpop.permute.xlu0 %7045
  %7047 = vrot.lane.b32.xlu0 %v6995, 28
  %v7048 = vpop.permute.xlu0 %7047
  %7049 = vrot.lane.b32.xlu0 %v6996, 28
  %v7050 = vpop.permute.xlu0 %7049
  %7051 = vrot.lane.b32.xlu0 %v6997, 28
  %v7052 = vpop.permute.xlu0 %7051
  %7053 = vrot.lane.b32.xlu0 %v6998, 28
  %v7054 = vpop.permute.xlu0 %7053
  %7055 = vrot.lane.b32.xlu0 %v6999, 28
  %v7056 = vpop.permute.xlu0 %7055
  %7057 = vrot.lane.b32.xlu0 %v7000, 28
  %v7058 = vpop.permute.xlu0 %7057
  %7059 = vrot.lane.b32.xlu0 %v7001, 28
  %v7060 = vpop.permute.xlu0 %7059
  %7061 = vrot.lane.b32.xlu0 %v7002, 28
  %v7062 = vpop.permute.xlu0 %7061
  %7063 = vrot.lane.b32.xlu0 %v7003, 28
  %v7064 = vpop.permute.xlu0 %7063
  %7065 = vrot.lane.b32.xlu0 %v7004, 28
  %v7066 = vpop.permute.xlu0 %7065
  %7067 = vrot.lane.b32.xlu0 %v7005, 28
  %v7068 = vpop.permute.xlu0 %7067
  %7069 = vrot.lane.b32.xlu0 %v7006, 28
  %v7070 = vpop.permute.xlu0 %7069
  %vm7103 = vcmask 261344
  %7104 = vst.msk [vmem:[#allocation3] sm:$0xff] %vm7103, %v7008
  %7105 = vst.msk [vmem:[#allocation3 + $0x8] sm:$0xff] %vm7103, %v7010
  %7106 = vst.msk [vmem:[#allocation3 + $0x10] sm:$0xff] %vm7103, %v7012
  %7107 = vst.msk [vmem:[#allocation3 + $0x18] sm:$0xff] %vm7103, %v7014
  %7108 = vst.msk [vmem:[#allocation3 + $0x20] sm:$0xff] %vm7103, %v7016
  %7109 = vst.msk [vmem:[#allocation3 + $0x28] sm:$0xff] %vm7103, %v7018
  %7110 = vst.msk [vmem:[#allocation3 + $0x30] sm:$0xff] %vm7103, %v7020
  %7111 = vst.msk [vmem:[#allocation3 + $0x38] sm:$0xff] %vm7103, %v7022
  %7112 = vst.msk [vmem:[#allocation3 + $0x40] sm:$0xff] %vm7103, %v7024
  %7113 = vst.msk [vmem:[#allocation3 + $0x48] sm:$0xff] %vm7103, %v7026
  %7114 = vst.msk [vmem:[#allocation3 + $0x50] sm:$0xff] %vm7103, %v7028
  %7115 = vst.msk [vmem:[#allocation3 + $0x58] sm:$0xff] %vm7103, %v7030
  %7116 = vst.msk [vmem:[#allocation3 + $0x60] sm:$0xff] %vm7103, %v7032
  %7117 = vst.msk [vmem:[#allocation3 + $0x68] sm:$0xff] %vm7103, %v7034
  %7118 = vst.msk [vmem:[#allocation3 + $0x70] sm:$0xff] %vm7103, %v7036
  %7119 = vst.msk [vmem:[#allocation3 + $0x78] sm:$0xff] %vm7103, %v7038
  %7120 = vst.msk [vmem:[#allocation3 + $0x80] sm:$0xff] %vm7103, %v7040
  %7121 = vst.msk [vmem:[#allocation3 + $0x88] sm:$0xff] %vm7103, %v7042
  %7122 = vst.msk [vmem:[#allocation3 + $0x90] sm:$0xff] %vm7103, %v7044
  %7123 = vst.msk [vmem:[#allocation3 + $0x98] sm:$0xff] %vm7103, %v7046
  %7124 = vst.msk [vmem:[#allocation3 + $0xa0] sm:$0xff] %vm7103, %v7048
  %7125 = vst.msk [vmem:[#allocation3 + $0xa8] sm:$0xff] %vm7103, %v7050
  %7126 = vst.msk [vmem:[#allocation3 + $0xb0] sm:$0xff] %vm7103, %v7052
  %7127 = vst.msk [vmem:[#allocation3 + $0xb8] sm:$0xff] %vm7103, %v7054
  %7128 = vst.msk [vmem:[#allocation3 + $0xc0] sm:$0xff] %vm7103, %v7056
  %7129 = vst.msk [vmem:[#allocation3 + $0xc8] sm:$0xff] %vm7103, %v7058
  %7130 = vst.msk [vmem:[#allocation3 + $0xd0] sm:$0xff] %vm7103, %v7060
  %7131 = vst.msk [vmem:[#allocation3 + $0xd8] sm:$0xff] %vm7103, %v7062
  %7132 = vst.msk [vmem:[#allocation3 + $0xe0] sm:$0xff] %vm7103, %v7064
  %7133 = vst.msk [vmem:[#allocation3 + $0xe8] sm:$0xff] %vm7103, %v7066
  %7134 = vst.msk [vmem:[#allocation3 + $0xf0] sm:$0xff] %vm7103, %v7068
  %7135 = vst.msk [vmem:[#allocation3 + $0xf8] sm:$0xff] %vm7103, %v7070
  %v7136 = vld [vmem:[%s5693] sm:$0xe]
  %v7137 = vld [vmem:[%s5693 + $0x4] sm:$0xf]
  %v7138 = vld [vmem:[%s5693 + $0x8] sm:$0x1]
  %v7139 = vld [vmem:[%s5693 + $0xc] sm:$0xe]
  %v7140 = vld [vmem:[%s5693 + $0x10] sm:$0xf]
  %v7141 = vld [vmem:[%s5693 + $0x14] sm:$0x1]
  %v7142 = vld [vmem:[%s5693 + $0x18] sm:$0xe]
  %v7143 = vld [vmem:[%s5693 + $0x1c] sm:$0xf]
  %v7144 = vld [vmem:[%s5693 + $0x20] sm:$0x1]
  %v7145 = vld [vmem:[%s5693 + $0x24] sm:$0xe]
  %v7146 = vld [vmem:[%s5693 + $0x28] sm:$0xf]
  %v7147 = vld [vmem:[%s5693 + $0x2c] sm:$0x1]
  %v7148 = vld [vmem:[%s5693 + $0x30] sm:$0xe]
  %v7149 = vld [vmem:[%s5693 + $0x34] sm:$0xf]
  %v7150 = vld [vmem:[%s5693 + $0x38] sm:$0x1]
  %v7151 = vld [vmem:[%s5693 + $0x3c] sm:$0xe]
  %v7152 = vld [vmem:[%s5693 + $0x40] sm:$0xf]
  %v7153 = vld [vmem:[%s5693 + $0x44] sm:$0x1]
  %v7154 = vld [vmem:[%s5693 + $0x48] sm:$0xe]
  %v7155 = vld [vmem:[%s5693 + $0x4c] sm:$0xf]
  %v7156 = vld [vmem:[%s5693 + $0x50] sm:$0x1]
  %v7157 = vld [vmem:[%s5693 + $0x54] sm:$0xe]
  %v7158 = vld [vmem:[%s5693 + $0x58] sm:$0xf]
  %v7159 = vld [vmem:[%s5693 + $0x5c] sm:$0x1]
  %v7160 = vld [vmem:[%s5693 + $0x60] sm:$0xe]
  %v7161 = vld [vmem:[%s5693 + $0x64] sm:$0xf]
  %v7162 = vld [vmem:[%s5693 + $0x68] sm:$0x1]
  %v7163 = vld [vmem:[%s5693 + $0x6c] sm:$0xe]
  %v7164 = vld [vmem:[%s5693 + $0x70] sm:$0xf]
  %v7165 = vld [vmem:[%s5693 + $0x74] sm:$0x1]
  %v7166 = vld [vmem:[%s5693 + $0x78] sm:$0xe]
  %v7167 = vld [vmem:[%s5693 + $0x7c] sm:$0xf]
  %v7168 = vld [vmem:[%s5693 + $0x80] sm:$0x1]
  %v7169 = vld [vmem:[%s5693 + $0x84] sm:$0xe]
  %v7170 = vld [vmem:[%s5693 + $0x88] sm:$0xf]
  %v7171 = vld [vmem:[%s5693 + $0x8c] sm:$0x1]
  %v7172 = vld [vmem:[%s5693 + $0x90] sm:$0xe]
  %v7173 = vld [vmem:[%s5693 + $0x94] sm:$0xf]
  %v7174 = vld [vmem:[%s5693 + $0x98] sm:$0x1]
  %v7175 = vld [vmem:[%s5693 + $0x9c] sm:$0xe]
  %v7176 = vld [vmem:[%s5693 + $0xa0] sm:$0xf]
  %v7177 = vld [vmem:[%s5693 + $0xa4] sm:$0x1]
  %v7178 = vld [vmem:[%s5693 + $0xa8] sm:$0xe]
  %v7179 = vld [vmem:[%s5693 + $0xac] sm:$0xf]
  %v7180 = vld [vmem:[%s5693 + $0xb0] sm:$0x1]
  %v7181 = vld [vmem:[%s5693 + $0xb4] sm:$0xe]
  %v7182 = vld [vmem:[%s5693 + $0xb8] sm:$0xf]
  %v7183 = vld [vmem:[%s5693 + $0xbc] sm:$0x1]
  %v7184 = vld [vmem:[%s5693 + $0xd8] sm:$0xe]
  %v7185 = vld [vmem:[%s5693 + $0xdc] sm:$0xf]
  %v7186 = vld [vmem:[%s5693 + $0xe0] sm:$0x1]
  %v7187 = vld [vmem:[%s5693 + $0xe4] sm:$0xe]
  %v7188 = vld [vmem:[%s5693 + $0xe8] sm:$0xf]
  %v7189 = vld [vmem:[%s5693 + $0xec] sm:$0x1]
  %v7190 = vld [vmem:[%s5693 + $0xf0] sm:$0xe]
  %v7191 = vld [vmem:[%s5693 + $0xf4] sm:$0xf]
  %v7192 = vld [vmem:[%s5693 + $0xf8] sm:$0x1]
  %v7193 = vld [vmem:[%s5693 + $0xfc] sm:$0xe]
  %v7194 = vld [vmem:[%s5693 + $0x100] sm:$0xf]
  %v7195 = vld [vmem:[%s5693 + $0x104] sm:$0x1]
  %v7196 = vld [vmem:[%s5693 + $0x108] sm:$0xe]
  %v7197 = vld [vmem:[%s5693 + $0x10c] sm:$0xf]
  %v7198 = vld [vmem:[%s5693 + $0x110] sm:$0x1]
  %v7199 = vld [vmem:[%s5693 + $0x114] sm:$0xe]
  %v7200 = vld [vmem:[%s5693 + $0x118] sm:$0xf]
  %v7201 = vld [vmem:[%s5693 + $0x11c] sm:$0x1]
  %v7202 = vld [vmem:[%s5693 + $0x120] sm:$0xe]
  %v7203 = vld [vmem:[%s5693 + $0x124] sm:$0xf]
  %v7204 = vld [vmem:[%s5693 + $0x128] sm:$0x1]
  %v7205 = vld [vmem:[%s5693 + $0x12c] sm:$0xe]
  %v7206 = vld [vmem:[%s5693 + $0x130] sm:$0xf]
  %v7207 = vld [vmem:[%s5693 + $0x134] sm:$0x1]
  %v7208 = vld [vmem:[%s5693 + $0x138] sm:$0xe]
  %v7209 = vld [vmem:[%s5693 + $0x13c] sm:$0xf]
  %v7210 = vld [vmem:[%s5693 + $0x140] sm:$0x1]
  %v7211 = vld [vmem:[%s5693 + $0x144] sm:$0xe]
  %v7212 = vld [vmem:[%s5693 + $0x148] sm:$0xf]
  %v7213 = vld [vmem:[%s5693 + $0x14c] sm:$0x1]
  %v7214 = vld [vmem:[%s5693 + $0x150] sm:$0xe]
  %v7215 = vld [vmem:[%s5693 + $0x154] sm:$0xf]
  %v7216 = vld [vmem:[%s5693 + $0x158] sm:$0x1]
  %v7217 = vld [vmem:[%s5693 + $0x15c] sm:$0xe]
  %v7218 = vld [vmem:[%s5693 + $0x160] sm:$0xf]
  %v7219 = vld [vmem:[%s5693 + $0x164] sm:$0x1]
  %v7220 = vld [vmem:[%s5693 + $0x168] sm:$0xe]
  %v7221 = vld [vmem:[%s5693 + $0x16c] sm:$0xf]
  %v7222 = vld [vmem:[%s5693 + $0x170] sm:$0x1]
  %v7223 = vld [vmem:[%s5693 + $0x174] sm:$0xe]
  %v7224 = vld [vmem:[%s5693 + $0x178] sm:$0xf]
  %v7225 = vld [vmem:[%s5693 + $0x17c] sm:$0x1]
  %v7226 = vld [vmem:[%s5693 + $0x180] sm:$0xe]
  %v7227 = vld [vmem:[%s5693 + $0x184] sm:$0xf]
  %v7228 = vld [vmem:[%s5693 + $0x188] sm:$0x1]
  %v7229 = vld [vmem:[%s5693 + $0x18c] sm:$0xe]
  %v7230 = vld [vmem:[%s5693 + $0x190] sm:$0xf]
  %v7231 = vld [vmem:[%s5693 + $0x194] sm:$0x1]
  %v7328 = vrot.slane %v7136, 5
  %v7329 = vrot.slane %v7328, 4
  %v7330 = vrot.slane %v7137, 5
  %v7331 = vsel %vm3160, %v7329, %v7330
  %v7332 = vrot.slane %v7330, 4
  %v7333 = vrot.slane %v7138, 5
  %v7334 = vsel %vm3160, %v7332, %v7333
  %v7335 = vrot.slane %v7139, 5
  %v7336 = vrot.slane %v7335, 4
  %v7337 = vrot.slane %v7140, 5
  %v7338 = vsel %vm3160, %v7336, %v7337
  %v7339 = vrot.slane %v7337, 4
  %v7340 = vrot.slane %v7141, 5
  %v7341 = vsel %vm3160, %v7339, %v7340
  %v7342 = vrot.slane %v7142, 5
  %v7343 = vrot.slane %v7342, 4
  %v7344 = vrot.slane %v7143, 5
  %v7345 = vsel %vm3160, %v7343, %v7344
  %v7346 = vrot.slane %v7344, 4
  %v7347 = vrot.slane %v7144, 5
  %v7348 = vsel %vm3160, %v7346, %v7347
  %v7349 = vrot.slane %v7145, 5
  %v7350 = vrot.slane %v7349, 4
  %v7351 = vrot.slane %v7146, 5
  %v7352 = vsel %vm3160, %v7350, %v7351
  %v7353 = vrot.slane %v7351, 4
  %v7354 = vrot.slane %v7147, 5
  %v7355 = vsel %vm3160, %v7353, %v7354
  %v7356 = vrot.slane %v7148, 5
  %v7357 = vrot.slane %v7356, 4
  %v7358 = vrot.slane %v7149, 5
  %v7359 = vsel %vm3160, %v7357, %v7358
  %v7360 = vrot.slane %v7358, 4
  %v7361 = vrot.slane %v7150, 5
  %v7362 = vsel %vm3160, %v7360, %v7361
  %v7363 = vrot.slane %v7151, 5
  %v7364 = vrot.slane %v7363, 4
  %v7365 = vrot.slane %v7152, 5
  %v7366 = vsel %vm3160, %v7364, %v7365
  %v7367 = vrot.slane %v7365, 4
  %v7368 = vrot.slane %v7153, 5
  %v7369 = vsel %vm3160, %v7367, %v7368
  %v7370 = vrot.slane %v7154, 5
  %v7371 = vrot.slane %v7370, 4
  %v7372 = vrot.slane %v7155, 5
  %v7373 = vsel %vm3160, %v7371, %v7372
  %v7374 = vrot.slane %v7372, 4
  %v7375 = vrot.slane %v7156, 5
  %v7376 = vsel %vm3160, %v7374, %v7375
  %v7377 = vrot.slane %v7157, 5
  %v7378 = vrot.slane %v7377, 4
  %v7379 = vrot.slane %v7158, 5
  %v7380 = vsel %vm3160, %v7378, %v7379
  %v7381 = vrot.slane %v7379, 4
  %v7382 = vrot.slane %v7159, 5
  %v7383 = vsel %vm3160, %v7381, %v7382
  %v7384 = vrot.slane %v7160, 5
  %v7385 = vrot.slane %v7384, 4
  %v7386 = vrot.slane %v7161, 5
  %v7387 = vsel %vm3160, %v7385, %v7386
  %v7388 = vrot.slane %v7386, 4
  %v7389 = vrot.slane %v7162, 5
  %v7390 = vsel %vm3160, %v7388, %v7389
  %v7391 = vrot.slane %v7163, 5
  %v7392 = vrot.slane %v7391, 4
  %v7393 = vrot.slane %v7164, 5
  %v7394 = vsel %vm3160, %v7392, %v7393
  %v7395 = vrot.slane %v7393, 4
  %v7396 = vrot.slane %v7165, 5
  %v7397 = vsel %vm3160, %v7395, %v7396
  %v7398 = vrot.slane %v7166, 5
  %v7399 = vrot.slane %v7398, 4
  %v7400 = vrot.slane %v7167, 5
  %v7401 = vsel %vm3160, %v7399, %v7400
  %v7402 = vrot.slane %v7400, 4
  %v7403 = vrot.slane %v7168, 5
  %v7404 = vsel %vm3160, %v7402, %v7403
  %v7405 = vrot.slane %v7169, 5
  %v7406 = vrot.slane %v7405, 4
  %v7407 = vrot.slane %v7170, 5
  %v7408 = vsel %vm3160, %v7406, %v7407
  %v7409 = vrot.slane %v7407, 4
  %v7410 = vrot.slane %v7171, 5
  %v7411 = vsel %vm3160, %v7409, %v7410
  %v7412 = vrot.slane %v7172, 5
  %v7413 = vrot.slane %v7412, 4
  %v7414 = vrot.slane %v7173, 5
  %v7415 = vsel %vm3160, %v7413, %v7414
  %v7416 = vrot.slane %v7414, 4
  %v7417 = vrot.slane %v7174, 5
  %v7418 = vsel %vm3160, %v7416, %v7417
  %v7419 = vrot.slane %v7175, 5
  %v7420 = vrot.slane %v7419, 4
  %v7421 = vrot.slane %v7176, 5
  %v7422 = vsel %vm3160, %v7420, %v7421
  %v7423 = vrot.slane %v7421, 4
  %v7424 = vrot.slane %v7177, 5
  %v7425 = vsel %vm3160, %v7423, %v7424
  %v7426 = vrot.slane %v7178, 5
  %v7427 = vrot.slane %v7426, 4
  %v7428 = vrot.slane %v7179, 5
  %v7429 = vsel %vm3160, %v7427, %v7428
  %v7430 = vrot.slane %v7428, 4
  %v7431 = vrot.slane %v7180, 5
  %v7432 = vsel %vm3160, %v7430, %v7431
  %v7433 = vrot.slane %v7181, 5
  %v7434 = vrot.slane %v7433, 4
  %v7435 = vrot.slane %v7182, 5
  %v7436 = vsel %vm3160, %v7434, %v7435
  %v7437 = vrot.slane %v7435, 4
  %v7438 = vrot.slane %v7183, 5
  %v7439 = vsel %vm3160, %v7437, %v7438
  %v7440 = vrot.slane %v7184, 5
  %v7441 = vrot.slane %v7440, 4
  %v7442 = vrot.slane %v7185, 5
  %v7443 = vsel %vm3160, %v7441, %v7442
  %v7444 = vrot.slane %v7442, 4
  %v7445 = vrot.slane %v7186, 5
  %v7446 = vsel %vm3160, %v7444, %v7445
  %v7447 = vrot.slane %v7187, 5
  %v7448 = vrot.slane %v7447, 4
  %v7449 = vrot.slane %v7188, 5
  %v7450 = vsel %vm3160, %v7448, %v7449
  %v7451 = vrot.slane %v7449, 4
  %v7452 = vrot.slane %v7189, 5
  %v7453 = vsel %vm3160, %v7451, %v7452
  %v7454 = vrot.slane %v7190, 5
  %v7455 = vrot.slane %v7454, 4
  %v7456 = vrot.slane %v7191, 5
  %v7457 = vsel %vm3160, %v7455, %v7456
  %v7458 = vrot.slane %v7456, 4
  %v7459 = vrot.slane %v7192, 5
  %v7460 = vsel %vm3160, %v7458, %v7459
  %v7461 = vrot.slane %v7193, 5
  %v7462 = vrot.slane %v7461, 4
  %v7463 = vrot.slane %v7194, 5
  %v7464 = vsel %vm3160, %v7462, %v7463
  %v7465 = vrot.slane %v7463, 4
  %v7466 = vrot.slane %v7195, 5
  %v7467 = vsel %vm3160, %v7465, %v7466
  %v7468 = vrot.slane %v7196, 5
  %v7469 = vrot.slane %v7468, 4
  %v7470 = vrot.slane %v7197, 5
  %v7471 = vsel %vm3160, %v7469, %v7470
  %v7472 = vrot.slane %v7470, 4
  %v7473 = vrot.slane %v7198, 5
  %v7474 = vsel %vm3160, %v7472, %v7473
  %v7475 = vrot.slane %v7199, 5
  %v7476 = vrot.slane %v7475, 4
  %v7477 = vrot.slane %v7200, 5
  %v7478 = vsel %vm3160, %v7476, %v7477
  %v7479 = vrot.slane %v7477, 4
  %v7480 = vrot.slane %v7201, 5
  %v7481 = vsel %vm3160, %v7479, %v7480
  %v7482 = vrot.slane %v7202, 5
  %v7483 = vrot.slane %v7482, 4
  %v7484 = vrot.slane %v7203, 5
  %v7485 = vsel %vm3160, %v7483, %v7484
  %v7486 = vrot.slane %v7484, 4
  %v7487 = vrot.slane %v7204, 5
  %v7488 = vsel %vm3160, %v7486, %v7487
  %v7489 = vrot.slane %v7205, 5
  %v7490 = vrot.slane %v7489, 4
  %v7491 = vrot.slane %v7206, 5
  %v7492 = vsel %vm3160, %v7490, %v7491
  %v7493 = vrot.slane %v7491, 4
  %v7494 = vrot.slane %v7207, 5
  %v7495 = vsel %vm3160, %v7493, %v7494
  %v7496 = vrot.slane %v7208, 5
  %v7497 = vrot.slane %v7496, 4
  %v7498 = vrot.slane %v7209, 5
  %v7499 = vsel %vm3160, %v7497, %v7498
  %v7500 = vrot.slane %v7498, 4
  %v7501 = vrot.slane %v7210, 5
  %v7502 = vsel %vm3160, %v7500, %v7501
  %v7503 = vrot.slane %v7211, 5
  %v7504 = vrot.slane %v7503, 4
  %v7505 = vrot.slane %v7212, 5
  %v7506 = vsel %vm3160, %v7504, %v7505
  %v7507 = vrot.slane %v7505, 4
  %v7508 = vrot.slane %v7213, 5
  %v7509 = vsel %vm3160, %v7507, %v7508
  %v7510 = vrot.slane %v7214, 5
  %v7511 = vrot.slane %v7510, 4
  %v7512 = vrot.slane %v7215, 5
  %v7513 = vsel %vm3160, %v7511, %v7512
  %v7514 = vrot.slane %v7512, 4
  %v7515 = vrot.slane %v7216, 5
  %v7516 = vsel %vm3160, %v7514, %v7515
  %v7517 = vrot.slane %v7217, 5
  %v7518 = vrot.slane %v7517, 4
  %v7519 = vrot.slane %v7218, 5
  %v7520 = vsel %vm3160, %v7518, %v7519
  %v7521 = vrot.slane %v7519, 4
  %v7522 = vrot.slane %v7219, 5
  %v7523 = vsel %vm3160, %v7521, %v7522
  %v7524 = vrot.slane %v7220, 5
  %v7525 = vrot.slane %v7524, 4
  %v7526 = vrot.slane %v7221, 5
  %v7527 = vsel %vm3160, %v7525, %v7526
  %v7528 = vrot.slane %v7526, 4
  %v7529 = vrot.slane %v7222, 5
  %v7530 = vsel %vm3160, %v7528, %v7529
  %v7531 = vrot.slane %v7223, 5
  %v7532 = vrot.slane %v7531, 4
  %v7533 = vrot.slane %v7224, 5
  %v7534 = vsel %vm3160, %v7532, %v7533
  %v7535 = vrot.slane %v7533, 4
  %v7536 = vrot.slane %v7225, 5
  %v7537 = vsel %vm3160, %v7535, %v7536
  %v7538 = vrot.slane %v7226, 5
  %v7539 = vrot.slane %v7538, 4
  %v7540 = vrot.slane %v7227, 5
  %v7541 = vsel %vm3160, %v7539, %v7540
  %v7542 = vrot.slane %v7540, 4
  %v7543 = vrot.slane %v7228, 5
  %v7544 = vsel %vm3160, %v7542, %v7543
  %v7545 = vrot.slane %v7229, 5
  %v7546 = vrot.slane %v7545, 4
  %v7547 = vrot.slane %v7230, 5
  %v7548 = vsel %vm3160, %v7546, %v7547
  %v7549 = vrot.slane %v7547, 4
  %v7550 = vrot.slane %v7231, 5
  %v7551 = vsel %vm3160, %v7549, %v7550
  %v7552 = vunpack.c.l.b16 %v7331
  %v7553 = vunpack.c.l.b16 %v7334
  %v7554 = vunpack.c.l.b16 %v7338
  %v7555 = vunpack.c.l.b16 %v7341
  %v7556 = vunpack.c.l.b16 %v7345
  %v7557 = vunpack.c.l.b16 %v7348
  %v7558 = vunpack.c.l.b16 %v7352
  %v7559 = vunpack.c.l.b16 %v7355
  %v7560 = vunpack.c.l.b16 %v7359
  %v7561 = vunpack.c.l.b16 %v7362
  %v7562 = vunpack.c.l.b16 %v7366
  %v7563 = vunpack.c.l.b16 %v7369
  %v7564 = vunpack.c.l.b16 %v7373
  %v7565 = vunpack.c.l.b16 %v7376
  %v7566 = vunpack.c.l.b16 %v7380
  %v7567 = vunpack.c.l.b16 %v7383
  %v7568 = vunpack.c.l.b16 %v7387
  %v7569 = vunpack.c.l.b16 %v7390
  %v7570 = vunpack.c.l.b16 %v7394
  %v7571 = vunpack.c.l.b16 %v7397
  %v7572 = vunpack.c.l.b16 %v7401
  %v7573 = vunpack.c.l.b16 %v7404
  %v7574 = vunpack.c.l.b16 %v7408
  %v7575 = vunpack.c.l.b16 %v7411
  %v7576 = vunpack.c.l.b16 %v7415
  %v7577 = vunpack.c.l.b16 %v7418
  %v7578 = vunpack.c.l.b16 %v7422
  %v7579 = vunpack.c.l.b16 %v7425
  %v7580 = vunpack.c.l.b16 %v7429
  %v7581 = vunpack.c.l.b16 %v7432
  %v7582 = vunpack.c.l.b16 %v7436
  %v7583 = vunpack.c.l.b16 %v7439
  %v7584 = vunpack.c.l.b16 %v7443
  %v7585 = vunpack.c.l.b16 %v7446
  %v7586 = vunpack.c.l.b16 %v7450
  %v7587 = vunpack.c.l.b16 %v7453
  %v7588 = vunpack.c.l.b16 %v7457
  %v7589 = vunpack.c.l.b16 %v7460
  %v7590 = vunpack.c.l.b16 %v7464
  %v7591 = vunpack.c.l.b16 %v7467
  %v7592 = vunpack.c.l.b16 %v7471
  %v7593 = vunpack.c.l.b16 %v7474
  %v7594 = vunpack.c.l.b16 %v7478
  %v7595 = vunpack.c.l.b16 %v7481
  %v7596 = vunpack.c.l.b16 %v7485
  %v7597 = vunpack.c.l.b16 %v7488
  %v7598 = vunpack.c.l.b16 %v7492
  %v7599 = vunpack.c.l.b16 %v7495
  %v7600 = vunpack.c.l.b16 %v7499
  %v7601 = vunpack.c.l.b16 %v7502
  %v7602 = vunpack.c.l.b16 %v7506
  %v7603 = vunpack.c.l.b16 %v7509
  %v7604 = vunpack.c.l.b16 %v7513
  %v7605 = vunpack.c.l.b16 %v7516
  %v7606 = vunpack.c.l.b16 %v7520
  %v7607 = vunpack.c.l.b16 %v7523
  %v7608 = vunpack.c.l.b16 %v7527
  %v7609 = vunpack.c.l.b16 %v7530
  %v7610 = vunpack.c.l.b16 %v7534
  %v7611 = vunpack.c.l.b16 %v7537
  %v7612 = vunpack.c.l.b16 %v7541
  %v7613 = vunpack.c.l.b16 %v7544
  %v7614 = vunpack.c.l.b16 %v7548
  %v7615 = vunpack.c.l.b16 %v7551
  %v7616 = vpack.c.b16 %v7553, %v7552
  %v7617 = vpack.c.b16 %v7555, %v7554
  %v7618 = vpack.c.b16 %v7557, %v7556
  %v7619 = vpack.c.b16 %v7559, %v7558
  %v7620 = vpack.c.b16 %v7561, %v7560
  %v7621 = vpack.c.b16 %v7563, %v7562
  %v7622 = vpack.c.b16 %v7565, %v7564
  %v7623 = vpack.c.b16 %v7567, %v7566
  %v7624 = vpack.c.b16 %v7569, %v7568
  %v7625 = vpack.c.b16 %v7571, %v7570
  %v7626 = vpack.c.b16 %v7573, %v7572
  %v7627 = vpack.c.b16 %v7575, %v7574
  %v7628 = vpack.c.b16 %v7577, %v7576
  %v7629 = vpack.c.b16 %v7579, %v7578
  %v7630 = vpack.c.b16 %v7581, %v7580
  %v7631 = vpack.c.b16 %v7583, %v7582
  %v7632 = vpack.c.b16 %v7585, %v7584
  %v7633 = vpack.c.b16 %v7587, %v7586
  %v7634 = vpack.c.b16 %v7589, %v7588
  %v7635 = vpack.c.b16 %v7591, %v7590
  %v7636 = vpack.c.b16 %v7593, %v7592
  %v7637 = vpack.c.b16 %v7595, %v7594
  %v7638 = vpack.c.b16 %v7597, %v7596
  %v7639 = vpack.c.b16 %v7599, %v7598
  %v7640 = vpack.c.b16 %v7601, %v7600
  %v7641 = vpack.c.b16 %v7603, %v7602
  %v7642 = vpack.c.b16 %v7605, %v7604
  %v7643 = vpack.c.b16 %v7607, %v7606
  %v7644 = vpack.c.b16 %v7609, %v7608
  %v7645 = vpack.c.b16 %v7611, %v7610
  %v7646 = vpack.c.b16 %v7613, %v7612
  %v7647 = vpack.c.b16 %v7615, %v7614
  %7648 = vrot.lane.b32.xlu0 %v7616, 32
  %v7649 = vpop.permute.xlu0 %7648
  %7650 = vrot.lane.b32.xlu0 %v7617, 32
  %v7651 = vpop.permute.xlu0 %7650
  %7652 = vrot.lane.b32.xlu0 %v7618, 32
  %v7653 = vpop.permute.xlu0 %7652
  %7654 = vrot.lane.b32.xlu0 %v7619, 32
  %v7655 = vpop.permute.xlu0 %7654
  %7656 = vrot.lane.b32.xlu0 %v7620, 32
  %v7657 = vpop.permute.xlu0 %7656
  %7658 = vrot.lane.b32.xlu0 %v7621, 32
  %v7659 = vpop.permute.xlu0 %7658
  %7660 = vrot.lane.b32.xlu0 %v7622, 32
  %v7661 = vpop.permute.xlu0 %7660
  %7662 = vrot.lane.b32.xlu0 %v7623, 32
  %v7663 = vpop.permute.xlu0 %7662
  %7664 = vrot.lane.b32.xlu0 %v7624, 32
  %v7665 = vpop.permute.xlu0 %7664
  %7666 = vrot.lane.b32.xlu0 %v7625, 32
  %v7667 = vpop.permute.xlu0 %7666
  %7668 = vrot.lane.b32.xlu0 %v7626, 32
  %v7669 = vpop.permute.xlu0 %7668
  %7670 = vrot.lane.b32.xlu0 %v7627, 32
  %v7671 = vpop.permute.xlu0 %7670
  %7672 = vrot.lane.b32.xlu0 %v7628, 32
  %v7673 = vpop.permute.xlu0 %7672
  %7674 = vrot.lane.b32.xlu0 %v7629, 32
  %v7675 = vpop.permute.xlu0 %7674
  %7676 = vrot.lane.b32.xlu0 %v7630, 32
  %v7677 = vpop.permute.xlu0 %7676
  %7678 = vrot.lane.b32.xlu0 %v7631, 32
  %v7679 = vpop.permute.xlu0 %7678
  %7680 = vrot.lane.b32.xlu0 %v7632, 32
  %v7681 = vpop.permute.xlu0 %7680
  %7682 = vrot.lane.b32.xlu0 %v7633, 32
  %v7683 = vpop.permute.xlu0 %7682
  %7684 = vrot.lane.b32.xlu0 %v7634, 32
  %v7685 = vpop.permute.xlu0 %7684
  %7686 = vrot.lane.b32.xlu0 %v7635, 32
  %v7687 = vpop.permute.xlu0 %7686
  %7688 = vrot.lane.b32.xlu0 %v7636, 32
  %v7689 = vpop.permute.xlu0 %7688
  %7690 = vrot.lane.b32.xlu0 %v7637, 32
  %v7691 = vpop.permute.xlu0 %7690
  %7692 = vrot.lane.b32.xlu0 %v7638, 32
  %v7693 = vpop.permute.xlu0 %7692
  %7694 = vrot.lane.b32.xlu0 %v7639, 32
  %v7695 = vpop.permute.xlu0 %7694
  %7696 = vrot.lane.b32.xlu0 %v7640, 32
  %v7697 = vpop.permute.xlu0 %7696
  %7698 = vrot.lane.b32.xlu0 %v7641, 32
  %v7699 = vpop.permute.xlu0 %7698
  %7700 = vrot.lane.b32.xlu0 %v7642, 32
  %v7701 = vpop.permute.xlu0 %7700
  %7702 = vrot.lane.b32.xlu0 %v7643, 32
  %v7703 = vpop.permute.xlu0 %7702
  %7704 = vrot.lane.b32.xlu0 %v7644, 32
  %v7705 = vpop.permute.xlu0 %7704
  %7706 = vrot.lane.b32.xlu0 %v7645, 32
  %v7707 = vpop.permute.xlu0 %7706
  %7708 = vrot.lane.b32.xlu0 %v7646, 32
  %v7709 = vpop.permute.xlu0 %7708
  %7710 = vrot.lane.b32.xlu0 %v7647, 32
  %v7711 = vpop.permute.xlu0 %7710
  %vm7744 = vcmask 294144
  %7745 = vst.msk [vmem:[#allocation3] sm:$0xff] %vm7744, %v7649
  %7746 = vst.msk [vmem:[#allocation3 + $0x8] sm:$0xff] %vm7744, %v7651
  %7747 = vst.msk [vmem:[#allocation3 + $0x10] sm:$0xff] %vm7744, %v7653
  %7748 = vst.msk [vmem:[#allocation3 + $0x18] sm:$0xff] %vm7744, %v7655
  %7749 = vst.msk [vmem:[#allocation3 + $0x20] sm:$0xff] %vm7744, %v7657
  %7750 = vst.msk [vmem:[#allocation3 + $0x28] sm:$0xff] %vm7744, %v7659
  %7751 = vst.msk [vmem:[#allocation3 + $0x30] sm:$0xff] %vm7744, %v7661
  %7752 = vst.msk [vmem:[#allocation3 + $0x38] sm:$0xff] %vm7744, %v7663
  %7753 = vst.msk [vmem:[#allocation3 + $0x40] sm:$0xff] %vm7744, %v7665
  %7754 = vst.msk [vmem:[#allocation3 + $0x48] sm:$0xff] %vm7744, %v7667
  %7755 = vst.msk [vmem:[#allocation3 + $0x50] sm:$0xff] %vm7744, %v7669
  %7756 = vst.msk [vmem:[#allocation3 + $0x58] sm:$0xff] %vm7744, %v7671
  %7757 = vst.msk [vmem:[#allocation3 + $0x60] sm:$0xff] %vm7744, %v7673
  %7758 = vst.msk [vmem:[#allocation3 + $0x68] sm:$0xff] %vm7744, %v7675
  %7759 = vst.msk [vmem:[#allocation3 + $0x70] sm:$0xff] %vm7744, %v7677
  %7760 = vst.msk [vmem:[#allocation3 + $0x78] sm:$0xff] %vm7744, %v7679
  %7761 = vst.msk [vmem:[#allocation3 + $0x80] sm:$0xff] %vm7744, %v7681
  %7762 = vst.msk [vmem:[#allocation3 + $0x88] sm:$0xff] %vm7744, %v7683
  %7763 = vst.msk [vmem:[#allocation3 + $0x90] sm:$0xff] %vm7744, %v7685
  %7764 = vst.msk [vmem:[#allocation3 + $0x98] sm:$0xff] %vm7744, %v7687
  %7765 = vst.msk [vmem:[#allocation3 + $0xa0] sm:$0xff] %vm7744, %v7689
  %7766 = vst.msk [vmem:[#allocation3 + $0xa8] sm:$0xff] %vm7744, %v7691
  %7767 = vst.msk [vmem:[#allocation3 + $0xb0] sm:$0xff] %vm7744, %v7693
  %7768 = vst.msk [vmem:[#allocation3 + $0xb8] sm:$0xff] %vm7744, %v7695
  %7769 = vst.msk [vmem:[#allocation3 + $0xc0] sm:$0xff] %vm7744, %v7697
  %7770 = vst.msk [vmem:[#allocation3 + $0xc8] sm:$0xff] %vm7744, %v7699
  %7771 = vst.msk [vmem:[#allocation3 + $0xd0] sm:$0xff] %vm7744, %v7701
  %7772 = vst.msk [vmem:[#allocation3 + $0xd8] sm:$0xff] %vm7744, %v7703
  %7773 = vst.msk [vmem:[#allocation3 + $0xe0] sm:$0xff] %vm7744, %v7705
  %7774 = vst.msk [vmem:[#allocation3 + $0xe8] sm:$0xff] %vm7744, %v7707
  %7775 = vst.msk [vmem:[#allocation3 + $0xf0] sm:$0xff] %vm7744, %v7709
  %7776 = vst.msk [vmem:[#allocation3 + $0xf8] sm:$0xff] %vm7744, %v7711
  %v7777 = vld [vmem:[#allocation3] sm:$0xff]
  %v7778 = vld [vmem:[#allocation3 + $0x8] sm:$0xff]
  %v7779 = vld [vmem:[#allocation3 + $0x10] sm:$0xff]
  %v7780 = vld [vmem:[#allocation3 + $0x18] sm:$0xff]
  %v7781 = vld [vmem:[#allocation3 + $0x20] sm:$0xff]
  %v7782 = vld [vmem:[#allocation3 + $0x28] sm:$0xff]
  %v7783 = vld [vmem:[#allocation3 + $0x30] sm:$0xff]
  %v7784 = vld [vmem:[#allocation3 + $0x38] sm:$0xff]
  %v7785 = vld [vmem:[#allocation3 + $0x40] sm:$0xff]
  %v7786 = vld [vmem:[#allocation3 + $0x48] sm:$0xff]
  %v7787 = vld [vmem:[#allocation3 + $0x50] sm:$0xff]
  %v7788 = vld [vmem:[#allocation3 + $0x58] sm:$0xff]
  %v7789 = vld [vmem:[#allocation3 + $0x60] sm:$0xff]
  %v7790 = vld [vmem:[#allocation3 + $0x68] sm:$0xff]
  %v7791 = vld [vmem:[#allocation3 + $0x70] sm:$0xff]
  %v7792 = vld [vmem:[#allocation3 + $0x78] sm:$0xff]
  %v7793 = vld [vmem:[#allocation3 + $0x80] sm:$0xff]
  %v7794 = vld [vmem:[#allocation3 + $0x88] sm:$0xff]
  %v7795 = vld [vmem:[#allocation3 + $0x90] sm:$0xff]
  %v7796 = vld [vmem:[#allocation3 + $0x98] sm:$0xff]
  %v7797 = vld [vmem:[#allocation3 + $0xa0] sm:$0xff]
  %v7798 = vld [vmem:[#allocation3 + $0xa8] sm:$0xff]
  %v7799 = vld [vmem:[#allocation3 + $0xb0] sm:$0xff]
  %v7800 = vld [vmem:[#allocation3 + $0xb8] sm:$0xff]
  %v7801 = vld [vmem:[#allocation3 + $0xc0] sm:$0xff]
  %v7802 = vld [vmem:[#allocation3 + $0xc8] sm:$0xff]
  %v7803 = vld [vmem:[#allocation3 + $0xd0] sm:$0xff]
  %v7804 = vld [vmem:[#allocation3 + $0xd8] sm:$0xff]
  %v7805 = vld [vmem:[#allocation3 + $0xe0] sm:$0xff]
  %v7806 = vld [vmem:[#allocation3 + $0xe8] sm:$0xff]
  %v7807 = vld [vmem:[#allocation3 + $0xf0] sm:$0xff]
  %v7808 = vld [vmem:[#allocation3 + $0xf8] sm:$0xff]
  %v7809 = vld [vmem:[%s3] sm:$0xf]
  %v7810 = vld [vmem:[%s3 + $0x4] sm:$0xf]
  %v7811 = vld [vmem:[%s3 + $0x8] sm:$0xf]
  %v7812 = vld [vmem:[%s3 + $0xc] sm:$0xf]
  %v7813 = vld [vmem:[%s3 + $0x10] sm:$0x3]
  %v7819 = vunpack.c.l.b16 %v7809
  %v7820 = vunpack.c.l.b16 %v7810
  %v7821 = vunpack.c.l.b16 %v7811
  %v7822 = vunpack.c.l.b16 %v7812
  %v7823 = vunpack.c.l.b16 %v7813
  %v7824 = vpack.c.b16 %v7820, %v7819
  %v7825 = vpack.c.b16 %v7822, %v7821
  %v7826 = vpack.c.b16 %v7823, %v7823
  %vm7829 = vcmask 293888
  %v7831 = vsel %vm7829, %v7777, 0
  %v7834 = vsel %vm7829, %v7778, 0
  %v7837 = vsel %vm7829, %v7779, 0
  %v7840 = vsel %vm7829, %v7780, 0
  %v7843 = vsel %vm7829, %v7781, 0
  %v7846 = vsel %vm7829, %v7782, 0
  %v7849 = vsel %vm7829, %v7783, 0
  %v7852 = vsel %vm7829, %v7784, 0
  %v7855 = vsel %vm7829, %v7785, 0
  %v7858 = vsel %vm7829, %v7786, 0
  %v7861 = vsel %vm7829, %v7787, 0
  %v7864 = vsel %vm7829, %v7788, 0
  %v7867 = vsel %vm7829, %v7789, 0
  %v7870 = vsel %vm7829, %v7790, 0
  %v7873 = vsel %vm7829, %v7791, 0
  %v7876 = vsel %vm7829, %v7792, 0
  %v7879 = vsel %vm7829, %v7793, 0
  %v7882 = vsel %vm7829, %v7794, 0
  %v7885 = vsel %vm7829, %v7795, 0
  %v7888 = vsel %vm7829, %v7796, 0
  %v7891 = vsel %vm7829, %v7797, 0
  %v7894 = vsel %vm7829, %v7798, 0
  %v7897 = vsel %vm7829, %v7799, 0
  %v7900 = vsel %vm7829, %v7800, 0
  %v7903 = vsel %vm7829, %v7801, 0
  %v7906 = vsel %vm7829, %v7802, 0
  %v7909 = vsel %vm7829, %v7803, 0
  %v7912 = vsel %vm7829, %v7804, 0
  %v7915 = vsel %vm7829, %v7805, 0
  %v7918 = vsel %vm7829, %v7806, 0
  %v7921 = vsel %vm7829, %v7807, 0
  %v7924 = vsel %vm7829, %v7808, 0
  %vm7926 = vcmask 1041408
  %v7928 = vsel %vm7926, %v7826, 0
  %7930 = vmatprep.subr.bf16.mxu0 0
  %7931 = vmatpush1.bf16.msra.mxu0 %v7824
  %7932 = vmatprep.subr.bf16.mxu0 0
  %7933 = vmatpush1.bf16.msra.mxu0 %v7825
  %7934 = vmatprep.subr.bf16.mxu0 0
  %7935 = vmatpush1.bf16.msra.mxu0 %v7928
  %7936 = vmatprep.subr.bf16.mxu0 0
  %7937 = vmatpush1.bf16.msra.mxu0 0
  %7938 = vmatprep.subr.bf16.mxu0 0
  %7939 = vmatpush1.bf16.msra.mxu0 0
  %7940 = vmatprep.subr.bf16.mxu0 0
  %7941 = vmatpush1.bf16.msra.mxu0 0
  %7942 = vmatprep.subr.bf16.mxu0 0
  %7943 = vmatpush1.bf16.msra.mxu0 0
  %7944 = vmatprep.subr.bf16.mxu0 0
  %7945 = vmatpush1.bf16.msra.mxu0 0
  %7946 = vmatprep.subr.bf16.mxu0 0
  %7947 = vmatpush1.bf16.msra.mxu0 0
  %7948 = vmatprep.subr.bf16.mxu0 0
  %7949 = vmatpush1.bf16.msra.mxu0 0
  %7950 = vmatprep.subr.bf16.mxu0 0
  %7951 = vmatpush1.bf16.msra.mxu0 0
  %7952 = vmatprep.subr.bf16.mxu0 0
  %7953 = vmatpush1.bf16.msra.mxu0 0
  %7954 = vmatprep.subr.bf16.mxu0 0
  %7955 = vmatpush1.bf16.msra.mxu0 0
  %7956 = vmatprep.subr.bf16.mxu0 0
  %7957 = vmatpush1.bf16.msra.mxu0 0
  %7958 = vmatprep.subr.bf16.mxu0 0
  %7959 = vmatpush1.bf16.msra.mxu0 0
  %7960 = vmatprep.subr.bf16.mxu0 0
  %7961 = vmatpush1.bf16.msra.mxu0 0
  %7962 = vmatprep.mubr.bf16.mxu0 0
  %7963 = vmatmul.mubr.bf16.gmra.mrb[0].mxu0 %v7831
  %v7964 = vpop.f32.mrb[0].mxu0
  %v7965 = vadd.f32 0.0, %v7964
  %v7966 = vpop.f32.mrb[0].mxu0
  %v7967 = vpop.f32.mrb[0].mxu0
  %v7968 = vadd.f32 0.0, %v7967
  %v7969 = vpop.f32.mrb[0].mxu0
  %7970 = vmatprep.mubr.bf16.mxu0 0
  %7971 = vmatmul.mubr.bf16.gmra.mrb[0].mxu0 %v7834
  %v7972 = vpop.f32.mrb[0].mxu0
  %v7973 = vadd.f32 0.0, %v7972
  %v7974 = vpop.f32.mrb[0].mxu0
  %v7975 = vpop.f32.mrb[0].mxu0
  %v7976 = vadd.f32 0.0, %v7975
  %v7977 = vpop.f32.mrb[0].mxu0
  %7978 = vmatprep.mubr.bf16.mxu0 0
  %7979 = vmatmul.mubr.bf16.gmra.mrb[0].mxu0 %v7837
  %v7980 = vpop.f32.mrb[0].mxu0
  %v7981 = vadd.f32 0.0, %v7980
  %v7982 = vpop.f32.mrb[0].mxu0
  %v7983 = vpop.f32.mrb[0].mxu0
  %v7984 = vadd.f32 0.0, %v7983
  %v7985 = vpop.f32.mrb[0].mxu0
  %7986 = vmatprep.mubr.bf16.mxu0 0
  %7987 = vmatmul.mubr.bf16.gmra.mrb[0].mxu0 %v7840
  %v7988 = vpop.f32.mrb[0].mxu0
  %v7989 = vadd.f32 0.0, %v7988
  %v7990 = vpop.f32.mrb[0].mxu0
  %v7991 = vpop.f32.mrb[0].mxu0
  %v7992 = vadd.f32 0.0, %v7991
  %v7993 = vpop.f32.mrb[0].mxu0
  %7994 = vmatprep.mubr.bf16.mxu0 0
  %7995 = vmatmul.mubr.bf16.gmra.mrb[0].mxu0 %v7843
  %v7996 = vpop.f32.mrb[0].mxu0
  %v7997 = vadd.f32 0.0, %v7996
  %v7998 = vpop.f32.mrb[0].mxu0
  %v7999 = vpop.f32.mrb[0].mxu0
  %v8000 = vadd.f32 0.0, %v7999
  %v8001 = vpop.f32.mrb[0].mxu0
  %8002 = vmatprep.mubr.bf16.mxu0 0
  %8003 = vmatmul.mubr.bf16.gmra.mrb[0].mxu0 %v7846
  %v8004 = vpop.f32.mrb[0].mxu0
  %v8005 = vadd.f32 0.0, %v8004
  %v8006 = vpop.f32.mrb[0].mxu0
  %v8007 = vpop.f32.mrb[0].mxu0
  %v8008 = vadd.f32 0.0, %v8007
  %v8009 = vpop.f32.mrb[0].mxu0
  %8010 = vmatprep.mubr.bf16.mxu0 0
  %8011 = vmatmul.mubr.bf16.gmra.mrb[0].mxu0 %v7849
  %v8012 = vpop.f32.mrb[0].mxu0
  %v8013 = vadd.f32 0.0, %v8012
  %v8014 = vpop.f32.mrb[0].mxu0
  %v8015 = vpop.f32.mrb[0].mxu0
  %v8016 = vadd.f32 0.0, %v8015
  %v8017 = vpop.f32.mrb[0].mxu0
  %8018 = vmatprep.mubr.bf16.mxu0 0
  %8019 = vmatmul.mubr.bf16.gmra.mrb[0].mxu0 %v7852
  %v8020 = vpop.f32.mrb[0].mxu0
  %v8021 = vadd.f32 0.0, %v8020
  %v8022 = vpop.f32.mrb[0].mxu0
  %v8023 = vpop.f32.mrb[0].mxu0
  %v8024 = vadd.f32 0.0, %v8023
  %v8025 = vpop.f32.mrb[0].mxu0
  %8026 = vmatprep.mubr.bf16.mxu0 0
  %8027 = vmatmul.mubr.bf16.gmra.mrb[0].mxu0 %v7855
  %v8028 = vpop.f32.mrb[0].mxu0
  %v8029 = vadd.f32 0.0, %v8028
  %v8030 = vpop.f32.mrb[0].mxu0
  %v8031 = vpop.f32.mrb[0].mxu0
  %v8032 = vadd.f32 0.0, %v8031
  %v8033 = vpop.f32.mrb[0].mxu0
  %8034 = vmatprep.mubr.bf16.mxu0 0
  %8035 = vmatmul.mubr.bf16.gmra.mrb[0].mxu0 %v7858
  %v8036 = vpop.f32.mrb[0].mxu0
  %v8037 = vadd.f32 0.0, %v8036
  %v8038 = vpop.f32.mrb[0].mxu0
  %v8039 = vpop.f32.mrb[0].mxu0
  %v8040 = vadd.f32 0.0, %v8039
  %v8041 = vpop.f32.mrb[0].mxu0
  %8042 = vmatprep.mubr.bf16.mxu0 0
  %8043 = vmatmul.mubr.bf16.gmra.mrb[0].mxu0 %v7861
  %v8044 = vpop.f32.mrb[0].mxu0
  %v8045 = vadd.f32 0.0, %v8044
  %v8046 = vpop.f32.mrb[0].mxu0
  %v8047 = vpop.f32.mrb[0].mxu0
  %v8048 = vadd.f32 0.0, %v8047
  %v8049 = vpop.f32.mrb[0].mxu0
  %8050 = vmatprep.mubr.bf16.mxu0 0
  %8051 = vmatmul.mubr.bf16.gmra.mrb[0].mxu0 %v7864
  %v8052 = vpop.f32.mrb[0].mxu0
  %v8053 = vadd.f32 0.0, %v8052
  %v8054 = vpop.f32.mrb[0].mxu0
  %v8055 = vpop.f32.mrb[0].mxu0
  %v8056 = vadd.f32 0.0, %v8055
  %v8057 = vpop.f32.mrb[0].mxu0
  %8058 = vmatprep.mubr.bf16.mxu0 0
  %8059 = vmatmul.mubr.bf16.gmra.mrb[0].mxu0 %v7867
  %v8060 = vpop.f32.mrb[0].mxu0
  %v8061 = vadd.f32 0.0, %v8060
  %v8062 = vpop.f32.mrb[0].mxu0
  %v8063 = vpop.f32.mrb[0].mxu0
  %v8064 = vadd.f32 0.0, %v8063
  %v8065 = vpop.f32.mrb[0].mxu0
  %8066 = vmatprep.mubr.bf16.mxu0 0
  %8067 = vmatmul.mubr.bf16.gmra.mrb[0].mxu0 %v7870
  %v8068 = vpop.f32.mrb[0].mxu0
  %v8069 = vadd.f32 0.0, %v8068
  %v8070 = vpop.f32.mrb[0].mxu0
  %v8071 = vpop.f32.mrb[0].mxu0
  %v8072 = vadd.f32 0.0, %v8071
  %v8073 = vpop.f32.mrb[0].mxu0
  %8074 = vmatprep.mubr.bf16.mxu0 0
  %8075 = vmatmul.mubr.bf16.gmra.mrb[0].mxu0 %v7873
  %v8076 = vpop.f32.mrb[0].mxu0
  %v8077 = vadd.f32 0.0, %v8076
  %v8078 = vpop.f32.mrb[0].mxu0
  %v8079 = vpop.f32.mrb[0].mxu0
  %v8080 = vadd.f32 0.0, %v8079
  %v8081 = vpop.f32.mrb[0].mxu0
  %8082 = vmatprep.mubr.bf16.mxu0 0
  %8083 = vmatmul.mubr.bf16.gmra.mrb[0].mxu0 %v7876
  %v8084 = vpop.f32.mrb[0].mxu0
  %v8085 = vadd.f32 0.0, %v8084
  %v8086 = vpop.f32.mrb[0].mxu0
  %v8087 = vpop.f32.mrb[0].mxu0
  %v8088 = vadd.f32 0.0, %v8087
  %v8089 = vpop.f32.mrb[0].mxu0
  %8090 = vmatprep.mubr.bf16.mxu0 0
  %8091 = vmatmul.mubr.bf16.gmra.mrb[0].mxu0 %v7879
  %v8092 = vpop.f32.mrb[0].mxu0
  %v8093 = vadd.f32 0.0, %v8092
  %v8094 = vpop.f32.mrb[0].mxu0
  %v8095 = vpop.f32.mrb[0].mxu0
  %v8096 = vadd.f32 0.0, %v8095
  %v8097 = vpop.f32.mrb[0].mxu0
  %8098 = vmatprep.mubr.bf16.mxu0 0
  %8099 = vmatmul.mubr.bf16.gmra.mrb[0].mxu0 %v7882
  %v8100 = vpop.f32.mrb[0].mxu0
  %v8101 = vadd.f32 0.0, %v8100
  %v8102 = vpop.f32.mrb[0].mxu0
  %v8103 = vpop.f32.mrb[0].mxu0
  %v8104 = vadd.f32 0.0, %v8103
  %v8105 = vpop.f32.mrb[0].mxu0
  %8106 = vmatprep.mubr.bf16.mxu0 0
  %8107 = vmatmul.mubr.bf16.gmra.mrb[0].mxu0 %v7885
  %v8108 = vpop.f32.mrb[0].mxu0
  %v8109 = vadd.f32 0.0, %v8108
  %v8110 = vpop.f32.mrb[0].mxu0
  %v8111 = vpop.f32.mrb[0].mxu0
  %v8112 = vadd.f32 0.0, %v8111
  %v8113 = vpop.f32.mrb[0].mxu0
  %8114 = vmatprep.mubr.bf16.mxu0 0
  %8115 = vmatmul.mubr.bf16.gmra.mrb[0].mxu0 %v7888
  %v8116 = vpop.f32.mrb[0].mxu0
  %v8117 = vadd.f32 0.0, %v8116
  %v8118 = vpop.f32.mrb[0].mxu0
  %v8119 = vpop.f32.mrb[0].mxu0
  %v8120 = vadd.f32 0.0, %v8119
  %v8121 = vpop.f32.mrb[0].mxu0
  %8122 = vmatprep.mubr.bf16.mxu0 0
  %8123 = vmatmul.mubr.bf16.gmra.mrb[0].mxu0 %v7891
  %v8124 = vpop.f32.mrb[0].mxu0
  %v8125 = vadd.f32 0.0, %v8124
  %v8126 = vpop.f32.mrb[0].mxu0
  %v8127 = vpop.f32.mrb[0].mxu0
  %v8128 = vadd.f32 0.0, %v8127
  %v8129 = vpop.f32.mrb[0].mxu0
  %8130 = vmatprep.mubr.bf16.mxu0 0
  %8131 = vmatmul.mubr.bf16.gmra.mrb[0].mxu0 %v7894
  %v8132 = vpop.f32.mrb[0].mxu0
  %v8133 = vadd.f32 0.0, %v8132
  %v8134 = vpop.f32.mrb[0].mxu0
  %v8135 = vpop.f32.mrb[0].mxu0
  %v8136 = vadd.f32 0.0, %v8135
  %v8137 = vpop.f32.mrb[0].mxu0
  %8138 = vmatprep.mubr.bf16.mxu0 0
  %8139 = vmatmul.mubr.bf16.gmra.mrb[0].mxu0 %v7897
  %v8140 = vpop.f32.mrb[0].mxu0
  %v8141 = vadd.f32 0.0, %v8140
  %v8142 = vpop.f32.mrb[0].mxu0
  %v8143 = vpop.f32.mrb[0].mxu0
  %v8144 = vadd.f32 0.0, %v8143
  %v8145 = vpop.f32.mrb[0].mxu0
  %8146 = vmatprep.mubr.bf16.mxu0 0
  %8147 = vmatmul.mubr.bf16.gmra.mrb[0].mxu0 %v7900
  %v8148 = vpop.f32.mrb[0].mxu0
  %v8149 = vadd.f32 0.0, %v8148
  %v8150 = vpop.f32.mrb[0].mxu0
  %v8151 = vpop.f32.mrb[0].mxu0
  %v8152 = vadd.f32 0.0, %v8151
  %v8153 = vpop.f32.mrb[0].mxu0
  %8154 = vmatprep.mubr.bf16.mxu0 0
  %8155 = vmatmul.mubr.bf16.gmra.mrb[0].mxu0 %v7903
  %v8156 = vpop.f32.mrb[0].mxu0
  %v8157 = vadd.f32 0.0, %v8156
  %v8158 = vpop.f32.mrb[0].mxu0
  %v8159 = vpop.f32.mrb[0].mxu0
  %v8160 = vadd.f32 0.0, %v8159
  %v8161 = vpop.f32.mrb[0].mxu0
  %8162 = vmatprep.mubr.bf16.mxu0 0
  %8163 = vmatmul.mubr.bf16.gmra.mrb[0].mxu0 %v7906
  %v8164 = vpop.f32.mrb[0].mxu0
  %v8165 = vadd.f32 0.0, %v8164
  %v8166 = vpop.f32.mrb[0].mxu0
  %v8167 = vpop.f32.mrb[0].mxu0
  %v8168 = vadd.f32 0.0, %v8167
  %v8169 = vpop.f32.mrb[0].mxu0
  %8170 = vmatprep.mubr.bf16.mxu0 0
  %8171 = vmatmul.mubr.bf16.gmra.mrb[0].mxu0 %v7909
  %v8172 = vpop.f32.mrb[0].mxu0
  %v8173 = vadd.f32 0.0, %v8172
  %v8174 = vpop.f32.mrb[0].mxu0
  %v8175 = vpop.f32.mrb[0].mxu0
  %v8176 = vadd.f32 0.0, %v8175
  %v8177 = vpop.f32.mrb[0].mxu0
  %8178 = vmatprep.mubr.bf16.mxu0 0
  %8179 = vmatmul.mubr.bf16.gmra.mrb[0].mxu0 %v7912
  %v8180 = vpop.f32.mrb[0].mxu0
  %v8181 = vadd.f32 0.0, %v8180
  %v8182 = vpop.f32.mrb[0].mxu0
  %v8183 = vpop.f32.mrb[0].mxu0
  %v8184 = vadd.f32 0.0, %v8183
  %v8185 = vpop.f32.mrb[0].mxu0
  %8186 = vmatprep.mubr.bf16.mxu0 0
  %8187 = vmatmul.mubr.bf16.gmra.mrb[0].mxu0 %v7915
  %v8188 = vpop.f32.mrb[0].mxu0
  %v8189 = vadd.f32 0.0, %v8188
  %v8190 = vpop.f32.mrb[0].mxu0
  %v8191 = vpop.f32.mrb[0].mxu0
  %v8192 = vadd.f32 0.0, %v8191
  %v8193 = vpop.f32.mrb[0].mxu0
  %8194 = vmatprep.mubr.bf16.mxu0 0
  %8195 = vmatmul.mubr.bf16.gmra.mrb[0].mxu0 %v7918
  %v8196 = vpop.f32.mrb[0].mxu0
  %v8197 = vadd.f32 0.0, %v8196
  %v8198 = vpop.f32.mrb[0].mxu0
  %v8199 = vpop.f32.mrb[0].mxu0
  %v8200 = vadd.f32 0.0, %v8199
  %v8201 = vpop.f32.mrb[0].mxu0
  %8202 = vmatprep.mubr.bf16.mxu0 0
  %8203 = vmatmul.mubr.bf16.gmra.mrb[0].mxu0 %v7921
  %v8204 = vpop.f32.mrb[0].mxu0
  %v8205 = vadd.f32 0.0, %v8204
  %v8206 = vpop.f32.mrb[0].mxu0
  %v8207 = vpop.f32.mrb[0].mxu0
  %v8208 = vadd.f32 0.0, %v8207
  %v8209 = vpop.f32.mrb[0].mxu0
  %8210 = vmatprep.mubr.bf16.mxu0 0
  %8211 = vmatmul.mubr.bf16.gmra.mrb[0].mxu0 %v7924
  %v8212 = vpop.f32.mrb[0].mxu0
  %v8213 = vadd.f32 0.0, %v8212
  %v8214 = vpop.f32.mrb[0].mxu0
  %v8215 = vpop.f32.mrb[0].mxu0
  %v8216 = vadd.f32 0.0, %v8215
  %v8217 = vpop.f32.mrb[0].mxu0
  %8218 = vdwg.mxu0
  %vm8219 = vcmask 64512
  %8220 = vst.msk [vmem:[%s4] sm:$0xff] %vm8219, %v7965
  %8221 = vst.msk [vmem:[%s4 + $0x8] sm:$0xff] %vm8219, %v7968
  %8222 = vst.msk [vmem:[%s4 + $0x10] sm:$0xff] %vm8219, %v7973
  %8223 = vst.msk [vmem:[%s4 + $0x18] sm:$0xff] %vm8219, %v7976
  %8224 = vst.msk [vmem:[%s4 + $0x20] sm:$0xff] %vm8219, %v7981
  %8225 = vst.msk [vmem:[%s4 + $0x28] sm:$0xff] %vm8219, %v7984
  %8226 = vst.msk [vmem:[%s4 + $0x30] sm:$0xff] %vm8219, %v7989
  %8227 = vst.msk [vmem:[%s4 + $0x38] sm:$0xff] %vm8219, %v7992
  %8228 = vst.msk [vmem:[%s4 + $0x40] sm:$0xff] %vm8219, %v7997
  %8229 = vst.msk [vmem:[%s4 + $0x48] sm:$0xff] %vm8219, %v8000
  %8230 = vst.msk [vmem:[%s4 + $0x50] sm:$0xff] %vm8219, %v8005
  %8231 = vst.msk [vmem:[%s4 + $0x58] sm:$0xff] %vm8219, %v8008
  %8232 = vst.msk [vmem:[%s4 + $0x60] sm:$0xff] %vm8219, %v8013
  %8233 = vst.msk [vmem:[%s4 + $0x68] sm:$0xff] %vm8219, %v8016
  %8234 = vst.msk [vmem:[%s4 + $0x70] sm:$0xff] %vm8219, %v8021
  %8235 = vst.msk [vmem:[%s4 + $0x78] sm:$0xff] %vm8219, %v8024
  %8236 = vst.msk [vmem:[%s4 + $0x80] sm:$0xff] %vm8219, %v8029
  %8237 = vst.msk [vmem:[%s4 + $0x88] sm:$0xff] %vm8219, %v8032
  %8238 = vst.msk [vmem:[%s4 + $0x90] sm:$0xff] %vm8219, %v8037
  %8239 = vst.msk [vmem:[%s4 + $0x98] sm:$0xff] %vm8219, %v8040
  %8240 = vst.msk [vmem:[%s4 + $0xa0] sm:$0xff] %vm8219, %v8045
  %8241 = vst.msk [vmem:[%s4 + $0xa8] sm:$0xff] %vm8219, %v8048
  %8242 = vst.msk [vmem:[%s4 + $0xb0] sm:$0xff] %vm8219, %v8053
  %8243 = vst.msk [vmem:[%s4 + $0xb8] sm:$0xff] %vm8219, %v8056
  %8244 = vst.msk [vmem:[%s4 + $0xc0] sm:$0xff] %vm8219, %v8061
  %8245 = vst.msk [vmem:[%s4 + $0xc8] sm:$0xff] %vm8219, %v8064
  %8246 = vst.msk [vmem:[%s4 + $0xd0] sm:$0xff] %vm8219, %v8069
  %8247 = vst.msk [vmem:[%s4 + $0xd8] sm:$0xff] %vm8219, %v8072
  %8248 = vst.msk [vmem:[%s4 + $0xe0] sm:$0xff] %vm8219, %v8077
  %8249 = vst.msk [vmem:[%s4 + $0xe8] sm:$0xff] %vm8219, %v8080
  %8250 = vst.msk [vmem:[%s4 + $0xf0] sm:$0xff] %vm8219, %v8085
  %8251 = vst.msk [vmem:[%s4 + $0xf8] sm:$0xff] %vm8219, %v8088
  %8252 = vst.msk [vmem:[%s4 + $0x100] sm:$0xff] %vm8219, %v8093
  %8253 = vst.msk [vmem:[%s4 + $0x108] sm:$0xff] %vm8219, %v8096
  %8254 = vst.msk [vmem:[%s4 + $0x110] sm:$0xff] %vm8219, %v8101
  %8255 = vst.msk [vmem:[%s4 + $0x118] sm:$0xff] %vm8219, %v8104
  %8256 = vst.msk [vmem:[%s4 + $0x120] sm:$0xff] %vm8219, %v8109
  %8257 = vst.msk [vmem:[%s4 + $0x128] sm:$0xff] %vm8219, %v8112
  %8258 = vst.msk [vmem:[%s4 + $0x130] sm:$0xff] %vm8219, %v8117
  %8259 = vst.msk [vmem:[%s4 + $0x138] sm:$0xff] %vm8219, %v8120
  %8260 = vst.msk [vmem:[%s4 + $0x140] sm:$0xff] %vm8219, %v8125
  %8261 = vst.msk [vmem:[%s4 + $0x148] sm:$0xff] %vm8219, %v8128
  %8262 = vst.msk [vmem:[%s4 + $0x150] sm:$0xff] %vm8219, %v8133
  %8263 = vst.msk [vmem:[%s4 + $0x158] sm:$0xff] %vm8219, %v8136
  %8264 = vst.msk [vmem:[%s4 + $0x160] sm:$0xff] %vm8219, %v8141
  %8265 = vst.msk [vmem:[%s4 + $0x168] sm:$0xff] %vm8219, %v8144
  %8266 = vst.msk [vmem:[%s4 + $0x170] sm:$0xff] %vm8219, %v8149
  %8267 = vst.msk [vmem:[%s4 + $0x178] sm:$0xff] %vm8219, %v8152
  %8268 = vst.msk [vmem:[%s4 + $0x180] sm:$0xff] %vm8219, %v8157
  %8269 = vst.msk [vmem:[%s4 + $0x188] sm:$0xff] %vm8219, %v8160
  %8270 = vst.msk [vmem:[%s4 + $0x190] sm:$0xff] %vm8219, %v8165
  %8271 = vst.msk [vmem:[%s4 + $0x198] sm:$0xff] %vm8219, %v8168
  %8272 = vst.msk [vmem:[%s4 + $0x1a0] sm:$0xff] %vm8219, %v8173
  %8273 = vst.msk [vmem:[%s4 + $0x1a8] sm:$0xff] %vm8219, %v8176
  %8274 = vst.msk [vmem:[%s4 + $0x1b0] sm:$0xff] %vm8219, %v8181
  %8275 = vst.msk [vmem:[%s4 + $0x1b8] sm:$0xff] %vm8219, %v8184
  %8276 = vst.msk [vmem:[%s4 + $0x1c0] sm:$0xff] %vm8219, %v8189
  %8277 = vst.msk [vmem:[%s4 + $0x1c8] sm:$0xff] %vm8219, %v8192
  %8278 = vst.msk [vmem:[%s4 + $0x1d0] sm:$0xff] %vm8219, %v8197
  %8279 = vst.msk [vmem:[%s4 + $0x1d8] sm:$0xff] %vm8219, %v8200
  %8280 = vst.msk [vmem:[%s4 + $0x1e0] sm:$0xff] %vm8219, %v8205
  %8281 = vst.msk [vmem:[%s4 + $0x1e8] sm:$0xff] %vm8219, %v8208
  %8282 = vst.msk [vmem:[%s4 + $0x1f0] sm:$0xff] %vm8219, %v8213
  %8283 = vst.msk [vmem:[%s4 + $0x1f8] sm:$0xff] %vm8219, %v8216
  // Predicated region
  $region18: #{tpu_custom_call.1} parent=0 // pred_check
    _
  $region19: #{tpu_custom_call.1} parent=0 // pred_check_branch
    %8285 = sbr.rel (0) target = $region21
  $region20: #{tpu_custom_call.1} parent=0 // pred_region
    _
  $region21: #{tpu_custom_call.1} parent=0 // pred_fallthru
    _
  // Predicated region
  $region22: #{tpu_custom_call.1} parent=0 // pred_check
    _
  $region23: #{tpu_custom_call.1} parent=0 // pred_check_branch
    %8287 = sbr.rel (0) target = $region25
  $region24: #{tpu_custom_call.1} parent=0 // pred_region
    _
  $region25: #{tpu_custom_call.1} parent=0 // pred_fallthru
    _

</llo_original>
